<compile_context>
chip_gen: v5e
topology: v5e:2x2
jax: 0.10.0
libtpu: 0.0.40
codegen_flags: <defaults>
</compile_context>

<pallas_src>
import jax
import jax.numpy as jnp
from jax import lax
from jax.experimental import pallas as pl
from jax.experimental.pallas import tpu as pltpu

VMEM = pltpu.MemorySpace.VMEM
SMEM = pltpu.MemorySpace.SMEM

# ------------------------------ model dims --------------------------------
B = 2
TEXT_LEN = 8
AUDIO_LEN = 8
VIDEO_LEN = 8

AUDIO_IN = 16
VIDEO_IN = 2048          # forced: VideoSubNet.linear1 = nn.Linear(2048, 64)
A_HIDDEN = 16            # a_lstm_hidden_size
V_HIDDEN = 64            # rnn1 hidden (feeds rnn2(64, 64) and linear3)
AUDIO_OUT = 16
VIDEO_OUT = 64
TEXT_OUT = 32

POST_FUSION_DIM = 64
POST_TEXT_DIM = 32
POST_AUDIO_DIM = 16
POST_VIDEO_DIM = 32

VOCAB = 64
EMB_DIM = 32

VBIG_N = 4 * V_HIDDEN + 64          # 320 = [rnn1 i|f|g|o (256) | linear1 (64)]

# Packed-output lane offsets: [M, T, A, V | Feature_t | Feature_a | Feature_v | Feature_f | pad]
OFF_T = 4
OFF_A = OFF_T + POST_TEXT_DIM        # 36
OFF_V = OFF_A + POST_AUDIO_DIM       # 52
OFF_F = OFF_V + POST_VIDEO_DIM       # 84
OUT_USED = OFF_F + POST_FUSION_DIM   # 148
OUT_LANES = 256

# Params that ride through ordinary (auto-DMA'd) VMEM BlockSpecs.  The packed
# bf16 video weight "v_big_w" is passed separately via memory_space=pl.ANY.
PARAM_VMEM = (
    "text_w", "text_b",
    "a_rnn_wih", "a_rnn_whh", "a_rnn_b",
    "a_lin_w", "a_lin_b",
    "v_big_b", "v_rnn1_whh",
    "v_rnn2_wih", "v_rnn2_whh", "v_rnn2_b",
    "v_lin2_w", "v_lin2_b", "v_lin3_w", "v_lin3_b",
    "att1_fc1_w", "att1_fc1_b", "att1_fc2_w", "att1_fc2_b",
    "pf1_w", "pf1_b", "pf2_w", "pf2_b", "pf4_w", "pf4_b",
    "pf5_w", "pf5_b", "pf6_w", "pf6_b",
    "pt1_w", "pt1_b", "pt2_w", "pt2_b", "pt3_w", "pt3_b",
    "pa1_w", "pa1_b", "pa2_w", "pa2_b", "pa3_w", "pa3_b",
    "pv1_w", "pv1_b", "pv2_w", "pv2_b", "pv3_w", "pv3_b",
)


# ------------------------------ kernel helpers ------------------------------

def _len_column(len_ref, bsz):
    """Build an int32 (bsz, 1) length column from SMEM scalars."""
    row = lax.broadcasted_iota(jnp.int32, (bsz, 1), 0)
    col = jnp.zeros((bsz, 1), jnp.int32)
    for b in range(bsz):
        col = jnp.where(row == b, len_ref[b], col)
    return col


def _softmax_last(a):
    a = a - jnp.max(a, axis=-1, keepdims=True)
    e = jnp.exp(a)
    return e * pl.reciprocal(jnp.sum(e, axis=-1, keepdims=True), approx=True)


def _rows_at_t(gx, t, bsz, seq_len):
    """Rows [b*seq_len + t] of a batch-major flattened (bsz*seq_len, G) value."""
    if bsz == 1:
        return gx[t:t + 1, :]
    return jnp.concatenate(
        [gx[b * seq_len + t: b * seq_len + t + 1, :] for b in range(bsz)], axis=0)


def _lstm_recurrence(step_in, n_steps, bsz, hidden, whh, len_col):
    """Gate-fused LSTM recurrence (single layer).

    step_in(t) -> (bsz, 4*hidden) precomputed input gate projection for step t
    (bias already folded in); whh: (hidden, 4*hidden); gate order i|f|g|o along
    lanes (PyTorch order, combined bias == bias_ih + bias_hh).  Returns the
    hidden state at the last valid step per batch row (state frozen once
    t >= length), matching pack_padded_sequence final-state semantics.
    """
    H = hidden
    h = jnp.zeros((bsz, H), jnp.float32)
    c = jnp.zeros((bsz, H), jnp.float32)
    for t in range(n_steps):                       # static, fully unrolled
        pre = step_in(t) + jnp.dot(h, whh, preferred_element_type=jnp.float32)
        i_g = jax.nn.sigmoid(pre[:, 0:H])
        f_g = jax.nn.sigmoid(pre[:, H:2 * H])
        g_g = jnp.tanh(pre[:, 2 * H:3 * H])
        o_g = jax.nn.sigmoid(pre[:, 3 * H:4 * H])
        c_new = f_g * c + i_g * g_g
        h_new = o_g * jnp.tanh(c_new)
        valid = t < len_col                        # (bsz, 1), broadcasts over H
        h = jnp.where(valid, h_new, h)
        c = jnp.where(valid, c_new, c)
    return h


# ------------------------------ fused kernel ------------------------------

def _self_mm_kernel(alen_ref, vlen_ref, cls_ref, audio_ref, video_hbm, vbigw_hbm,
                    *refs):
    n = len(PARAM_VMEM)
    prm = dict(zip(PARAM_VMEM, refs[:n]))
    out_ref = refs[n]
    vbuf, wbuf, sem = refs[n + 1], refs[n + 2], refs[n + 3]

    bsz = cls_ref.shape[0]
    t_audio = audio_ref.shape[0] // bsz
    t_video = vbuf.shape[0] // bsz

    # --- kick off the big video DMAs immediately; hide behind text/audio ---
    cp_video = pltpu.make_async_copy(video_hbm, vbuf, sem.at[0])
    cp_vw = pltpu.make_async_copy(vbigw_hbm, wbuf, sem.at[1])
    cp_video.start()
    cp_vw.start()

    def lin(x, name, relu=False):
        y = (jnp.dot(x, prm[name + "_w"][...], preferred_element_type=jnp.float32)
             + prm[name + "_b"][...])
        return jnp.maximum(y, 0.0) if relu else y

    # SMEM scalar reads happen before any DMA wait (keep sst->sld forwarding).
    audio_len = _len_column(alen_ref, bsz)
    video_len = _len_column(vlen_ref, bsz)

    # --- text branch (BERT stand-in: [CLS] embedding -> linear) ---
    text_feat = lin(cls_ref[...], "text")                           # (B, 32)

    # --- AuViSubNet (audio): fused-gate LSTM, hoisted input projection ---
    gx_a = (jnp.dot(audio_ref[...], prm["a_rnn_wih"][...],
                    preferred_element_type=jnp.float32) + prm["a_rnn_b"][...])
    h_a = _lstm_recurrence(lambda t: _rows_at_t(gx_a, t, bsz, t_audio),
                           t_audio, bsz, A_HIDDEN, prm["a_rnn_whh"][...],
                           audio_len)
    audio_feat = lin(h_a, "a_lin")                                  # (B, 16)

    # --- video DMAs must be complete from here on ---
    cp_video.wait()
    cp_vw.wait()

    # --- VideoSubNet ---
    # One wide K=2048 matmul: [rnn1 i|f|g|o projections | linear1], bf16 in, f32 acc.
    vflat = vbuf[...]                                               # (B*T, 2048)
    big = (jnp.dot(vflat.astype(jnp.bfloat16), wbuf[...],
                   preferred_element_type=jnp.float32)
           + prm["v_big_b"][...])                                   # (B*T, 320)
    gx1 = big[:, 0:4 * V_HIDDEN]                                    # (B*T, 256)
    x1 = big[:, 4 * V_HIDDEN:VBIG_N]                                # (B*T, 64) = linear1(x)

    h1 = _lstm_recurrence(lambda t: _rows_at_t(gx1, t, bsz, t_video),
                          t_video, bsz, V_HIDDEN, prm["v_rnn1_whh"][...],
                          video_len)                                # (B, 64)

    attn = _softmax_last(lin(jnp.maximum(x1, 0.0), "v_lin2"))       # dropout1 = id
    attended = attn * x1                                            # (B*T, 64) (pre-ReLU x1)

    # rnn2 over the sequence [h1, attended_0 .. attended_{T-1}], lengths + 1.
    wih2 = prm["v_rnn2_wih"][...]
    b2 = prm["v_rnn2_b"][...]
    gh1 = jnp.dot(h1, wih2, preferred_element_type=jnp.float32) + b2        # (B, 256)
    gatt = jnp.dot(attended, wih2, preferred_element_type=jnp.float32) + b2  # (B*T, 256)

    def rnn2_step(t):
        return gh1 if t == 0 else _rows_at_t(gatt, t - 1, bsz, t_video)

    h3 = _lstm_recurrence(rnn2_step, t_video + 1, bsz, 64,
                          prm["v_rnn2_whh"][...], video_len + 1)    # (B, 64)
    h5 = h3 + h1                                                    # dropouts = id
    video_raw = lin(h5, "v_lin3")                                   # (B, 64)

    # --- top-level self-attention over the video features ---
    a1 = _softmax_last(lin(lin(video_raw, "att1_fc1", relu=True), "att1_fc2"))
    video_feat = a1 * video_raw + video_raw                         # (B, 64)

    # --- post-fusion / unimodal heads (dropouts = identity) ---
    fusion_in = jnp.concatenate([text_feat, audio_feat, video_feat], axis=-1)
    fusion_h = lin(fusion_in, "pf1", relu=True)

    text_h = lin(text_feat, "pt1", relu=True)
    audio_h = lin(audio_feat, "pa1", relu=True)
    video_h = lin(video_feat, "pv1", relu=True)

    x_f = lin(fusion_h, "pf2", relu=True)
    x_f = jnp.concatenate([x_f, text_feat, audio_feat, video_feat], axis=-1)
    x_f = lin(x_f, "pf4", relu=True)
    fusion_feat = x_f
    x_f = lin(x_f, "pf5", relu=True)
    out_m = lin(x_f, "pf6")

    out_t = lin(lin(text_h, "pt2", relu=True), "pt3")
    out_a = lin(lin(audio_h, "pa2", relu=True), "pa3")
    out_v = lin(lin(video_h, "pv2", relu=True), "pv3")

    # Single lane-dense packed output slab: one store, one writeback DMA.
    pad = jnp.zeros((bsz, OUT_LANES - OUT_USED), jnp.float32)
    out_ref[...] = jnp.concatenate(
        [out_m, out_t, out_a, out_v, text_h, audio_h, video_h, fusion_feat, pad],
        axis=-1)


# ------------------------------ wrapper ------------------------------

@jax.jit
def self_mm_forward(params, text, audio, audio_lengths, video, video_lengths):
    ids = text[:, 0, :].astype(jnp.int32)
    # TODO(synk): full BertTextEncoder (12-layer transformer) has no compact
    # Pallas equivalent here; replaced by a deterministic [CLS] embedding lookup.
    cls_emb = params["text_emb"][ids[:, 0]]                         # (B, EMB_DIM)

    bsz, t_a, d_a = audio.shape
    _, t_v, d_v = video.shape
    # Batch-major flattening is a free metadata-only reshape (no transpose kernel,
    # no extra HBM round trip); per-step rows are gathered in-kernel.
    audio_flat = audio.reshape(bsz * t_a, d_a)
    video_flat = video.reshape(bsz * t_v, d_v)

    param_list = [params[name] for name in PARAM_VMEM]

    in_specs = ([pl.BlockSpec(memory_space=SMEM)] * 2               # lengths
                + [pl.BlockSpec(memory_space=VMEM)] * 2             # cls_emb, audio
                + [pl.BlockSpec(memory_space=pl.ANY)] * 2           # video, v_big_w (manual DMA)
                + [pl.BlockSpec(memory_space=VMEM)] * len(PARAM_VMEM))

    packed = pl.pallas_call(
        _self_mm_kernel,
        out_shape=jax.ShapeDtypeStruct((bsz, OUT_LANES), jnp.float32),
        in_specs=in_specs,
        out_specs=pl.BlockSpec(memory_space=VMEM),
        scratch_shapes=[
            pltpu.VMEM((bsz * t_v, d_v), jnp.float32),              # video activations
            pltpu.VMEM((d_v, VBIG_N), jnp.bfloat16),                # packed video weight
            pltpu.SemaphoreType.DMA((2,)),
        ],
        compiler_params=pltpu.CompilerParams(vmem_limit_bytes=32 * 1024 * 1024),
    )(audio_lengths.astype(jnp.int32), video_lengths.astype(jnp.int32),
      cls_emb, audio_flat, video_flat, params["v_big_w"], *param_list)

    return {
        "M": packed[:, 0:1], "T": packed[:, 1:2],
        "A": packed[:, 2:3], "V": packed[:, 3:4],
        "Feature_t": packed[:, OFF_T:OFF_A],
        "Feature_a": packed[:, OFF_A:OFF_V],
        "Feature_v": packed[:, OFF_V:OFF_F],
        "Feature_f": packed[:, OFF_F:OUT_USED],
    }


# ------------------------------ parameters ------------------------------

def init_params(key):
    p = {}

    def nxt():
        nonlocal key
        key, sub = jax.random.split(key)
        return sub

    def lin(name, din, dout, scale=0.1):
        p[name + "_w"] = jax.random.normal(nxt(), (din, dout), jnp.float32) * scale
        p[name + "_b"] = jax.random.normal(nxt(), (1, dout), jnp.float32) * scale

    def lstm(name, din, hidden, scale=0.1):
        # Fused-gate layout, gate order i|f|g|o along lanes.  Equivalent torch
        # params: wih == weight_ih_l0.T rearranged into [i|f|g|o] column blocks,
        # whh == weight_hh_l0.T likewise, b == bias_ih_l0 + bias_hh_l0.
        p[name + "_wih"] = jax.random.normal(nxt(), (din, 4 * hidden), jnp.float32) * scale
        p[name + "_whh"] = jax.random.normal(nxt(), (hidden, 4 * hidden), jnp.float32) * scale
        p[name + "_b"] = jax.random.normal(nxt(), (1, 4 * hidden), jnp.float32) * scale

    # text encoder stand-in
    p["text_emb"] = jax.random.normal(nxt(), (VOCAB, EMB_DIM), jnp.float32) * 0.1
    lin("text", EMB_DIM, TEXT_OUT)

    # AuViSubNet (audio)
    lstm("a_rnn", AUDIO_IN, A_HIDDEN)
    lin("a_lin", A_HIDDEN, AUDIO_OUT)

    # VideoSubNet: rnn1 input projection and linear1 share K=2048 -> packed into
    # one (2048, 320) bf16 weight [rnn1 i|f|g|o (256) | linear1 (64)].
    v_rnn1_wih = jax.random.normal(nxt(), (VIDEO_IN, 4 * V_HIDDEN), jnp.float32) * 0.1
    v_rnn1_b = jax.random.normal(nxt(), (1, 4 * V_HIDDEN), jnp.float32) * 0.1
    v_lin1_w = jax.random.normal(nxt(), (VIDEO_IN, 64), jnp.float32) * 0.1
    v_lin1_b = jax.random.normal(nxt(), (1, 64), jnp.float32) * 0.1
    p["v_big_w"] = jnp.concatenate([v_rnn1_wih, v_lin1_w], axis=1).astype(jnp.bfloat16)
    p["v_big_b"] = jnp.concatenate([v_rnn1_b, v_lin1_b], axis=1)
    p["v_rnn1_whh"] = jax.random.normal(nxt(), (V_HIDDEN, 4 * V_HIDDEN), jnp.float32) * 0.1

    lstm("v_rnn2", 64, 64)
    lin("v_lin2", 64, 64)
    lin("v_lin3", V_HIDDEN, VIDEO_OUT)

    # top-level attention
    lin("att1_fc1", 64, 64)
    lin("att1_fc2", 64, 64)

    fused = TEXT_OUT + VIDEO_OUT + AUDIO_OUT
    lin("pf1", fused, POST_FUSION_DIM)
    lin("pf2", POST_FUSION_DIM, POST_FUSION_DIM)
    lin("pf4", POST_FUSION_DIM + fused, POST_FUSION_DIM)
    lin("pf5", POST_FUSION_DIM, POST_FUSION_DIM)
    lin("pf6", POST_FUSION_DIM, 1)

    lin("pt1", TEXT_OUT, POST_TEXT_DIM)
    lin("pt2", POST_TEXT_DIM, POST_TEXT_DIM)
    lin("pt3", POST_TEXT_DIM, 1)

    lin("pa1", AUDIO_OUT, POST_AUDIO_DIM)
    lin("pa2", POST_AUDIO_DIM, POST_AUDIO_DIM)
    lin("pa3", POST_AUDIO_DIM, 1)

    lin("pv1", VIDEO_OUT, POST_VIDEO_DIM)
    lin("pv2", POST_VIDEO_DIM, POST_VIDEO_DIM)
    lin("pv3", POST_VIDEO_DIM, 1)
    return p


# ------------------------------ main ------------------------------

if __name__ == "__main__":
    params = init_params(jax.random.PRNGKey(0))

    k1, k2, k3 = jax.random.split(jax.random.PRNGKey(0), 3)

    # text = stacked [ids, mask, segment_ids] as floats, like BERT-style input
    ids = jax.random.randint(k1, (B, TEXT_LEN), 1, VOCAB).astype(jnp.float32)
    text_lens = jnp.array([TEXT_LEN, TEXT_LEN - 2], dtype=jnp.int32)
    mask = (jnp.arange(TEXT_LEN)[None, :] < text_lens[:, None]).astype(jnp.float32)
    seg = jnp.zeros((B, TEXT_LEN), jnp.float32)
    text = jnp.stack([ids, mask, seg], axis=1)              # (B, 3, L)

    audio = jax.random.normal(k2, (B, AUDIO_LEN, AUDIO_IN), jnp.float32)
    audio_lengths = jnp.array([AUDIO_LEN, AUDIO_LEN - 3], dtype=jnp.int32)

    video = jax.random.normal(k3, (B, VIDEO_LEN, VIDEO_IN), jnp.float32)
    video_lengths = jnp.array([VIDEO_LEN, VIDEO_LEN - 2], dtype=jnp.int32)

    res = self_mm_forward(params, text, audio, audio_lengths, video, video_lengths)
    jax.block_until_ready(res)

    assert res["M"].shape == (B, 1)
    assert res["T"].shape == (B, 1)
    assert res["A"].shape == (B, 1)
    assert res["V"].shape == (B, 1)
    assert res["Feature_t"].shape == (B, POST_TEXT_DIM)
    assert res["Feature_a"].shape == (B, POST_AUDIO_DIM)
    assert res["Feature_v"].shape == (B, POST_VIDEO_DIM)
    assert res["Feature_f"].shape == (B, POST_FUSION_DIM)
    print("KERNEL_OK")
</pallas_src>

<mosaic_0001>
module attributes {stable_mosaic.version = 11 : i64} {
  func.func @_self_mm_kernel(%arg0: memref<2xi32, #tpu.memory_space<smem>>, %arg1: memref<2xi32, #tpu.memory_space<smem>>, %arg2: memref<2x32xf32, #tpu.memory_space<vmem>>, %arg3: memref<16x16xf32, #tpu.memory_space<vmem>>, %arg4: memref<16x2048xf32, #tpu.memory_space<any>>, %arg5: memref<2048x320xbf16, #tpu.memory_space<any>>, %arg6: memref<32x32xf32, #tpu.memory_space<vmem>>, %arg7: memref<1x32xf32, #tpu.memory_space<vmem>>, %arg8: memref<16x64xf32, #tpu.memory_space<vmem>>, %arg9: memref<16x64xf32, #tpu.memory_space<vmem>>, %arg10: memref<1x64xf32, #tpu.memory_space<vmem>>, %arg11: memref<16x16xf32, #tpu.memory_space<vmem>>, %arg12: memref<1x16xf32, #tpu.memory_space<vmem>>, %arg13: memref<1x320xf32, #tpu.memory_space<vmem>>, %arg14: memref<64x256xf32, #tpu.memory_space<vmem>>, %arg15: memref<64x256xf32, #tpu.memory_space<vmem>>, %arg16: memref<64x256xf32, #tpu.memory_space<vmem>>, %arg17: memref<1x256xf32, #tpu.memory_space<vmem>>, %arg18: memref<64x64xf32, #tpu.memory_space<vmem>>, %arg19: memref<1x64xf32, #tpu.memory_space<vmem>>, %arg20: memref<64x64xf32, #tpu.memory_space<vmem>>, %arg21: memref<1x64xf32, #tpu.memory_space<vmem>>, %arg22: memref<64x64xf32, #tpu.memory_space<vmem>>, %arg23: memref<1x64xf32, #tpu.memory_space<vmem>>, %arg24: memref<64x64xf32, #tpu.memory_space<vmem>>, %arg25: memref<1x64xf32, #tpu.memory_space<vmem>>, %arg26: memref<112x64xf32, #tpu.memory_space<vmem>>, %arg27: memref<1x64xf32, #tpu.memory_space<vmem>>, %arg28: memref<64x64xf32, #tpu.memory_space<vmem>>, %arg29: memref<1x64xf32, #tpu.memory_space<vmem>>, %arg30: memref<176x64xf32, #tpu.memory_space<vmem>>, %arg31: memref<1x64xf32, #tpu.memory_space<vmem>>, %arg32: memref<64x64xf32, #tpu.memory_space<vmem>>, %arg33: memref<1x64xf32, #tpu.memory_space<vmem>>, %arg34: memref<64x1xf32, #tpu.memory_space<vmem>>, %arg35: memref<1x1xf32, #tpu.memory_space<vmem>>, %arg36: memref<32x32xf32, #tpu.memory_space<vmem>>, %arg37: memref<1x32xf32, #tpu.memory_space<vmem>>, %arg38: memref<32x32xf32, #tpu.memory_space<vmem>>, %arg39: memref<1x32xf32, #tpu.memory_space<vmem>>, %arg40: memref<32x1xf32, #tpu.memory_space<vmem>>, %arg41: memref<1x1xf32, #tpu.memory_space<vmem>>, %arg42: memref<16x16xf32, #tpu.memory_space<vmem>>, %arg43: memref<1x16xf32, #tpu.memory_space<vmem>>, %arg44: memref<16x16xf32, #tpu.memory_space<vmem>>, %arg45: memref<1x16xf32, #tpu.memory_space<vmem>>, %arg46: memref<16x1xf32, #tpu.memory_space<vmem>>, %arg47: memref<1x1xf32, #tpu.memory_space<vmem>>, %arg48: memref<64x32xf32, #tpu.memory_space<vmem>>, %arg49: memref<1x32xf32, #tpu.memory_space<vmem>>, %arg50: memref<32x32xf32, #tpu.memory_space<vmem>>, %arg51: memref<1x32xf32, #tpu.memory_space<vmem>>, %arg52: memref<32x1xf32, #tpu.memory_space<vmem>>, %arg53: memref<1x1xf32, #tpu.memory_space<vmem>>, %arg54: memref<2x256xf32, #tpu.memory_space<vmem>>, %arg55: memref<16x2048xf32, #tpu.memory_space<vmem>>, %arg56: memref<2048x320xbf16, #tpu.memory_space<vmem>>, %arg57: memref<2x!tpu.dma_semaphore, #tpu.memory_space<semaphore_mem>>) attributes {dimension_semantics = [], scalar_prefetch = 0 : i64, scratch_operands = 3 : i64, tpu.core_type = #tpu.core_type<tc>} {
    %c0_i32 = arith.constant 0 : i32
    %0 = tpu.memref_slice %arg57[%c0_i32] : memref<2x!tpu.dma_semaphore, #tpu.memory_space<semaphore_mem>> -> memref<1x!tpu.dma_semaphore, #tpu.memory_space<semaphore_mem>>
    %1 = tpu.memref_squeeze %0 : memref<1x!tpu.dma_semaphore, #tpu.memory_space<semaphore_mem>> -> memref<!tpu.dma_semaphore, #tpu.memory_space<semaphore_mem>>
    tpu.enqueue_dma source(%arg4 : memref<16x2048xf32, #tpu.memory_space<any>>) target(%arg55 : memref<16x2048xf32, #tpu.memory_space<vmem>>) target_semaphore(%1 : memref<!tpu.dma_semaphore, #tpu.memory_space<semaphore_mem>>)
    %c1_i32 = arith.constant 1 : i32
    %2 = tpu.memref_slice %arg57[%c1_i32] : memref<2x!tpu.dma_semaphore, #tpu.memory_space<semaphore_mem>> -> memref<1x!tpu.dma_semaphore, #tpu.memory_space<semaphore_mem>>
    %3 = tpu.memref_squeeze %2 : memref<1x!tpu.dma_semaphore, #tpu.memory_space<semaphore_mem>> -> memref<!tpu.dma_semaphore, #tpu.memory_space<semaphore_mem>>
    tpu.enqueue_dma source(%arg5 : memref<2048x320xbf16, #tpu.memory_space<any>>) target(%arg56 : memref<2048x320xbf16, #tpu.memory_space<vmem>>) target_semaphore(%3 : memref<!tpu.dma_semaphore, #tpu.memory_space<semaphore_mem>>)
    %4 = tpu.iota {dimensions = array<i32: 0>} : vector<2x1xi32>
    %c0_i32_0 = arith.constant 0 : i32
    %5 = vector.broadcast %c0_i32_0 : i32 to vector<2x1xi32>
    %c0_i32_1 = arith.constant 0 : i32
    %6 = vector.broadcast %c0_i32_1 : i32 to vector<2x1xi32>
    %7 = arith.cmpi eq, %4, %6 : vector<2x1xi32>
    %c0 = arith.constant 0 : index
    %8 = memref.load %arg0[%c0] : memref<2xi32, #tpu.memory_space<smem>>
    %9 = vector.broadcast %8 : i32 to vector<2x1xi32>
    %10 = arith.select %7, %9, %5 : vector<2x1xi1>, vector<2x1xi32>
    %c1_i32_2 = arith.constant 1 : i32
    %11 = vector.broadcast %c1_i32_2 : i32 to vector<2x1xi32>
    %12 = arith.cmpi eq, %4, %11 : vector<2x1xi32>
    %c1 = arith.constant 1 : index
    %13 = memref.load %arg0[%c1] : memref<2xi32, #tpu.memory_space<smem>>
    %14 = vector.broadcast %13 : i32 to vector<2x1xi32>
    %15 = arith.select %12, %14, %10 : vector<2x1xi1>, vector<2x1xi32>
    %16 = tpu.iota {dimensions = array<i32: 0>} : vector<2x1xi32>
    %c0_i32_3 = arith.constant 0 : i32
    %17 = vector.broadcast %c0_i32_3 : i32 to vector<2x1xi32>
    %c0_i32_4 = arith.constant 0 : i32
    %18 = vector.broadcast %c0_i32_4 : i32 to vector<2x1xi32>
    %19 = arith.cmpi eq, %16, %18 : vector<2x1xi32>
    %c0_5 = arith.constant 0 : index
    %20 = memref.load %arg1[%c0_5] : memref<2xi32, #tpu.memory_space<smem>>
    %21 = vector.broadcast %20 : i32 to vector<2x1xi32>
    %22 = arith.select %19, %21, %17 : vector<2x1xi1>, vector<2x1xi32>
    %c1_i32_6 = arith.constant 1 : i32
    %23 = vector.broadcast %c1_i32_6 : i32 to vector<2x1xi32>
    %24 = arith.cmpi eq, %16, %23 : vector<2x1xi32>
    %c1_7 = arith.constant 1 : index
    %25 = memref.load %arg1[%c1_7] : memref<2xi32, #tpu.memory_space<smem>>
    %26 = vector.broadcast %25 : i32 to vector<2x1xi32>
    %27 = arith.select %24, %26, %22 : vector<2x1xi1>, vector<2x1xi32>
    %c0_8 = arith.constant 0 : index
    %c0_9 = arith.constant 0 : index
    %28 = vector.load %arg2[%c0_8, %c0_9] : memref<2x32xf32, #tpu.memory_space<vmem>>, vector<2x32xf32>
    %c0_10 = arith.constant 0 : index
    %c0_11 = arith.constant 0 : index
    %29 = vector.load %arg6[%c0_10, %c0_11] : memref<32x32xf32, #tpu.memory_space<vmem>>, vector<32x32xf32>
    %cst = arith.constant dense<0.000000e+00> : vector<2x32xf32>
    %30 = tpu.matmul %28, %29, %cst {dimension_numbers = #tpu.dot_dimension_numbers<[1], [0], [0], [1], [0, 0, 1, 1], [], []>} : vector<2x32xf32>, vector<32x32xf32>, vector<2x32xf32> -> vector<2x32xf32>
    %c0_12 = arith.constant 0 : index
    %c0_13 = arith.constant 0 : index
    %31 = vector.load %arg7[%c0_12, %c0_13] : memref<1x32xf32, #tpu.memory_space<vmem>>, vector<1x32xf32>
    %32 = vector.broadcast %31 : vector<1x32xf32> to vector<2x32xf32>
    %33 = arith.addf %30, %32 : vector<2x32xf32>
    %c0_14 = arith.constant 0 : index
    %c0_15 = arith.constant 0 : index
    %34 = vector.load %arg3[%c0_14, %c0_15] : memref<16x16xf32, #tpu.memory_space<vmem>>, vector<16x16xf32>
    %c0_16 = arith.constant 0 : index
    %c0_17 = arith.constant 0 : index
    %35 = vector.load %arg8[%c0_16, %c0_17] : memref<16x64xf32, #tpu.memory_space<vmem>>, vector<16x64xf32>
    %cst_18 = arith.constant dense<0.000000e+00> : vector<16x64xf32>
    %36 = tpu.matmul %34, %35, %cst_18 {dimension_numbers = #tpu.dot_dimension_numbers<[1], [0], [0], [1], [0, 0, 1, 1], [], []>} : vector<16x16xf32>, vector<16x64xf32>, vector<16x64xf32> -> vector<16x64xf32>
    %c0_19 = arith.constant 0 : index
    %c0_20 = arith.constant 0 : index
    %37 = vector.load %arg10[%c0_19, %c0_20] : memref<1x64xf32, #tpu.memory_space<vmem>>, vector<1x64xf32>
    %38 = vector.broadcast %37 : vector<1x64xf32> to vector<16x64xf32>
    %39 = arith.addf %36, %38 : vector<16x64xf32>
    %c0_21 = arith.constant 0 : index
    %c0_22 = arith.constant 0 : index
    %40 = vector.load %arg9[%c0_21, %c0_22] : memref<16x64xf32, #tpu.memory_space<vmem>>, vector<16x64xf32>
    %cst_23 = arith.constant 0.000000e+00 : f32
    %41 = vector.broadcast %cst_23 : f32 to vector<2x16xf32>
    %cst_24 = arith.constant 0.000000e+00 : f32
    %42 = vector.broadcast %cst_24 : f32 to vector<2x16xf32>
    %43 = vector.extract_strided_slice %39 {offsets = [0, 0], sizes = [1, 64], strides = [1, 1]} : vector<16x64xf32> to vector<1x64xf32>
    %44 = vector.extract_strided_slice %39 {offsets = [8, 0], sizes = [1, 64], strides = [1, 1]} : vector<16x64xf32> to vector<1x64xf32>
    %45 = tpu.concatenate %43, %44 in 0 : vector<1x64xf32>, vector<1x64xf32> -> vector<2x64xf32>
    %cst_25 = arith.constant dense<0.000000e+00> : vector<2x64xf32>
    %46 = tpu.matmul %41, %40, %cst_25 {dimension_numbers = #tpu.dot_dimension_numbers<[1], [0], [0], [1], [0, 0, 1, 1], [], []>} : vector<2x16xf32>, vector<16x64xf32>, vector<2x64xf32> -> vector<2x64xf32>
    %47 = arith.addf %45, %46 : vector<2x64xf32>
    %48 = vector.extract_strided_slice %47 {offsets = [0, 0], sizes = [2, 16], strides = [1, 1]} : vector<2x64xf32> to vector<2x16xf32>
    %49 = arith.negf %48 : vector<2x16xf32>
    %50 = math.exp %49 : vector<2x16xf32>
    %cst_26 = arith.constant 1.000000e+00 : f32
    %51 = vector.broadcast %cst_26 : f32 to vector<2x16xf32>
    %52 = arith.addf %51, %50 : vector<2x16xf32>
    %53 = arith.divf %51, %52 : vector<2x16xf32>
    %54 = vector.extract_strided_slice %47 {offsets = [0, 16], sizes = [2, 16], strides = [1, 1]} : vector<2x64xf32> to vector<2x16xf32>
    %55 = arith.negf %54 : vector<2x16xf32>
    %56 = math.exp %55 : vector<2x16xf32>
    %cst_27 = arith.constant 1.000000e+00 : f32
    %57 = vector.broadcast %cst_27 : f32 to vector<2x16xf32>
    %58 = arith.addf %57, %56 : vector<2x16xf32>
    %59 = arith.divf %57, %58 : vector<2x16xf32>
    %60 = vector.extract_strided_slice %47 {offsets = [0, 32], sizes = [2, 16], strides = [1, 1]} : vector<2x64xf32> to vector<2x16xf32>
    %61 = math.tanh %60 : vector<2x16xf32>
    %62 = vector.extract_strided_slice %47 {offsets = [0, 48], sizes = [2, 16], strides = [1, 1]} : vector<2x64xf32> to vector<2x16xf32>
    %63 = arith.negf %62 : vector<2x16xf32>
    %64 = math.exp %63 : vector<2x16xf32>
    %cst_28 = arith.constant 1.000000e+00 : f32
    %65 = vector.broadcast %cst_28 : f32 to vector<2x16xf32>
    %66 = arith.addf %65, %64 : vector<2x16xf32>
    %67 = arith.divf %65, %66 : vector<2x16xf32>
    %68 = arith.mulf %59, %42 : vector<2x16xf32>
    %69 = arith.mulf %53, %61 : vector<2x16xf32>
    %70 = arith.addf %68, %69 : vector<2x16xf32>
    %71 = math.tanh %70 : vector<2x16xf32>
    %72 = arith.mulf %67, %71 : vector<2x16xf32>
    %c0_i32_29 = arith.constant 0 : i32
    %73 = vector.broadcast %c0_i32_29 : i32 to vector<2x1xi32>
    %74 = arith.cmpi sgt, %15, %73 : vector<2x1xi32>
    %75 = vector.shape_cast %74 : vector<2x1xi1> to vector<2x1xi1>
    %76 = vector.broadcast %75 : vector<2x1xi1> to vector<2x16xi1>
    %77 = arith.select %76, %72, %41 : vector<2x16xi1>, vector<2x16xf32>
    %78 = vector.shape_cast %74 : vector<2x1xi1> to vector<2x1xi1>
    %79 = vector.broadcast %78 : vector<2x1xi1> to vector<2x16xi1>
    %80 = arith.select %79, %70, %42 : vector<2x16xi1>, vector<2x16xf32>
    %81 = vector.extract_strided_slice %39 {offsets = [1, 0], sizes = [1, 64], strides = [1, 1]} : vector<16x64xf32> to vector<1x64xf32>
    %82 = vector.extract_strided_slice %39 {offsets = [9, 0], sizes = [1, 64], strides = [1, 1]} : vector<16x64xf32> to vector<1x64xf32>
    %83 = tpu.concatenate %81, %82 in 0 : vector<1x64xf32>, vector<1x64xf32> -> vector<2x64xf32>
    %cst_30 = arith.constant dense<0.000000e+00> : vector<2x64xf32>
    %84 = tpu.matmul %77, %40, %cst_30 {dimension_numbers = #tpu.dot_dimension_numbers<[1], [0], [0], [1], [0, 0, 1, 1], [], []>} : vector<2x16xf32>, vector<16x64xf32>, vector<2x64xf32> -> vector<2x64xf32>
    %85 = arith.addf %83, %84 : vector<2x64xf32>
    %86 = vector.extract_strided_slice %85 {offsets = [0, 0], sizes = [2, 16], strides = [1, 1]} : vector<2x64xf32> to vector<2x16xf32>
    %87 = arith.negf %86 : vector<2x16xf32>
    %88 = math.exp %87 : vector<2x16xf32>
    %cst_31 = arith.constant 1.000000e+00 : f32
    %89 = vector.broadcast %cst_31 : f32 to vector<2x16xf32>
    %90 = arith.addf %89, %88 : vector<2x16xf32>
    %91 = arith.divf %89, %90 : vector<2x16xf32>
    %92 = vector.extract_strided_slice %85 {offsets = [0, 16], sizes = [2, 16], strides = [1, 1]} : vector<2x64xf32> to vector<2x16xf32>
    %93 = arith.negf %92 : vector<2x16xf32>
    %94 = math.exp %93 : vector<2x16xf32>
    %cst_32 = arith.constant 1.000000e+00 : f32
    %95 = vector.broadcast %cst_32 : f32 to vector<2x16xf32>
    %96 = arith.addf %95, %94 : vector<2x16xf32>
    %97 = arith.divf %95, %96 : vector<2x16xf32>
    %98 = vector.extract_strided_slice %85 {offsets = [0, 32], sizes = [2, 16], strides = [1, 1]} : vector<2x64xf32> to vector<2x16xf32>
    %99 = math.tanh %98 : vector<2x16xf32>
    %100 = vector.extract_strided_slice %85 {offsets = [0, 48], sizes = [2, 16], strides = [1, 1]} : vector<2x64xf32> to vector<2x16xf32>
    %101 = arith.negf %100 : vector<2x16xf32>
    %102 = math.exp %101 : vector<2x16xf32>
    %cst_33 = arith.constant 1.000000e+00 : f32
    %103 = vector.broadcast %cst_33 : f32 to vector<2x16xf32>
    %104 = arith.addf %103, %102 : vector<2x16xf32>
    %105 = arith.divf %103, %104 : vector<2x16xf32>
    %106 = arith.mulf %97, %80 : vector<2x16xf32>
    %107 = arith.mulf %91, %99 : vector<2x16xf32>
    %108 = arith.addf %106, %107 : vector<2x16xf32>
    %109 = math.tanh %108 : vector<2x16xf32>
    %110 = arith.mulf %105, %109 : vector<2x16xf32>
    %c1_i32_34 = arith.constant 1 : i32
    %111 = vector.broadcast %c1_i32_34 : i32 to vector<2x1xi32>
    %112 = arith.cmpi sgt, %15, %111 : vector<2x1xi32>
    %113 = vector.shape_cast %112 : vector<2x1xi1> to vector<2x1xi1>
    %114 = vector.broadcast %113 : vector<2x1xi1> to vector<2x16xi1>
    %115 = arith.select %114, %110, %77 : vector<2x16xi1>, vector<2x16xf32>
    %116 = vector.shape_cast %112 : vector<2x1xi1> to vector<2x1xi1>
    %117 = vector.broadcast %116 : vector<2x1xi1> to vector<2x16xi1>
    %118 = arith.select %117, %108, %80 : vector<2x16xi1>, vector<2x16xf32>
    %119 = vector.extract_strided_slice %39 {offsets = [2, 0], sizes = [1, 64], strides = [1, 1]} : vector<16x64xf32> to vector<1x64xf32>
    %120 = vector.extract_strided_slice %39 {offsets = [10, 0], sizes = [1, 64], strides = [1, 1]} : vector<16x64xf32> to vector<1x64xf32>
    %121 = tpu.concatenate %119, %120 in 0 : vector<1x64xf32>, vector<1x64xf32> -> vector<2x64xf32>
    %cst_35 = arith.constant dense<0.000000e+00> : vector<2x64xf32>
    %122 = tpu.matmul %115, %40, %cst_35 {dimension_numbers = #tpu.dot_dimension_numbers<[1], [0], [0], [1], [0, 0, 1, 1], [], []>} : vector<2x16xf32>, vector<16x64xf32>, vector<2x64xf32> -> vector<2x64xf32>
    %123 = arith.addf %121, %122 : vector<2x64xf32>
    %124 = vector.extract_strided_slice %123 {offsets = [0, 0], sizes = [2, 16], strides = [1, 1]} : vector<2x64xf32> to vector<2x16xf32>
    %125 = arith.negf %124 : vector<2x16xf32>
    %126 = math.exp %125 : vector<2x16xf32>
    %cst_36 = arith.constant 1.000000e+00 : f32
    %127 = vector.broadcast %cst_36 : f32 to vector<2x16xf32>
    %128 = arith.addf %127, %126 : vector<2x16xf32>
    %129 = arith.divf %127, %128 : vector<2x16xf32>
    %130 = vector.extract_strided_slice %123 {offsets = [0, 16], sizes = [2, 16], strides = [1, 1]} : vector<2x64xf32> to vector<2x16xf32>
    %131 = arith.negf %130 : vector<2x16xf32>
    %132 = math.exp %131 : vector<2x16xf32>
    %cst_37 = arith.constant 1.000000e+00 : f32
    %133 = vector.broadcast %cst_37 : f32 to vector<2x16xf32>
    %134 = arith.addf %133, %132 : vector<2x16xf32>
    %135 = arith.divf %133, %134 : vector<2x16xf32>
    %136 = vector.extract_strided_slice %123 {offsets = [0, 32], sizes = [2, 16], strides = [1, 1]} : vector<2x64xf32> to vector<2x16xf32>
    %137 = math.tanh %136 : vector<2x16xf32>
    %138 = vector.extract_strided_slice %123 {offsets = [0, 48], sizes = [2, 16], strides = [1, 1]} : vector<2x64xf32> to vector<2x16xf32>
    %139 = arith.negf %138 : vector<2x16xf32>
    %140 = math.exp %139 : vector<2x16xf32>
    %cst_38 = arith.constant 1.000000e+00 : f32
    %141 = vector.broadcast %cst_38 : f32 to vector<2x16xf32>
    %142 = arith.addf %141, %140 : vector<2x16xf32>
    %143 = arith.divf %141, %142 : vector<2x16xf32>
    %144 = arith.mulf %135, %118 : vector<2x16xf32>
    %145 = arith.mulf %129, %137 : vector<2x16xf32>
    %146 = arith.addf %144, %145 : vector<2x16xf32>
    %147 = math.tanh %146 : vector<2x16xf32>
    %148 = arith.mulf %143, %147 : vector<2x16xf32>
    %c2_i32 = arith.constant 2 : i32
    %149 = vector.broadcast %c2_i32 : i32 to vector<2x1xi32>
    %150 = arith.cmpi sgt, %15, %149 : vector<2x1xi32>
    %151 = vector.shape_cast %150 : vector<2x1xi1> to vector<2x1xi1>
    %152 = vector.broadcast %151 : vector<2x1xi1> to vector<2x16xi1>
    %153 = arith.select %152, %148, %115 : vector<2x16xi1>, vector<2x16xf32>
    %154 = vector.shape_cast %150 : vector<2x1xi1> to vector<2x1xi1>
    %155 = vector.broadcast %154 : vector<2x1xi1> to vector<2x16xi1>
    %156 = arith.select %155, %146, %118 : vector<2x16xi1>, vector<2x16xf32>
    %157 = vector.extract_strided_slice %39 {offsets = [3, 0], sizes = [1, 64], strides = [1, 1]} : vector<16x64xf32> to vector<1x64xf32>
    %158 = vector.extract_strided_slice %39 {offsets = [11, 0], sizes = [1, 64], strides = [1, 1]} : vector<16x64xf32> to vector<1x64xf32>
    %159 = tpu.concatenate %157, %158 in 0 : vector<1x64xf32>, vector<1x64xf32> -> vector<2x64xf32>
    %cst_39 = arith.constant dense<0.000000e+00> : vector<2x64xf32>
    %160 = tpu.matmul %153, %40, %cst_39 {dimension_numbers = #tpu.dot_dimension_numbers<[1], [0], [0], [1], [0, 0, 1, 1], [], []>} : vector<2x16xf32>, vector<16x64xf32>, vector<2x64xf32> -> vector<2x64xf32>
    %161 = arith.addf %159, %160 : vector<2x64xf32>
    %162 = vector.extract_strided_slice %161 {offsets = [0, 0], sizes = [2, 16], strides = [1, 1]} : vector<2x64xf32> to vector<2x16xf32>
    %163 = arith.negf %162 : vector<2x16xf32>
    %164 = math.exp %163 : vector<2x16xf32>
    %cst_40 = arith.constant 1.000000e+00 : f32
    %165 = vector.broadcast %cst_40 : f32 to vector<2x16xf32>
    %166 = arith.addf %165, %164 : vector<2x16xf32>
    %167 = arith.divf %165, %166 : vector<2x16xf32>
    %168 = vector.extract_strided_slice %161 {offsets = [0, 16], sizes = [2, 16], strides = [1, 1]} : vector<2x64xf32> to vector<2x16xf32>
    %169 = arith.negf %168 : vector<2x16xf32>
    %170 = math.exp %169 : vector<2x16xf32>
    %cst_41 = arith.constant 1.000000e+00 : f32
    %171 = vector.broadcast %cst_41 : f32 to vector<2x16xf32>
    %172 = arith.addf %171, %170 : vector<2x16xf32>
    %173 = arith.divf %171, %172 : vector<2x16xf32>
    %174 = vector.extract_strided_slice %161 {offsets = [0, 32], sizes = [2, 16], strides = [1, 1]} : vector<2x64xf32> to vector<2x16xf32>
    %175 = math.tanh %174 : vector<2x16xf32>
    %176 = vector.extract_strided_slice %161 {offsets = [0, 48], sizes = [2, 16], strides = [1, 1]} : vector<2x64xf32> to vector<2x16xf32>
    %177 = arith.negf %176 : vector<2x16xf32>
    %178 = math.exp %177 : vector<2x16xf32>
    %cst_42 = arith.constant 1.000000e+00 : f32
    %179 = vector.broadcast %cst_42 : f32 to vector<2x16xf32>
    %180 = arith.addf %179, %178 : vector<2x16xf32>
    %181 = arith.divf %179, %180 : vector<2x16xf32>
    %182 = arith.mulf %173, %156 : vector<2x16xf32>
    %183 = arith.mulf %167, %175 : vector<2x16xf32>
    %184 = arith.addf %182, %183 : vector<2x16xf32>
    %185 = math.tanh %184 : vector<2x16xf32>
    %186 = arith.mulf %181, %185 : vector<2x16xf32>
    %c3_i32 = arith.constant 3 : i32
    %187 = vector.broadcast %c3_i32 : i32 to vector<2x1xi32>
    %188 = arith.cmpi sgt, %15, %187 : vector<2x1xi32>
    %189 = vector.shape_cast %188 : vector<2x1xi1> to vector<2x1xi1>
    %190 = vector.broadcast %189 : vector<2x1xi1> to vector<2x16xi1>
    %191 = arith.select %190, %186, %153 : vector<2x16xi1>, vector<2x16xf32>
    %192 = vector.shape_cast %188 : vector<2x1xi1> to vector<2x1xi1>
    %193 = vector.broadcast %192 : vector<2x1xi1> to vector<2x16xi1>
    %194 = arith.select %193, %184, %156 : vector<2x16xi1>, vector<2x16xf32>
    %195 = vector.extract_strided_slice %39 {offsets = [4, 0], sizes = [1, 64], strides = [1, 1]} : vector<16x64xf32> to vector<1x64xf32>
    %196 = vector.extract_strided_slice %39 {offsets = [12, 0], sizes = [1, 64], strides = [1, 1]} : vector<16x64xf32> to vector<1x64xf32>
    %197 = tpu.concatenate %195, %196 in 0 : vector<1x64xf32>, vector<1x64xf32> -> vector<2x64xf32>
    %cst_43 = arith.constant dense<0.000000e+00> : vector<2x64xf32>
    %198 = tpu.matmul %191, %40, %cst_43 {dimension_numbers = #tpu.dot_dimension_numbers<[1], [0], [0], [1], [0, 0, 1, 1], [], []>} : vector<2x16xf32>, vector<16x64xf32>, vector<2x64xf32> -> vector<2x64xf32>
    %199 = arith.addf %197, %198 : vector<2x64xf32>
    %200 = vector.extract_strided_slice %199 {offsets = [0, 0], sizes = [2, 16], strides = [1, 1]} : vector<2x64xf32> to vector<2x16xf32>
    %201 = arith.negf %200 : vector<2x16xf32>
    %202 = math.exp %201 : vector<2x16xf32>
    %cst_44 = arith.constant 1.000000e+00 : f32
    %203 = vector.broadcast %cst_44 : f32 to vector<2x16xf32>
    %204 = arith.addf %203, %202 : vector<2x16xf32>
    %205 = arith.divf %203, %204 : vector<2x16xf32>
    %206 = vector.extract_strided_slice %199 {offsets = [0, 16], sizes = [2, 16], strides = [1, 1]} : vector<2x64xf32> to vector<2x16xf32>
    %207 = arith.negf %206 : vector<2x16xf32>
    %208 = math.exp %207 : vector<2x16xf32>
    %cst_45 = arith.constant 1.000000e+00 : f32
    %209 = vector.broadcast %cst_45 : f32 to vector<2x16xf32>
    %210 = arith.addf %209, %208 : vector<2x16xf32>
    %211 = arith.divf %209, %210 : vector<2x16xf32>
    %212 = vector.extract_strided_slice %199 {offsets = [0, 32], sizes = [2, 16], strides = [1, 1]} : vector<2x64xf32> to vector<2x16xf32>
    %213 = math.tanh %212 : vector<2x16xf32>
    %214 = vector.extract_strided_slice %199 {offsets = [0, 48], sizes = [2, 16], strides = [1, 1]} : vector<2x64xf32> to vector<2x16xf32>
    %215 = arith.negf %214 : vector<2x16xf32>
    %216 = math.exp %215 : vector<2x16xf32>
    %cst_46 = arith.constant 1.000000e+00 : f32
    %217 = vector.broadcast %cst_46 : f32 to vector<2x16xf32>
    %218 = arith.addf %217, %216 : vector<2x16xf32>
    %219 = arith.divf %217, %218 : vector<2x16xf32>
    %220 = arith.mulf %211, %194 : vector<2x16xf32>
    %221 = arith.mulf %205, %213 : vector<2x16xf32>
    %222 = arith.addf %220, %221 : vector<2x16xf32>
    %223 = math.tanh %222 : vector<2x16xf32>
    %224 = arith.mulf %219, %223 : vector<2x16xf32>
    %c4_i32 = arith.constant 4 : i32
    %225 = vector.broadcast %c4_i32 : i32 to vector<2x1xi32>
    %226 = arith.cmpi sgt, %15, %225 : vector<2x1xi32>
    %227 = vector.shape_cast %226 : vector<2x1xi1> to vector<2x1xi1>
    %228 = vector.broadcast %227 : vector<2x1xi1> to vector<2x16xi1>
    %229 = arith.select %228, %224, %191 : vector<2x16xi1>, vector<2x16xf32>
    %230 = vector.shape_cast %226 : vector<2x1xi1> to vector<2x1xi1>
    %231 = vector.broadcast %230 : vector<2x1xi1> to vector<2x16xi1>
    %232 = arith.select %231, %222, %194 : vector<2x16xi1>, vector<2x16xf32>
    %233 = vector.extract_strided_slice %39 {offsets = [5, 0], sizes = [1, 64], strides = [1, 1]} : vector<16x64xf32> to vector<1x64xf32>
    %234 = vector.extract_strided_slice %39 {offsets = [13, 0], sizes = [1, 64], strides = [1, 1]} : vector<16x64xf32> to vector<1x64xf32>
    %235 = tpu.concatenate %233, %234 in 0 : vector<1x64xf32>, vector<1x64xf32> -> vector<2x64xf32>
    %cst_47 = arith.constant dense<0.000000e+00> : vector<2x64xf32>
    %236 = tpu.matmul %229, %40, %cst_47 {dimension_numbers = #tpu.dot_dimension_numbers<[1], [0], [0], [1], [0, 0, 1, 1], [], []>} : vector<2x16xf32>, vector<16x64xf32>, vector<2x64xf32> -> vector<2x64xf32>
    %237 = arith.addf %235, %236 : vector<2x64xf32>
    %238 = vector.extract_strided_slice %237 {offsets = [0, 0], sizes = [2, 16], strides = [1, 1]} : vector<2x64xf32> to vector<2x16xf32>
    %239 = arith.negf %238 : vector<2x16xf32>
    %240 = math.exp %239 : vector<2x16xf32>
    %cst_48 = arith.constant 1.000000e+00 : f32
    %241 = vector.broadcast %cst_48 : f32 to vector<2x16xf32>
    %242 = arith.addf %241, %240 : vector<2x16xf32>
    %243 = arith.divf %241, %242 : vector<2x16xf32>
    %244 = vector.extract_strided_slice %237 {offsets = [0, 16], sizes = [2, 16], strides = [1, 1]} : vector<2x64xf32> to vector<2x16xf32>
    %245 = arith.negf %244 : vector<2x16xf32>
    %246 = math.exp %245 : vector<2x16xf32>
    %cst_49 = arith.constant 1.000000e+00 : f32
    %247 = vector.broadcast %cst_49 : f32 to vector<2x16xf32>
    %248 = arith.addf %247, %246 : vector<2x16xf32>
    %249 = arith.divf %247, %248 : vector<2x16xf32>
    %250 = vector.extract_strided_slice %237 {offsets = [0, 32], sizes = [2, 16], strides = [1, 1]} : vector<2x64xf32> to vector<2x16xf32>
    %251 = math.tanh %250 : vector<2x16xf32>
    %252 = vector.extract_strided_slice %237 {offsets = [0, 48], sizes = [2, 16], strides = [1, 1]} : vector<2x64xf32> to vector<2x16xf32>
    %253 = arith.negf %252 : vector<2x16xf32>
    %254 = math.exp %253 : vector<2x16xf32>
    %cst_50 = arith.constant 1.000000e+00 : f32
    %255 = vector.broadcast %cst_50 : f32 to vector<2x16xf32>
    %256 = arith.addf %255, %254 : vector<2x16xf32>
    %257 = arith.divf %255, %256 : vector<2x16xf32>
    %258 = arith.mulf %249, %232 : vector<2x16xf32>
    %259 = arith.mulf %243, %251 : vector<2x16xf32>
    %260 = arith.addf %258, %259 : vector<2x16xf32>
    %261 = math.tanh %260 : vector<2x16xf32>
    %262 = arith.mulf %257, %261 : vector<2x16xf32>
    %c5_i32 = arith.constant 5 : i32
    %263 = vector.broadcast %c5_i32 : i32 to vector<2x1xi32>
    %264 = arith.cmpi sgt, %15, %263 : vector<2x1xi32>
    %265 = vector.shape_cast %264 : vector<2x1xi1> to vector<2x1xi1>
    %266 = vector.broadcast %265 : vector<2x1xi1> to vector<2x16xi1>
    %267 = arith.select %266, %262, %229 : vector<2x16xi1>, vector<2x16xf32>
    %268 = vector.shape_cast %264 : vector<2x1xi1> to vector<2x1xi1>
    %269 = vector.broadcast %268 : vector<2x1xi1> to vector<2x16xi1>
    %270 = arith.select %269, %260, %232 : vector<2x16xi1>, vector<2x16xf32>
    %271 = vector.extract_strided_slice %39 {offsets = [6, 0], sizes = [1, 64], strides = [1, 1]} : vector<16x64xf32> to vector<1x64xf32>
    %272 = vector.extract_strided_slice %39 {offsets = [14, 0], sizes = [1, 64], strides = [1, 1]} : vector<16x64xf32> to vector<1x64xf32>
    %273 = tpu.concatenate %271, %272 in 0 : vector<1x64xf32>, vector<1x64xf32> -> vector<2x64xf32>
    %cst_51 = arith.constant dense<0.000000e+00> : vector<2x64xf32>
    %274 = tpu.matmul %267, %40, %cst_51 {dimension_numbers = #tpu.dot_dimension_numbers<[1], [0], [0], [1], [0, 0, 1, 1], [], []>} : vector<2x16xf32>, vector<16x64xf32>, vector<2x64xf32> -> vector<2x64xf32>
    %275 = arith.addf %273, %274 : vector<2x64xf32>
    %276 = vector.extract_strided_slice %275 {offsets = [0, 0], sizes = [2, 16], strides = [1, 1]} : vector<2x64xf32> to vector<2x16xf32>
    %277 = arith.negf %276 : vector<2x16xf32>
    %278 = math.exp %277 : vector<2x16xf32>
    %cst_52 = arith.constant 1.000000e+00 : f32
    %279 = vector.broadcast %cst_52 : f32 to vector<2x16xf32>
    %280 = arith.addf %279, %278 : vector<2x16xf32>
    %281 = arith.divf %279, %280 : vector<2x16xf32>
    %282 = vector.extract_strided_slice %275 {offsets = [0, 16], sizes = [2, 16], strides = [1, 1]} : vector<2x64xf32> to vector<2x16xf32>
    %283 = arith.negf %282 : vector<2x16xf32>
    %284 = math.exp %283 : vector<2x16xf32>
    %cst_53 = arith.constant 1.000000e+00 : f32
    %285 = vector.broadcast %cst_53 : f32 to vector<2x16xf32>
    %286 = arith.addf %285, %284 : vector<2x16xf32>
    %287 = arith.divf %285, %286 : vector<2x16xf32>
    %288 = vector.extract_strided_slice %275 {offsets = [0, 32], sizes = [2, 16], strides = [1, 1]} : vector<2x64xf32> to vector<2x16xf32>
    %289 = math.tanh %288 : vector<2x16xf32>
    %290 = vector.extract_strided_slice %275 {offsets = [0, 48], sizes = [2, 16], strides = [1, 1]} : vector<2x64xf32> to vector<2x16xf32>
    %291 = arith.negf %290 : vector<2x16xf32>
    %292 = math.exp %291 : vector<2x16xf32>
    %cst_54 = arith.constant 1.000000e+00 : f32
    %293 = vector.broadcast %cst_54 : f32 to vector<2x16xf32>
    %294 = arith.addf %293, %292 : vector<2x16xf32>
    %295 = arith.divf %293, %294 : vector<2x16xf32>
    %296 = arith.mulf %287, %270 : vector<2x16xf32>
    %297 = arith.mulf %281, %289 : vector<2x16xf32>
    %298 = arith.addf %296, %297 : vector<2x16xf32>
    %299 = math.tanh %298 : vector<2x16xf32>
    %300 = arith.mulf %295, %299 : vector<2x16xf32>
    %c6_i32 = arith.constant 6 : i32
    %301 = vector.broadcast %c6_i32 : i32 to vector<2x1xi32>
    %302 = arith.cmpi sgt, %15, %301 : vector<2x1xi32>
    %303 = vector.shape_cast %302 : vector<2x1xi1> to vector<2x1xi1>
    %304 = vector.broadcast %303 : vector<2x1xi1> to vector<2x16xi1>
    %305 = arith.select %304, %300, %267 : vector<2x16xi1>, vector<2x16xf32>
    %306 = vector.shape_cast %302 : vector<2x1xi1> to vector<2x1xi1>
    %307 = vector.broadcast %306 : vector<2x1xi1> to vector<2x16xi1>
    %308 = arith.select %307, %298, %270 : vector<2x16xi1>, vector<2x16xf32>
    %309 = vector.extract_strided_slice %39 {offsets = [7, 0], sizes = [1, 64], strides = [1, 1]} : vector<16x64xf32> to vector<1x64xf32>
    %310 = vector.extract_strided_slice %39 {offsets = [15, 0], sizes = [1, 64], strides = [1, 1]} : vector<16x64xf32> to vector<1x64xf32>
    %311 = tpu.concatenate %309, %310 in 0 : vector<1x64xf32>, vector<1x64xf32> -> vector<2x64xf32>
    %cst_55 = arith.constant dense<0.000000e+00> : vector<2x64xf32>
    %312 = tpu.matmul %305, %40, %cst_55 {dimension_numbers = #tpu.dot_dimension_numbers<[1], [0], [0], [1], [0, 0, 1, 1], [], []>} : vector<2x16xf32>, vector<16x64xf32>, vector<2x64xf32> -> vector<2x64xf32>
    %313 = arith.addf %311, %312 : vector<2x64xf32>
    %314 = vector.extract_strided_slice %313 {offsets = [0, 0], sizes = [2, 16], strides = [1, 1]} : vector<2x64xf32> to vector<2x16xf32>
    %315 = arith.negf %314 : vector<2x16xf32>
    %316 = math.exp %315 : vector<2x16xf32>
    %cst_56 = arith.constant 1.000000e+00 : f32
    %317 = vector.broadcast %cst_56 : f32 to vector<2x16xf32>
    %318 = arith.addf %317, %316 : vector<2x16xf32>
    %319 = arith.divf %317, %318 : vector<2x16xf32>
    %320 = vector.extract_strided_slice %313 {offsets = [0, 16], sizes = [2, 16], strides = [1, 1]} : vector<2x64xf32> to vector<2x16xf32>
    %321 = arith.negf %320 : vector<2x16xf32>
    %322 = math.exp %321 : vector<2x16xf32>
    %cst_57 = arith.constant 1.000000e+00 : f32
    %323 = vector.broadcast %cst_57 : f32 to vector<2x16xf32>
    %324 = arith.addf %323, %322 : vector<2x16xf32>
    %325 = arith.divf %323, %324 : vector<2x16xf32>
    %326 = vector.extract_strided_slice %313 {offsets = [0, 32], sizes = [2, 16], strides = [1, 1]} : vector<2x64xf32> to vector<2x16xf32>
    %327 = math.tanh %326 : vector<2x16xf32>
    %328 = vector.extract_strided_slice %313 {offsets = [0, 48], sizes = [2, 16], strides = [1, 1]} : vector<2x64xf32> to vector<2x16xf32>
    %329 = arith.negf %328 : vector<2x16xf32>
    %330 = math.exp %329 : vector<2x16xf32>
    %cst_58 = arith.constant 1.000000e+00 : f32
    %331 = vector.broadcast %cst_58 : f32 to vector<2x16xf32>
    %332 = arith.addf %331, %330 : vector<2x16xf32>
    %333 = arith.divf %331, %332 : vector<2x16xf32>
    %334 = arith.mulf %325, %308 : vector<2x16xf32>
    %335 = arith.mulf %319, %327 : vector<2x16xf32>
    %336 = arith.addf %334, %335 : vector<2x16xf32>
    %337 = math.tanh %336 : vector<2x16xf32>
    %338 = arith.mulf %333, %337 : vector<2x16xf32>
    %c7_i32 = arith.constant 7 : i32
    %339 = vector.broadcast %c7_i32 : i32 to vector<2x1xi32>
    %340 = arith.cmpi sgt, %15, %339 : vector<2x1xi32>
    %341 = vector.shape_cast %340 : vector<2x1xi1> to vector<2x1xi1>
    %342 = vector.broadcast %341 : vector<2x1xi1> to vector<2x16xi1>
    %343 = arith.select %342, %338, %305 : vector<2x16xi1>, vector<2x16xf32>
    %c0_59 = arith.constant 0 : index
    %c0_60 = arith.constant 0 : index
    %344 = vector.load %arg11[%c0_59, %c0_60] : memref<16x16xf32, #tpu.memory_space<vmem>>, vector<16x16xf32>
    %cst_61 = arith.constant dense<0.000000e+00> : vector<2x16xf32>
    %345 = tpu.matmul %343, %344, %cst_61 {dimension_numbers = #tpu.dot_dimension_numbers<[1], [0], [0], [1], [0, 0, 1, 1], [], []>} : vector<2x16xf32>, vector<16x16xf32>, vector<2x16xf32> -> vector<2x16xf32>
    %c0_62 = arith.constant 0 : index
    %c0_63 = arith.constant 0 : index
    %346 = vector.load %arg12[%c0_62, %c0_63] : memref<1x16xf32, #tpu.memory_space<vmem>>, vector<1x16xf32>
    %347 = vector.broadcast %346 : vector<1x16xf32> to vector<2x16xf32>
    %348 = arith.addf %345, %347 : vector<2x16xf32>
    %c0_i32_64 = arith.constant 0 : i32
    %349 = tpu.memref_slice %arg57[%c0_i32_64] : memref<2x!tpu.dma_semaphore, #tpu.memory_space<semaphore_mem>> -> memref<1x!tpu.dma_semaphore, #tpu.memory_space<semaphore_mem>>
    %350 = tpu.memref_squeeze %349 : memref<1x!tpu.dma_semaphore, #tpu.memory_space<semaphore_mem>> -> memref<!tpu.dma_semaphore, #tpu.memory_space<semaphore_mem>>
    tpu.wait_dma2 semaphore(%350 : memref<!tpu.dma_semaphore, #tpu.memory_space<semaphore_mem>>) src(%arg4 : memref<16x2048xf32, #tpu.memory_space<any>>) dst(%arg55 : memref<16x2048xf32, #tpu.memory_space<vmem>>)
    %c1_i32_65 = arith.constant 1 : i32
    %351 = tpu.memref_slice %arg57[%c1_i32_65] : memref<2x!tpu.dma_semaphore, #tpu.memory_space<semaphore_mem>> -> memref<1x!tpu.dma_semaphore, #tpu.memory_space<semaphore_mem>>
    %352 = tpu.memref_squeeze %351 : memref<1x!tpu.dma_semaphore, #tpu.memory_space<semaphore_mem>> -> memref<!tpu.dma_semaphore, #tpu.memory_space<semaphore_mem>>
    tpu.wait_dma2 semaphore(%352 : memref<!tpu.dma_semaphore, #tpu.memory_space<semaphore_mem>>) src(%arg5 : memref<2048x320xbf16, #tpu.memory_space<any>>) dst(%arg56 : memref<2048x320xbf16, #tpu.memory_space<vmem>>)
    %c0_66 = arith.constant 0 : index
    %c0_67 = arith.constant 0 : index
    %353 = vector.load %arg55[%c0_66, %c0_67] : memref<16x2048xf32, #tpu.memory_space<vmem>>, vector<16x2048xf32>
    %354 = arith.truncf %353 : vector<16x2048xf32> to vector<16x2048xbf16>
    %c0_68 = arith.constant 0 : index
    %c0_69 = arith.constant 0 : index
    %355 = vector.load %arg56[%c0_68, %c0_69] : memref<2048x320xbf16, #tpu.memory_space<vmem>>, vector<2048x320xbf16>
    %cst_70 = arith.constant dense<0.000000e+00> : vector<16x320xf32>
    %356 = tpu.matmul %354, %355, %cst_70 {dimension_numbers = #tpu.dot_dimension_numbers<[1], [0], [0], [1], [0, 0, 1, 1], [], []>} : vector<16x2048xbf16>, vector<2048x320xbf16>, vector<16x320xf32> -> vector<16x320xf32>
    %c0_71 = arith.constant 0 : index
    %c0_72 = arith.constant 0 : index
    %357 = vector.load %arg13[%c0_71, %c0_72] : memref<1x320xf32, #tpu.memory_space<vmem>>, vector<1x320xf32>
    %358 = vector.broadcast %357 : vector<1x320xf32> to vector<16x320xf32>
    %359 = arith.addf %356, %358 : vector<16x320xf32>
    %360 = vector.extract_strided_slice %359 {offsets = [0, 0], sizes = [16, 256], strides = [1, 1]} : vector<16x320xf32> to vector<16x256xf32>
    %361 = vector.extract_strided_slice %359 {offsets = [0, 256], sizes = [16, 64], strides = [1, 1]} : vector<16x320xf32> to vector<16x64xf32>
    %c0_73 = arith.constant 0 : index
    %c0_74 = arith.constant 0 : index
    %362 = vector.load %arg14[%c0_73, %c0_74] : memref<64x256xf32, #tpu.memory_space<vmem>>, vector<64x256xf32>
    %cst_75 = arith.constant 0.000000e+00 : f32
    %363 = vector.broadcast %cst_75 : f32 to vector<2x64xf32>
    %cst_76 = arith.constant 0.000000e+00 : f32
    %364 = vector.broadcast %cst_76 : f32 to vector<2x64xf32>
    %365 = vector.extract_strided_slice %360 {offsets = [0, 0], sizes = [1, 256], strides = [1, 1]} : vector<16x256xf32> to vector<1x256xf32>
    %366 = vector.extract_strided_slice %360 {offsets = [8, 0], sizes = [1, 256], strides = [1, 1]} : vector<16x256xf32> to vector<1x256xf32>
    %367 = tpu.concatenate %365, %366 in 0 : vector<1x256xf32>, vector<1x256xf32> -> vector<2x256xf32>
    %cst_77 = arith.constant dense<0.000000e+00> : vector<2x256xf32>
    %368 = tpu.matmul %363, %362, %cst_77 {dimension_numbers = #tpu.dot_dimension_numbers<[1], [0], [0], [1], [0, 0, 1, 1], [], []>} : vector<2x64xf32>, vector<64x256xf32>, vector<2x256xf32> -> vector<2x256xf32>
    %369 = arith.addf %367, %368 : vector<2x256xf32>
    %370 = vector.extract_strided_slice %369 {offsets = [0, 0], sizes = [2, 64], strides = [1, 1]} : vector<2x256xf32> to vector<2x64xf32>
    %371 = arith.negf %370 : vector<2x64xf32>
    %372 = math.exp %371 : vector<2x64xf32>
    %cst_78 = arith.constant 1.000000e+00 : f32
    %373 = vector.broadcast %cst_78 : f32 to vector<2x64xf32>
    %374 = arith.addf %373, %372 : vector<2x64xf32>
    %375 = arith.divf %373, %374 : vector<2x64xf32>
    %376 = vector.extract_strided_slice %369 {offsets = [0, 64], sizes = [2, 64], strides = [1, 1]} : vector<2x256xf32> to vector<2x64xf32>
    %377 = arith.negf %376 : vector<2x64xf32>
    %378 = math.exp %377 : vector<2x64xf32>
    %cst_79 = arith.constant 1.000000e+00 : f32
    %379 = vector.broadcast %cst_79 : f32 to vector<2x64xf32>
    %380 = arith.addf %379, %378 : vector<2x64xf32>
    %381 = arith.divf %379, %380 : vector<2x64xf32>
    %382 = vector.extract_strided_slice %369 {offsets = [0, 128], sizes = [2, 64], strides = [1, 1]} : vector<2x256xf32> to vector<2x64xf32>
    %383 = math.tanh %382 : vector<2x64xf32>
    %384 = vector.extract_strided_slice %369 {offsets = [0, 192], sizes = [2, 64], strides = [1, 1]} : vector<2x256xf32> to vector<2x64xf32>
    %385 = arith.negf %384 : vector<2x64xf32>
    %386 = math.exp %385 : vector<2x64xf32>
    %cst_80 = arith.constant 1.000000e+00 : f32
    %387 = vector.broadcast %cst_80 : f32 to vector<2x64xf32>
    %388 = arith.addf %387, %386 : vector<2x64xf32>
    %389 = arith.divf %387, %388 : vector<2x64xf32>
    %390 = arith.mulf %381, %364 : vector<2x64xf32>
    %391 = arith.mulf %375, %383 : vector<2x64xf32>
    %392 = arith.addf %390, %391 : vector<2x64xf32>
    %393 = math.tanh %392 : vector<2x64xf32>
    %394 = arith.mulf %389, %393 : vector<2x64xf32>
    %c0_i32_81 = arith.constant 0 : i32
    %395 = vector.broadcast %c0_i32_81 : i32 to vector<2x1xi32>
    %396 = arith.cmpi sgt, %27, %395 : vector<2x1xi32>
    %397 = vector.shape_cast %396 : vector<2x1xi1> to vector<2x1xi1>
    %398 = vector.broadcast %397 : vector<2x1xi1> to vector<2x64xi1>
    %399 = arith.select %398, %394, %363 : vector<2x64xi1>, vector<2x64xf32>
    %400 = vector.shape_cast %396 : vector<2x1xi1> to vector<2x1xi1>
    %401 = vector.broadcast %400 : vector<2x1xi1> to vector<2x64xi1>
    %402 = arith.select %401, %392, %364 : vector<2x64xi1>, vector<2x64xf32>
    %403 = vector.extract_strided_slice %360 {offsets = [1, 0], sizes = [1, 256], strides = [1, 1]} : vector<16x256xf32> to vector<1x256xf32>
    %404 = vector.extract_strided_slice %360 {offsets = [9, 0], sizes = [1, 256], strides = [1, 1]} : vector<16x256xf32> to vector<1x256xf32>
    %405 = tpu.concatenate %403, %404 in 0 : vector<1x256xf32>, vector<1x256xf32> -> vector<2x256xf32>
    %cst_82 = arith.constant dense<0.000000e+00> : vector<2x256xf32>
    %406 = tpu.matmul %399, %362, %cst_82 {dimension_numbers = #tpu.dot_dimension_numbers<[1], [0], [0], [1], [0, 0, 1, 1], [], []>} : vector<2x64xf32>, vector<64x256xf32>, vector<2x256xf32> -> vector<2x256xf32>
    %407 = arith.addf %405, %406 : vector<2x256xf32>
    %408 = vector.extract_strided_slice %407 {offsets = [0, 0], sizes = [2, 64], strides = [1, 1]} : vector<2x256xf32> to vector<2x64xf32>
    %409 = arith.negf %408 : vector<2x64xf32>
    %410 = math.exp %409 : vector<2x64xf32>
    %cst_83 = arith.constant 1.000000e+00 : f32
    %411 = vector.broadcast %cst_83 : f32 to vector<2x64xf32>
    %412 = arith.addf %411, %410 : vector<2x64xf32>
    %413 = arith.divf %411, %412 : vector<2x64xf32>
    %414 = vector.extract_strided_slice %407 {offsets = [0, 64], sizes = [2, 64], strides = [1, 1]} : vector<2x256xf32> to vector<2x64xf32>
    %415 = arith.negf %414 : vector<2x64xf32>
    %416 = math.exp %415 : vector<2x64xf32>
    %cst_84 = arith.constant 1.000000e+00 : f32
    %417 = vector.broadcast %cst_84 : f32 to vector<2x64xf32>
    %418 = arith.addf %417, %416 : vector<2x64xf32>
    %419 = arith.divf %417, %418 : vector<2x64xf32>
    %420 = vector.extract_strided_slice %407 {offsets = [0, 128], sizes = [2, 64], strides = [1, 1]} : vector<2x256xf32> to vector<2x64xf32>
    %421 = math.tanh %420 : vector<2x64xf32>
    %422 = vector.extract_strided_slice %407 {offsets = [0, 192], sizes = [2, 64], strides = [1, 1]} : vector<2x256xf32> to vector<2x64xf32>
    %423 = arith.negf %422 : vector<2x64xf32>
    %424 = math.exp %423 : vector<2x64xf32>
    %cst_85 = arith.constant 1.000000e+00 : f32
    %425 = vector.broadcast %cst_85 : f32 to vector<2x64xf32>
    %426 = arith.addf %425, %424 : vector<2x64xf32>
    %427 = arith.divf %425, %426 : vector<2x64xf32>
    %428 = arith.mulf %419, %402 : vector<2x64xf32>
    %429 = arith.mulf %413, %421 : vector<2x64xf32>
    %430 = arith.addf %428, %429 : vector<2x64xf32>
    %431 = math.tanh %430 : vector<2x64xf32>
    %432 = arith.mulf %427, %431 : vector<2x64xf32>
    %c1_i32_86 = arith.constant 1 : i32
    %433 = vector.broadcast %c1_i32_86 : i32 to vector<2x1xi32>
    %434 = arith.cmpi sgt, %27, %433 : vector<2x1xi32>
    %435 = vector.shape_cast %434 : vector<2x1xi1> to vector<2x1xi1>
    %436 = vector.broadcast %435 : vector<2x1xi1> to vector<2x64xi1>
    %437 = arith.select %436, %432, %399 : vector<2x64xi1>, vector<2x64xf32>
    %438 = vector.shape_cast %434 : vector<2x1xi1> to vector<2x1xi1>
    %439 = vector.broadcast %438 : vector<2x1xi1> to vector<2x64xi1>
    %440 = arith.select %439, %430, %402 : vector<2x64xi1>, vector<2x64xf32>
    %441 = vector.extract_strided_slice %360 {offsets = [2, 0], sizes = [1, 256], strides = [1, 1]} : vector<16x256xf32> to vector<1x256xf32>
    %442 = vector.extract_strided_slice %360 {offsets = [10, 0], sizes = [1, 256], strides = [1, 1]} : vector<16x256xf32> to vector<1x256xf32>
    %443 = tpu.concatenate %441, %442 in 0 : vector<1x256xf32>, vector<1x256xf32> -> vector<2x256xf32>
    %cst_87 = arith.constant dense<0.000000e+00> : vector<2x256xf32>
    %444 = tpu.matmul %437, %362, %cst_87 {dimension_numbers = #tpu.dot_dimension_numbers<[1], [0], [0], [1], [0, 0, 1, 1], [], []>} : vector<2x64xf32>, vector<64x256xf32>, vector<2x256xf32> -> vector<2x256xf32>
    %445 = arith.addf %443, %444 : vector<2x256xf32>
    %446 = vector.extract_strided_slice %445 {offsets = [0, 0], sizes = [2, 64], strides = [1, 1]} : vector<2x256xf32> to vector<2x64xf32>
    %447 = arith.negf %446 : vector<2x64xf32>
    %448 = math.exp %447 : vector<2x64xf32>
    %cst_88 = arith.constant 1.000000e+00 : f32
    %449 = vector.broadcast %cst_88 : f32 to vector<2x64xf32>
    %450 = arith.addf %449, %448 : vector<2x64xf32>
    %451 = arith.divf %449, %450 : vector<2x64xf32>
    %452 = vector.extract_strided_slice %445 {offsets = [0, 64], sizes = [2, 64], strides = [1, 1]} : vector<2x256xf32> to vector<2x64xf32>
    %453 = arith.negf %452 : vector<2x64xf32>
    %454 = math.exp %453 : vector<2x64xf32>
    %cst_89 = arith.constant 1.000000e+00 : f32
    %455 = vector.broadcast %cst_89 : f32 to vector<2x64xf32>
    %456 = arith.addf %455, %454 : vector<2x64xf32>
    %457 = arith.divf %455, %456 : vector<2x64xf32>
    %458 = vector.extract_strided_slice %445 {offsets = [0, 128], sizes = [2, 64], strides = [1, 1]} : vector<2x256xf32> to vector<2x64xf32>
    %459 = math.tanh %458 : vector<2x64xf32>
    %460 = vector.extract_strided_slice %445 {offsets = [0, 192], sizes = [2, 64], strides = [1, 1]} : vector<2x256xf32> to vector<2x64xf32>
    %461 = arith.negf %460 : vector<2x64xf32>
    %462 = math.exp %461 : vector<2x64xf32>
    %cst_90 = arith.constant 1.000000e+00 : f32
    %463 = vector.broadcast %cst_90 : f32 to vector<2x64xf32>
    %464 = arith.addf %463, %462 : vector<2x64xf32>
    %465 = arith.divf %463, %464 : vector<2x64xf32>
    %466 = arith.mulf %457, %440 : vector<2x64xf32>
    %467 = arith.mulf %451, %459 : vector<2x64xf32>
    %468 = arith.addf %466, %467 : vector<2x64xf32>
    %469 = math.tanh %468 : vector<2x64xf32>
    %470 = arith.mulf %465, %469 : vector<2x64xf32>
    %c2_i32_91 = arith.constant 2 : i32
    %471 = vector.broadcast %c2_i32_91 : i32 to vector<2x1xi32>
    %472 = arith.cmpi sgt, %27, %471 : vector<2x1xi32>
    %473 = vector.shape_cast %472 : vector<2x1xi1> to vector<2x1xi1>
    %474 = vector.broadcast %473 : vector<2x1xi1> to vector<2x64xi1>
    %475 = arith.select %474, %470, %437 : vector<2x64xi1>, vector<2x64xf32>
    %476 = vector.shape_cast %472 : vector<2x1xi1> to vector<2x1xi1>
    %477 = vector.broadcast %476 : vector<2x1xi1> to vector<2x64xi1>
    %478 = arith.select %477, %468, %440 : vector<2x64xi1>, vector<2x64xf32>
    %479 = vector.extract_strided_slice %360 {offsets = [3, 0], sizes = [1, 256], strides = [1, 1]} : vector<16x256xf32> to vector<1x256xf32>
    %480 = vector.extract_strided_slice %360 {offsets = [11, 0], sizes = [1, 256], strides = [1, 1]} : vector<16x256xf32> to vector<1x256xf32>
    %481 = tpu.concatenate %479, %480 in 0 : vector<1x256xf32>, vector<1x256xf32> -> vector<2x256xf32>
    %cst_92 = arith.constant dense<0.000000e+00> : vector<2x256xf32>
    %482 = tpu.matmul %475, %362, %cst_92 {dimension_numbers = #tpu.dot_dimension_numbers<[1], [0], [0], [1], [0, 0, 1, 1], [], []>} : vector<2x64xf32>, vector<64x256xf32>, vector<2x256xf32> -> vector<2x256xf32>
    %483 = arith.addf %481, %482 : vector<2x256xf32>
    %484 = vector.extract_strided_slice %483 {offsets = [0, 0], sizes = [2, 64], strides = [1, 1]} : vector<2x256xf32> to vector<2x64xf32>
    %485 = arith.negf %484 : vector<2x64xf32>
    %486 = math.exp %485 : vector<2x64xf32>
    %cst_93 = arith.constant 1.000000e+00 : f32
    %487 = vector.broadcast %cst_93 : f32 to vector<2x64xf32>
    %488 = arith.addf %487, %486 : vector<2x64xf32>
    %489 = arith.divf %487, %488 : vector<2x64xf32>
    %490 = vector.extract_strided_slice %483 {offsets = [0, 64], sizes = [2, 64], strides = [1, 1]} : vector<2x256xf32> to vector<2x64xf32>
    %491 = arith.negf %490 : vector<2x64xf32>
    %492 = math.exp %491 : vector<2x64xf32>
    %cst_94 = arith.constant 1.000000e+00 : f32
    %493 = vector.broadcast %cst_94 : f32 to vector<2x64xf32>
    %494 = arith.addf %493, %492 : vector<2x64xf32>
    %495 = arith.divf %493, %494 : vector<2x64xf32>
    %496 = vector.extract_strided_slice %483 {offsets = [0, 128], sizes = [2, 64], strides = [1, 1]} : vector<2x256xf32> to vector<2x64xf32>
    %497 = math.tanh %496 : vector<2x64xf32>
    %498 = vector.extract_strided_slice %483 {offsets = [0, 192], sizes = [2, 64], strides = [1, 1]} : vector<2x256xf32> to vector<2x64xf32>
    %499 = arith.negf %498 : vector<2x64xf32>
    %500 = math.exp %499 : vector<2x64xf32>
    %cst_95 = arith.constant 1.000000e+00 : f32
    %501 = vector.broadcast %cst_95 : f32 to vector<2x64xf32>
    %502 = arith.addf %501, %500 : vector<2x64xf32>
    %503 = arith.divf %501, %502 : vector<2x64xf32>
    %504 = arith.mulf %495, %478 : vector<2x64xf32>
    %505 = arith.mulf %489, %497 : vector<2x64xf32>
    %506 = arith.addf %504, %505 : vector<2x64xf32>
    %507 = math.tanh %506 : vector<2x64xf32>
    %508 = arith.mulf %503, %507 : vector<2x64xf32>
    %c3_i32_96 = arith.constant 3 : i32
    %509 = vector.broadcast %c3_i32_96 : i32 to vector<2x1xi32>
    %510 = arith.cmpi sgt, %27, %509 : vector<2x1xi32>
    %511 = vector.shape_cast %510 : vector<2x1xi1> to vector<2x1xi1>
    %512 = vector.broadcast %511 : vector<2x1xi1> to vector<2x64xi1>
    %513 = arith.select %512, %508, %475 : vector<2x64xi1>, vector<2x64xf32>
    %514 = vector.shape_cast %510 : vector<2x1xi1> to vector<2x1xi1>
    %515 = vector.broadcast %514 : vector<2x1xi1> to vector<2x64xi1>
    %516 = arith.select %515, %506, %478 : vector<2x64xi1>, vector<2x64xf32>
    %517 = vector.extract_strided_slice %360 {offsets = [4, 0], sizes = [1, 256], strides = [1, 1]} : vector<16x256xf32> to vector<1x256xf32>
    %518 = vector.extract_strided_slice %360 {offsets = [12, 0], sizes = [1, 256], strides = [1, 1]} : vector<16x256xf32> to vector<1x256xf32>
    %519 = tpu.concatenate %517, %518 in 0 : vector<1x256xf32>, vector<1x256xf32> -> vector<2x256xf32>
    %cst_97 = arith.constant dense<0.000000e+00> : vector<2x256xf32>
    %520 = tpu.matmul %513, %362, %cst_97 {dimension_numbers = #tpu.dot_dimension_numbers<[1], [0], [0], [1], [0, 0, 1, 1], [], []>} : vector<2x64xf32>, vector<64x256xf32>, vector<2x256xf32> -> vector<2x256xf32>
    %521 = arith.addf %519, %520 : vector<2x256xf32>
    %522 = vector.extract_strided_slice %521 {offsets = [0, 0], sizes = [2, 64], strides = [1, 1]} : vector<2x256xf32> to vector<2x64xf32>
    %523 = arith.negf %522 : vector<2x64xf32>
    %524 = math.exp %523 : vector<2x64xf32>
    %cst_98 = arith.constant 1.000000e+00 : f32
    %525 = vector.broadcast %cst_98 : f32 to vector<2x64xf32>
    %526 = arith.addf %525, %524 : vector<2x64xf32>
    %527 = arith.divf %525, %526 : vector<2x64xf32>
    %528 = vector.extract_strided_slice %521 {offsets = [0, 64], sizes = [2, 64], strides = [1, 1]} : vector<2x256xf32> to vector<2x64xf32>
    %529 = arith.negf %528 : vector<2x64xf32>
    %530 = math.exp %529 : vector<2x64xf32>
    %cst_99 = arith.constant 1.000000e+00 : f32
    %531 = vector.broadcast %cst_99 : f32 to vector<2x64xf32>
    %532 = arith.addf %531, %530 : vector<2x64xf32>
    %533 = arith.divf %531, %532 : vector<2x64xf32>
    %534 = vector.extract_strided_slice %521 {offsets = [0, 128], sizes = [2, 64], strides = [1, 1]} : vector<2x256xf32> to vector<2x64xf32>
    %535 = math.tanh %534 : vector<2x64xf32>
    %536 = vector.extract_strided_slice %521 {offsets = [0, 192], sizes = [2, 64], strides = [1, 1]} : vector<2x256xf32> to vector<2x64xf32>
    %537 = arith.negf %536 : vector<2x64xf32>
    %538 = math.exp %537 : vector<2x64xf32>
    %cst_100 = arith.constant 1.000000e+00 : f32
    %539 = vector.broadcast %cst_100 : f32 to vector<2x64xf32>
    %540 = arith.addf %539, %538 : vector<2x64xf32>
    %541 = arith.divf %539, %540 : vector<2x64xf32>
    %542 = arith.mulf %533, %516 : vector<2x64xf32>
    %543 = arith.mulf %527, %535 : vector<2x64xf32>
    %544 = arith.addf %542, %543 : vector<2x64xf32>
    %545 = math.tanh %544 : vector<2x64xf32>
    %546 = arith.mulf %541, %545 : vector<2x64xf32>
    %c4_i32_101 = arith.constant 4 : i32
    %547 = vector.broadcast %c4_i32_101 : i32 to vector<2x1xi32>
    %548 = arith.cmpi sgt, %27, %547 : vector<2x1xi32>
    %549 = vector.shape_cast %548 : vector<2x1xi1> to vector<2x1xi1>
    %550 = vector.broadcast %549 : vector<2x1xi1> to vector<2x64xi1>
    %551 = arith.select %550, %546, %513 : vector<2x64xi1>, vector<2x64xf32>
    %552 = vector.shape_cast %548 : vector<2x1xi1> to vector<2x1xi1>
    %553 = vector.broadcast %552 : vector<2x1xi1> to vector<2x64xi1>
    %554 = arith.select %553, %544, %516 : vector<2x64xi1>, vector<2x64xf32>
    %555 = vector.extract_strided_slice %360 {offsets = [5, 0], sizes = [1, 256], strides = [1, 1]} : vector<16x256xf32> to vector<1x256xf32>
    %556 = vector.extract_strided_slice %360 {offsets = [13, 0], sizes = [1, 256], strides = [1, 1]} : vector<16x256xf32> to vector<1x256xf32>
    %557 = tpu.concatenate %555, %556 in 0 : vector<1x256xf32>, vector<1x256xf32> -> vector<2x256xf32>
    %cst_102 = arith.constant dense<0.000000e+00> : vector<2x256xf32>
    %558 = tpu.matmul %551, %362, %cst_102 {dimension_numbers = #tpu.dot_dimension_numbers<[1], [0], [0], [1], [0, 0, 1, 1], [], []>} : vector<2x64xf32>, vector<64x256xf32>, vector<2x256xf32> -> vector<2x256xf32>
    %559 = arith.addf %557, %558 : vector<2x256xf32>
    %560 = vector.extract_strided_slice %559 {offsets = [0, 0], sizes = [2, 64], strides = [1, 1]} : vector<2x256xf32> to vector<2x64xf32>
    %561 = arith.negf %560 : vector<2x64xf32>
    %562 = math.exp %561 : vector<2x64xf32>
    %cst_103 = arith.constant 1.000000e+00 : f32
    %563 = vector.broadcast %cst_103 : f32 to vector<2x64xf32>
    %564 = arith.addf %563, %562 : vector<2x64xf32>
    %565 = arith.divf %563, %564 : vector<2x64xf32>
    %566 = vector.extract_strided_slice %559 {offsets = [0, 64], sizes = [2, 64], strides = [1, 1]} : vector<2x256xf32> to vector<2x64xf32>
    %567 = arith.negf %566 : vector<2x64xf32>
    %568 = math.exp %567 : vector<2x64xf32>
    %cst_104 = arith.constant 1.000000e+00 : f32
    %569 = vector.broadcast %cst_104 : f32 to vector<2x64xf32>
    %570 = arith.addf %569, %568 : vector<2x64xf32>
    %571 = arith.divf %569, %570 : vector<2x64xf32>
    %572 = vector.extract_strided_slice %559 {offsets = [0, 128], sizes = [2, 64], strides = [1, 1]} : vector<2x256xf32> to vector<2x64xf32>
    %573 = math.tanh %572 : vector<2x64xf32>
    %574 = vector.extract_strided_slice %559 {offsets = [0, 192], sizes = [2, 64], strides = [1, 1]} : vector<2x256xf32> to vector<2x64xf32>
    %575 = arith.negf %574 : vector<2x64xf32>
    %576 = math.exp %575 : vector<2x64xf32>
    %cst_105 = arith.constant 1.000000e+00 : f32
    %577 = vector.broadcast %cst_105 : f32 to vector<2x64xf32>
    %578 = arith.addf %577, %576 : vector<2x64xf32>
    %579 = arith.divf %577, %578 : vector<2x64xf32>
    %580 = arith.mulf %571, %554 : vector<2x64xf32>
    %581 = arith.mulf %565, %573 : vector<2x64xf32>
    %582 = arith.addf %580, %581 : vector<2x64xf32>
    %583 = math.tanh %582 : vector<2x64xf32>
    %584 = arith.mulf %579, %583 : vector<2x64xf32>
    %c5_i32_106 = arith.constant 5 : i32
    %585 = vector.broadcast %c5_i32_106 : i32 to vector<2x1xi32>
    %586 = arith.cmpi sgt, %27, %585 : vector<2x1xi32>
    %587 = vector.shape_cast %586 : vector<2x1xi1> to vector<2x1xi1>
    %588 = vector.broadcast %587 : vector<2x1xi1> to vector<2x64xi1>
    %589 = arith.select %588, %584, %551 : vector<2x64xi1>, vector<2x64xf32>
    %590 = vector.shape_cast %586 : vector<2x1xi1> to vector<2x1xi1>
    %591 = vector.broadcast %590 : vector<2x1xi1> to vector<2x64xi1>
    %592 = arith.select %591, %582, %554 : vector<2x64xi1>, vector<2x64xf32>
    %593 = vector.extract_strided_slice %360 {offsets = [6, 0], sizes = [1, 256], strides = [1, 1]} : vector<16x256xf32> to vector<1x256xf32>
    %594 = vector.extract_strided_slice %360 {offsets = [14, 0], sizes = [1, 256], strides = [1, 1]} : vector<16x256xf32> to vector<1x256xf32>
    %595 = tpu.concatenate %593, %594 in 0 : vector<1x256xf32>, vector<1x256xf32> -> vector<2x256xf32>
    %cst_107 = arith.constant dense<0.000000e+00> : vector<2x256xf32>
    %596 = tpu.matmul %589, %362, %cst_107 {dimension_numbers = #tpu.dot_dimension_numbers<[1], [0], [0], [1], [0, 0, 1, 1], [], []>} : vector<2x64xf32>, vector<64x256xf32>, vector<2x256xf32> -> vector<2x256xf32>
    %597 = arith.addf %595, %596 : vector<2x256xf32>
    %598 = vector.extract_strided_slice %597 {offsets = [0, 0], sizes = [2, 64], strides = [1, 1]} : vector<2x256xf32> to vector<2x64xf32>
    %599 = arith.negf %598 : vector<2x64xf32>
    %600 = math.exp %599 : vector<2x64xf32>
    %cst_108 = arith.constant 1.000000e+00 : f32
    %601 = vector.broadcast %cst_108 : f32 to vector<2x64xf32>
    %602 = arith.addf %601, %600 : vector<2x64xf32>
    %603 = arith.divf %601, %602 : vector<2x64xf32>
    %604 = vector.extract_strided_slice %597 {offsets = [0, 64], sizes = [2, 64], strides = [1, 1]} : vector<2x256xf32> to vector<2x64xf32>
    %605 = arith.negf %604 : vector<2x64xf32>
    %606 = math.exp %605 : vector<2x64xf32>
    %cst_109 = arith.constant 1.000000e+00 : f32
    %607 = vector.broadcast %cst_109 : f32 to vector<2x64xf32>
    %608 = arith.addf %607, %606 : vector<2x64xf32>
    %609 = arith.divf %607, %608 : vector<2x64xf32>
    %610 = vector.extract_strided_slice %597 {offsets = [0, 128], sizes = [2, 64], strides = [1, 1]} : vector<2x256xf32> to vector<2x64xf32>
    %611 = math.tanh %610 : vector<2x64xf32>
    %612 = vector.extract_strided_slice %597 {offsets = [0, 192], sizes = [2, 64], strides = [1, 1]} : vector<2x256xf32> to vector<2x64xf32>
    %613 = arith.negf %612 : vector<2x64xf32>
    %614 = math.exp %613 : vector<2x64xf32>
    %cst_110 = arith.constant 1.000000e+00 : f32
    %615 = vector.broadcast %cst_110 : f32 to vector<2x64xf32>
    %616 = arith.addf %615, %614 : vector<2x64xf32>
    %617 = arith.divf %615, %616 : vector<2x64xf32>
    %618 = arith.mulf %609, %592 : vector<2x64xf32>
    %619 = arith.mulf %603, %611 : vector<2x64xf32>
    %620 = arith.addf %618, %619 : vector<2x64xf32>
    %621 = math.tanh %620 : vector<2x64xf32>
    %622 = arith.mulf %617, %621 : vector<2x64xf32>
    %c6_i32_111 = arith.constant 6 : i32
    %623 = vector.broadcast %c6_i32_111 : i32 to vector<2x1xi32>
    %624 = arith.cmpi sgt, %27, %623 : vector<2x1xi32>
    %625 = vector.shape_cast %624 : vector<2x1xi1> to vector<2x1xi1>
    %626 = vector.broadcast %625 : vector<2x1xi1> to vector<2x64xi1>
    %627 = arith.select %626, %622, %589 : vector<2x64xi1>, vector<2x64xf32>
    %628 = vector.shape_cast %624 : vector<2x1xi1> to vector<2x1xi1>
    %629 = vector.broadcast %628 : vector<2x1xi1> to vector<2x64xi1>
    %630 = arith.select %629, %620, %592 : vector<2x64xi1>, vector<2x64xf32>
    %631 = vector.extract_strided_slice %360 {offsets = [7, 0], sizes = [1, 256], strides = [1, 1]} : vector<16x256xf32> to vector<1x256xf32>
    %632 = vector.extract_strided_slice %360 {offsets = [15, 0], sizes = [1, 256], strides = [1, 1]} : vector<16x256xf32> to vector<1x256xf32>
    %633 = tpu.concatenate %631, %632 in 0 : vector<1x256xf32>, vector<1x256xf32> -> vector<2x256xf32>
    %cst_112 = arith.constant dense<0.000000e+00> : vector<2x256xf32>
    %634 = tpu.matmul %627, %362, %cst_112 {dimension_numbers = #tpu.dot_dimension_numbers<[1], [0], [0], [1], [0, 0, 1, 1], [], []>} : vector<2x64xf32>, vector<64x256xf32>, vector<2x256xf32> -> vector<2x256xf32>
    %635 = arith.addf %633, %634 : vector<2x256xf32>
    %636 = vector.extract_strided_slice %635 {offsets = [0, 0], sizes = [2, 64], strides = [1, 1]} : vector<2x256xf32> to vector<2x64xf32>
    %637 = arith.negf %636 : vector<2x64xf32>
    %638 = math.exp %637 : vector<2x64xf32>
    %cst_113 = arith.constant 1.000000e+00 : f32
    %639 = vector.broadcast %cst_113 : f32 to vector<2x64xf32>
    %640 = arith.addf %639, %638 : vector<2x64xf32>
    %641 = arith.divf %639, %640 : vector<2x64xf32>
    %642 = vector.extract_strided_slice %635 {offsets = [0, 64], sizes = [2, 64], strides = [1, 1]} : vector<2x256xf32> to vector<2x64xf32>
    %643 = arith.negf %642 : vector<2x64xf32>
    %644 = math.exp %643 : vector<2x64xf32>
    %cst_114 = arith.constant 1.000000e+00 : f32
    %645 = vector.broadcast %cst_114 : f32 to vector<2x64xf32>
    %646 = arith.addf %645, %644 : vector<2x64xf32>
    %647 = arith.divf %645, %646 : vector<2x64xf32>
    %648 = vector.extract_strided_slice %635 {offsets = [0, 128], sizes = [2, 64], strides = [1, 1]} : vector<2x256xf32> to vector<2x64xf32>
    %649 = math.tanh %648 : vector<2x64xf32>
    %650 = vector.extract_strided_slice %635 {offsets = [0, 192], sizes = [2, 64], strides = [1, 1]} : vector<2x256xf32> to vector<2x64xf32>
    %651 = arith.negf %650 : vector<2x64xf32>
    %652 = math.exp %651 : vector<2x64xf32>
    %cst_115 = arith.constant 1.000000e+00 : f32
    %653 = vector.broadcast %cst_115 : f32 to vector<2x64xf32>
    %654 = arith.addf %653, %652 : vector<2x64xf32>
    %655 = arith.divf %653, %654 : vector<2x64xf32>
    %656 = arith.mulf %647, %630 : vector<2x64xf32>
    %657 = arith.mulf %641, %649 : vector<2x64xf32>
    %658 = arith.addf %656, %657 : vector<2x64xf32>
    %659 = math.tanh %658 : vector<2x64xf32>
    %660 = arith.mulf %655, %659 : vector<2x64xf32>
    %c7_i32_116 = arith.constant 7 : i32
    %661 = vector.broadcast %c7_i32_116 : i32 to vector<2x1xi32>
    %662 = arith.cmpi sgt, %27, %661 : vector<2x1xi32>
    %663 = vector.shape_cast %662 : vector<2x1xi1> to vector<2x1xi1>
    %664 = vector.broadcast %663 : vector<2x1xi1> to vector<2x64xi1>
    %665 = arith.select %664, %660, %627 : vector<2x64xi1>, vector<2x64xf32>
    %cst_117 = arith.constant 0.000000e+00 : f32
    %666 = vector.broadcast %cst_117 : f32 to vector<16x64xf32>
    %667 = arith.maximumf %361, %666 : vector<16x64xf32>
    %c0_118 = arith.constant 0 : index
    %c0_119 = arith.constant 0 : index
    %668 = vector.load %arg18[%c0_118, %c0_119] : memref<64x64xf32, #tpu.memory_space<vmem>>, vector<64x64xf32>
    %cst_120 = arith.constant dense<0.000000e+00> : vector<16x64xf32>
    %669 = tpu.matmul %667, %668, %cst_120 {dimension_numbers = #tpu.dot_dimension_numbers<[1], [0], [0], [1], [0, 0, 1, 1], [], []>} : vector<16x64xf32>, vector<64x64xf32>, vector<16x64xf32> -> vector<16x64xf32>
    %c0_121 = arith.constant 0 : index
    %c0_122 = arith.constant 0 : index
    %670 = vector.load %arg19[%c0_121, %c0_122] : memref<1x64xf32, #tpu.memory_space<vmem>>, vector<1x64xf32>
    %671 = vector.broadcast %670 : vector<1x64xf32> to vector<16x64xf32>
    %672 = arith.addf %669, %671 : vector<16x64xf32>
    %cst_123 = arith.constant dense<0xFF800000> : vector<16xf32>
    %673 = vector.multi_reduction <maximumf>, %672, %cst_123 [1] : vector<16x64xf32> to vector<16xf32>
    %674 = vector.shape_cast %673 : vector<16xf32> to vector<16x1xf32>
    %675 = vector.broadcast %674 : vector<16x1xf32> to vector<16x64xf32>
    %676 = arith.subf %672, %675 : vector<16x64xf32>
    %677 = math.exp %676 : vector<16x64xf32>
    %cst_124 = arith.constant dense<0.000000e+00> : vector<16xf32>
    %678 = vector.multi_reduction <add>, %677, %cst_124 [1] : vector<16x64xf32> to vector<16xf32>
    %679 = vector.shape_cast %678 : vector<16xf32> to vector<16x1xf32>
    %680 = tpu.reciprocal %679 {approx = true} : vector<16x1xf32> -> vector<16x1xf32>
    %681 = vector.broadcast %680 : vector<16x1xf32> to vector<16x64xf32>
    %682 = arith.mulf %677, %681 : vector<16x64xf32>
    %683 = arith.mulf %682, %361 : vector<16x64xf32>
    %c0_125 = arith.constant 0 : index
    %c0_126 = arith.constant 0 : index
    %684 = vector.load %arg15[%c0_125, %c0_126] : memref<64x256xf32, #tpu.memory_space<vmem>>, vector<64x256xf32>
    %c0_127 = arith.constant 0 : index
    %c0_128 = arith.constant 0 : index
    %685 = vector.load %arg17[%c0_127, %c0_128] : memref<1x256xf32, #tpu.memory_space<vmem>>, vector<1x256xf32>
    %cst_129 = arith.constant dense<0.000000e+00> : vector<2x256xf32>
    %686 = tpu.matmul %665, %684, %cst_129 {dimension_numbers = #tpu.dot_dimension_numbers<[1], [0], [0], [1], [0, 0, 1, 1], [], []>} : vector<2x64xf32>, vector<64x256xf32>, vector<2x256xf32> -> vector<2x256xf32>
    %687 = vector.broadcast %685 : vector<1x256xf32> to vector<2x256xf32>
    %688 = arith.addf %686, %687 : vector<2x256xf32>
    %cst_130 = arith.constant dense<0.000000e+00> : vector<16x256xf32>
    %689 = tpu.matmul %683, %684, %cst_130 {dimension_numbers = #tpu.dot_dimension_numbers<[1], [0], [0], [1], [0, 0, 1, 1], [], []>} : vector<16x64xf32>, vector<64x256xf32>, vector<16x256xf32> -> vector<16x256xf32>
    %690 = vector.broadcast %685 : vector<1x256xf32> to vector<16x256xf32>
    %691 = arith.addf %689, %690 : vector<16x256xf32>
    %c0_131 = arith.constant 0 : index
    %c0_132 = arith.constant 0 : index
    %692 = vector.load %arg16[%c0_131, %c0_132] : memref<64x256xf32, #tpu.memory_space<vmem>>, vector<64x256xf32>
    %c1_i32_133 = arith.constant 1 : i32
    %693 = vector.broadcast %c1_i32_133 : i32 to vector<2x1xi32>
    %694 = arith.addi %27, %693 : vector<2x1xi32>
    %cst_134 = arith.constant 0.000000e+00 : f32
    %695 = vector.broadcast %cst_134 : f32 to vector<2x64xf32>
    %cst_135 = arith.constant 0.000000e+00 : f32
    %696 = vector.broadcast %cst_135 : f32 to vector<2x64xf32>
    %cst_136 = arith.constant dense<0.000000e+00> : vector<2x256xf32>
    %697 = tpu.matmul %695, %692, %cst_136 {dimension_numbers = #tpu.dot_dimension_numbers<[1], [0], [0], [1], [0, 0, 1, 1], [], []>} : vector<2x64xf32>, vector<64x256xf32>, vector<2x256xf32> -> vector<2x256xf32>
    %698 = arith.addf %688, %697 : vector<2x256xf32>
    %699 = vector.extract_strided_slice %698 {offsets = [0, 0], sizes = [2, 64], strides = [1, 1]} : vector<2x256xf32> to vector<2x64xf32>
    %700 = arith.negf %699 : vector<2x64xf32>
    %701 = math.exp %700 : vector<2x64xf32>
    %cst_137 = arith.constant 1.000000e+00 : f32
    %702 = vector.broadcast %cst_137 : f32 to vector<2x64xf32>
    %703 = arith.addf %702, %701 : vector<2x64xf32>
    %704 = arith.divf %702, %703 : vector<2x64xf32>
    %705 = vector.extract_strided_slice %698 {offsets = [0, 64], sizes = [2, 64], strides = [1, 1]} : vector<2x256xf32> to vector<2x64xf32>
    %706 = arith.negf %705 : vector<2x64xf32>
    %707 = math.exp %706 : vector<2x64xf32>
    %cst_138 = arith.constant 1.000000e+00 : f32
    %708 = vector.broadcast %cst_138 : f32 to vector<2x64xf32>
    %709 = arith.addf %708, %707 : vector<2x64xf32>
    %710 = arith.divf %708, %709 : vector<2x64xf32>
    %711 = vector.extract_strided_slice %698 {offsets = [0, 128], sizes = [2, 64], strides = [1, 1]} : vector<2x256xf32> to vector<2x64xf32>
    %712 = math.tanh %711 : vector<2x64xf32>
    %713 = vector.extract_strided_slice %698 {offsets = [0, 192], sizes = [2, 64], strides = [1, 1]} : vector<2x256xf32> to vector<2x64xf32>
    %714 = arith.negf %713 : vector<2x64xf32>
    %715 = math.exp %714 : vector<2x64xf32>
    %cst_139 = arith.constant 1.000000e+00 : f32
    %716 = vector.broadcast %cst_139 : f32 to vector<2x64xf32>
    %717 = arith.addf %716, %715 : vector<2x64xf32>
    %718 = arith.divf %716, %717 : vector<2x64xf32>
    %719 = arith.mulf %710, %696 : vector<2x64xf32>
    %720 = arith.mulf %704, %712 : vector<2x64xf32>
    %721 = arith.addf %719, %720 : vector<2x64xf32>
    %722 = math.tanh %721 : vector<2x64xf32>
    %723 = arith.mulf %718, %722 : vector<2x64xf32>
    %c0_i32_140 = arith.constant 0 : i32
    %724 = vector.broadcast %c0_i32_140 : i32 to vector<2x1xi32>
    %725 = arith.cmpi sgt, %694, %724 : vector<2x1xi32>
    %726 = vector.shape_cast %725 : vector<2x1xi1> to vector<2x1xi1>
    %727 = vector.broadcast %726 : vector<2x1xi1> to vector<2x64xi1>
    %728 = arith.select %727, %723, %695 : vector<2x64xi1>, vector<2x64xf32>
    %729 = vector.shape_cast %725 : vector<2x1xi1> to vector<2x1xi1>
    %730 = vector.broadcast %729 : vector<2x1xi1> to vector<2x64xi1>
    %731 = arith.select %730, %721, %696 : vector<2x64xi1>, vector<2x64xf32>
    %732 = vector.extract_strided_slice %691 {offsets = [0, 0], sizes = [1, 256], strides = [1, 1]} : vector<16x256xf32> to vector<1x256xf32>
    %733 = vector.extract_strided_slice %691 {offsets = [8, 0], sizes = [1, 256], strides = [1, 1]} : vector<16x256xf32> to vector<1x256xf32>
    %734 = tpu.concatenate %732, %733 in 0 : vector<1x256xf32>, vector<1x256xf32> -> vector<2x256xf32>
    %cst_141 = arith.constant dense<0.000000e+00> : vector<2x256xf32>
    %735 = tpu.matmul %728, %692, %cst_141 {dimension_numbers = #tpu.dot_dimension_numbers<[1], [0], [0], [1], [0, 0, 1, 1], [], []>} : vector<2x64xf32>, vector<64x256xf32>, vector<2x256xf32> -> vector<2x256xf32>
    %736 = arith.addf %734, %735 : vector<2x256xf32>
    %737 = vector.extract_strided_slice %736 {offsets = [0, 0], sizes = [2, 64], strides = [1, 1]} : vector<2x256xf32> to vector<2x64xf32>
    %738 = arith.negf %737 : vector<2x64xf32>
    %739 = math.exp %738 : vector<2x64xf32>
    %cst_142 = arith.constant 1.000000e+00 : f32
    %740 = vector.broadcast %cst_142 : f32 to vector<2x64xf32>
    %741 = arith.addf %740, %739 : vector<2x64xf32>
    %742 = arith.divf %740, %741 : vector<2x64xf32>
    %743 = vector.extract_strided_slice %736 {offsets = [0, 64], sizes = [2, 64], strides = [1, 1]} : vector<2x256xf32> to vector<2x64xf32>
    %744 = arith.negf %743 : vector<2x64xf32>
    %745 = math.exp %744 : vector<2x64xf32>
    %cst_143 = arith.constant 1.000000e+00 : f32
    %746 = vector.broadcast %cst_143 : f32 to vector<2x64xf32>
    %747 = arith.addf %746, %745 : vector<2x64xf32>
    %748 = arith.divf %746, %747 : vector<2x64xf32>
    %749 = vector.extract_strided_slice %736 {offsets = [0, 128], sizes = [2, 64], strides = [1, 1]} : vector<2x256xf32> to vector<2x64xf32>
    %750 = math.tanh %749 : vector<2x64xf32>
    %751 = vector.extract_strided_slice %736 {offsets = [0, 192], sizes = [2, 64], strides = [1, 1]} : vector<2x256xf32> to vector<2x64xf32>
    %752 = arith.negf %751 : vector<2x64xf32>
    %753 = math.exp %752 : vector<2x64xf32>
    %cst_144 = arith.constant 1.000000e+00 : f32
    %754 = vector.broadcast %cst_144 : f32 to vector<2x64xf32>
    %755 = arith.addf %754, %753 : vector<2x64xf32>
    %756 = arith.divf %754, %755 : vector<2x64xf32>
    %757 = arith.mulf %748, %731 : vector<2x64xf32>
    %758 = arith.mulf %742, %750 : vector<2x64xf32>
    %759 = arith.addf %757, %758 : vector<2x64xf32>
    %760 = math.tanh %759 : vector<2x64xf32>
    %761 = arith.mulf %756, %760 : vector<2x64xf32>
    %c1_i32_145 = arith.constant 1 : i32
    %762 = vector.broadcast %c1_i32_145 : i32 to vector<2x1xi32>
    %763 = arith.cmpi sgt, %694, %762 : vector<2x1xi32>
    %764 = vector.shape_cast %763 : vector<2x1xi1> to vector<2x1xi1>
    %765 = vector.broadcast %764 : vector<2x1xi1> to vector<2x64xi1>
    %766 = arith.select %765, %761, %728 : vector<2x64xi1>, vector<2x64xf32>
    %767 = vector.shape_cast %763 : vector<2x1xi1> to vector<2x1xi1>
    %768 = vector.broadcast %767 : vector<2x1xi1> to vector<2x64xi1>
    %769 = arith.select %768, %759, %731 : vector<2x64xi1>, vector<2x64xf32>
    %770 = vector.extract_strided_slice %691 {offsets = [1, 0], sizes = [1, 256], strides = [1, 1]} : vector<16x256xf32> to vector<1x256xf32>
    %771 = vector.extract_strided_slice %691 {offsets = [9, 0], sizes = [1, 256], strides = [1, 1]} : vector<16x256xf32> to vector<1x256xf32>
    %772 = tpu.concatenate %770, %771 in 0 : vector<1x256xf32>, vector<1x256xf32> -> vector<2x256xf32>
    %cst_146 = arith.constant dense<0.000000e+00> : vector<2x256xf32>
    %773 = tpu.matmul %766, %692, %cst_146 {dimension_numbers = #tpu.dot_dimension_numbers<[1], [0], [0], [1], [0, 0, 1, 1], [], []>} : vector<2x64xf32>, vector<64x256xf32>, vector<2x256xf32> -> vector<2x256xf32>
    %774 = arith.addf %772, %773 : vector<2x256xf32>
    %775 = vector.extract_strided_slice %774 {offsets = [0, 0], sizes = [2, 64], strides = [1, 1]} : vector<2x256xf32> to vector<2x64xf32>
    %776 = arith.negf %775 : vector<2x64xf32>
    %777 = math.exp %776 : vector<2x64xf32>
    %cst_147 = arith.constant 1.000000e+00 : f32
    %778 = vector.broadcast %cst_147 : f32 to vector<2x64xf32>
    %779 = arith.addf %778, %777 : vector<2x64xf32>
    %780 = arith.divf %778, %779 : vector<2x64xf32>
    %781 = vector.extract_strided_slice %774 {offsets = [0, 64], sizes = [2, 64], strides = [1, 1]} : vector<2x256xf32> to vector<2x64xf32>
    %782 = arith.negf %781 : vector<2x64xf32>
    %783 = math.exp %782 : vector<2x64xf32>
    %cst_148 = arith.constant 1.000000e+00 : f32
    %784 = vector.broadcast %cst_148 : f32 to vector<2x64xf32>
    %785 = arith.addf %784, %783 : vector<2x64xf32>
    %786 = arith.divf %784, %785 : vector<2x64xf32>
    %787 = vector.extract_strided_slice %774 {offsets = [0, 128], sizes = [2, 64], strides = [1, 1]} : vector<2x256xf32> to vector<2x64xf32>
    %788 = math.tanh %787 : vector<2x64xf32>
    %789 = vector.extract_strided_slice %774 {offsets = [0, 192], sizes = [2, 64], strides = [1, 1]} : vector<2x256xf32> to vector<2x64xf32>
    %790 = arith.negf %789 : vector<2x64xf32>
    %791 = math.exp %790 : vector<2x64xf32>
    %cst_149 = arith.constant 1.000000e+00 : f32
    %792 = vector.broadcast %cst_149 : f32 to vector<2x64xf32>
    %793 = arith.addf %792, %791 : vector<2x64xf32>
    %794 = arith.divf %792, %793 : vector<2x64xf32>
    %795 = arith.mulf %786, %769 : vector<2x64xf32>
    %796 = arith.mulf %780, %788 : vector<2x64xf32>
    %797 = arith.addf %795, %796 : vector<2x64xf32>
    %798 = math.tanh %797 : vector<2x64xf32>
    %799 = arith.mulf %794, %798 : vector<2x64xf32>
    %c2_i32_150 = arith.constant 2 : i32
    %800 = vector.broadcast %c2_i32_150 : i32 to vector<2x1xi32>
    %801 = arith.cmpi sgt, %694, %800 : vector<2x1xi32>
    %802 = vector.shape_cast %801 : vector<2x1xi1> to vector<2x1xi1>
    %803 = vector.broadcast %802 : vector<2x1xi1> to vector<2x64xi1>
    %804 = arith.select %803, %799, %766 : vector<2x64xi1>, vector<2x64xf32>
    %805 = vector.shape_cast %801 : vector<2x1xi1> to vector<2x1xi1>
    %806 = vector.broadcast %805 : vector<2x1xi1> to vector<2x64xi1>
    %807 = arith.select %806, %797, %769 : vector<2x64xi1>, vector<2x64xf32>
    %808 = vector.extract_strided_slice %691 {offsets = [2, 0], sizes = [1, 256], strides = [1, 1]} : vector<16x256xf32> to vector<1x256xf32>
    %809 = vector.extract_strided_slice %691 {offsets = [10, 0], sizes = [1, 256], strides = [1, 1]} : vector<16x256xf32> to vector<1x256xf32>
    %810 = tpu.concatenate %808, %809 in 0 : vector<1x256xf32>, vector<1x256xf32> -> vector<2x256xf32>
    %cst_151 = arith.constant dense<0.000000e+00> : vector<2x256xf32>
    %811 = tpu.matmul %804, %692, %cst_151 {dimension_numbers = #tpu.dot_dimension_numbers<[1], [0], [0], [1], [0, 0, 1, 1], [], []>} : vector<2x64xf32>, vector<64x256xf32>, vector<2x256xf32> -> vector<2x256xf32>
    %812 = arith.addf %810, %811 : vector<2x256xf32>
    %813 = vector.extract_strided_slice %812 {offsets = [0, 0], sizes = [2, 64], strides = [1, 1]} : vector<2x256xf32> to vector<2x64xf32>
    %814 = arith.negf %813 : vector<2x64xf32>
    %815 = math.exp %814 : vector<2x64xf32>
    %cst_152 = arith.constant 1.000000e+00 : f32
    %816 = vector.broadcast %cst_152 : f32 to vector<2x64xf32>
    %817 = arith.addf %816, %815 : vector<2x64xf32>
    %818 = arith.divf %816, %817 : vector<2x64xf32>
    %819 = vector.extract_strided_slice %812 {offsets = [0, 64], sizes = [2, 64], strides = [1, 1]} : vector<2x256xf32> to vector<2x64xf32>
    %820 = arith.negf %819 : vector<2x64xf32>
    %821 = math.exp %820 : vector<2x64xf32>
    %cst_153 = arith.constant 1.000000e+00 : f32
    %822 = vector.broadcast %cst_153 : f32 to vector<2x64xf32>
    %823 = arith.addf %822, %821 : vector<2x64xf32>
    %824 = arith.divf %822, %823 : vector<2x64xf32>
    %825 = vector.extract_strided_slice %812 {offsets = [0, 128], sizes = [2, 64], strides = [1, 1]} : vector<2x256xf32> to vector<2x64xf32>
    %826 = math.tanh %825 : vector<2x64xf32>
    %827 = vector.extract_strided_slice %812 {offsets = [0, 192], sizes = [2, 64], strides = [1, 1]} : vector<2x256xf32> to vector<2x64xf32>
    %828 = arith.negf %827 : vector<2x64xf32>
    %829 = math.exp %828 : vector<2x64xf32>
    %cst_154 = arith.constant 1.000000e+00 : f32
    %830 = vector.broadcast %cst_154 : f32 to vector<2x64xf32>
    %831 = arith.addf %830, %829 : vector<2x64xf32>
    %832 = arith.divf %830, %831 : vector<2x64xf32>
    %833 = arith.mulf %824, %807 : vector<2x64xf32>
    %834 = arith.mulf %818, %826 : vector<2x64xf32>
    %835 = arith.addf %833, %834 : vector<2x64xf32>
    %836 = math.tanh %835 : vector<2x64xf32>
    %837 = arith.mulf %832, %836 : vector<2x64xf32>
    %c3_i32_155 = arith.constant 3 : i32
    %838 = vector.broadcast %c3_i32_155 : i32 to vector<2x1xi32>
    %839 = arith.cmpi sgt, %694, %838 : vector<2x1xi32>
    %840 = vector.shape_cast %839 : vector<2x1xi1> to vector<2x1xi1>
    %841 = vector.broadcast %840 : vector<2x1xi1> to vector<2x64xi1>
    %842 = arith.select %841, %837, %804 : vector<2x64xi1>, vector<2x64xf32>
    %843 = vector.shape_cast %839 : vector<2x1xi1> to vector<2x1xi1>
    %844 = vector.broadcast %843 : vector<2x1xi1> to vector<2x64xi1>
    %845 = arith.select %844, %835, %807 : vector<2x64xi1>, vector<2x64xf32>
    %846 = vector.extract_strided_slice %691 {offsets = [3, 0], sizes = [1, 256], strides = [1, 1]} : vector<16x256xf32> to vector<1x256xf32>
    %847 = vector.extract_strided_slice %691 {offsets = [11, 0], sizes = [1, 256], strides = [1, 1]} : vector<16x256xf32> to vector<1x256xf32>
    %848 = tpu.concatenate %846, %847 in 0 : vector<1x256xf32>, vector<1x256xf32> -> vector<2x256xf32>
    %cst_156 = arith.constant dense<0.000000e+00> : vector<2x256xf32>
    %849 = tpu.matmul %842, %692, %cst_156 {dimension_numbers = #tpu.dot_dimension_numbers<[1], [0], [0], [1], [0, 0, 1, 1], [], []>} : vector<2x64xf32>, vector<64x256xf32>, vector<2x256xf32> -> vector<2x256xf32>
    %850 = arith.addf %848, %849 : vector<2x256xf32>
    %851 = vector.extract_strided_slice %850 {offsets = [0, 0], sizes = [2, 64], strides = [1, 1]} : vector<2x256xf32> to vector<2x64xf32>
    %852 = arith.negf %851 : vector<2x64xf32>
    %853 = math.exp %852 : vector<2x64xf32>
    %cst_157 = arith.constant 1.000000e+00 : f32
    %854 = vector.broadcast %cst_157 : f32 to vector<2x64xf32>
    %855 = arith.addf %854, %853 : vector<2x64xf32>
    %856 = arith.divf %854, %855 : vector<2x64xf32>
    %857 = vector.extract_strided_slice %850 {offsets = [0, 64], sizes = [2, 64], strides = [1, 1]} : vector<2x256xf32> to vector<2x64xf32>
    %858 = arith.negf %857 : vector<2x64xf32>
    %859 = math.exp %858 : vector<2x64xf32>
    %cst_158 = arith.constant 1.000000e+00 : f32
    %860 = vector.broadcast %cst_158 : f32 to vector<2x64xf32>
    %861 = arith.addf %860, %859 : vector<2x64xf32>
    %862 = arith.divf %860, %861 : vector<2x64xf32>
    %863 = vector.extract_strided_slice %850 {offsets = [0, 128], sizes = [2, 64], strides = [1, 1]} : vector<2x256xf32> to vector<2x64xf32>
    %864 = math.tanh %863 : vector<2x64xf32>
    %865 = vector.extract_strided_slice %850 {offsets = [0, 192], sizes = [2, 64], strides = [1, 1]} : vector<2x256xf32> to vector<2x64xf32>
    %866 = arith.negf %865 : vector<2x64xf32>
    %867 = math.exp %866 : vector<2x64xf32>
    %cst_159 = arith.constant 1.000000e+00 : f32
    %868 = vector.broadcast %cst_159 : f32 to vector<2x64xf32>
    %869 = arith.addf %868, %867 : vector<2x64xf32>
    %870 = arith.divf %868, %869 : vector<2x64xf32>
    %871 = arith.mulf %862, %845 : vector<2x64xf32>
    %872 = arith.mulf %856, %864 : vector<2x64xf32>
    %873 = arith.addf %871, %872 : vector<2x64xf32>
    %874 = math.tanh %873 : vector<2x64xf32>
    %875 = arith.mulf %870, %874 : vector<2x64xf32>
    %c4_i32_160 = arith.constant 4 : i32
    %876 = vector.broadcast %c4_i32_160 : i32 to vector<2x1xi32>
    %877 = arith.cmpi sgt, %694, %876 : vector<2x1xi32>
    %878 = vector.shape_cast %877 : vector<2x1xi1> to vector<2x1xi1>
    %879 = vector.broadcast %878 : vector<2x1xi1> to vector<2x64xi1>
    %880 = arith.select %879, %875, %842 : vector<2x64xi1>, vector<2x64xf32>
    %881 = vector.shape_cast %877 : vector<2x1xi1> to vector<2x1xi1>
    %882 = vector.broadcast %881 : vector<2x1xi1> to vector<2x64xi1>
    %883 = arith.select %882, %873, %845 : vector<2x64xi1>, vector<2x64xf32>
    %884 = vector.extract_strided_slice %691 {offsets = [4, 0], sizes = [1, 256], strides = [1, 1]} : vector<16x256xf32> to vector<1x256xf32>
    %885 = vector.extract_strided_slice %691 {offsets = [12, 0], sizes = [1, 256], strides = [1, 1]} : vector<16x256xf32> to vector<1x256xf32>
    %886 = tpu.concatenate %884, %885 in 0 : vector<1x256xf32>, vector<1x256xf32> -> vector<2x256xf32>
    %cst_161 = arith.constant dense<0.000000e+00> : vector<2x256xf32>
    %887 = tpu.matmul %880, %692, %cst_161 {dimension_numbers = #tpu.dot_dimension_numbers<[1], [0], [0], [1], [0, 0, 1, 1], [], []>} : vector<2x64xf32>, vector<64x256xf32>, vector<2x256xf32> -> vector<2x256xf32>
    %888 = arith.addf %886, %887 : vector<2x256xf32>
    %889 = vector.extract_strided_slice %888 {offsets = [0, 0], sizes = [2, 64], strides = [1, 1]} : vector<2x256xf32> to vector<2x64xf32>
    %890 = arith.negf %889 : vector<2x64xf32>
    %891 = math.exp %890 : vector<2x64xf32>
    %cst_162 = arith.constant 1.000000e+00 : f32
    %892 = vector.broadcast %cst_162 : f32 to vector<2x64xf32>
    %893 = arith.addf %892, %891 : vector<2x64xf32>
    %894 = arith.divf %892, %893 : vector<2x64xf32>
    %895 = vector.extract_strided_slice %888 {offsets = [0, 64], sizes = [2, 64], strides = [1, 1]} : vector<2x256xf32> to vector<2x64xf32>
    %896 = arith.negf %895 : vector<2x64xf32>
    %897 = math.exp %896 : vector<2x64xf32>
    %cst_163 = arith.constant 1.000000e+00 : f32
    %898 = vector.broadcast %cst_163 : f32 to vector<2x64xf32>
    %899 = arith.addf %898, %897 : vector<2x64xf32>
    %900 = arith.divf %898, %899 : vector<2x64xf32>
    %901 = vector.extract_strided_slice %888 {offsets = [0, 128], sizes = [2, 64], strides = [1, 1]} : vector<2x256xf32> to vector<2x64xf32>
    %902 = math.tanh %901 : vector<2x64xf32>
    %903 = vector.extract_strided_slice %888 {offsets = [0, 192], sizes = [2, 64], strides = [1, 1]} : vector<2x256xf32> to vector<2x64xf32>
    %904 = arith.negf %903 : vector<2x64xf32>
    %905 = math.exp %904 : vector<2x64xf32>
    %cst_164 = arith.constant 1.000000e+00 : f32
    %906 = vector.broadcast %cst_164 : f32 to vector<2x64xf32>
    %907 = arith.addf %906, %905 : vector<2x64xf32>
    %908 = arith.divf %906, %907 : vector<2x64xf32>
    %909 = arith.mulf %900, %883 : vector<2x64xf32>
    %910 = arith.mulf %894, %902 : vector<2x64xf32>
    %911 = arith.addf %909, %910 : vector<2x64xf32>
    %912 = math.tanh %911 : vector<2x64xf32>
    %913 = arith.mulf %908, %912 : vector<2x64xf32>
    %c5_i32_165 = arith.constant 5 : i32
    %914 = vector.broadcast %c5_i32_165 : i32 to vector<2x1xi32>
    %915 = arith.cmpi sgt, %694, %914 : vector<2x1xi32>
    %916 = vector.shape_cast %915 : vector<2x1xi1> to vector<2x1xi1>
    %917 = vector.broadcast %916 : vector<2x1xi1> to vector<2x64xi1>
    %918 = arith.select %917, %913, %880 : vector<2x64xi1>, vector<2x64xf32>
    %919 = vector.shape_cast %915 : vector<2x1xi1> to vector<2x1xi1>
    %920 = vector.broadcast %919 : vector<2x1xi1> to vector<2x64xi1>
    %921 = arith.select %920, %911, %883 : vector<2x64xi1>, vector<2x64xf32>
    %922 = vector.extract_strided_slice %691 {offsets = [5, 0], sizes = [1, 256], strides = [1, 1]} : vector<16x256xf32> to vector<1x256xf32>
    %923 = vector.extract_strided_slice %691 {offsets = [13, 0], sizes = [1, 256], strides = [1, 1]} : vector<16x256xf32> to vector<1x256xf32>
    %924 = tpu.concatenate %922, %923 in 0 : vector<1x256xf32>, vector<1x256xf32> -> vector<2x256xf32>
    %cst_166 = arith.constant dense<0.000000e+00> : vector<2x256xf32>
    %925 = tpu.matmul %918, %692, %cst_166 {dimension_numbers = #tpu.dot_dimension_numbers<[1], [0], [0], [1], [0, 0, 1, 1], [], []>} : vector<2x64xf32>, vector<64x256xf32>, vector<2x256xf32> -> vector<2x256xf32>
    %926 = arith.addf %924, %925 : vector<2x256xf32>
    %927 = vector.extract_strided_slice %926 {offsets = [0, 0], sizes = [2, 64], strides = [1, 1]} : vector<2x256xf32> to vector<2x64xf32>
    %928 = arith.negf %927 : vector<2x64xf32>
    %929 = math.exp %928 : vector<2x64xf32>
    %cst_167 = arith.constant 1.000000e+00 : f32
    %930 = vector.broadcast %cst_167 : f32 to vector<2x64xf32>
    %931 = arith.addf %930, %929 : vector<2x64xf32>
    %932 = arith.divf %930, %931 : vector<2x64xf32>
    %933 = vector.extract_strided_slice %926 {offsets = [0, 64], sizes = [2, 64], strides = [1, 1]} : vector<2x256xf32> to vector<2x64xf32>
    %934 = arith.negf %933 : vector<2x64xf32>
    %935 = math.exp %934 : vector<2x64xf32>
    %cst_168 = arith.constant 1.000000e+00 : f32
    %936 = vector.broadcast %cst_168 : f32 to vector<2x64xf32>
    %937 = arith.addf %936, %935 : vector<2x64xf32>
    %938 = arith.divf %936, %937 : vector<2x64xf32>
    %939 = vector.extract_strided_slice %926 {offsets = [0, 128], sizes = [2, 64], strides = [1, 1]} : vector<2x256xf32> to vector<2x64xf32>
    %940 = math.tanh %939 : vector<2x64xf32>
    %941 = vector.extract_strided_slice %926 {offsets = [0, 192], sizes = [2, 64], strides = [1, 1]} : vector<2x256xf32> to vector<2x64xf32>
    %942 = arith.negf %941 : vector<2x64xf32>
    %943 = math.exp %942 : vector<2x64xf32>
    %cst_169 = arith.constant 1.000000e+00 : f32
    %944 = vector.broadcast %cst_169 : f32 to vector<2x64xf32>
    %945 = arith.addf %944, %943 : vector<2x64xf32>
    %946 = arith.divf %944, %945 : vector<2x64xf32>
    %947 = arith.mulf %938, %921 : vector<2x64xf32>
    %948 = arith.mulf %932, %940 : vector<2x64xf32>
    %949 = arith.addf %947, %948 : vector<2x64xf32>
    %950 = math.tanh %949 : vector<2x64xf32>
    %951 = arith.mulf %946, %950 : vector<2x64xf32>
    %c6_i32_170 = arith.constant 6 : i32
    %952 = vector.broadcast %c6_i32_170 : i32 to vector<2x1xi32>
    %953 = arith.cmpi sgt, %694, %952 : vector<2x1xi32>
    %954 = vector.shape_cast %953 : vector<2x1xi1> to vector<2x1xi1>
    %955 = vector.broadcast %954 : vector<2x1xi1> to vector<2x64xi1>
    %956 = arith.select %955, %951, %918 : vector<2x64xi1>, vector<2x64xf32>
    %957 = vector.shape_cast %953 : vector<2x1xi1> to vector<2x1xi1>
    %958 = vector.broadcast %957 : vector<2x1xi1> to vector<2x64xi1>
    %959 = arith.select %958, %949, %921 : vector<2x64xi1>, vector<2x64xf32>
    %960 = vector.extract_strided_slice %691 {offsets = [6, 0], sizes = [1, 256], strides = [1, 1]} : vector<16x256xf32> to vector<1x256xf32>
    %961 = vector.extract_strided_slice %691 {offsets = [14, 0], sizes = [1, 256], strides = [1, 1]} : vector<16x256xf32> to vector<1x256xf32>
    %962 = tpu.concatenate %960, %961 in 0 : vector<1x256xf32>, vector<1x256xf32> -> vector<2x256xf32>
    %cst_171 = arith.constant dense<0.000000e+00> : vector<2x256xf32>
    %963 = tpu.matmul %956, %692, %cst_171 {dimension_numbers = #tpu.dot_dimension_numbers<[1], [0], [0], [1], [0, 0, 1, 1], [], []>} : vector<2x64xf32>, vector<64x256xf32>, vector<2x256xf32> -> vector<2x256xf32>
    %964 = arith.addf %962, %963 : vector<2x256xf32>
    %965 = vector.extract_strided_slice %964 {offsets = [0, 0], sizes = [2, 64], strides = [1, 1]} : vector<2x256xf32> to vector<2x64xf32>
    %966 = arith.negf %965 : vector<2x64xf32>
    %967 = math.exp %966 : vector<2x64xf32>
    %cst_172 = arith.constant 1.000000e+00 : f32
    %968 = vector.broadcast %cst_172 : f32 to vector<2x64xf32>
    %969 = arith.addf %968, %967 : vector<2x64xf32>
    %970 = arith.divf %968, %969 : vector<2x64xf32>
    %971 = vector.extract_strided_slice %964 {offsets = [0, 64], sizes = [2, 64], strides = [1, 1]} : vector<2x256xf32> to vector<2x64xf32>
    %972 = arith.negf %971 : vector<2x64xf32>
    %973 = math.exp %972 : vector<2x64xf32>
    %cst_173 = arith.constant 1.000000e+00 : f32
    %974 = vector.broadcast %cst_173 : f32 to vector<2x64xf32>
    %975 = arith.addf %974, %973 : vector<2x64xf32>
    %976 = arith.divf %974, %975 : vector<2x64xf32>
    %977 = vector.extract_strided_slice %964 {offsets = [0, 128], sizes = [2, 64], strides = [1, 1]} : vector<2x256xf32> to vector<2x64xf32>
    %978 = math.tanh %977 : vector<2x64xf32>
    %979 = vector.extract_strided_slice %964 {offsets = [0, 192], sizes = [2, 64], strides = [1, 1]} : vector<2x256xf32> to vector<2x64xf32>
    %980 = arith.negf %979 : vector<2x64xf32>
    %981 = math.exp %980 : vector<2x64xf32>
    %cst_174 = arith.constant 1.000000e+00 : f32
    %982 = vector.broadcast %cst_174 : f32 to vector<2x64xf32>
    %983 = arith.addf %982, %981 : vector<2x64xf32>
    %984 = arith.divf %982, %983 : vector<2x64xf32>
    %985 = arith.mulf %976, %959 : vector<2x64xf32>
    %986 = arith.mulf %970, %978 : vector<2x64xf32>
    %987 = arith.addf %985, %986 : vector<2x64xf32>
    %988 = math.tanh %987 : vector<2x64xf32>
    %989 = arith.mulf %984, %988 : vector<2x64xf32>
    %c7_i32_175 = arith.constant 7 : i32
    %990 = vector.broadcast %c7_i32_175 : i32 to vector<2x1xi32>
    %991 = arith.cmpi sgt, %694, %990 : vector<2x1xi32>
    %992 = vector.shape_cast %991 : vector<2x1xi1> to vector<2x1xi1>
    %993 = vector.broadcast %992 : vector<2x1xi1> to vector<2x64xi1>
    %994 = arith.select %993, %989, %956 : vector<2x64xi1>, vector<2x64xf32>
    %995 = vector.shape_cast %991 : vector<2x1xi1> to vector<2x1xi1>
    %996 = vector.broadcast %995 : vector<2x1xi1> to vector<2x64xi1>
    %997 = arith.select %996, %987, %959 : vector<2x64xi1>, vector<2x64xf32>
    %998 = vector.extract_strided_slice %691 {offsets = [7, 0], sizes = [1, 256], strides = [1, 1]} : vector<16x256xf32> to vector<1x256xf32>
    %999 = vector.extract_strided_slice %691 {offsets = [15, 0], sizes = [1, 256], strides = [1, 1]} : vector<16x256xf32> to vector<1x256xf32>
    %1000 = tpu.concatenate %998, %999 in 0 : vector<1x256xf32>, vector<1x256xf32> -> vector<2x256xf32>
    %cst_176 = arith.constant dense<0.000000e+00> : vector<2x256xf32>
    %1001 = tpu.matmul %994, %692, %cst_176 {dimension_numbers = #tpu.dot_dimension_numbers<[1], [0], [0], [1], [0, 0, 1, 1], [], []>} : vector<2x64xf32>, vector<64x256xf32>, vector<2x256xf32> -> vector<2x256xf32>
    %1002 = arith.addf %1000, %1001 : vector<2x256xf32>
    %1003 = vector.extract_strided_slice %1002 {offsets = [0, 0], sizes = [2, 64], strides = [1, 1]} : vector<2x256xf32> to vector<2x64xf32>
    %1004 = arith.negf %1003 : vector<2x64xf32>
    %1005 = math.exp %1004 : vector<2x64xf32>
    %cst_177 = arith.constant 1.000000e+00 : f32
    %1006 = vector.broadcast %cst_177 : f32 to vector<2x64xf32>
    %1007 = arith.addf %1006, %1005 : vector<2x64xf32>
    %1008 = arith.divf %1006, %1007 : vector<2x64xf32>
    %1009 = vector.extract_strided_slice %1002 {offsets = [0, 64], sizes = [2, 64], strides = [1, 1]} : vector<2x256xf32> to vector<2x64xf32>
    %1010 = arith.negf %1009 : vector<2x64xf32>
    %1011 = math.exp %1010 : vector<2x64xf32>
    %cst_178 = arith.constant 1.000000e+00 : f32
    %1012 = vector.broadcast %cst_178 : f32 to vector<2x64xf32>
    %1013 = arith.addf %1012, %1011 : vector<2x64xf32>
    %1014 = arith.divf %1012, %1013 : vector<2x64xf32>
    %1015 = vector.extract_strided_slice %1002 {offsets = [0, 128], sizes = [2, 64], strides = [1, 1]} : vector<2x256xf32> to vector<2x64xf32>
    %1016 = math.tanh %1015 : vector<2x64xf32>
    %1017 = vector.extract_strided_slice %1002 {offsets = [0, 192], sizes = [2, 64], strides = [1, 1]} : vector<2x256xf32> to vector<2x64xf32>
    %1018 = arith.negf %1017 : vector<2x64xf32>
    %1019 = math.exp %1018 : vector<2x64xf32>
    %cst_179 = arith.constant 1.000000e+00 : f32
    %1020 = vector.broadcast %cst_179 : f32 to vector<2x64xf32>
    %1021 = arith.addf %1020, %1019 : vector<2x64xf32>
    %1022 = arith.divf %1020, %1021 : vector<2x64xf32>
    %1023 = arith.mulf %1014, %997 : vector<2x64xf32>
    %1024 = arith.mulf %1008, %1016 : vector<2x64xf32>
    %1025 = arith.addf %1023, %1024 : vector<2x64xf32>
    %1026 = math.tanh %1025 : vector<2x64xf32>
    %1027 = arith.mulf %1022, %1026 : vector<2x64xf32>
    %c8_i32 = arith.constant 8 : i32
    %1028 = vector.broadcast %c8_i32 : i32 to vector<2x1xi32>
    %1029 = arith.cmpi sgt, %694, %1028 : vector<2x1xi32>
    %1030 = vector.shape_cast %1029 : vector<2x1xi1> to vector<2x1xi1>
    %1031 = vector.broadcast %1030 : vector<2x1xi1> to vector<2x64xi1>
    %1032 = arith.select %1031, %1027, %994 : vector<2x64xi1>, vector<2x64xf32>
    %1033 = arith.addf %1032, %665 : vector<2x64xf32>
    %c0_180 = arith.constant 0 : index
    %c0_181 = arith.constant 0 : index
    %1034 = vector.load %arg20[%c0_180, %c0_181] : memref<64x64xf32, #tpu.memory_space<vmem>>, vector<64x64xf32>
    %cst_182 = arith.constant dense<0.000000e+00> : vector<2x64xf32>
    %1035 = tpu.matmul %1033, %1034, %cst_182 {dimension_numbers = #tpu.dot_dimension_numbers<[1], [0], [0], [1], [0, 0, 1, 1], [], []>} : vector<2x64xf32>, vector<64x64xf32>, vector<2x64xf32> -> vector<2x64xf32>
    %c0_183 = arith.constant 0 : index
    %c0_184 = arith.constant 0 : index
    %1036 = vector.load %arg21[%c0_183, %c0_184] : memref<1x64xf32, #tpu.memory_space<vmem>>, vector<1x64xf32>
    %1037 = vector.broadcast %1036 : vector<1x64xf32> to vector<2x64xf32>
    %1038 = arith.addf %1035, %1037 : vector<2x64xf32>
    %c0_185 = arith.constant 0 : index
    %c0_186 = arith.constant 0 : index
    %1039 = vector.load %arg22[%c0_185, %c0_186] : memref<64x64xf32, #tpu.memory_space<vmem>>, vector<64x64xf32>
    %cst_187 = arith.constant dense<0.000000e+00> : vector<2x64xf32>
    %1040 = tpu.matmul %1038, %1039, %cst_187 {dimension_numbers = #tpu.dot_dimension_numbers<[1], [0], [0], [1], [0, 0, 1, 1], [], []>} : vector<2x64xf32>, vector<64x64xf32>, vector<2x64xf32> -> vector<2x64xf32>
    %c0_188 = arith.constant 0 : index
    %c0_189 = arith.constant 0 : index
    %1041 = vector.load %arg23[%c0_188, %c0_189] : memref<1x64xf32, #tpu.memory_space<vmem>>, vector<1x64xf32>
    %1042 = vector.broadcast %1041 : vector<1x64xf32> to vector<2x64xf32>
    %1043 = arith.addf %1040, %1042 : vector<2x64xf32>
    %cst_190 = arith.constant 0.000000e+00 : f32
    %1044 = vector.broadcast %cst_190 : f32 to vector<2x64xf32>
    %1045 = arith.maximumf %1043, %1044 : vector<2x64xf32>
    %c0_191 = arith.constant 0 : index
    %c0_192 = arith.constant 0 : index
    %1046 = vector.load %arg24[%c0_191, %c0_192] : memref<64x64xf32, #tpu.memory_space<vmem>>, vector<64x64xf32>
    %cst_193 = arith.constant dense<0.000000e+00> : vector<2x64xf32>
    %1047 = tpu.matmul %1045, %1046, %cst_193 {dimension_numbers = #tpu.dot_dimension_numbers<[1], [0], [0], [1], [0, 0, 1, 1], [], []>} : vector<2x64xf32>, vector<64x64xf32>, vector<2x64xf32> -> vector<2x64xf32>
    %c0_194 = arith.constant 0 : index
    %c0_195 = arith.constant 0 : index
    %1048 = vector.load %arg25[%c0_194, %c0_195] : memref<1x64xf32, #tpu.memory_space<vmem>>, vector<1x64xf32>
    %1049 = vector.broadcast %1048 : vector<1x64xf32> to vector<2x64xf32>
    %1050 = arith.addf %1047, %1049 : vector<2x64xf32>
    %cst_196 = arith.constant dense<0xFF800000> : vector<2xf32>
    %1051 = vector.multi_reduction <maximumf>, %1050, %cst_196 [1] : vector<2x64xf32> to vector<2xf32>
    %1052 = vector.shape_cast %1051 : vector<2xf32> to vector<2x1xf32>
    %1053 = vector.broadcast %1052 : vector<2x1xf32> to vector<2x64xf32>
    %1054 = arith.subf %1050, %1053 : vector<2x64xf32>
    %1055 = math.exp %1054 : vector<2x64xf32>
    %cst_197 = arith.constant dense<0.000000e+00> : vector<2xf32>
    %1056 = vector.multi_reduction <add>, %1055, %cst_197 [1] : vector<2x64xf32> to vector<2xf32>
    %1057 = vector.shape_cast %1056 : vector<2xf32> to vector<2x1xf32>
    %1058 = tpu.reciprocal %1057 {approx = true} : vector<2x1xf32> -> vector<2x1xf32>
    %1059 = vector.broadcast %1058 : vector<2x1xf32> to vector<2x64xf32>
    %1060 = arith.mulf %1055, %1059 : vector<2x64xf32>
    %1061 = arith.mulf %1060, %1038 : vector<2x64xf32>
    %1062 = arith.addf %1061, %1038 : vector<2x64xf32>
    %1063 = tpu.concatenate %33, %348, %1062 in 1 : vector<2x32xf32>, vector<2x16xf32>, vector<2x64xf32> -> vector<2x112xf32>
    %c0_198 = arith.constant 0 : index
    %c0_199 = arith.constant 0 : index
    %1064 = vector.load %arg26[%c0_198, %c0_199] : memref<112x64xf32, #tpu.memory_space<vmem>>, vector<112x64xf32>
    %cst_200 = arith.constant dense<0.000000e+00> : vector<2x64xf32>
    %1065 = tpu.matmul %1063, %1064, %cst_200 {dimension_numbers = #tpu.dot_dimension_numbers<[1], [0], [0], [1], [0, 0, 1, 1], [], []>} : vector<2x112xf32>, vector<112x64xf32>, vector<2x64xf32> -> vector<2x64xf32>
    %c0_201 = arith.constant 0 : index
    %c0_202 = arith.constant 0 : index
    %1066 = vector.load %arg27[%c0_201, %c0_202] : memref<1x64xf32, #tpu.memory_space<vmem>>, vector<1x64xf32>
    %1067 = vector.broadcast %1066 : vector<1x64xf32> to vector<2x64xf32>
    %1068 = arith.addf %1065, %1067 : vector<2x64xf32>
    %cst_203 = arith.constant 0.000000e+00 : f32
    %1069 = vector.broadcast %cst_203 : f32 to vector<2x64xf32>
    %1070 = arith.maximumf %1068, %1069 : vector<2x64xf32>
    %c0_204 = arith.constant 0 : index
    %c0_205 = arith.constant 0 : index
    %1071 = vector.load %arg36[%c0_204, %c0_205] : memref<32x32xf32, #tpu.memory_space<vmem>>, vector<32x32xf32>
    %cst_206 = arith.constant dense<0.000000e+00> : vector<2x32xf32>
    %1072 = tpu.matmul %33, %1071, %cst_206 {dimension_numbers = #tpu.dot_dimension_numbers<[1], [0], [0], [1], [0, 0, 1, 1], [], []>} : vector<2x32xf32>, vector<32x32xf32>, vector<2x32xf32> -> vector<2x32xf32>
    %c0_207 = arith.constant 0 : index
    %c0_208 = arith.constant 0 : index
    %1073 = vector.load %arg37[%c0_207, %c0_208] : memref<1x32xf32, #tpu.memory_space<vmem>>, vector<1x32xf32>
    %1074 = vector.broadcast %1073 : vector<1x32xf32> to vector<2x32xf32>
    %1075 = arith.addf %1072, %1074 : vector<2x32xf32>
    %cst_209 = arith.constant 0.000000e+00 : f32
    %1076 = vector.broadcast %cst_209 : f32 to vector<2x32xf32>
    %1077 = arith.maximumf %1075, %1076 : vector<2x32xf32>
    %c0_210 = arith.constant 0 : index
    %c0_211 = arith.constant 0 : index
    %1078 = vector.load %arg42[%c0_210, %c0_211] : memref<16x16xf32, #tpu.memory_space<vmem>>, vector<16x16xf32>
    %cst_212 = arith.constant dense<0.000000e+00> : vector<2x16xf32>
    %1079 = tpu.matmul %348, %1078, %cst_212 {dimension_numbers = #tpu.dot_dimension_numbers<[1], [0], [0], [1], [0, 0, 1, 1], [], []>} : vector<2x16xf32>, vector<16x16xf32>, vector<2x16xf32> -> vector<2x16xf32>
    %c0_213 = arith.constant 0 : index
    %c0_214 = arith.constant 0 : index
    %1080 = vector.load %arg43[%c0_213, %c0_214] : memref<1x16xf32, #tpu.memory_space<vmem>>, vector<1x16xf32>
    %1081 = vector.broadcast %1080 : vector<1x16xf32> to vector<2x16xf32>
    %1082 = arith.addf %1079, %1081 : vector<2x16xf32>
    %cst_215 = arith.constant 0.000000e+00 : f32
    %1083 = vector.broadcast %cst_215 : f32 to vector<2x16xf32>
    %1084 = arith.maximumf %1082, %1083 : vector<2x16xf32>
    %c0_216 = arith.constant 0 : index
    %c0_217 = arith.constant 0 : index
    %1085 = vector.load %arg48[%c0_216, %c0_217] : memref<64x32xf32, #tpu.memory_space<vmem>>, vector<64x32xf32>
    %cst_218 = arith.constant dense<0.000000e+00> : vector<2x32xf32>
    %1086 = tpu.matmul %1062, %1085, %cst_218 {dimension_numbers = #tpu.dot_dimension_numbers<[1], [0], [0], [1], [0, 0, 1, 1], [], []>} : vector<2x64xf32>, vector<64x32xf32>, vector<2x32xf32> -> vector<2x32xf32>
    %c0_219 = arith.constant 0 : index
    %c0_220 = arith.constant 0 : index
    %1087 = vector.load %arg49[%c0_219, %c0_220] : memref<1x32xf32, #tpu.memory_space<vmem>>, vector<1x32xf32>
    %1088 = vector.broadcast %1087 : vector<1x32xf32> to vector<2x32xf32>
    %1089 = arith.addf %1086, %1088 : vector<2x32xf32>
    %cst_221 = arith.constant 0.000000e+00 : f32
    %1090 = vector.broadcast %cst_221 : f32 to vector<2x32xf32>
    %1091 = arith.maximumf %1089, %1090 : vector<2x32xf32>
    %c0_222 = arith.constant 0 : index
    %c0_223 = arith.constant 0 : index
    %1092 = vector.load %arg28[%c0_222, %c0_223] : memref<64x64xf32, #tpu.memory_space<vmem>>, vector<64x64xf32>
    %cst_224 = arith.constant dense<0.000000e+00> : vector<2x64xf32>
    %1093 = tpu.matmul %1070, %1092, %cst_224 {dimension_numbers = #tpu.dot_dimension_numbers<[1], [0], [0], [1], [0, 0, 1, 1], [], []>} : vector<2x64xf32>, vector<64x64xf32>, vector<2x64xf32> -> vector<2x64xf32>
    %c0_225 = arith.constant 0 : index
    %c0_226 = arith.constant 0 : index
    %1094 = vector.load %arg29[%c0_225, %c0_226] : memref<1x64xf32, #tpu.memory_space<vmem>>, vector<1x64xf32>
    %1095 = vector.broadcast %1094 : vector<1x64xf32> to vector<2x64xf32>
    %1096 = arith.addf %1093, %1095 : vector<2x64xf32>
    %cst_227 = arith.constant 0.000000e+00 : f32
    %1097 = vector.broadcast %cst_227 : f32 to vector<2x64xf32>
    %1098 = arith.maximumf %1096, %1097 : vector<2x64xf32>
    %1099 = tpu.concatenate %1098, %33, %348, %1062 in 1 : vector<2x64xf32>, vector<2x32xf32>, vector<2x16xf32>, vector<2x64xf32> -> vector<2x176xf32>
    %c0_228 = arith.constant 0 : index
    %c0_229 = arith.constant 0 : index
    %1100 = vector.load %arg30[%c0_228, %c0_229] : memref<176x64xf32, #tpu.memory_space<vmem>>, vector<176x64xf32>
    %cst_230 = arith.constant dense<0.000000e+00> : vector<2x64xf32>
    %1101 = tpu.matmul %1099, %1100, %cst_230 {dimension_numbers = #tpu.dot_dimension_numbers<[1], [0], [0], [1], [0, 0, 1, 1], [], []>} : vector<2x176xf32>, vector<176x64xf32>, vector<2x64xf32> -> vector<2x64xf32>
    %c0_231 = arith.constant 0 : index
    %c0_232 = arith.constant 0 : index
    %1102 = vector.load %arg31[%c0_231, %c0_232] : memref<1x64xf32, #tpu.memory_space<vmem>>, vector<1x64xf32>
    %1103 = vector.broadcast %1102 : vector<1x64xf32> to vector<2x64xf32>
    %1104 = arith.addf %1101, %1103 : vector<2x64xf32>
    %cst_233 = arith.constant 0.000000e+00 : f32
    %1105 = vector.broadcast %cst_233 : f32 to vector<2x64xf32>
    %1106 = arith.maximumf %1104, %1105 : vector<2x64xf32>
    %c0_234 = arith.constant 0 : index
    %c0_235 = arith.constant 0 : index
    %1107 = vector.load %arg32[%c0_234, %c0_235] : memref<64x64xf32, #tpu.memory_space<vmem>>, vector<64x64xf32>
    %cst_236 = arith.constant dense<0.000000e+00> : vector<2x64xf32>
    %1108 = tpu.matmul %1106, %1107, %cst_236 {dimension_numbers = #tpu.dot_dimension_numbers<[1], [0], [0], [1], [0, 0, 1, 1], [], []>} : vector<2x64xf32>, vector<64x64xf32>, vector<2x64xf32> -> vector<2x64xf32>
    %c0_237 = arith.constant 0 : index
    %c0_238 = arith.constant 0 : index
    %1109 = vector.load %arg33[%c0_237, %c0_238] : memref<1x64xf32, #tpu.memory_space<vmem>>, vector<1x64xf32>
    %1110 = vector.broadcast %1109 : vector<1x64xf32> to vector<2x64xf32>
    %1111 = arith.addf %1108, %1110 : vector<2x64xf32>
    %cst_239 = arith.constant 0.000000e+00 : f32
    %1112 = vector.broadcast %cst_239 : f32 to vector<2x64xf32>
    %1113 = arith.maximumf %1111, %1112 : vector<2x64xf32>
    %c0_240 = arith.constant 0 : index
    %c0_241 = arith.constant 0 : index
    %1114 = vector.load %arg34[%c0_240, %c0_241] : memref<64x1xf32, #tpu.memory_space<vmem>>, vector<64x1xf32>
    %cst_242 = arith.constant dense<0.000000e+00> : vector<2x1xf32>
    %1115 = tpu.matmul %1113, %1114, %cst_242 {dimension_numbers = #tpu.dot_dimension_numbers<[1], [0], [0], [1], [0, 0, 1, 1], [], []>} : vector<2x64xf32>, vector<64x1xf32>, vector<2x1xf32> -> vector<2x1xf32>
    %c0_243 = arith.constant 0 : index
    %c0_244 = arith.constant 0 : index
    %1116 = vector.load %arg35[%c0_243, %c0_244] : memref<1x1xf32, #tpu.memory_space<vmem>>, vector<1x1xf32>
    %1117 = vector.broadcast %1116 : vector<1x1xf32> to vector<2x1xf32>
    %1118 = arith.addf %1115, %1117 : vector<2x1xf32>
    %c0_245 = arith.constant 0 : index
    %c0_246 = arith.constant 0 : index
    %1119 = vector.load %arg38[%c0_245, %c0_246] : memref<32x32xf32, #tpu.memory_space<vmem>>, vector<32x32xf32>
    %cst_247 = arith.constant dense<0.000000e+00> : vector<2x32xf32>
    %1120 = tpu.matmul %1077, %1119, %cst_247 {dimension_numbers = #tpu.dot_dimension_numbers<[1], [0], [0], [1], [0, 0, 1, 1], [], []>} : vector<2x32xf32>, vector<32x32xf32>, vector<2x32xf32> -> vector<2x32xf32>
    %c0_248 = arith.constant 0 : index
    %c0_249 = arith.constant 0 : index
    %1121 = vector.load %arg39[%c0_248, %c0_249] : memref<1x32xf32, #tpu.memory_space<vmem>>, vector<1x32xf32>
    %1122 = vector.broadcast %1121 : vector<1x32xf32> to vector<2x32xf32>
    %1123 = arith.addf %1120, %1122 : vector<2x32xf32>
    %cst_250 = arith.constant 0.000000e+00 : f32
    %1124 = vector.broadcast %cst_250 : f32 to vector<2x32xf32>
    %1125 = arith.maximumf %1123, %1124 : vector<2x32xf32>
    %c0_251 = arith.constant 0 : index
    %c0_252 = arith.constant 0 : index
    %1126 = vector.load %arg40[%c0_251, %c0_252] : memref<32x1xf32, #tpu.memory_space<vmem>>, vector<32x1xf32>
    %cst_253 = arith.constant dense<0.000000e+00> : vector<2x1xf32>
    %1127 = tpu.matmul %1125, %1126, %cst_253 {dimension_numbers = #tpu.dot_dimension_numbers<[1], [0], [0], [1], [0, 0, 1, 1], [], []>} : vector<2x32xf32>, vector<32x1xf32>, vector<2x1xf32> -> vector<2x1xf32>
    %c0_254 = arith.constant 0 : index
    %c0_255 = arith.constant 0 : index
    %1128 = vector.load %arg41[%c0_254, %c0_255] : memref<1x1xf32, #tpu.memory_space<vmem>>, vector<1x1xf32>
    %1129 = vector.broadcast %1128 : vector<1x1xf32> to vector<2x1xf32>
    %1130 = arith.addf %1127, %1129 : vector<2x1xf32>
    %c0_256 = arith.constant 0 : index
    %c0_257 = arith.constant 0 : index
    %1131 = vector.load %arg44[%c0_256, %c0_257] : memref<16x16xf32, #tpu.memory_space<vmem>>, vector<16x16xf32>
    %cst_258 = arith.constant dense<0.000000e+00> : vector<2x16xf32>
    %1132 = tpu.matmul %1084, %1131, %cst_258 {dimension_numbers = #tpu.dot_dimension_numbers<[1], [0], [0], [1], [0, 0, 1, 1], [], []>} : vector<2x16xf32>, vector<16x16xf32>, vector<2x16xf32> -> vector<2x16xf32>
    %c0_259 = arith.constant 0 : index
    %c0_260 = arith.constant 0 : index
    %1133 = vector.load %arg45[%c0_259, %c0_260] : memref<1x16xf32, #tpu.memory_space<vmem>>, vector<1x16xf32>
    %1134 = vector.broadcast %1133 : vector<1x16xf32> to vector<2x16xf32>
    %1135 = arith.addf %1132, %1134 : vector<2x16xf32>
    %cst_261 = arith.constant 0.000000e+00 : f32
    %1136 = vector.broadcast %cst_261 : f32 to vector<2x16xf32>
    %1137 = arith.maximumf %1135, %1136 : vector<2x16xf32>
    %c0_262 = arith.constant 0 : index
    %c0_263 = arith.constant 0 : index
    %1138 = vector.load %arg46[%c0_262, %c0_263] : memref<16x1xf32, #tpu.memory_space<vmem>>, vector<16x1xf32>
    %cst_264 = arith.constant dense<0.000000e+00> : vector<2x1xf32>
    %1139 = tpu.matmul %1137, %1138, %cst_264 {dimension_numbers = #tpu.dot_dimension_numbers<[1], [0], [0], [1], [0, 0, 1, 1], [], []>} : vector<2x16xf32>, vector<16x1xf32>, vector<2x1xf32> -> vector<2x1xf32>
    %c0_265 = arith.constant 0 : index
    %c0_266 = arith.constant 0 : index
    %1140 = vector.load %arg47[%c0_265, %c0_266] : memref<1x1xf32, #tpu.memory_space<vmem>>, vector<1x1xf32>
    %1141 = vector.broadcast %1140 : vector<1x1xf32> to vector<2x1xf32>
    %1142 = arith.addf %1139, %1141 : vector<2x1xf32>
    %c0_267 = arith.constant 0 : index
    %c0_268 = arith.constant 0 : index
    %1143 = vector.load %arg50[%c0_267, %c0_268] : memref<32x32xf32, #tpu.memory_space<vmem>>, vector<32x32xf32>
    %cst_269 = arith.constant dense<0.000000e+00> : vector<2x32xf32>
    %1144 = tpu.matmul %1091, %1143, %cst_269 {dimension_numbers = #tpu.dot_dimension_numbers<[1], [0], [0], [1], [0, 0, 1, 1], [], []>} : vector<2x32xf32>, vector<32x32xf32>, vector<2x32xf32> -> vector<2x32xf32>
    %c0_270 = arith.constant 0 : index
    %c0_271 = arith.constant 0 : index
    %1145 = vector.load %arg51[%c0_270, %c0_271] : memref<1x32xf32, #tpu.memory_space<vmem>>, vector<1x32xf32>
    %1146 = vector.broadcast %1145 : vector<1x32xf32> to vector<2x32xf32>
    %1147 = arith.addf %1144, %1146 : vector<2x32xf32>
    %cst_272 = arith.constant 0.000000e+00 : f32
    %1148 = vector.broadcast %cst_272 : f32 to vector<2x32xf32>
    %1149 = arith.maximumf %1147, %1148 : vector<2x32xf32>
    %c0_273 = arith.constant 0 : index
    %c0_274 = arith.constant 0 : index
    %1150 = vector.load %arg52[%c0_273, %c0_274] : memref<32x1xf32, #tpu.memory_space<vmem>>, vector<32x1xf32>
    %cst_275 = arith.constant dense<0.000000e+00> : vector<2x1xf32>
    %1151 = tpu.matmul %1149, %1150, %cst_275 {dimension_numbers = #tpu.dot_dimension_numbers<[1], [0], [0], [1], [0, 0, 1, 1], [], []>} : vector<2x32xf32>, vector<32x1xf32>, vector<2x1xf32> -> vector<2x1xf32>
    %c0_276 = arith.constant 0 : index
    %c0_277 = arith.constant 0 : index
    %1152 = vector.load %arg53[%c0_276, %c0_277] : memref<1x1xf32, #tpu.memory_space<vmem>>, vector<1x1xf32>
    %1153 = vector.broadcast %1152 : vector<1x1xf32> to vector<2x1xf32>
    %1154 = arith.addf %1151, %1153 : vector<2x1xf32>
    %cst_278 = arith.constant 0.000000e+00 : f32
    %1155 = vector.broadcast %cst_278 : f32 to vector<2x108xf32>
    %1156 = tpu.concatenate %1118, %1130, %1142, %1154, %1077, %1084, %1091, %1106, %1155 in 1 : vector<2x1xf32>, vector<2x1xf32>, vector<2x1xf32>, vector<2x1xf32>, vector<2x32xf32>, vector<2x16xf32>, vector<2x32xf32>, vector<2x64xf32>, vector<2x108xf32> -> vector<2x256xf32>
    %c0_279 = arith.constant 0 : index
    %c0_280 = arith.constant 0 : index
    %1157 = vector.load %arg54[%c0_279, %c0_280] : memref<2x256xf32, #tpu.memory_space<vmem>>, vector<2x256xf32>
    tpu.vector_store %arg54[%c0_279, %c0_280], %1156 {strides = array<i32>} : memref<2x256xf32, #tpu.memory_space<vmem>>, vector<2x256xf32>,
    return
  }
}

</mosaic_0001>

<llo_original>
// kernel: self_mm_forward.1
$region0: #{self_mm_forward.1}
  #allocation0 [shape = 'u32[]', space=smem, size = 0x4, offset = 0x4, fixed_abs, tag = 'smem constant byte address 0x4 - core index']
  #allocation1 [shape = 'u32[72,128]{1,0:T(1,128)}', space=vmem, size = 0x9000, scoped, tag = 'internal scratch']
  #allocation2 [shape = 'f32[16,2048]{1,0:T(8,128)}', space=vmem, size = 0x20000, scoped, tag = 'scratch operand']
  #allocation3 [shape = 'bf16[2048,320]{1,0:T(8,128)(2,1)}', space=vmem, size = 0x180000, scoped, tag = 'scratch operand']
  #allocation4 [shape = 's32[2]{0}', space=sflag, size = 0x8, scoped, tag = 'scratch operand']
  #allocation5 [shape = 'f32[1,1]{1,0:T(1,128)S(1)}', space=vmem, size = 0x200, scoped, tag = 'scoped memory for self_mm_forward.1']
  #allocation6 [shape = 'f32[1,1]{1,0:T(1,128)S(1)}', space=vmem, size = 0x200, scoped, tag = 'scoped memory for self_mm_forward.1']
  #allocation7 [shape = 'f32[1,1]{1,0:T(1,128)S(1)}', space=vmem, size = 0x200, scoped, tag = 'scoped memory for self_mm_forward.1']
  #allocation8 [shape = 'f32[1,1]{1,0:T(1,128)S(1)}', space=vmem, size = 0x200, scoped, tag = 'scoped memory for self_mm_forward.1']
  #allocation15 [shape = 's32[]', space=sflag, size = 0x4, offset = 0, fixed_abs, tag = 'sflag constant byte address 0x0 - dummy sync flag']
  #allocation16 [shape = 's32[]', space=sflag, size = 0x4, offset = 0, fixed_abs, tag = 'sflag constant byte address 0x0 - dummy sync flag']
  %s0 = inlined_call_operand.smem [shape: u32[55], index: -1, kind: input, shape index: {}]
  %s1 = sld [smem:[%s0]]
  %s2 = scalar_lea.smem %s0, 1
  %s3 = sld [smem:[%s2]]
  %s4 = scalar_lea.smem %s0, 2
  %s5 = sld [smem:[%s4]]
  %s6 = scalar_lea.smem %s0, 3
  %s7 = sld [smem:[%s6]]
  %s8 = scalar_lea.smem %s0, 4
  %s9 = sld [smem:[%s8]]
  %s10 = scalar_lea.smem %s0, 5
  %s11 = sld [smem:[%s10]]
  %s12 = scalar_lea.smem %s0, 6
  %s13 = sld [smem:[%s12]]
  %s14 = scalar_lea.smem %s0, 7
  %s15 = sld [smem:[%s14]]
  %s16 = scalar_lea.smem %s0, 8
  %s17 = sld [smem:[%s16]]
  %s18 = scalar_lea.smem %s0, 9
  %s19 = sld [smem:[%s18]]
  %s20 = scalar_lea.smem %s0, 10
  %s21 = sld [smem:[%s20]]
  %s22 = scalar_lea.smem %s0, 11
  %s23 = sld [smem:[%s22]]
  %s24 = scalar_lea.smem %s0, 12
  %s25 = sld [smem:[%s24]]
  %s26 = scalar_lea.smem %s0, 13
  %s27 = sld [smem:[%s26]]
  %s28 = scalar_lea.smem %s0, 14
  %s29 = sld [smem:[%s28]]
  %s30 = scalar_lea.smem %s0, 15
  %s31 = sld [smem:[%s30]]
  %s32 = scalar_lea.smem %s0, 16
  %s33 = sld [smem:[%s32]]
  %s34 = scalar_lea.smem %s0, 17
  %s35 = sld [smem:[%s34]]
  %s36 = scalar_lea.smem %s0, 18
  %s37 = sld [smem:[%s36]]
  %s38 = scalar_lea.smem %s0, 19
  %s39 = sld [smem:[%s38]]
  %s40 = scalar_lea.smem %s0, 20
  %s41 = sld [smem:[%s40]]
  %s42 = scalar_lea.smem %s0, 21
  %s43 = sld [smem:[%s42]]
  %s44 = scalar_lea.smem %s0, 22
  %s45 = sld [smem:[%s44]]
  %s46 = scalar_lea.smem %s0, 23
  %s47 = sld [smem:[%s46]]
  %s48 = scalar_lea.smem %s0, 24
  %s49 = sld [smem:[%s48]]
  %s50 = scalar_lea.smem %s0, 25
  %s51 = sld [smem:[%s50]]
  %s52 = scalar_lea.smem %s0, 26
  %s53 = sld [smem:[%s52]]
  %s54 = scalar_lea.smem %s0, 27
  %s55 = sld [smem:[%s54]]
  %s56 = scalar_lea.smem %s0, 28
  %s57 = sld [smem:[%s56]]
  %s58 = scalar_lea.smem %s0, 29
  %s59 = sld [smem:[%s58]]
  %s60 = scalar_lea.smem %s0, 30
  %s61 = sld [smem:[%s60]]
  %s62 = scalar_lea.smem %s0, 31
  %s63 = sld [smem:[%s62]]
  %s64 = scalar_lea.smem %s0, 32
  %s65 = sld [smem:[%s64]]
  %s66 = scalar_lea.smem %s0, 33
  %s67 = sld [smem:[%s66]]
  %s68 = scalar_lea.smem %s0, 34
  %s69 = sld [smem:[%s68]]
  %s70 = scalar_lea.smem %s0, 35
  %s71 = sld [smem:[%s70]]
  %s72 = scalar_lea.smem %s0, 36
  %s73 = sld [smem:[%s72]]
  %s74 = scalar_lea.smem %s0, 37
  %s75 = sld [smem:[%s74]]
  %s76 = scalar_lea.smem %s0, 38
  %s77 = sld [smem:[%s76]]
  %s78 = scalar_lea.smem %s0, 39
  %s79 = sld [smem:[%s78]]
  %s80 = scalar_lea.smem %s0, 40
  %s81 = sld [smem:[%s80]]
  %s82 = scalar_lea.smem %s0, 41
  %s83 = sld [smem:[%s82]]
  %s84 = scalar_lea.smem %s0, 42
  %s85 = sld [smem:[%s84]]
  %s86 = scalar_lea.smem %s0, 43
  %s87 = sld [smem:[%s86]]
  %s88 = scalar_lea.smem %s0, 44
  %s89 = sld [smem:[%s88]]
  %s90 = scalar_lea.smem %s0, 45
  %s91 = sld [smem:[%s90]]
  %s92 = scalar_lea.smem %s0, 46
  %s93 = sld [smem:[%s92]]
  %s94 = scalar_lea.smem %s0, 47
  %s95 = sld [smem:[%s94]]
  %s96 = scalar_lea.smem %s0, 48
  %s97 = sld [smem:[%s96]]
  %s98 = scalar_lea.smem %s0, 49
  %s99 = sld [smem:[%s98]]
  %s100 = scalar_lea.smem %s0, 50
  %s101 = sld [smem:[%s100]]
  %s102 = scalar_lea.smem %s0, 51
  %s103 = sld [smem:[%s102]]
  %s104 = scalar_lea.smem %s0, 52
  %s105 = sld [smem:[%s104]]
  %s106 = scalar_lea.smem %s0, 53
  %s107 = sld [smem:[%s106]]
  %s108 = scalar_lea.smem %s0, 54
  %s109 = sld [smem:[%s108]]
  %s110 = sld [smem:[#allocation0]]
  $region268: #{self_mm_forward.1} parent=0
    _
  %s112 = ssub.s32 1, %s110
  %s113 = scalar_select 0, %s112, %s110
  %v114 = vstv %s71
  %115 = vst [vmem:[#allocation5] sm:$0x1] %v114
  %v116 = vstv %s83
  %117 = vst [vmem:[#allocation6] sm:$0x1] %v116
  %v118 = vstv %s95
  %119 = vst [vmem:[#allocation7] sm:$0x1] %v118
  %v120 = vstv %s107
  %121 = vst [vmem:[#allocation8] sm:$0x1] %v120
  $region1: #{self_mm_forward.1} parent=0
    #allocation9 [shape = 'u8[512]{0}', space=smem, size = 0x200, scoped, tag = 'input window, operand 0, single buffered']
    #allocation10 [shape = 's32[1]{0}', space=sflag, size = 0x4, scoped, tag = 'scoped memory for self_mm_forward.1']
    #allocation11 [shape = 's32[1]{0}', space=sflag, size = 0x4, scoped, tag = 'scoped memory for self_mm_forward.1']
    #allocation12 [shape = 'u8[512]{0}', space=smem, size = 0x200, scoped, tag = 'input window, operand 1, single buffered']
    #allocation13 [shape = 's32[1]{0}', space=sflag, size = 0x4, scoped, tag = 'scoped memory for self_mm_forward.1']
    #allocation14 [shape = 'u8[512]{0}', space=vmem, size = 0x400, scoped, tag = 'input window, operand 51, single buffered']
    %122 = vsyncpa [#allocation11], 0
    %123 = vsyncpa [#allocation13], 0
    %124 = vsyncpa [#allocation10], 0
    // Predicated region
    $region2: #{self_mm_forward.1} parent=1 // pred_check
      _
    $region3: #{self_mm_forward.1} parent=1 // pred_check_branch
      %126 = sbr.rel (0) target = $region5
    $region4: #{self_mm_forward.1} parent=1 // pred_region
      %128 = vsyncadd [#allocation11], 0
      %s130 = sshll.u32 %s1, 4
      %s131 = int_to_ptr.vmem [resolvable:$true] %s130
      %133 = dma.vmem_to_smem %s131, 16, [#allocation9], [#allocation11]
    $region5: #{self_mm_forward.1} parent=1 // pred_fallthru
      _
    // Predicated region
    $region6: #{self_mm_forward.1} parent=1 // pred_check
      _
    $region7: #{self_mm_forward.1} parent=1 // pred_check_branch
      %135 = sbr.rel (0) target = $region9
    $region8: #{self_mm_forward.1} parent=1 // pred_region
      %137 = vsyncadd [#allocation13], 0
      %s139 = sshll.u32 %s3, 4
      %s140 = int_to_ptr.vmem [resolvable:$true] %s139
      %142 = dma.vmem_to_smem %s140, 16, [#allocation12], [#allocation13]
    $region9: #{self_mm_forward.1} parent=1 // pred_fallthru
      _
    // Predicated region
    $region10: #{self_mm_forward.1} parent=1 // pred_check
      _
    $region11: #{self_mm_forward.1} parent=1 // pred_check_branch
      %144 = sbr.rel (0) target = $region13
    $region12: #{self_mm_forward.1} parent=1 // pred_region
      _
    $region13: #{self_mm_forward.1} parent=1 // pred_fallthru
      _
    // Predicated region
    $region14: #{self_mm_forward.1} parent=1 // pred_check
      _
    $region15: #{self_mm_forward.1} parent=1 // pred_check_branch
      %146 = sbr.rel (0) target = $region17
    $region16: #{self_mm_forward.1} parent=1 // pred_region
      _
    $region17: #{self_mm_forward.1} parent=1 // pred_fallthru
      _
    // Predicated region
    $region18: #{self_mm_forward.1} parent=1 // pred_check
      _
    $region19: #{self_mm_forward.1} parent=1 // pred_check_branch
      %148 = sbr.rel (0) target = $region21
    $region20: #{self_mm_forward.1} parent=1 // pred_region
      _
    $region21: #{self_mm_forward.1} parent=1 // pred_fallthru
      _
    // Predicated region
    $region22: #{self_mm_forward.1} parent=1 // pred_check
      _
    $region23: #{self_mm_forward.1} parent=1 // pred_check_branch
      %150 = sbr.rel (0) target = $region25
    $region24: #{self_mm_forward.1} parent=1 // pred_region
      _
    $region25: #{self_mm_forward.1} parent=1 // pred_fallthru
      _
    // Predicated region
    $region26: #{self_mm_forward.1} parent=1 // pred_check
      _
    $region27: #{self_mm_forward.1} parent=1 // pred_check_branch
      %152 = sbr.rel (0) target = $region29
    $region28: #{self_mm_forward.1} parent=1 // pred_region
      _
    $region29: #{self_mm_forward.1} parent=1 // pred_fallthru
      _
    // Predicated region
    $region30: #{self_mm_forward.1} parent=1 // pred_check
      _
    $region31: #{self_mm_forward.1} parent=1 // pred_check_branch
      %154 = sbr.rel (0) target = $region33
    $region32: #{self_mm_forward.1} parent=1 // pred_region
      _
    $region33: #{self_mm_forward.1} parent=1 // pred_fallthru
      _
    // Predicated region
    $region34: #{self_mm_forward.1} parent=1 // pred_check
      _
    $region35: #{self_mm_forward.1} parent=1 // pred_check_branch
      %156 = sbr.rel (0) target = $region37
    $region36: #{self_mm_forward.1} parent=1 // pred_region
      _
    $region37: #{self_mm_forward.1} parent=1 // pred_fallthru
      _
    // Predicated region
    $region38: #{self_mm_forward.1} parent=1 // pred_check
      _
    $region39: #{self_mm_forward.1} parent=1 // pred_check_branch
      %158 = sbr.rel (0) target = $region41
    $region40: #{self_mm_forward.1} parent=1 // pred_region
      _
    $region41: #{self_mm_forward.1} parent=1 // pred_fallthru
      _
    // Predicated region
    $region42: #{self_mm_forward.1} parent=1 // pred_check
      _
    $region43: #{self_mm_forward.1} parent=1 // pred_check_branch
      %160 = sbr.rel (0) target = $region45
    $region44: #{self_mm_forward.1} parent=1 // pred_region
      _
    $region45: #{self_mm_forward.1} parent=1 // pred_fallthru
      _
    // Predicated region
    $region46: #{self_mm_forward.1} parent=1 // pred_check
      _
    $region47: #{self_mm_forward.1} parent=1 // pred_check_branch
      %162 = sbr.rel (0) target = $region49
    $region48: #{self_mm_forward.1} parent=1 // pred_region
      _
    $region49: #{self_mm_forward.1} parent=1 // pred_fallthru
      _
    // Predicated region
    $region50: #{self_mm_forward.1} parent=1 // pred_check
      _
    $region51: #{self_mm_forward.1} parent=1 // pred_check_branch
      %164 = sbr.rel (0) target = $region53
    $region52: #{self_mm_forward.1} parent=1 // pred_region
      _
    $region53: #{self_mm_forward.1} parent=1 // pred_fallthru
      _
    // Predicated region
    $region54: #{self_mm_forward.1} parent=1 // pred_check
      _
    $region55: #{self_mm_forward.1} parent=1 // pred_check_branch
      %166 = sbr.rel (0) target = $region57
    $region56: #{self_mm_forward.1} parent=1 // pred_region
      _
    $region57: #{self_mm_forward.1} parent=1 // pred_fallthru
      _
    // Predicated region
    $region58: #{self_mm_forward.1} parent=1 // pred_check
      _
    $region59: #{self_mm_forward.1} parent=1 // pred_check_branch
      %168 = sbr.rel (0) target = $region61
    $region60: #{self_mm_forward.1} parent=1 // pred_region
      _
    $region61: #{self_mm_forward.1} parent=1 // pred_fallthru
      _
    // Predicated region
    $region62: #{self_mm_forward.1} parent=1 // pred_check
      _
    $region63: #{self_mm_forward.1} parent=1 // pred_check_branch
      %170 = sbr.rel (0) target = $region65
    $region64: #{self_mm_forward.1} parent=1 // pred_region
      _
    $region65: #{self_mm_forward.1} parent=1 // pred_fallthru
      _
    // Predicated region
    $region66: #{self_mm_forward.1} parent=1 // pred_check
      _
    $region67: #{self_mm_forward.1} parent=1 // pred_check_branch
      %172 = sbr.rel (0) target = $region69
    $region68: #{self_mm_forward.1} parent=1 // pred_region
      _
    $region69: #{self_mm_forward.1} parent=1 // pred_fallthru
      _
    // Predicated region
    $region70: #{self_mm_forward.1} parent=1 // pred_check
      _
    $region71: #{self_mm_forward.1} parent=1 // pred_check_branch
      %174 = sbr.rel (0) target = $region73
    $region72: #{self_mm_forward.1} parent=1 // pred_region
      _
    $region73: #{self_mm_forward.1} parent=1 // pred_fallthru
      _
    // Predicated region
    $region74: #{self_mm_forward.1} parent=1 // pred_check
      _
    $region75: #{self_mm_forward.1} parent=1 // pred_check_branch
      %176 = sbr.rel (0) target = $region77
    $region76: #{self_mm_forward.1} parent=1 // pred_region
      _
    $region77: #{self_mm_forward.1} parent=1 // pred_fallthru
      _
    // Predicated region
    $region78: #{self_mm_forward.1} parent=1 // pred_check
      _
    $region79: #{self_mm_forward.1} parent=1 // pred_check_branch
      %178 = sbr.rel (0) target = $region81
    $region80: #{self_mm_forward.1} parent=1 // pred_region
      _
    $region81: #{self_mm_forward.1} parent=1 // pred_fallthru
      _
    // Predicated region
    $region82: #{self_mm_forward.1} parent=1 // pred_check
      _
    $region83: #{self_mm_forward.1} parent=1 // pred_check_branch
      %180 = sbr.rel (0) target = $region85
    $region84: #{self_mm_forward.1} parent=1 // pred_region
      _
    $region85: #{self_mm_forward.1} parent=1 // pred_fallthru
      _
    // Predicated region
    $region86: #{self_mm_forward.1} parent=1 // pred_check
      _
    $region87: #{self_mm_forward.1} parent=1 // pred_check_branch
      %182 = sbr.rel (0) target = $region89
    $region88: #{self_mm_forward.1} parent=1 // pred_region
      _
    $region89: #{self_mm_forward.1} parent=1 // pred_fallthru
      _
    // Predicated region
    $region90: #{self_mm_forward.1} parent=1 // pred_check
      _
    $region91: #{self_mm_forward.1} parent=1 // pred_check_branch
      %184 = sbr.rel (0) target = $region93
    $region92: #{self_mm_forward.1} parent=1 // pred_region
      _
    $region93: #{self_mm_forward.1} parent=1 // pred_fallthru
      _
    // Predicated region
    $region94: #{self_mm_forward.1} parent=1 // pred_check
      _
    $region95: #{self_mm_forward.1} parent=1 // pred_check_branch
      %186 = sbr.rel (0) target = $region97
    $region96: #{self_mm_forward.1} parent=1 // pred_region
      _
    $region97: #{self_mm_forward.1} parent=1 // pred_fallthru
      _
    // Predicated region
    $region98: #{self_mm_forward.1} parent=1 // pred_check
      _
    $region99: #{self_mm_forward.1} parent=1 // pred_check_branch
      %188 = sbr.rel (0) target = $region101
    $region100: #{self_mm_forward.1} parent=1 // pred_region
      _
    $region101: #{self_mm_forward.1} parent=1 // pred_fallthru
      _
    // Predicated region
    $region102: #{self_mm_forward.1} parent=1 // pred_check
      _
    $region103: #{self_mm_forward.1} parent=1 // pred_check_branch
      %190 = sbr.rel (0) target = $region105
    $region104: #{self_mm_forward.1} parent=1 // pred_region
      _
    $region105: #{self_mm_forward.1} parent=1 // pred_fallthru
      _
    // Predicated region
    $region106: #{self_mm_forward.1} parent=1 // pred_check
      _
    $region107: #{self_mm_forward.1} parent=1 // pred_check_branch
      %192 = sbr.rel (0) target = $region109
    $region108: #{self_mm_forward.1} parent=1 // pred_region
      _
    $region109: #{self_mm_forward.1} parent=1 // pred_fallthru
      _
    // Predicated region
    $region110: #{self_mm_forward.1} parent=1 // pred_check
      _
    $region111: #{self_mm_forward.1} parent=1 // pred_check_branch
      %194 = sbr.rel (0) target = $region113
    $region112: #{self_mm_forward.1} parent=1 // pred_region
      _
    $region113: #{self_mm_forward.1} parent=1 // pred_fallthru
      _
    // Predicated region
    $region114: #{self_mm_forward.1} parent=1 // pred_check
      _
    $region115: #{self_mm_forward.1} parent=1 // pred_check_branch
      %196 = sbr.rel (0) target = $region117
    $region116: #{self_mm_forward.1} parent=1 // pred_region
      _
    $region117: #{self_mm_forward.1} parent=1 // pred_fallthru
      _
    // Predicated region
    $region118: #{self_mm_forward.1} parent=1 // pred_check
      _
    $region119: #{self_mm_forward.1} parent=1 // pred_check_branch
      %198 = sbr.rel (0) target = $region121
    $region120: #{self_mm_forward.1} parent=1 // pred_region
      _
    $region121: #{self_mm_forward.1} parent=1 // pred_fallthru
      _
    // Predicated region
    $region122: #{self_mm_forward.1} parent=1 // pred_check
      _
    $region123: #{self_mm_forward.1} parent=1 // pred_check_branch
      %200 = sbr.rel (0) target = $region125
    $region124: #{self_mm_forward.1} parent=1 // pred_region
      _
    $region125: #{self_mm_forward.1} parent=1 // pred_fallthru
      _
    // Predicated region
    $region126: #{self_mm_forward.1} parent=1 // pred_check
      _
    $region127: #{self_mm_forward.1} parent=1 // pred_check_branch
      %202 = sbr.rel (0) target = $region129
    $region128: #{self_mm_forward.1} parent=1 // pred_region
      _
    $region129: #{self_mm_forward.1} parent=1 // pred_fallthru
      _
    // Predicated region
    $region130: #{self_mm_forward.1} parent=1 // pred_check
      _
    $region131: #{self_mm_forward.1} parent=1 // pred_check_branch
      %204 = sbr.rel (0) target = $region133
    $region132: #{self_mm_forward.1} parent=1 // pred_region
      _
    $region133: #{self_mm_forward.1} parent=1 // pred_fallthru
      _
    // Predicated region
    $region134: #{self_mm_forward.1} parent=1 // pred_check
      _
    $region135: #{self_mm_forward.1} parent=1 // pred_check_branch
      %206 = sbr.rel (0) target = $region137
    $region136: #{self_mm_forward.1} parent=1 // pred_region
      _
    $region137: #{self_mm_forward.1} parent=1 // pred_fallthru
      _
    // Predicated region
    $region138: #{self_mm_forward.1} parent=1 // pred_check
      _
    $region139: #{self_mm_forward.1} parent=1 // pred_check_branch
      %208 = sbr.rel (0) target = $region141
    $region140: #{self_mm_forward.1} parent=1 // pred_region
      _
    $region141: #{self_mm_forward.1} parent=1 // pred_fallthru
      _
    // Predicated region
    $region142: #{self_mm_forward.1} parent=1 // pred_check
      _
    $region143: #{self_mm_forward.1} parent=1 // pred_check_branch
      %210 = sbr.rel (0) target = $region145
    $region144: #{self_mm_forward.1} parent=1 // pred_region
      _
    $region145: #{self_mm_forward.1} parent=1 // pred_fallthru
      _
    // Predicated region
    $region146: #{self_mm_forward.1} parent=1 // pred_check
      _
    $region147: #{self_mm_forward.1} parent=1 // pred_check_branch
      %212 = sbr.rel (0) target = $region149
    $region148: #{self_mm_forward.1} parent=1 // pred_region
      _
    $region149: #{self_mm_forward.1} parent=1 // pred_fallthru
      _
    // Predicated region
    $region150: #{self_mm_forward.1} parent=1 // pred_check
      _
    $region151: #{self_mm_forward.1} parent=1 // pred_check_branch
      %214 = sbr.rel (0) target = $region153
    $region152: #{self_mm_forward.1} parent=1 // pred_region
      _
    $region153: #{self_mm_forward.1} parent=1 // pred_fallthru
      _
    // Predicated region
    $region154: #{self_mm_forward.1} parent=1 // pred_check
      _
    $region155: #{self_mm_forward.1} parent=1 // pred_check_branch
      %216 = sbr.rel (0) target = $region157
    $region156: #{self_mm_forward.1} parent=1 // pred_region
      _
    $region157: #{self_mm_forward.1} parent=1 // pred_fallthru
      _
    // Predicated region
    $region158: #{self_mm_forward.1} parent=1 // pred_check
      _
    $region159: #{self_mm_forward.1} parent=1 // pred_check_branch
      %218 = sbr.rel (0) target = $region161
    $region160: #{self_mm_forward.1} parent=1 // pred_region
      _
    $region161: #{self_mm_forward.1} parent=1 // pred_fallthru
      _
    // Predicated region
    $region162: #{self_mm_forward.1} parent=1 // pred_check
      _
    $region163: #{self_mm_forward.1} parent=1 // pred_check_branch
      %220 = sbr.rel (0) target = $region165
    $region164: #{self_mm_forward.1} parent=1 // pred_region
      _
    $region165: #{self_mm_forward.1} parent=1 // pred_fallthru
      _
    // Predicated region
    $region166: #{self_mm_forward.1} parent=1 // pred_check
      _
    $region167: #{self_mm_forward.1} parent=1 // pred_check_branch
      %222 = sbr.rel (0) target = $region169
    $region168: #{self_mm_forward.1} parent=1 // pred_region
      _
    $region169: #{self_mm_forward.1} parent=1 // pred_fallthru
      _
    // Predicated region
    $region170: #{self_mm_forward.1} parent=1 // pred_check
      _
    $region171: #{self_mm_forward.1} parent=1 // pred_check_branch
      %224 = sbr.rel (0) target = $region173
    $region172: #{self_mm_forward.1} parent=1 // pred_region
      _
    $region173: #{self_mm_forward.1} parent=1 // pred_fallthru
      _
    // Predicated region
    $region174: #{self_mm_forward.1} parent=1 // pred_check
      _
    $region175: #{self_mm_forward.1} parent=1 // pred_check_branch
      %226 = sbr.rel (0) target = $region177
    $region176: #{self_mm_forward.1} parent=1 // pred_region
      _
    $region177: #{self_mm_forward.1} parent=1 // pred_fallthru
      _
    // Predicated region
    $region178: #{self_mm_forward.1} parent=1 // pred_check
      _
    $region179: #{self_mm_forward.1} parent=1 // pred_check_branch
      %228 = sbr.rel (0) target = $region181
    $region180: #{self_mm_forward.1} parent=1 // pred_region
      _
    $region181: #{self_mm_forward.1} parent=1 // pred_fallthru
      _
    // Predicated region
    $region182: #{self_mm_forward.1} parent=1 // pred_check
      _
    $region183: #{self_mm_forward.1} parent=1 // pred_check_branch
      %230 = sbr.rel (0) target = $region185
    $region184: #{self_mm_forward.1} parent=1 // pred_region
      _
    $region185: #{self_mm_forward.1} parent=1 // pred_fallthru
      _
    // Predicated region
    $region186: #{self_mm_forward.1} parent=1 // pred_check
      _
    $region187: #{self_mm_forward.1} parent=1 // pred_check_branch
      %232 = sbr.rel (0) target = $region189
    $region188: #{self_mm_forward.1} parent=1 // pred_region
      _
    $region189: #{self_mm_forward.1} parent=1 // pred_fallthru
      _
    // Predicated region
    $region190: #{self_mm_forward.1} parent=1 // pred_check
      _
    $region191: #{self_mm_forward.1} parent=1 // pred_check_branch
      %234 = sbr.rel (0) target = $region193
    $region192: #{self_mm_forward.1} parent=1 // pred_region
      _
    $region193: #{self_mm_forward.1} parent=1 // pred_fallthru
      _
    // Predicated region
    $region194: #{self_mm_forward.1} parent=1 // pred_check
      _
    $region195: #{self_mm_forward.1} parent=1 // pred_check_branch
      %236 = sbr.rel (0) target = $region197
    $region196: #{self_mm_forward.1} parent=1 // pred_region
      _
    $region197: #{self_mm_forward.1} parent=1 // pred_fallthru
      _
    // Predicated region
    $region198: #{self_mm_forward.1} parent=1 // pred_check
      _
    $region199: #{self_mm_forward.1} parent=1 // pred_check_branch
      %238 = sbr.rel (0) target = $region201
    $region200: #{self_mm_forward.1} parent=1 // pred_region
      %240 = vsyncadd [#allocation10], 0
      %s242 = sshll.u32 %s103, 4
      %s243 = int_to_ptr.hbm [resolvable:$true] %s242
      %s244 = sshll.u32 [#allocation14], 4
      %s245 = int_to_ptr.vmem [resolvable:$true] %s244
      %247 = dma.hbm_to_vmem [thread:$0]  %s243, 16, %s245, [#allocation10]
    $region201: #{self_mm_forward.1} parent=1 // pred_fallthru
      _
    // Predicated region
    $region202: #{self_mm_forward.1} parent=1 // pred_check
      _
    $region203: #{self_mm_forward.1} parent=1 // pred_check_branch
      %249 = sbr.rel (0) target = $region205
    $region204: #{self_mm_forward.1} parent=1 // pred_region
      _
    $region205: #{self_mm_forward.1} parent=1 // pred_fallthru
      _
    // Predicated region
    $region206: #{self_mm_forward.1} parent=1 // pred_check
      _
    $region207: #{self_mm_forward.1} parent=1 // pred_check_branch
      %251 = sbr.rel (0) target = $region209
    $region208: #{self_mm_forward.1} parent=1 // pred_region
      _
    $region209: #{self_mm_forward.1} parent=1 // pred_fallthru
      _
    // Predicated region
    $region210: #{self_mm_forward.1} parent=1 // pred_check
      _
    $region211: #{self_mm_forward.1} parent=1 // pred_check_branch
      %253 = sbr.rel (0) target = $region213
    $region212: #{self_mm_forward.1} parent=1 // pred_region
      %255 = dma.done [#allocation11], 16
    $region213: #{self_mm_forward.1} parent=1 // pred_fallthru
      _
    // Predicated region
    $region214: #{self_mm_forward.1} parent=1 // pred_check
      _
    $region215: #{self_mm_forward.1} parent=1 // pred_check_branch
      %257 = sbr.rel (0) target = $region217
    $region216: #{self_mm_forward.1} parent=1 // pred_region
      %259 = dma.done [#allocation13], 16
    $region217: #{self_mm_forward.1} parent=1 // pred_fallthru
      _
    // Predicated region
    $region218: #{self_mm_forward.1} parent=1 // pred_check
      _
    $region219: #{self_mm_forward.1} parent=1 // pred_check_branch
      %261 = sbr.rel (0) target = $region221
    $region220: #{self_mm_forward.1} parent=1 // pred_region
      %263 = dma.done [#allocation10], 16
    $region221: #{self_mm_forward.1} parent=1 // pred_fallthru
      _
    %264 = sfence
    // Predicated region
    $region222: #{self_mm_forward.1} parent=1 // pred_check
      _
    $region223: #{self_mm_forward.1} parent=1 // pred_check_branch
      %266 = sbr.rel (0) target = $region225
    $region224: #{self_mm_forward.1} parent=1 // pred_region
      loop: start=0, step=1, limit=1
      $region226: #{self_mm_forward.1} parent=224 // loop_pre_header
        _
      $region227: #{self_mm_forward.1} parent=224 // loop_header
        %s268 = sphi 0, %s272
        %p269 = scmp.ge.s32.totalorder %s268, 1
        %s273 = sphi %s9, %s9
        %s274 = sphi [#allocation2], [#allocation2]
      $region228: #{self_mm_forward.1} parent=224 // loop_header_branch
        %271 = sbr.rel (%p269) target = $region232
      $region229: #{self_mm_forward.1} parent=224 // loop_body
        %v275 = vld [vmem:[%s273] sm:$0xff]
        %276 = vst [vmem:[%s274] sm:$0xff] %v275
        %v277 = vld [vmem:[%s273 + $0x8] sm:$0xff]
        %278 = vst [vmem:[%s274 + $0x8] sm:$0xff] %v277
        %v279 = vld [vmem:[%s273 + $0x10] sm:$0xff]
        %280 = vst [vmem:[%s274 + $0x10] sm:$0xff] %v279
        %v281 = vld [vmem:[%s273 + $0x18] sm:$0xff]
        %282 = vst [vmem:[%s274 + $0x18] sm:$0xff] %v281
        %v283 = vld [vmem:[%s273 + $0x20] sm:$0xff]
        %284 = vst [vmem:[%s274 + $0x20] sm:$0xff] %v283
        %v285 = vld [vmem:[%s273 + $0x28] sm:$0xff]
        %286 = vst [vmem:[%s274 + $0x28] sm:$0xff] %v285
        %v287 = vld [vmem:[%s273 + $0x30] sm:$0xff]
        %288 = vst [vmem:[%s274 + $0x30] sm:$0xff] %v287
        %v289 = vld [vmem:[%s273 + $0x38] sm:$0xff]
        %290 = vst [vmem:[%s274 + $0x38] sm:$0xff] %v289
        %v291 = vld [vmem:[%s273 + $0x40] sm:$0xff]
        %292 = vst [vmem:[%s274 + $0x40] sm:$0xff] %v291
        %v293 = vld [vmem:[%s273 + $0x48] sm:$0xff]
        %294 = vst [vmem:[%s274 + $0x48] sm:$0xff] %v293
        %v295 = vld [vmem:[%s273 + $0x50] sm:$0xff]
        %296 = vst [vmem:[%s274 + $0x50] sm:$0xff] %v295
        %v297 = vld [vmem:[%s273 + $0x58] sm:$0xff]
        %298 = vst [vmem:[%s274 + $0x58] sm:$0xff] %v297
        %v299 = vld [vmem:[%s273 + $0x60] sm:$0xff]
        %300 = vst [vmem:[%s274 + $0x60] sm:$0xff] %v299
        %v301 = vld [vmem:[%s273 + $0x68] sm:$0xff]
        %302 = vst [vmem:[%s274 + $0x68] sm:$0xff] %v301
        %v303 = vld [vmem:[%s273 + $0x70] sm:$0xff]
        %304 = vst [vmem:[%s274 + $0x70] sm:$0xff] %v303
        %v305 = vld [vmem:[%s273 + $0x78] sm:$0xff]
        %306 = vst [vmem:[%s274 + $0x78] sm:$0xff] %v305
        %v307 = vld [vmem:[%s273 + $0x80] sm:$0xff]
        %308 = vst [vmem:[%s274 + $0x80] sm:$0xff] %v307
        %v309 = vld [vmem:[%s273 + $0x88] sm:$0xff]
        %310 = vst [vmem:[%s274 + $0x88] sm:$0xff] %v309
        %v311 = vld [vmem:[%s273 + $0x90] sm:$0xff]
        %312 = vst [vmem:[%s274 + $0x90] sm:$0xff] %v311
        %v313 = vld [vmem:[%s273 + $0x98] sm:$0xff]
        %314 = vst [vmem:[%s274 + $0x98] sm:$0xff] %v313
        %v315 = vld [vmem:[%s273 + $0xa0] sm:$0xff]
        %316 = vst [vmem:[%s274 + $0xa0] sm:$0xff] %v315
        %v317 = vld [vmem:[%s273 + $0xa8] sm:$0xff]
        %318 = vst [vmem:[%s274 + $0xa8] sm:$0xff] %v317
        %v319 = vld [vmem:[%s273 + $0xb0] sm:$0xff]
        %320 = vst [vmem:[%s274 + $0xb0] sm:$0xff] %v319
        %v321 = vld [vmem:[%s273 + $0xb8] sm:$0xff]
        %322 = vst [vmem:[%s274 + $0xb8] sm:$0xff] %v321
        %v323 = vld [vmem:[%s273 + $0xc0] sm:$0xff]
        %324 = vst [vmem:[%s274 + $0xc0] sm:$0xff] %v323
        %v325 = vld [vmem:[%s273 + $0xc8] sm:$0xff]
        %326 = vst [vmem:[%s274 + $0xc8] sm:$0xff] %v325
        %v327 = vld [vmem:[%s273 + $0xd0] sm:$0xff]
        %328 = vst [vmem:[%s274 + $0xd0] sm:$0xff] %v327
        %v329 = vld [vmem:[%s273 + $0xd8] sm:$0xff]
        %330 = vst [vmem:[%s274 + $0xd8] sm:$0xff] %v329
        %v331 = vld [vmem:[%s273 + $0xe0] sm:$0xff]
        %332 = vst [vmem:[%s274 + $0xe0] sm:$0xff] %v331
        %v333 = vld [vmem:[%s273 + $0xe8] sm:$0xff]
        %334 = vst [vmem:[%s274 + $0xe8] sm:$0xff] %v333
        %v335 = vld [vmem:[%s273 + $0xf0] sm:$0xff]
        %336 = vst [vmem:[%s274 + $0xf0] sm:$0xff] %v335
        %v337 = vld [vmem:[%s273 + $0xf8] sm:$0xff]
        %338 = vst [vmem:[%s274 + $0xf8] sm:$0xff] %v337
      $region230: #{self_mm_forward.1} parent=224 // loop_footer
        %s272 = sadd.s32 1, %s268
      $region231: #{self_mm_forward.1} parent=224 // loop_footer_branch
        %267 = sbr.rel target = $region227
      $region232: #{self_mm_forward.1} parent=224 // loop_exit
        _
    $region225: #{self_mm_forward.1} parent=1 // pred_fallthru
      _
    // Predicated region
    $region233: #{self_mm_forward.1} parent=1 // pred_check
      _
    $region234: #{self_mm_forward.1} parent=1 // pred_check_branch
      %340 = sbr.rel target = $region236
    $region235: #{self_mm_forward.1} parent=1 // pred_region
      _
    $region236: #{self_mm_forward.1} parent=1 // pred_fallthru
      _
    // Predicated region
    $region237: #{self_mm_forward.1} parent=1 // pred_check
      _
    $region238: #{self_mm_forward.1} parent=1 // pred_check_branch
      %343 = sbr.rel (0) target = $region240
    $region239: #{self_mm_forward.1} parent=1 // pred_region
      %344 = vsyncadd [#allocation4], 4096
    $region240: #{self_mm_forward.1} parent=1 // pred_fallthru
      _
    %s345 = scalar_lea.sflag [#allocation4], 1
    // Predicated region
    $region241: #{self_mm_forward.1} parent=1 // pred_check
      _
    $region242: #{self_mm_forward.1} parent=1 // pred_check_branch
      %347 = sbr.rel (0) target = $region244
    $region243: #{self_mm_forward.1} parent=1 // pred_region
      loop: start=0, step=1, limit=1
      $region245: #{self_mm_forward.1} parent=243 // loop_pre_header
        _
      $region246: #{self_mm_forward.1} parent=243 // loop_header
        %s349 = sphi 0, %s353
        %p350 = scmp.ge.s32.totalorder %s349, 1
        %s354 = sphi %s11, %s11
        %s355 = sphi [#allocation3], [#allocation3]
      $region247: #{self_mm_forward.1} parent=243 // loop_header_branch
        %352 = sbr.rel (%p350) target = $region251
      $region248: #{self_mm_forward.1} parent=243 // loop_body
        %v356 = vld [vmem:[%s354] sm:$0xff]
        %357 = vst [vmem:[%s355] sm:$0xff] %v356
        %v358 = vld [vmem:[%s354 + $0x8] sm:$0xff]
        %359 = vst [vmem:[%s355 + $0x8] sm:$0xff] %v358
        %v360 = vld [vmem:[%s354 + $0x10] sm:$0xff]
        %361 = vst [vmem:[%s355 + $0x10] sm:$0xff] %v360
        %v362 = vld [vmem:[%s354 + $0x18] sm:$0xff]
        %363 = vst [vmem:[%s355 + $0x18] sm:$0xff] %v362
        %v364 = vld [vmem:[%s354 + $0x20] sm:$0xff]
        %365 = vst [vmem:[%s355 + $0x20] sm:$0xff] %v364
        %v366 = vld [vmem:[%s354 + $0x28] sm:$0xff]
        %367 = vst [vmem:[%s355 + $0x28] sm:$0xff] %v366
        %v368 = vld [vmem:[%s354 + $0x30] sm:$0xff]
        %369 = vst [vmem:[%s355 + $0x30] sm:$0xff] %v368
        %v370 = vld [vmem:[%s354 + $0x38] sm:$0xff]
        %371 = vst [vmem:[%s355 + $0x38] sm:$0xff] %v370
        %v372 = vld [vmem:[%s354 + $0x40] sm:$0xff]
        %373 = vst [vmem:[%s355 + $0x40] sm:$0xff] %v372
        %v374 = vld [vmem:[%s354 + $0x48] sm:$0xff]
        %375 = vst [vmem:[%s355 + $0x48] sm:$0xff] %v374
        %v376 = vld [vmem:[%s354 + $0x50] sm:$0xff]
        %377 = vst [vmem:[%s355 + $0x50] sm:$0xff] %v376
        %v378 = vld [vmem:[%s354 + $0x58] sm:$0xff]
        %379 = vst [vmem:[%s355 + $0x58] sm:$0xff] %v378
        %v380 = vld [vmem:[%s354 + $0x60] sm:$0xff]
        %381 = vst [vmem:[%s355 + $0x60] sm:$0xff] %v380
        %v382 = vld [vmem:[%s354 + $0x68] sm:$0xff]
        %383 = vst [vmem:[%s355 + $0x68] sm:$0xff] %v382
        %v384 = vld [vmem:[%s354 + $0x70] sm:$0xff]
        %385 = vst [vmem:[%s355 + $0x70] sm:$0xff] %v384
        %v386 = vld [vmem:[%s354 + $0x78] sm:$0xff]
        %387 = vst [vmem:[%s355 + $0x78] sm:$0xff] %v386
        %v388 = vld [vmem:[%s354 + $0x80] sm:$0xff]
        %389 = vst [vmem:[%s355 + $0x80] sm:$0xff] %v388
        %v390 = vld [vmem:[%s354 + $0x88] sm:$0xff]
        %391 = vst [vmem:[%s355 + $0x88] sm:$0xff] %v390
        %v392 = vld [vmem:[%s354 + $0x90] sm:$0xff]
        %393 = vst [vmem:[%s355 + $0x90] sm:$0xff] %v392
        %v394 = vld [vmem:[%s354 + $0x98] sm:$0xff]
        %395 = vst [vmem:[%s355 + $0x98] sm:$0xff] %v394
        %v396 = vld [vmem:[%s354 + $0xa0] sm:$0xff]
        %397 = vst [vmem:[%s355 + $0xa0] sm:$0xff] %v396
        %v398 = vld [vmem:[%s354 + $0xa8] sm:$0xff]
        %399 = vst [vmem:[%s355 + $0xa8] sm:$0xff] %v398
        %v400 = vld [vmem:[%s354 + $0xb0] sm:$0xff]
        %401 = vst [vmem:[%s355 + $0xb0] sm:$0xff] %v400
        %v402 = vld [vmem:[%s354 + $0xb8] sm:$0xff]
        %403 = vst [vmem:[%s355 + $0xb8] sm:$0xff] %v402
        %v404 = vld [vmem:[%s354 + $0xc0] sm:$0xff]
        %405 = vst [vmem:[%s355 + $0xc0] sm:$0xff] %v404
        %v406 = vld [vmem:[%s354 + $0xc8] sm:$0xff]
        %407 = vst [vmem:[%s355 + $0xc8] sm:$0xff] %v406
        %v408 = vld [vmem:[%s354 + $0xd0] sm:$0xff]
        %409 = vst [vmem:[%s355 + $0xd0] sm:$0xff] %v408
        %v410 = vld [vmem:[%s354 + $0xd8] sm:$0xff]
        %411 = vst [vmem:[%s355 + $0xd8] sm:$0xff] %v410
        %v412 = vld [vmem:[%s354 + $0xe0] sm:$0xff]
        %413 = vst [vmem:[%s355 + $0xe0] sm:$0xff] %v412
        %v414 = vld [vmem:[%s354 + $0xe8] sm:$0xff]
        %415 = vst [vmem:[%s355 + $0xe8] sm:$0xff] %v414
        %v416 = vld [vmem:[%s354 + $0xf0] sm:$0xff]
        %417 = vst [vmem:[%s355 + $0xf0] sm:$0xff] %v416
        %v418 = vld [vmem:[%s354 + $0xf8] sm:$0xff]
        %419 = vst [vmem:[%s355 + $0xf8] sm:$0xff] %v418
        %v420 = vld [vmem:[%s354 + $0x100] sm:$0xff]
        %421 = vst [vmem:[%s355 + $0x100] sm:$0xff] %v420
        %v422 = vld [vmem:[%s354 + $0x108] sm:$0xff]
        %423 = vst [vmem:[%s355 + $0x108] sm:$0xff] %v422
        %v424 = vld [vmem:[%s354 + $0x110] sm:$0xff]
        %425 = vst [vmem:[%s355 + $0x110] sm:$0xff] %v424
        %v426 = vld [vmem:[%s354 + $0x118] sm:$0xff]
        %427 = vst [vmem:[%s355 + $0x118] sm:$0xff] %v426
        %v428 = vld [vmem:[%s354 + $0x120] sm:$0xff]
        %429 = vst [vmem:[%s355 + $0x120] sm:$0xff] %v428
        %v430 = vld [vmem:[%s354 + $0x128] sm:$0xff]
        %431 = vst [vmem:[%s355 + $0x128] sm:$0xff] %v430
        %v432 = vld [vmem:[%s354 + $0x130] sm:$0xff]
        %433 = vst [vmem:[%s355 + $0x130] sm:$0xff] %v432
        %v434 = vld [vmem:[%s354 + $0x138] sm:$0xff]
        %435 = vst [vmem:[%s355 + $0x138] sm:$0xff] %v434
        %v436 = vld [vmem:[%s354 + $0x140] sm:$0xff]
        %437 = vst [vmem:[%s355 + $0x140] sm:$0xff] %v436
        %v438 = vld [vmem:[%s354 + $0x148] sm:$0xff]
        %439 = vst [vmem:[%s355 + $0x148] sm:$0xff] %v438
        %v440 = vld [vmem:[%s354 + $0x150] sm:$0xff]
        %441 = vst [vmem:[%s355 + $0x150] sm:$0xff] %v440
        %v442 = vld [vmem:[%s354 + $0x158] sm:$0xff]
        %443 = vst [vmem:[%s355 + $0x158] sm:$0xff] %v442
        %v444 = vld [vmem:[%s354 + $0x160] sm:$0xff]
        %445 = vst [vmem:[%s355 + $0x160] sm:$0xff] %v444
        %v446 = vld [vmem:[%s354 + $0x168] sm:$0xff]
        %447 = vst [vmem:[%s355 + $0x168] sm:$0xff] %v446
        %v448 = vld [vmem:[%s354 + $0x170] sm:$0xff]
        %449 = vst [vmem:[%s355 + $0x170] sm:$0xff] %v448
        %v450 = vld [vmem:[%s354 + $0x178] sm:$0xff]
        %451 = vst [vmem:[%s355 + $0x178] sm:$0xff] %v450
        %v452 = vld [vmem:[%s354 + $0x180] sm:$0xff]
        %453 = vst [vmem:[%s355 + $0x180] sm:$0xff] %v452
        %v454 = vld [vmem:[%s354 + $0x188] sm:$0xff]
        %455 = vst [vmem:[%s355 + $0x188] sm:$0xff] %v454
        %v456 = vld [vmem:[%s354 + $0x190] sm:$0xff]
        %457 = vst [vmem:[%s355 + $0x190] sm:$0xff] %v456
        %v458 = vld [vmem:[%s354 + $0x198] sm:$0xff]
        %459 = vst [vmem:[%s355 + $0x198] sm:$0xff] %v458
        %v460 = vld [vmem:[%s354 + $0x1a0] sm:$0xff]
        %461 = vst [vmem:[%s355 + $0x1a0] sm:$0xff] %v460
        %v462 = vld [vmem:[%s354 + $0x1a8] sm:$0xff]
        %463 = vst [vmem:[%s355 + $0x1a8] sm:$0xff] %v462
        %v464 = vld [vmem:[%s354 + $0x1b0] sm:$0xff]
        %465 = vst [vmem:[%s355 + $0x1b0] sm:$0xff] %v464
        %v466 = vld [vmem:[%s354 + $0x1b8] sm:$0xff]
        %467 = vst [vmem:[%s355 + $0x1b8] sm:$0xff] %v466
        %v468 = vld [vmem:[%s354 + $0x1c0] sm:$0xff]
        %469 = vst [vmem:[%s355 + $0x1c0] sm:$0xff] %v468
        %v470 = vld [vmem:[%s354 + $0x1c8] sm:$0xff]
        %471 = vst [vmem:[%s355 + $0x1c8] sm:$0xff] %v470
        %v472 = vld [vmem:[%s354 + $0x1d0] sm:$0xff]
        %473 = vst [vmem:[%s355 + $0x1d0] sm:$0xff] %v472
        %v474 = vld [vmem:[%s354 + $0x1d8] sm:$0xff]
        %475 = vst [vmem:[%s355 + $0x1d8] sm:$0xff] %v474
        %v476 = vld [vmem:[%s354 + $0x1e0] sm:$0xff]
        %477 = vst [vmem:[%s355 + $0x1e0] sm:$0xff] %v476
        %v478 = vld [vmem:[%s354 + $0x1e8] sm:$0xff]
        %479 = vst [vmem:[%s355 + $0x1e8] sm:$0xff] %v478
        %v480 = vld [vmem:[%s354 + $0x1f0] sm:$0xff]
        %481 = vst [vmem:[%s355 + $0x1f0] sm:$0xff] %v480
        %v482 = vld [vmem:[%s354 + $0x1f8] sm:$0xff]
        %483 = vst [vmem:[%s355 + $0x1f8] sm:$0xff] %v482
        %v484 = vld [vmem:[%s354 + $0x200] sm:$0xff]
        %485 = vst [vmem:[%s355 + $0x200] sm:$0xff] %v484
        %v486 = vld [vmem:[%s354 + $0x208] sm:$0xff]
        %487 = vst [vmem:[%s355 + $0x208] sm:$0xff] %v486
        %v488 = vld [vmem:[%s354 + $0x210] sm:$0xff]
        %489 = vst [vmem:[%s355 + $0x210] sm:$0xff] %v488
        %v490 = vld [vmem:[%s354 + $0x218] sm:$0xff]
        %491 = vst [vmem:[%s355 + $0x218] sm:$0xff] %v490
        %v492 = vld [vmem:[%s354 + $0x220] sm:$0xff]
        %493 = vst [vmem:[%s355 + $0x220] sm:$0xff] %v492
        %v494 = vld [vmem:[%s354 + $0x228] sm:$0xff]
        %495 = vst [vmem:[%s355 + $0x228] sm:$0xff] %v494
        %v496 = vld [vmem:[%s354 + $0x230] sm:$0xff]
        %497 = vst [vmem:[%s355 + $0x230] sm:$0xff] %v496
        %v498 = vld [vmem:[%s354 + $0x238] sm:$0xff]
        %499 = vst [vmem:[%s355 + $0x238] sm:$0xff] %v498
        %v500 = vld [vmem:[%s354 + $0x240] sm:$0xff]
        %501 = vst [vmem:[%s355 + $0x240] sm:$0xff] %v500
        %v502 = vld [vmem:[%s354 + $0x248] sm:$0xff]
        %503 = vst [vmem:[%s355 + $0x248] sm:$0xff] %v502
        %v504 = vld [vmem:[%s354 + $0x250] sm:$0xff]
        %505 = vst [vmem:[%s355 + $0x250] sm:$0xff] %v504
        %v506 = vld [vmem:[%s354 + $0x258] sm:$0xff]
        %507 = vst [vmem:[%s355 + $0x258] sm:$0xff] %v506
        %v508 = vld [vmem:[%s354 + $0x260] sm:$0xff]
        %509 = vst [vmem:[%s355 + $0x260] sm:$0xff] %v508
        %v510 = vld [vmem:[%s354 + $0x268] sm:$0xff]
        %511 = vst [vmem:[%s355 + $0x268] sm:$0xff] %v510
        %v512 = vld [vmem:[%s354 + $0x270] sm:$0xff]
        %513 = vst [vmem:[%s355 + $0x270] sm:$0xff] %v512
        %v514 = vld [vmem:[%s354 + $0x278] sm:$0xff]
        %515 = vst [vmem:[%s355 + $0x278] sm:$0xff] %v514
        %v516 = vld [vmem:[%s354 + $0x280] sm:$0xff]
        %517 = vst [vmem:[%s355 + $0x280] sm:$0xff] %v516
        %v518 = vld [vmem:[%s354 + $0x288] sm:$0xff]
        %519 = vst [vmem:[%s355 + $0x288] sm:$0xff] %v518
        %v520 = vld [vmem:[%s354 + $0x290] sm:$0xff]
        %521 = vst [vmem:[%s355 + $0x290] sm:$0xff] %v520
        %v522 = vld [vmem:[%s354 + $0x298] sm:$0xff]
        %523 = vst [vmem:[%s355 + $0x298] sm:$0xff] %v522
        %v524 = vld [vmem:[%s354 + $0x2a0] sm:$0xff]
        %525 = vst [vmem:[%s355 + $0x2a0] sm:$0xff] %v524
        %v526 = vld [vmem:[%s354 + $0x2a8] sm:$0xff]
        %527 = vst [vmem:[%s355 + $0x2a8] sm:$0xff] %v526
        %v528 = vld [vmem:[%s354 + $0x2b0] sm:$0xff]
        %529 = vst [vmem:[%s355 + $0x2b0] sm:$0xff] %v528
        %v530 = vld [vmem:[%s354 + $0x2b8] sm:$0xff]
        %531 = vst [vmem:[%s355 + $0x2b8] sm:$0xff] %v530
        %v532 = vld [vmem:[%s354 + $0x2c0] sm:$0xff]
        %533 = vst [vmem:[%s355 + $0x2c0] sm:$0xff] %v532
        %v534 = vld [vmem:[%s354 + $0x2c8] sm:$0xff]
        %535 = vst [vmem:[%s355 + $0x2c8] sm:$0xff] %v534
        %v536 = vld [vmem:[%s354 + $0x2d0] sm:$0xff]
        %537 = vst [vmem:[%s355 + $0x2d0] sm:$0xff] %v536
        %v538 = vld [vmem:[%s354 + $0x2d8] sm:$0xff]
        %539 = vst [vmem:[%s355 + $0x2d8] sm:$0xff] %v538
        %v540 = vld [vmem:[%s354 + $0x2e0] sm:$0xff]
        %541 = vst [vmem:[%s355 + $0x2e0] sm:$0xff] %v540
        %v542 = vld [vmem:[%s354 + $0x2e8] sm:$0xff]
        %543 = vst [vmem:[%s355 + $0x2e8] sm:$0xff] %v542
        %v544 = vld [vmem:[%s354 + $0x2f0] sm:$0xff]
        %545 = vst [vmem:[%s355 + $0x2f0] sm:$0xff] %v544
        %v546 = vld [vmem:[%s354 + $0x2f8] sm:$0xff]
        %547 = vst [vmem:[%s355 + $0x2f8] sm:$0xff] %v546
        %v548 = vld [vmem:[%s354 + $0x300] sm:$0xff]
        %549 = vst [vmem:[%s355 + $0x300] sm:$0xff] %v548
        %v550 = vld [vmem:[%s354 + $0x308] sm:$0xff]
        %551 = vst [vmem:[%s355 + $0x308] sm:$0xff] %v550
        %v552 = vld [vmem:[%s354 + $0x310] sm:$0xff]
        %553 = vst [vmem:[%s355 + $0x310] sm:$0xff] %v552
        %v554 = vld [vmem:[%s354 + $0x318] sm:$0xff]
        %555 = vst [vmem:[%s355 + $0x318] sm:$0xff] %v554
        %v556 = vld [vmem:[%s354 + $0x320] sm:$0xff]
        %557 = vst [vmem:[%s355 + $0x320] sm:$0xff] %v556
        %v558 = vld [vmem:[%s354 + $0x328] sm:$0xff]
        %559 = vst [vmem:[%s355 + $0x328] sm:$0xff] %v558
        %v560 = vld [vmem:[%s354 + $0x330] sm:$0xff]
        %561 = vst [vmem:[%s355 + $0x330] sm:$0xff] %v560
        %v562 = vld [vmem:[%s354 + $0x338] sm:$0xff]
        %563 = vst [vmem:[%s355 + $0x338] sm:$0xff] %v562
        %v564 = vld [vmem:[%s354 + $0x340] sm:$0xff]
        %565 = vst [vmem:[%s355 + $0x340] sm:$0xff] %v564
        %v566 = vld [vmem:[%s354 + $0x348] sm:$0xff]
        %567 = vst [vmem:[%s355 + $0x348] sm:$0xff] %v566
        %v568 = vld [vmem:[%s354 + $0x350] sm:$0xff]
        %569 = vst [vmem:[%s355 + $0x350] sm:$0xff] %v568
        %v570 = vld [vmem:[%s354 + $0x358] sm:$0xff]
        %571 = vst [vmem:[%s355 + $0x358] sm:$0xff] %v570
        %v572 = vld [vmem:[%s354 + $0x360] sm:$0xff]
        %573 = vst [vmem:[%s355 + $0x360] sm:$0xff] %v572
        %v574 = vld [vmem:[%s354 + $0x368] sm:$0xff]
        %575 = vst [vmem:[%s355 + $0x368] sm:$0xff] %v574
        %v576 = vld [vmem:[%s354 + $0x370] sm:$0xff]
        %577 = vst [vmem:[%s355 + $0x370] sm:$0xff] %v576
        %v578 = vld [vmem:[%s354 + $0x378] sm:$0xff]
        %579 = vst [vmem:[%s355 + $0x378] sm:$0xff] %v578
        %v580 = vld [vmem:[%s354 + $0x380] sm:$0xff]
        %581 = vst [vmem:[%s355 + $0x380] sm:$0xff] %v580
        %v582 = vld [vmem:[%s354 + $0x388] sm:$0xff]
        %583 = vst [vmem:[%s355 + $0x388] sm:$0xff] %v582
        %v584 = vld [vmem:[%s354 + $0x390] sm:$0xff]
        %585 = vst [vmem:[%s355 + $0x390] sm:$0xff] %v584
        %v586 = vld [vmem:[%s354 + $0x398] sm:$0xff]
        %587 = vst [vmem:[%s355 + $0x398] sm:$0xff] %v586
        %v588 = vld [vmem:[%s354 + $0x3a0] sm:$0xff]
        %589 = vst [vmem:[%s355 + $0x3a0] sm:$0xff] %v588
        %v590 = vld [vmem:[%s354 + $0x3a8] sm:$0xff]
        %591 = vst [vmem:[%s355 + $0x3a8] sm:$0xff] %v590
        %v592 = vld [vmem:[%s354 + $0x3b0] sm:$0xff]
        %593 = vst [vmem:[%s355 + $0x3b0] sm:$0xff] %v592
        %v594 = vld [vmem:[%s354 + $0x3b8] sm:$0xff]
        %595 = vst [vmem:[%s355 + $0x3b8] sm:$0xff] %v594
        %v596 = vld [vmem:[%s354 + $0x3c0] sm:$0xff]
        %597 = vst [vmem:[%s355 + $0x3c0] sm:$0xff] %v596
        %v598 = vld [vmem:[%s354 + $0x3c8] sm:$0xff]
        %599 = vst [vmem:[%s355 + $0x3c8] sm:$0xff] %v598
        %v600 = vld [vmem:[%s354 + $0x3d0] sm:$0xff]
        %601 = vst [vmem:[%s355 + $0x3d0] sm:$0xff] %v600
        %v602 = vld [vmem:[%s354 + $0x3d8] sm:$0xff]
        %603 = vst [vmem:[%s355 + $0x3d8] sm:$0xff] %v602
        %v604 = vld [vmem:[%s354 + $0x3e0] sm:$0xff]
        %605 = vst [vmem:[%s355 + $0x3e0] sm:$0xff] %v604
        %v606 = vld [vmem:[%s354 + $0x3e8] sm:$0xff]
        %607 = vst [vmem:[%s355 + $0x3e8] sm:$0xff] %v606
        %v608 = vld [vmem:[%s354 + $0x3f0] sm:$0xff]
        %609 = vst [vmem:[%s355 + $0x3f0] sm:$0xff] %v608
        %v610 = vld [vmem:[%s354 + $0x3f8] sm:$0xff]
        %611 = vst [vmem:[%s355 + $0x3f8] sm:$0xff] %v610
        %v612 = vld [vmem:[%s354 + $0x400] sm:$0xff]
        %613 = vst [vmem:[%s355 + $0x400] sm:$0xff] %v612
        %v614 = vld [vmem:[%s354 + $0x408] sm:$0xff]
        %615 = vst [vmem:[%s355 + $0x408] sm:$0xff] %v614
        %v616 = vld [vmem:[%s354 + $0x410] sm:$0xff]
        %617 = vst [vmem:[%s355 + $0x410] sm:$0xff] %v616
        %v618 = vld [vmem:[%s354 + $0x418] sm:$0xff]
        %619 = vst [vmem:[%s355 + $0x418] sm:$0xff] %v618
        %v620 = vld [vmem:[%s354 + $0x420] sm:$0xff]
        %621 = vst [vmem:[%s355 + $0x420] sm:$0xff] %v620
        %v622 = vld [vmem:[%s354 + $0x428] sm:$0xff]
        %623 = vst [vmem:[%s355 + $0x428] sm:$0xff] %v622
        %v624 = vld [vmem:[%s354 + $0x430] sm:$0xff]
        %625 = vst [vmem:[%s355 + $0x430] sm:$0xff] %v624
        %v626 = vld [vmem:[%s354 + $0x438] sm:$0xff]
        %627 = vst [vmem:[%s355 + $0x438] sm:$0xff] %v626
        %v628 = vld [vmem:[%s354 + $0x440] sm:$0xff]
        %629 = vst [vmem:[%s355 + $0x440] sm:$0xff] %v628
        %v630 = vld [vmem:[%s354 + $0x448] sm:$0xff]
        %631 = vst [vmem:[%s355 + $0x448] sm:$0xff] %v630
        %v632 = vld [vmem:[%s354 + $0x450] sm:$0xff]
        %633 = vst [vmem:[%s355 + $0x450] sm:$0xff] %v632
        %v634 = vld [vmem:[%s354 + $0x458] sm:$0xff]
        %635 = vst [vmem:[%s355 + $0x458] sm:$0xff] %v634
        %v636 = vld [vmem:[%s354 + $0x460] sm:$0xff]
        %637 = vst [vmem:[%s355 + $0x460] sm:$0xff] %v636
        %v638 = vld [vmem:[%s354 + $0x468] sm:$0xff]
        %639 = vst [vmem:[%s355 + $0x468] sm:$0xff] %v638
        %v640 = vld [vmem:[%s354 + $0x470] sm:$0xff]
        %641 = vst [vmem:[%s355 + $0x470] sm:$0xff] %v640
        %v642 = vld [vmem:[%s354 + $0x478] sm:$0xff]
        %643 = vst [vmem:[%s355 + $0x478] sm:$0xff] %v642
        %v644 = vld [vmem:[%s354 + $0x480] sm:$0xff]
        %645 = vst [vmem:[%s355 + $0x480] sm:$0xff] %v644
        %v646 = vld [vmem:[%s354 + $0x488] sm:$0xff]
        %647 = vst [vmem:[%s355 + $0x488] sm:$0xff] %v646
        %v648 = vld [vmem:[%s354 + $0x490] sm:$0xff]
        %649 = vst [vmem:[%s355 + $0x490] sm:$0xff] %v648
        %v650 = vld [vmem:[%s354 + $0x498] sm:$0xff]
        %651 = vst [vmem:[%s355 + $0x498] sm:$0xff] %v650
        %v652 = vld [vmem:[%s354 + $0x4a0] sm:$0xff]
        %653 = vst [vmem:[%s355 + $0x4a0] sm:$0xff] %v652
        %v654 = vld [vmem:[%s354 + $0x4a8] sm:$0xff]
        %655 = vst [vmem:[%s355 + $0x4a8] sm:$0xff] %v654
        %v656 = vld [vmem:[%s354 + $0x4b0] sm:$0xff]
        %657 = vst [vmem:[%s355 + $0x4b0] sm:$0xff] %v656
        %v658 = vld [vmem:[%s354 + $0x4b8] sm:$0xff]
        %659 = vst [vmem:[%s355 + $0x4b8] sm:$0xff] %v658
        %v660 = vld [vmem:[%s354 + $0x4c0] sm:$0xff]
        %661 = vst [vmem:[%s355 + $0x4c0] sm:$0xff] %v660
        %v662 = vld [vmem:[%s354 + $0x4c8] sm:$0xff]
        %663 = vst [vmem:[%s355 + $0x4c8] sm:$0xff] %v662
        %v664 = vld [vmem:[%s354 + $0x4d0] sm:$0xff]
        %665 = vst [vmem:[%s355 + $0x4d0] sm:$0xff] %v664
        %v666 = vld [vmem:[%s354 + $0x4d8] sm:$0xff]
        %667 = vst [vmem:[%s355 + $0x4d8] sm:$0xff] %v666
        %v668 = vld [vmem:[%s354 + $0x4e0] sm:$0xff]
        %669 = vst [vmem:[%s355 + $0x4e0] sm:$0xff] %v668
        %v670 = vld [vmem:[%s354 + $0x4e8] sm:$0xff]
        %671 = vst [vmem:[%s355 + $0x4e8] sm:$0xff] %v670
        %v672 = vld [vmem:[%s354 + $0x4f0] sm:$0xff]
        %673 = vst [vmem:[%s355 + $0x4f0] sm:$0xff] %v672
        %v674 = vld [vmem:[%s354 + $0x4f8] sm:$0xff]
        %675 = vst [vmem:[%s355 + $0x4f8] sm:$0xff] %v674
        %v676 = vld [vmem:[%s354 + $0x500] sm:$0xff]
        %677 = vst [vmem:[%s355 + $0x500] sm:$0xff] %v676
        %v678 = vld [vmem:[%s354 + $0x508] sm:$0xff]
        %679 = vst [vmem:[%s355 + $0x508] sm:$0xff] %v678
        %v680 = vld [vmem:[%s354 + $0x510] sm:$0xff]
        %681 = vst [vmem:[%s355 + $0x510] sm:$0xff] %v680
        %v682 = vld [vmem:[%s354 + $0x518] sm:$0xff]
        %683 = vst [vmem:[%s355 + $0x518] sm:$0xff] %v682
        %v684 = vld [vmem:[%s354 + $0x520] sm:$0xff]
        %685 = vst [vmem:[%s355 + $0x520] sm:$0xff] %v684
        %v686 = vld [vmem:[%s354 + $0x528] sm:$0xff]
        %687 = vst [vmem:[%s355 + $0x528] sm:$0xff] %v686
        %v688 = vld [vmem:[%s354 + $0x530] sm:$0xff]
        %689 = vst [vmem:[%s355 + $0x530] sm:$0xff] %v688
        %v690 = vld [vmem:[%s354 + $0x538] sm:$0xff]
        %691 = vst [vmem:[%s355 + $0x538] sm:$0xff] %v690
        %v692 = vld [vmem:[%s354 + $0x540] sm:$0xff]
        %693 = vst [vmem:[%s355 + $0x540] sm:$0xff] %v692
        %v694 = vld [vmem:[%s354 + $0x548] sm:$0xff]
        %695 = vst [vmem:[%s355 + $0x548] sm:$0xff] %v694
        %v696 = vld [vmem:[%s354 + $0x550] sm:$0xff]
        %697 = vst [vmem:[%s355 + $0x550] sm:$0xff] %v696
        %v698 = vld [vmem:[%s354 + $0x558] sm:$0xff]
        %699 = vst [vmem:[%s355 + $0x558] sm:$0xff] %v698
        %v700 = vld [vmem:[%s354 + $0x560] sm:$0xff]
        %701 = vst [vmem:[%s355 + $0x560] sm:$0xff] %v700
        %v702 = vld [vmem:[%s354 + $0x568] sm:$0xff]
        %703 = vst [vmem:[%s355 + $0x568] sm:$0xff] %v702
        %v704 = vld [vmem:[%s354 + $0x570] sm:$0xff]
        %705 = vst [vmem:[%s355 + $0x570] sm:$0xff] %v704
        %v706 = vld [vmem:[%s354 + $0x578] sm:$0xff]
        %707 = vst [vmem:[%s355 + $0x578] sm:$0xff] %v706
        %v708 = vld [vmem:[%s354 + $0x580] sm:$0xff]
        %709 = vst [vmem:[%s355 + $0x580] sm:$0xff] %v708
        %v710 = vld [vmem:[%s354 + $0x588] sm:$0xff]
        %711 = vst [vmem:[%s355 + $0x588] sm:$0xff] %v710
        %v712 = vld [vmem:[%s354 + $0x590] sm:$0xff]
        %713 = vst [vmem:[%s355 + $0x590] sm:$0xff] %v712
        %v714 = vld [vmem:[%s354 + $0x598] sm:$0xff]
        %715 = vst [vmem:[%s355 + $0x598] sm:$0xff] %v714
        %v716 = vld [vmem:[%s354 + $0x5a0] sm:$0xff]
        %717 = vst [vmem:[%s355 + $0x5a0] sm:$0xff] %v716
        %v718 = vld [vmem:[%s354 + $0x5a8] sm:$0xff]
        %719 = vst [vmem:[%s355 + $0x5a8] sm:$0xff] %v718
        %v720 = vld [vmem:[%s354 + $0x5b0] sm:$0xff]
        %721 = vst [vmem:[%s355 + $0x5b0] sm:$0xff] %v720
        %v722 = vld [vmem:[%s354 + $0x5b8] sm:$0xff]
        %723 = vst [vmem:[%s355 + $0x5b8] sm:$0xff] %v722
        %v724 = vld [vmem:[%s354 + $0x5c0] sm:$0xff]
        %725 = vst [vmem:[%s355 + $0x5c0] sm:$0xff] %v724
        %v726 = vld [vmem:[%s354 + $0x5c8] sm:$0xff]
        %727 = vst [vmem:[%s355 + $0x5c8] sm:$0xff] %v726
        %v728 = vld [vmem:[%s354 + $0x5d0] sm:$0xff]
        %729 = vst [vmem:[%s355 + $0x5d0] sm:$0xff] %v728
        %v730 = vld [vmem:[%s354 + $0x5d8] sm:$0xff]
        %731 = vst [vmem:[%s355 + $0x5d8] sm:$0xff] %v730
        %v732 = vld [vmem:[%s354 + $0x5e0] sm:$0xff]
        %733 = vst [vmem:[%s355 + $0x5e0] sm:$0xff] %v732
        %v734 = vld [vmem:[%s354 + $0x5e8] sm:$0xff]
        %735 = vst [vmem:[%s355 + $0x5e8] sm:$0xff] %v734
        %v736 = vld [vmem:[%s354 + $0x5f0] sm:$0xff]
        %737 = vst [vmem:[%s355 + $0x5f0] sm:$0xff] %v736
        %v738 = vld [vmem:[%s354 + $0x5f8] sm:$0xff]
        %739 = vst [vmem:[%s355 + $0x5f8] sm:$0xff] %v738
        %v740 = vld [vmem:[%s354 + $0x600] sm:$0xff]
        %741 = vst [vmem:[%s355 + $0x600] sm:$0xff] %v740
        %v742 = vld [vmem:[%s354 + $0x608] sm:$0xff]
        %743 = vst [vmem:[%s355 + $0x608] sm:$0xff] %v742
        %v744 = vld [vmem:[%s354 + $0x610] sm:$0xff]
        %745 = vst [vmem:[%s355 + $0x610] sm:$0xff] %v744
        %v746 = vld [vmem:[%s354 + $0x618] sm:$0xff]
        %747 = vst [vmem:[%s355 + $0x618] sm:$0xff] %v746
        %v748 = vld [vmem:[%s354 + $0x620] sm:$0xff]
        %749 = vst [vmem:[%s355 + $0x620] sm:$0xff] %v748
        %v750 = vld [vmem:[%s354 + $0x628] sm:$0xff]
        %751 = vst [vmem:[%s355 + $0x628] sm:$0xff] %v750
        %v752 = vld [vmem:[%s354 + $0x630] sm:$0xff]
        %753 = vst [vmem:[%s355 + $0x630] sm:$0xff] %v752
        %v754 = vld [vmem:[%s354 + $0x638] sm:$0xff]
        %755 = vst [vmem:[%s355 + $0x638] sm:$0xff] %v754
        %v756 = vld [vmem:[%s354 + $0x640] sm:$0xff]
        %757 = vst [vmem:[%s355 + $0x640] sm:$0xff] %v756
        %v758 = vld [vmem:[%s354 + $0x648] sm:$0xff]
        %759 = vst [vmem:[%s355 + $0x648] sm:$0xff] %v758
        %v760 = vld [vmem:[%s354 + $0x650] sm:$0xff]
        %761 = vst [vmem:[%s355 + $0x650] sm:$0xff] %v760
        %v762 = vld [vmem:[%s354 + $0x658] sm:$0xff]
        %763 = vst [vmem:[%s355 + $0x658] sm:$0xff] %v762
        %v764 = vld [vmem:[%s354 + $0x660] sm:$0xff]
        %765 = vst [vmem:[%s355 + $0x660] sm:$0xff] %v764
        %v766 = vld [vmem:[%s354 + $0x668] sm:$0xff]
        %767 = vst [vmem:[%s355 + $0x668] sm:$0xff] %v766
        %v768 = vld [vmem:[%s354 + $0x670] sm:$0xff]
        %769 = vst [vmem:[%s355 + $0x670] sm:$0xff] %v768
        %v770 = vld [vmem:[%s354 + $0x678] sm:$0xff]
        %771 = vst [vmem:[%s355 + $0x678] sm:$0xff] %v770
        %v772 = vld [vmem:[%s354 + $0x680] sm:$0xff]
        %773 = vst [vmem:[%s355 + $0x680] sm:$0xff] %v772
        %v774 = vld [vmem:[%s354 + $0x688] sm:$0xff]
        %775 = vst [vmem:[%s355 + $0x688] sm:$0xff] %v774
        %v776 = vld [vmem:[%s354 + $0x690] sm:$0xff]
        %777 = vst [vmem:[%s355 + $0x690] sm:$0xff] %v776
        %v778 = vld [vmem:[%s354 + $0x698] sm:$0xff]
        %779 = vst [vmem:[%s355 + $0x698] sm:$0xff] %v778
        %v780 = vld [vmem:[%s354 + $0x6a0] sm:$0xff]
        %781 = vst [vmem:[%s355 + $0x6a0] sm:$0xff] %v780
        %v782 = vld [vmem:[%s354 + $0x6a8] sm:$0xff]
        %783 = vst [vmem:[%s355 + $0x6a8] sm:$0xff] %v782
        %v784 = vld [vmem:[%s354 + $0x6b0] sm:$0xff]
        %785 = vst [vmem:[%s355 + $0x6b0] sm:$0xff] %v784
        %v786 = vld [vmem:[%s354 + $0x6b8] sm:$0xff]
        %787 = vst [vmem:[%s355 + $0x6b8] sm:$0xff] %v786
        %v788 = vld [vmem:[%s354 + $0x6c0] sm:$0xff]
        %789 = vst [vmem:[%s355 + $0x6c0] sm:$0xff] %v788
        %v790 = vld [vmem:[%s354 + $0x6c8] sm:$0xff]
        %791 = vst [vmem:[%s355 + $0x6c8] sm:$0xff] %v790
        %v792 = vld [vmem:[%s354 + $0x6d0] sm:$0xff]
        %793 = vst [vmem:[%s355 + $0x6d0] sm:$0xff] %v792
        %v794 = vld [vmem:[%s354 + $0x6d8] sm:$0xff]
        %795 = vst [vmem:[%s355 + $0x6d8] sm:$0xff] %v794
        %v796 = vld [vmem:[%s354 + $0x6e0] sm:$0xff]
        %797 = vst [vmem:[%s355 + $0x6e0] sm:$0xff] %v796
        %v798 = vld [vmem:[%s354 + $0x6e8] sm:$0xff]
        %799 = vst [vmem:[%s355 + $0x6e8] sm:$0xff] %v798
        %v800 = vld [vmem:[%s354 + $0x6f0] sm:$0xff]
        %801 = vst [vmem:[%s355 + $0x6f0] sm:$0xff] %v800
        %v802 = vld [vmem:[%s354 + $0x6f8] sm:$0xff]
        %803 = vst [vmem:[%s355 + $0x6f8] sm:$0xff] %v802
        %v804 = vld [vmem:[%s354 + $0x700] sm:$0xff]
        %805 = vst [vmem:[%s355 + $0x700] sm:$0xff] %v804
        %v806 = vld [vmem:[%s354 + $0x708] sm:$0xff]
        %807 = vst [vmem:[%s355 + $0x708] sm:$0xff] %v806
        %v808 = vld [vmem:[%s354 + $0x710] sm:$0xff]
        %809 = vst [vmem:[%s355 + $0x710] sm:$0xff] %v808
        %v810 = vld [vmem:[%s354 + $0x718] sm:$0xff]
        %811 = vst [vmem:[%s355 + $0x718] sm:$0xff] %v810
        %v812 = vld [vmem:[%s354 + $0x720] sm:$0xff]
        %813 = vst [vmem:[%s355 + $0x720] sm:$0xff] %v812
        %v814 = vld [vmem:[%s354 + $0x728] sm:$0xff]
        %815 = vst [vmem:[%s355 + $0x728] sm:$0xff] %v814
        %v816 = vld [vmem:[%s354 + $0x730] sm:$0xff]
        %817 = vst [vmem:[%s355 + $0x730] sm:$0xff] %v816
        %v818 = vld [vmem:[%s354 + $0x738] sm:$0xff]
        %819 = vst [vmem:[%s355 + $0x738] sm:$0xff] %v818
        %v820 = vld [vmem:[%s354 + $0x740] sm:$0xff]
        %821 = vst [vmem:[%s355 + $0x740] sm:$0xff] %v820
        %v822 = vld [vmem:[%s354 + $0x748] sm:$0xff]
        %823 = vst [vmem:[%s355 + $0x748] sm:$0xff] %v822
        %v824 = vld [vmem:[%s354 + $0x750] sm:$0xff]
        %825 = vst [vmem:[%s355 + $0x750] sm:$0xff] %v824
        %v826 = vld [vmem:[%s354 + $0x758] sm:$0xff]
        %827 = vst [vmem:[%s355 + $0x758] sm:$0xff] %v826
        %v828 = vld [vmem:[%s354 + $0x760] sm:$0xff]
        %829 = vst [vmem:[%s355 + $0x760] sm:$0xff] %v828
        %v830 = vld [vmem:[%s354 + $0x768] sm:$0xff]
        %831 = vst [vmem:[%s355 + $0x768] sm:$0xff] %v830
        %v832 = vld [vmem:[%s354 + $0x770] sm:$0xff]
        %833 = vst [vmem:[%s355 + $0x770] sm:$0xff] %v832
        %v834 = vld [vmem:[%s354 + $0x778] sm:$0xff]
        %835 = vst [vmem:[%s355 + $0x778] sm:$0xff] %v834
        %v836 = vld [vmem:[%s354 + $0x780] sm:$0xff]
        %837 = vst [vmem:[%s355 + $0x780] sm:$0xff] %v836
        %v838 = vld [vmem:[%s354 + $0x788] sm:$0xff]
        %839 = vst [vmem:[%s355 + $0x788] sm:$0xff] %v838
        %v840 = vld [vmem:[%s354 + $0x790] sm:$0xff]
        %841 = vst [vmem:[%s355 + $0x790] sm:$0xff] %v840
        %v842 = vld [vmem:[%s354 + $0x798] sm:$0xff]
        %843 = vst [vmem:[%s355 + $0x798] sm:$0xff] %v842
        %v844 = vld [vmem:[%s354 + $0x7a0] sm:$0xff]
        %845 = vst [vmem:[%s355 + $0x7a0] sm:$0xff] %v844
        %v846 = vld [vmem:[%s354 + $0x7a8] sm:$0xff]
        %847 = vst [vmem:[%s355 + $0x7a8] sm:$0xff] %v846
        %v848 = vld [vmem:[%s354 + $0x7b0] sm:$0xff]
        %849 = vst [vmem:[%s355 + $0x7b0] sm:$0xff] %v848
        %v850 = vld [vmem:[%s354 + $0x7b8] sm:$0xff]
        %851 = vst [vmem:[%s355 + $0x7b8] sm:$0xff] %v850
        %v852 = vld [vmem:[%s354 + $0x7c0] sm:$0xff]
        %853 = vst [vmem:[%s355 + $0x7c0] sm:$0xff] %v852
        %v854 = vld [vmem:[%s354 + $0x7c8] sm:$0xff]
        %855 = vst [vmem:[%s355 + $0x7c8] sm:$0xff] %v854
        %v856 = vld [vmem:[%s354 + $0x7d0] sm:$0xff]
        %857 = vst [vmem:[%s355 + $0x7d0] sm:$0xff] %v856
        %v858 = vld [vmem:[%s354 + $0x7d8] sm:$0xff]
        %859 = vst [vmem:[%s355 + $0x7d8] sm:$0xff] %v858
        %v860 = vld [vmem:[%s354 + $0x7e0] sm:$0xff]
        %861 = vst [vmem:[%s355 + $0x7e0] sm:$0xff] %v860
        %v862 = vld [vmem:[%s354 + $0x7e8] sm:$0xff]
        %863 = vst [vmem:[%s355 + $0x7e8] sm:$0xff] %v862
        %v864 = vld [vmem:[%s354 + $0x7f0] sm:$0xff]
        %865 = vst [vmem:[%s355 + $0x7f0] sm:$0xff] %v864
        %v866 = vld [vmem:[%s354 + $0x7f8] sm:$0xff]
        %867 = vst [vmem:[%s355 + $0x7f8] sm:$0xff] %v866
        %v868 = vld [vmem:[%s354 + $0x800] sm:$0xff]
        %869 = vst [vmem:[%s355 + $0x800] sm:$0xff] %v868
        %v870 = vld [vmem:[%s354 + $0x808] sm:$0xff]
        %871 = vst [vmem:[%s355 + $0x808] sm:$0xff] %v870
        %v872 = vld [vmem:[%s354 + $0x810] sm:$0xff]
        %873 = vst [vmem:[%s355 + $0x810] sm:$0xff] %v872
        %v874 = vld [vmem:[%s354 + $0x818] sm:$0xff]
        %875 = vst [vmem:[%s355 + $0x818] sm:$0xff] %v874
        %v876 = vld [vmem:[%s354 + $0x820] sm:$0xff]
        %877 = vst [vmem:[%s355 + $0x820] sm:$0xff] %v876
        %v878 = vld [vmem:[%s354 + $0x828] sm:$0xff]
        %879 = vst [vmem:[%s355 + $0x828] sm:$0xff] %v878
        %v880 = vld [vmem:[%s354 + $0x830] sm:$0xff]
        %881 = vst [vmem:[%s355 + $0x830] sm:$0xff] %v880
        %v882 = vld [vmem:[%s354 + $0x838] sm:$0xff]
        %883 = vst [vmem:[%s355 + $0x838] sm:$0xff] %v882
        %v884 = vld [vmem:[%s354 + $0x840] sm:$0xff]
        %885 = vst [vmem:[%s355 + $0x840] sm:$0xff] %v884
        %v886 = vld [vmem:[%s354 + $0x848] sm:$0xff]
        %887 = vst [vmem:[%s355 + $0x848] sm:$0xff] %v886
        %v888 = vld [vmem:[%s354 + $0x850] sm:$0xff]
        %889 = vst [vmem:[%s355 + $0x850] sm:$0xff] %v888
        %v890 = vld [vmem:[%s354 + $0x858] sm:$0xff]
        %891 = vst [vmem:[%s355 + $0x858] sm:$0xff] %v890
        %v892 = vld [vmem:[%s354 + $0x860] sm:$0xff]
        %893 = vst [vmem:[%s355 + $0x860] sm:$0xff] %v892
        %v894 = vld [vmem:[%s354 + $0x868] sm:$0xff]
        %895 = vst [vmem:[%s355 + $0x868] sm:$0xff] %v894
        %v896 = vld [vmem:[%s354 + $0x870] sm:$0xff]
        %897 = vst [vmem:[%s355 + $0x870] sm:$0xff] %v896
        %v898 = vld [vmem:[%s354 + $0x878] sm:$0xff]
        %899 = vst [vmem:[%s355 + $0x878] sm:$0xff] %v898
        %v900 = vld [vmem:[%s354 + $0x880] sm:$0xff]
        %901 = vst [vmem:[%s355 + $0x880] sm:$0xff] %v900
        %v902 = vld [vmem:[%s354 + $0x888] sm:$0xff]
        %903 = vst [vmem:[%s355 + $0x888] sm:$0xff] %v902
        %v904 = vld [vmem:[%s354 + $0x890] sm:$0xff]
        %905 = vst [vmem:[%s355 + $0x890] sm:$0xff] %v904
        %v906 = vld [vmem:[%s354 + $0x898] sm:$0xff]
        %907 = vst [vmem:[%s355 + $0x898] sm:$0xff] %v906
        %v908 = vld [vmem:[%s354 + $0x8a0] sm:$0xff]
        %909 = vst [vmem:[%s355 + $0x8a0] sm:$0xff] %v908
        %v910 = vld [vmem:[%s354 + $0x8a8] sm:$0xff]
        %911 = vst [vmem:[%s355 + $0x8a8] sm:$0xff] %v910
        %v912 = vld [vmem:[%s354 + $0x8b0] sm:$0xff]
        %913 = vst [vmem:[%s355 + $0x8b0] sm:$0xff] %v912
        %v914 = vld [vmem:[%s354 + $0x8b8] sm:$0xff]
        %915 = vst [vmem:[%s355 + $0x8b8] sm:$0xff] %v914
        %v916 = vld [vmem:[%s354 + $0x8c0] sm:$0xff]
        %917 = vst [vmem:[%s355 + $0x8c0] sm:$0xff] %v916
        %v918 = vld [vmem:[%s354 + $0x8c8] sm:$0xff]
        %919 = vst [vmem:[%s355 + $0x8c8] sm:$0xff] %v918
        %v920 = vld [vmem:[%s354 + $0x8d0] sm:$0xff]
        %921 = vst [vmem:[%s355 + $0x8d0] sm:$0xff] %v920
        %v922 = vld [vmem:[%s354 + $0x8d8] sm:$0xff]
        %923 = vst [vmem:[%s355 + $0x8d8] sm:$0xff] %v922
        %v924 = vld [vmem:[%s354 + $0x8e0] sm:$0xff]
        %925 = vst [vmem:[%s355 + $0x8e0] sm:$0xff] %v924
        %v926 = vld [vmem:[%s354 + $0x8e8] sm:$0xff]
        %927 = vst [vmem:[%s355 + $0x8e8] sm:$0xff] %v926
        %v928 = vld [vmem:[%s354 + $0x8f0] sm:$0xff]
        %929 = vst [vmem:[%s355 + $0x8f0] sm:$0xff] %v928
        %v930 = vld [vmem:[%s354 + $0x8f8] sm:$0xff]
        %931 = vst [vmem:[%s355 + $0x8f8] sm:$0xff] %v930
        %v932 = vld [vmem:[%s354 + $0x900] sm:$0xff]
        %933 = vst [vmem:[%s355 + $0x900] sm:$0xff] %v932
        %v934 = vld [vmem:[%s354 + $0x908] sm:$0xff]
        %935 = vst [vmem:[%s355 + $0x908] sm:$0xff] %v934
        %v936 = vld [vmem:[%s354 + $0x910] sm:$0xff]
        %937 = vst [vmem:[%s355 + $0x910] sm:$0xff] %v936
        %v938 = vld [vmem:[%s354 + $0x918] sm:$0xff]
        %939 = vst [vmem:[%s355 + $0x918] sm:$0xff] %v938
        %v940 = vld [vmem:[%s354 + $0x920] sm:$0xff]
        %941 = vst [vmem:[%s355 + $0x920] sm:$0xff] %v940
        %v942 = vld [vmem:[%s354 + $0x928] sm:$0xff]
        %943 = vst [vmem:[%s355 + $0x928] sm:$0xff] %v942
        %v944 = vld [vmem:[%s354 + $0x930] sm:$0xff]
        %945 = vst [vmem:[%s355 + $0x930] sm:$0xff] %v944
        %v946 = vld [vmem:[%s354 + $0x938] sm:$0xff]
        %947 = vst [vmem:[%s355 + $0x938] sm:$0xff] %v946
        %v948 = vld [vmem:[%s354 + $0x940] sm:$0xff]
        %949 = vst [vmem:[%s355 + $0x940] sm:$0xff] %v948
        %v950 = vld [vmem:[%s354 + $0x948] sm:$0xff]
        %951 = vst [vmem:[%s355 + $0x948] sm:$0xff] %v950
        %v952 = vld [vmem:[%s354 + $0x950] sm:$0xff]
        %953 = vst [vmem:[%s355 + $0x950] sm:$0xff] %v952
        %v954 = vld [vmem:[%s354 + $0x958] sm:$0xff]
        %955 = vst [vmem:[%s355 + $0x958] sm:$0xff] %v954
        %v956 = vld [vmem:[%s354 + $0x960] sm:$0xff]
        %957 = vst [vmem:[%s355 + $0x960] sm:$0xff] %v956
        %v958 = vld [vmem:[%s354 + $0x968] sm:$0xff]
        %959 = vst [vmem:[%s355 + $0x968] sm:$0xff] %v958
        %v960 = vld [vmem:[%s354 + $0x970] sm:$0xff]
        %961 = vst [vmem:[%s355 + $0x970] sm:$0xff] %v960
        %v962 = vld [vmem:[%s354 + $0x978] sm:$0xff]
        %963 = vst [vmem:[%s355 + $0x978] sm:$0xff] %v962
        %v964 = vld [vmem:[%s354 + $0x980] sm:$0xff]
        %965 = vst [vmem:[%s355 + $0x980] sm:$0xff] %v964
        %v966 = vld [vmem:[%s354 + $0x988] sm:$0xff]
        %967 = vst [vmem:[%s355 + $0x988] sm:$0xff] %v966
        %v968 = vld [vmem:[%s354 + $0x990] sm:$0xff]
        %969 = vst [vmem:[%s355 + $0x990] sm:$0xff] %v968
        %v970 = vld [vmem:[%s354 + $0x998] sm:$0xff]
        %971 = vst [vmem:[%s355 + $0x998] sm:$0xff] %v970
        %v972 = vld [vmem:[%s354 + $0x9a0] sm:$0xff]
        %973 = vst [vmem:[%s355 + $0x9a0] sm:$0xff] %v972
        %v974 = vld [vmem:[%s354 + $0x9a8] sm:$0xff]
        %975 = vst [vmem:[%s355 + $0x9a8] sm:$0xff] %v974
        %v976 = vld [vmem:[%s354 + $0x9b0] sm:$0xff]
        %977 = vst [vmem:[%s355 + $0x9b0] sm:$0xff] %v976
        %v978 = vld [vmem:[%s354 + $0x9b8] sm:$0xff]
        %979 = vst [vmem:[%s355 + $0x9b8] sm:$0xff] %v978
        %v980 = vld [vmem:[%s354 + $0x9c0] sm:$0xff]
        %981 = vst [vmem:[%s355 + $0x9c0] sm:$0xff] %v980
        %v982 = vld [vmem:[%s354 + $0x9c8] sm:$0xff]
        %983 = vst [vmem:[%s355 + $0x9c8] sm:$0xff] %v982
        %v984 = vld [vmem:[%s354 + $0x9d0] sm:$0xff]
        %985 = vst [vmem:[%s355 + $0x9d0] sm:$0xff] %v984
        %v986 = vld [vmem:[%s354 + $0x9d8] sm:$0xff]
        %987 = vst [vmem:[%s355 + $0x9d8] sm:$0xff] %v986
        %v988 = vld [vmem:[%s354 + $0x9e0] sm:$0xff]
        %989 = vst [vmem:[%s355 + $0x9e0] sm:$0xff] %v988
        %v990 = vld [vmem:[%s354 + $0x9e8] sm:$0xff]
        %991 = vst [vmem:[%s355 + $0x9e8] sm:$0xff] %v990
        %v992 = vld [vmem:[%s354 + $0x9f0] sm:$0xff]
        %993 = vst [vmem:[%s355 + $0x9f0] sm:$0xff] %v992
        %v994 = vld [vmem:[%s354 + $0x9f8] sm:$0xff]
        %995 = vst [vmem:[%s355 + $0x9f8] sm:$0xff] %v994
        %v996 = vld [vmem:[%s354 + $0xa00] sm:$0xff]
        %997 = vst [vmem:[%s355 + $0xa00] sm:$0xff] %v996
        %v998 = vld [vmem:[%s354 + $0xa08] sm:$0xff]
        %999 = vst [vmem:[%s355 + $0xa08] sm:$0xff] %v998
        %v1000 = vld [vmem:[%s354 + $0xa10] sm:$0xff]
        %1001 = vst [vmem:[%s355 + $0xa10] sm:$0xff] %v1000
        %v1002 = vld [vmem:[%s354 + $0xa18] sm:$0xff]
        %1003 = vst [vmem:[%s355 + $0xa18] sm:$0xff] %v1002
        %v1004 = vld [vmem:[%s354 + $0xa20] sm:$0xff]
        %1005 = vst [vmem:[%s355 + $0xa20] sm:$0xff] %v1004
        %v1006 = vld [vmem:[%s354 + $0xa28] sm:$0xff]
        %1007 = vst [vmem:[%s355 + $0xa28] sm:$0xff] %v1006
        %v1008 = vld [vmem:[%s354 + $0xa30] sm:$0xff]
        %1009 = vst [vmem:[%s355 + $0xa30] sm:$0xff] %v1008
        %v1010 = vld [vmem:[%s354 + $0xa38] sm:$0xff]
        %1011 = vst [vmem:[%s355 + $0xa38] sm:$0xff] %v1010
        %v1012 = vld [vmem:[%s354 + $0xa40] sm:$0xff]
        %1013 = vst [vmem:[%s355 + $0xa40] sm:$0xff] %v1012
        %v1014 = vld [vmem:[%s354 + $0xa48] sm:$0xff]
        %1015 = vst [vmem:[%s355 + $0xa48] sm:$0xff] %v1014
        %v1016 = vld [vmem:[%s354 + $0xa50] sm:$0xff]
        %1017 = vst [vmem:[%s355 + $0xa50] sm:$0xff] %v1016
        %v1018 = vld [vmem:[%s354 + $0xa58] sm:$0xff]
        %1019 = vst [vmem:[%s355 + $0xa58] sm:$0xff] %v1018
        %v1020 = vld [vmem:[%s354 + $0xa60] sm:$0xff]
        %1021 = vst [vmem:[%s355 + $0xa60] sm:$0xff] %v1020
        %v1022 = vld [vmem:[%s354 + $0xa68] sm:$0xff]
        %1023 = vst [vmem:[%s355 + $0xa68] sm:$0xff] %v1022
        %v1024 = vld [vmem:[%s354 + $0xa70] sm:$0xff]
        %1025 = vst [vmem:[%s355 + $0xa70] sm:$0xff] %v1024
        %v1026 = vld [vmem:[%s354 + $0xa78] sm:$0xff]
        %1027 = vst [vmem:[%s355 + $0xa78] sm:$0xff] %v1026
        %v1028 = vld [vmem:[%s354 + $0xa80] sm:$0xff]
        %1029 = vst [vmem:[%s355 + $0xa80] sm:$0xff] %v1028
        %v1030 = vld [vmem:[%s354 + $0xa88] sm:$0xff]
        %1031 = vst [vmem:[%s355 + $0xa88] sm:$0xff] %v1030
        %v1032 = vld [vmem:[%s354 + $0xa90] sm:$0xff]
        %1033 = vst [vmem:[%s355 + $0xa90] sm:$0xff] %v1032
        %v1034 = vld [vmem:[%s354 + $0xa98] sm:$0xff]
        %1035 = vst [vmem:[%s355 + $0xa98] sm:$0xff] %v1034
        %v1036 = vld [vmem:[%s354 + $0xaa0] sm:$0xff]
        %1037 = vst [vmem:[%s355 + $0xaa0] sm:$0xff] %v1036
        %v1038 = vld [vmem:[%s354 + $0xaa8] sm:$0xff]
        %1039 = vst [vmem:[%s355 + $0xaa8] sm:$0xff] %v1038
        %v1040 = vld [vmem:[%s354 + $0xab0] sm:$0xff]
        %1041 = vst [vmem:[%s355 + $0xab0] sm:$0xff] %v1040
        %v1042 = vld [vmem:[%s354 + $0xab8] sm:$0xff]
        %1043 = vst [vmem:[%s355 + $0xab8] sm:$0xff] %v1042
        %v1044 = vld [vmem:[%s354 + $0xac0] sm:$0xff]
        %1045 = vst [vmem:[%s355 + $0xac0] sm:$0xff] %v1044
        %v1046 = vld [vmem:[%s354 + $0xac8] sm:$0xff]
        %1047 = vst [vmem:[%s355 + $0xac8] sm:$0xff] %v1046
        %v1048 = vld [vmem:[%s354 + $0xad0] sm:$0xff]
        %1049 = vst [vmem:[%s355 + $0xad0] sm:$0xff] %v1048
        %v1050 = vld [vmem:[%s354 + $0xad8] sm:$0xff]
        %1051 = vst [vmem:[%s355 + $0xad8] sm:$0xff] %v1050
        %v1052 = vld [vmem:[%s354 + $0xae0] sm:$0xff]
        %1053 = vst [vmem:[%s355 + $0xae0] sm:$0xff] %v1052
        %v1054 = vld [vmem:[%s354 + $0xae8] sm:$0xff]
        %1055 = vst [vmem:[%s355 + $0xae8] sm:$0xff] %v1054
        %v1056 = vld [vmem:[%s354 + $0xaf0] sm:$0xff]
        %1057 = vst [vmem:[%s355 + $0xaf0] sm:$0xff] %v1056
        %v1058 = vld [vmem:[%s354 + $0xaf8] sm:$0xff]
        %1059 = vst [vmem:[%s355 + $0xaf8] sm:$0xff] %v1058
        %v1060 = vld [vmem:[%s354 + $0xb00] sm:$0xff]
        %1061 = vst [vmem:[%s355 + $0xb00] sm:$0xff] %v1060
        %v1062 = vld [vmem:[%s354 + $0xb08] sm:$0xff]
        %1063 = vst [vmem:[%s355 + $0xb08] sm:$0xff] %v1062
        %v1064 = vld [vmem:[%s354 + $0xb10] sm:$0xff]
        %1065 = vst [vmem:[%s355 + $0xb10] sm:$0xff] %v1064
        %v1066 = vld [vmem:[%s354 + $0xb18] sm:$0xff]
        %1067 = vst [vmem:[%s355 + $0xb18] sm:$0xff] %v1066
        %v1068 = vld [vmem:[%s354 + $0xb20] sm:$0xff]
        %1069 = vst [vmem:[%s355 + $0xb20] sm:$0xff] %v1068
        %v1070 = vld [vmem:[%s354 + $0xb28] sm:$0xff]
        %1071 = vst [vmem:[%s355 + $0xb28] sm:$0xff] %v1070
        %v1072 = vld [vmem:[%s354 + $0xb30] sm:$0xff]
        %1073 = vst [vmem:[%s355 + $0xb30] sm:$0xff] %v1072
        %v1074 = vld [vmem:[%s354 + $0xb38] sm:$0xff]
        %1075 = vst [vmem:[%s355 + $0xb38] sm:$0xff] %v1074
        %v1076 = vld [vmem:[%s354 + $0xb40] sm:$0xff]
        %1077 = vst [vmem:[%s355 + $0xb40] sm:$0xff] %v1076
        %v1078 = vld [vmem:[%s354 + $0xb48] sm:$0xff]
        %1079 = vst [vmem:[%s355 + $0xb48] sm:$0xff] %v1078
        %v1080 = vld [vmem:[%s354 + $0xb50] sm:$0xff]
        %1081 = vst [vmem:[%s355 + $0xb50] sm:$0xff] %v1080
        %v1082 = vld [vmem:[%s354 + $0xb58] sm:$0xff]
        %1083 = vst [vmem:[%s355 + $0xb58] sm:$0xff] %v1082
        %v1084 = vld [vmem:[%s354 + $0xb60] sm:$0xff]
        %1085 = vst [vmem:[%s355 + $0xb60] sm:$0xff] %v1084
        %v1086 = vld [vmem:[%s354 + $0xb68] sm:$0xff]
        %1087 = vst [vmem:[%s355 + $0xb68] sm:$0xff] %v1086
        %v1088 = vld [vmem:[%s354 + $0xb70] sm:$0xff]
        %1089 = vst [vmem:[%s355 + $0xb70] sm:$0xff] %v1088
        %v1090 = vld [vmem:[%s354 + $0xb78] sm:$0xff]
        %1091 = vst [vmem:[%s355 + $0xb78] sm:$0xff] %v1090
        %v1092 = vld [vmem:[%s354 + $0xb80] sm:$0xff]
        %1093 = vst [vmem:[%s355 + $0xb80] sm:$0xff] %v1092
        %v1094 = vld [vmem:[%s354 + $0xb88] sm:$0xff]
        %1095 = vst [vmem:[%s355 + $0xb88] sm:$0xff] %v1094
        %v1096 = vld [vmem:[%s354 + $0xb90] sm:$0xff]
        %1097 = vst [vmem:[%s355 + $0xb90] sm:$0xff] %v1096
        %v1098 = vld [vmem:[%s354 + $0xb98] sm:$0xff]
        %1099 = vst [vmem:[%s355 + $0xb98] sm:$0xff] %v1098
        %v1100 = vld [vmem:[%s354 + $0xba0] sm:$0xff]
        %1101 = vst [vmem:[%s355 + $0xba0] sm:$0xff] %v1100
        %v1102 = vld [vmem:[%s354 + $0xba8] sm:$0xff]
        %1103 = vst [vmem:[%s355 + $0xba8] sm:$0xff] %v1102
        %v1104 = vld [vmem:[%s354 + $0xbb0] sm:$0xff]
        %1105 = vst [vmem:[%s355 + $0xbb0] sm:$0xff] %v1104
        %v1106 = vld [vmem:[%s354 + $0xbb8] sm:$0xff]
        %1107 = vst [vmem:[%s355 + $0xbb8] sm:$0xff] %v1106
        %v1108 = vld [vmem:[%s354 + $0xbc0] sm:$0xff]
        %1109 = vst [vmem:[%s355 + $0xbc0] sm:$0xff] %v1108
        %v1110 = vld [vmem:[%s354 + $0xbc8] sm:$0xff]
        %1111 = vst [vmem:[%s355 + $0xbc8] sm:$0xff] %v1110
        %v1112 = vld [vmem:[%s354 + $0xbd0] sm:$0xff]
        %1113 = vst [vmem:[%s355 + $0xbd0] sm:$0xff] %v1112
        %v1114 = vld [vmem:[%s354 + $0xbd8] sm:$0xff]
        %1115 = vst [vmem:[%s355 + $0xbd8] sm:$0xff] %v1114
        %v1116 = vld [vmem:[%s354 + $0xbe0] sm:$0xff]
        %1117 = vst [vmem:[%s355 + $0xbe0] sm:$0xff] %v1116
        %v1118 = vld [vmem:[%s354 + $0xbe8] sm:$0xff]
        %1119 = vst [vmem:[%s355 + $0xbe8] sm:$0xff] %v1118
        %v1120 = vld [vmem:[%s354 + $0xbf0] sm:$0xff]
        %1121 = vst [vmem:[%s355 + $0xbf0] sm:$0xff] %v1120
        %v1122 = vld [vmem:[%s354 + $0xbf8] sm:$0xff]
        %1123 = vst [vmem:[%s355 + $0xbf8] sm:$0xff] %v1122
      $region249: #{self_mm_forward.1} parent=243 // loop_footer
        %s353 = sadd.s32 1, %s349
      $region250: #{self_mm_forward.1} parent=243 // loop_footer_branch
        %348 = sbr.rel target = $region246
      $region251: #{self_mm_forward.1} parent=243 // loop_exit
        _
    $region244: #{self_mm_forward.1} parent=1 // pred_fallthru
      _
    // Predicated region
    $region252: #{self_mm_forward.1} parent=1 // pred_check
      _
    $region253: #{self_mm_forward.1} parent=1 // pred_check_branch
      %1125 = sbr.rel target = $region255
    $region254: #{self_mm_forward.1} parent=1 // pred_region
      _
    $region255: #{self_mm_forward.1} parent=1 // pred_fallthru
      _
    // Predicated region
    $region256: #{self_mm_forward.1} parent=1 // pred_check
      _
    $region257: #{self_mm_forward.1} parent=1 // pred_check_branch
      %1128 = sbr.rel (0) target = $region259
    $region258: #{self_mm_forward.1} parent=1 // pred_region
      %1129 = vsyncadd %s345, 49152
    $region259: #{self_mm_forward.1} parent=1 // pred_fallthru
      _
    %v1130 = vlaneseq
    %v1131 = vshrl.u32 %v1130, 7
    %vm1132 = vcmp.eq.s32.totalorder %v1131, 0
    %s1133 = sld [smem:[#allocation9]]
    %v1134 = vstv %s1133
    %v1135 = vsel %vm1132, %v1134, 0
    %vm1136 = vcmp.eq.s32.totalorder %v1131, 1
    %s1137 = sld [smem:[#allocation9 + $0x1]]
    %v1138 = vstv %s1137
    %v1139 = vsel %vm1136, %v1138, %v1135
    %s1140 = sld [smem:[#allocation12]]
    %v1141 = vstv %s1140
    %v1142 = vsel %vm1132, %v1141, 0
    %s1143 = sld [smem:[#allocation12 + $0x1]]
    %v1144 = vstv %s1143
    %v1145 = vsel %vm1136, %v1144, %v1142
    %v1146 = vld [vmem:[%s5] sm:$0x3]
    %v1147 = vld [vmem:[%s13] sm:$0xff]
    %v1148 = vld [vmem:[%s13 + $0x8] sm:$0xff]
    %v1149 = vld [vmem:[%s13 + $0x10] sm:$0xff]
    %v1150 = vld [vmem:[%s13 + $0x18] sm:$0xff]
    %v1151 = vld [vmem:[%s15] sm:$0x1]
    %v1153 = vperm.slane %v1151, 0
    %vm1155 = vcmask 261120
    %v1157 = vsel %vm1155, %v1146, 0
    %1159 = vmatpush.msra.mxu0 0.0
    %1160 = vmatpush.msra.mxu0 0.0
    %1161 = vmatpush.msra.mxu0 0.0
    %1162 = vmatpush.msra.mxu0 0.0
    %1163 = vmatpush.msra.mxu0 0.0
    %1164 = vmatpush.msra.mxu0 0.0
    %1165 = vmatpush.msra.mxu0 0.0
    %1166 = vmatpush.msra.mxu0 0.0
    %1167 = vmatpush.msra.mxu0 0.0
    %1168 = vmatpush.msra.mxu0 0.0
    %1169 = vmatpush.msra.mxu0 0.0
    %1170 = vmatpush.msra.mxu0 0.0
    %1171 = vmatpush.msra.mxu0 %v1150
    %1172 = vmatpush.msra.mxu0 %v1149
    %1173 = vmatpush.msra.mxu0 %v1148
    %1174 = vmatpush.msra.mxu0 %v1147
    %1175 = vmatmul.f32.gmra.mxu0 %v1157
    %v1176 = vpop.f32.mrf.mxu0
    %v1177 = vadd.f32 %v1153, %v1176
    %1178 = vdwg.mxu0
    %v1179 = vld [vmem:[%s7] sm:$0xff]
    %v1180 = vld [vmem:[%s7 + $0x8] sm:$0xff]
    %v1181 = vld [vmem:[%s17] sm:$0xff]
    %v1182 = vld [vmem:[%s17 + $0x8] sm:$0xff]
    %v1183 = vld [vmem:[%s21] sm:$0x1]
    %v1185 = vperm.slane %v1183, 0
    %vm1187 = vcmask 130048
    %v1189 = vsel %vm1187, %v1179, 0
    %v1192 = vsel %vm1187, %v1180, 0
    %1194 = vmatpush.msra.mxu0 0.0
    %1195 = vmatpush.msra.mxu0 0.0
    %1196 = vmatpush.msra.mxu0 0.0
    %1197 = vmatpush.msra.mxu0 0.0
    %1198 = vmatpush.msra.mxu0 0.0
    %1199 = vmatpush.msra.mxu0 0.0
    %1200 = vmatpush.msra.mxu0 0.0
    %1201 = vmatpush.msra.mxu0 0.0
    %1202 = vmatpush.msra.mxu0 0.0
    %1203 = vmatpush.msra.mxu0 0.0
    %1204 = vmatpush.msra.mxu0 0.0
    %1205 = vmatpush.msra.mxu0 0.0
    %1206 = vmatpush.msra.mxu0 0.0
    %1207 = vmatpush.msra.mxu0 0.0
    %1208 = vmatpush.msra.mxu0 %v1182
    %1209 = vmatpush.msra.mxu0 %v1181
    %1210 = vmatmul.f32.gmra.mxu0 %v1189
    %v1211 = vpop.f32.mrf.mxu0
    %v1212 = vadd.f32 %v1185, %v1211
    %1213 = vmatmul.f32.gmra.mxu0 %v1192
    %v1214 = vpop.f32.mrf.mxu0
    %v1215 = vadd.f32 %v1185, %v1214
    %1216 = vdwg.mxu0
    %v1217 = vld [vmem:[%s19] sm:$0xff]
    %v1218 = vld [vmem:[%s19 + $0x8] sm:$0xff]
    %v1220 = vrot.slane %v1215, 7
    %vm1222 = vcmask 1040384
    %v1223 = vsel %vm1222, %v1212, %v1220
    %v1225 = vsel %vm1187, 0.0, 0
    %1227 = vmatpush.msra.mxu0 0.0
    %1228 = vmatpush.msra.mxu0 0.0
    %1229 = vmatpush.msra.mxu0 0.0
    %1230 = vmatpush.msra.mxu0 0.0
    %1231 = vmatpush.msra.mxu0 0.0
    %1232 = vmatpush.msra.mxu0 0.0
    %1233 = vmatpush.msra.mxu0 0.0
    %1234 = vmatpush.msra.mxu0 0.0
    %1235 = vmatpush.msra.mxu0 0.0
    %1236 = vmatpush.msra.mxu0 0.0
    %1237 = vmatpush.msra.mxu0 0.0
    %1238 = vmatpush.msra.mxu0 0.0
    %1239 = vmatpush.msra.mxu0 0.0
    %1240 = vmatpush.msra.mxu0 0.0
    %1241 = vmatpush.msra.mxu0 %v1218
    %1242 = vmatpush.msra.mxu0 %v1217
    %1243 = vmatmul.f32.gmra.mxu0 %v1225
    %v1244 = vpop.f32.mrf.mxu0
    %v1245 = vadd.f32 0.0, %v1244
    %1246 = vdwg.mxu0
    %v1247 = vadd.f32 %v1223, %v1245
    %v1248 = vxor.u32 %v1247, 2147483648
    %v1249 = vmul.f32 %v1248, 1.442695
    %v1250 = vpow.pop %v1249
    %v1251 = vadd.f32 %v1250, 1.0
    %v1252 = vrcp.pop %v1251
    %v1253 = vmul.f32 %v1251, %v1252
    %v1254 = vsub.f32 1.0, %v1253
    %v1255 = vmul.f32 %v1252, %v1254
    %v1256 = vadd.f32 %v1252, %v1255
    %vm1257 = vweird.f32 %v1251
    %vm1258 = vweird.f32 %v1252
    %vm1259 = vmor %vm1257, %vm1258
    %v1260 = vsel %vm1259, %v1252, %v1256
    %v1261 = vand.u32 2147483647, %v1251
    %vm1262 = vcmp.eq.f32.partialorder %v1261, 8.507059e+37
    %v1263 = vand.u32 %v1251, 2147483648
    %v1264 = vor.u32 1.1754944e-38, %v1263
    %v1265 = vsel %vm1262, %v1264, %v1260
    %v1266 = vmul.f32 1.0, %v1265
    %v1267 = vtanh.pop %v1247
    %v1268 = vmul.f32 %v1266, 0.0
    %1270 = vrot.lane.b32.xlu0 %v1267, 96
    %v1271 = vpop.permute.xlu0 %1270
    %v1273 = vmul.f32 %v1266, %v1271
    %1275 = vrot.lane.b32.xlu0 %v1273, 16
    %v1276 = vpop.permute.xlu0 %1275
    %v1278 = vadd.f32 %v1268, %v1276
    %v1279 = vtanh.pop %v1278
    %1281 = vrot.lane.b32.xlu0 %v1279, 32
    %v1282 = vpop.permute.xlu0 %1281
    %v1284 = vmul.f32 %v1266, %v1282
    %vm1285 = vcmp.gt.s32.totalorder %v1139, 0
    %v1286 = vsel %vm1285, 1, 0
    %vm1287 = vcmp.eq.s32.totalorder %v1286, 1
    %v1288 = vsel %vm1287, %v1284, 0.0
    %v1289 = vsel %vm1287, %v1278, 0.0
    %v1291 = vrot.slane %v1212, 1
    %v1293 = vsel %vm1222, %v1291, %v1215
    %1295 = vrot.lane.b32.xlu0 %v1288, 80
    %v1296 = vpop.permute.xlu0 %1295
    %v1297 = vsel %vm1187, %v1296, 0
    %1299 = vmatpush.msra.mxu0 0.0
    %1300 = vmatpush.msra.mxu0 0.0
    %1301 = vmatpush.msra.mxu0 0.0
    %1302 = vmatpush.msra.mxu0 0.0
    %1303 = vmatpush.msra.mxu0 0.0
    %1304 = vmatpush.msra.mxu0 0.0
    %1305 = vmatpush.msra.mxu0 0.0
    %1306 = vmatpush.msra.mxu0 0.0
    %1307 = vmatpush.msra.mxu0 0.0
    %1308 = vmatpush.msra.mxu0 0.0
    %1309 = vmatpush.msra.mxu0 0.0
    %1310 = vmatpush.msra.mxu0 0.0
    %1311 = vmatpush.msra.mxu0 0.0
    %1312 = vmatpush.msra.mxu0 0.0
    %1313 = vmatpush.msra.mxu0 %v1218
    %1314 = vmatpush.msra.mxu0 %v1217
    %1315 = vmatmul.f32.gmra.mxu0 %v1297
    %v1316 = vpop.f32.mrf.mxu0
    %v1317 = vadd.f32 0.0, %v1316
    %1318 = vdwg.mxu0
    %v1319 = vadd.f32 %v1293, %v1317
    %v1320 = vxor.u32 %v1319, 2147483648
    %v1321 = vmul.f32 %v1320, 1.442695
    %v1322 = vpow.pop %v1321
    %v1323 = vadd.f32 %v1322, 1.0
    %v1324 = vrcp.pop %v1323
    %v1325 = vmul.f32 %v1323, %v1324
    %v1326 = vsub.f32 1.0, %v1325
    %v1327 = vmul.f32 %v1324, %v1326
    %v1328 = vadd.f32 %v1324, %v1327
    %vm1329 = vweird.f32 %v1323
    %vm1330 = vweird.f32 %v1324
    %vm1331 = vmor %vm1329, %vm1330
    %v1332 = vsel %vm1331, %v1324, %v1328
    %v1333 = vand.u32 2147483647, %v1323
    %vm1334 = vcmp.eq.f32.partialorder %v1333, 8.507059e+37
    %v1335 = vand.u32 %v1323, 2147483648
    %v1336 = vor.u32 1.1754944e-38, %v1335
    %v1337 = vsel %vm1334, %v1336, %v1332
    %v1338 = vmul.f32 1.0, %v1337
    %v1339 = vtanh.pop %v1319
    %v1340 = vmul.f32 %v1338, %v1289
    %1342 = vrot.lane.b32.xlu0 %v1339, 96
    %v1343 = vpop.permute.xlu0 %1342
    %v1345 = vmul.f32 %v1338, %v1343
    %1347 = vrot.lane.b32.xlu0 %v1345, 16
    %v1348 = vpop.permute.xlu0 %1347
    %v1350 = vadd.f32 %v1340, %v1348
    %v1351 = vtanh.pop %v1350
    %1353 = vrot.lane.b32.xlu0 %v1351, 32
    %v1354 = vpop.permute.xlu0 %1353
    %v1356 = vmul.f32 %v1338, %v1354
    %vm1357 = vcmp.gt.s32.totalorder %v1139, 1
    %v1358 = vsel %vm1357, 1, 0
    %vm1359 = vcmp.eq.s32.totalorder %v1358, 1
    %v1360 = vsel %vm1359, %v1356, %v1288
    %v1361 = vsel %vm1359, %v1350, %v1289
    %v1362 = vrot.slane %v1212, 2
    %v1364 = vrot.slane %v1215, 1
    %v1366 = vsel %vm1222, %v1362, %v1364
    %1368 = vrot.lane.b32.xlu0 %v1360, 80
    %v1369 = vpop.permute.xlu0 %1368
    %v1370 = vsel %vm1187, %v1369, 0
    %1372 = vmatpush.msra.mxu0 0.0
    %1373 = vmatpush.msra.mxu0 0.0
    %1374 = vmatpush.msra.mxu0 0.0
    %1375 = vmatpush.msra.mxu0 0.0
    %1376 = vmatpush.msra.mxu0 0.0
    %1377 = vmatpush.msra.mxu0 0.0
    %1378 = vmatpush.msra.mxu0 0.0
    %1379 = vmatpush.msra.mxu0 0.0
    %1380 = vmatpush.msra.mxu0 0.0
    %1381 = vmatpush.msra.mxu0 0.0
    %1382 = vmatpush.msra.mxu0 0.0
    %1383 = vmatpush.msra.mxu0 0.0
    %1384 = vmatpush.msra.mxu0 0.0
    %1385 = vmatpush.msra.mxu0 0.0
    %1386 = vmatpush.msra.mxu0 %v1218
    %1387 = vmatpush.msra.mxu0 %v1217
    %1388 = vmatmul.f32.gmra.mxu0 %v1370
    %v1389 = vpop.f32.mrf.mxu0
    %v1390 = vadd.f32 0.0, %v1389
    %1391 = vdwg.mxu0
    %v1392 = vadd.f32 %v1366, %v1390
    %v1393 = vxor.u32 %v1392, 2147483648
    %v1394 = vmul.f32 %v1393, 1.442695
    %v1395 = vpow.pop %v1394
    %v1396 = vadd.f32 %v1395, 1.0
    %v1397 = vrcp.pop %v1396
    %v1398 = vmul.f32 %v1396, %v1397
    %v1399 = vsub.f32 1.0, %v1398
    %v1400 = vmul.f32 %v1397, %v1399
    %v1401 = vadd.f32 %v1397, %v1400
    %vm1402 = vweird.f32 %v1396
    %vm1403 = vweird.f32 %v1397
    %vm1404 = vmor %vm1402, %vm1403
    %v1405 = vsel %vm1404, %v1397, %v1401
    %v1406 = vand.u32 2147483647, %v1396
    %vm1407 = vcmp.eq.f32.partialorder %v1406, 8.507059e+37
    %v1408 = vand.u32 %v1396, 2147483648
    %v1409 = vor.u32 1.1754944e-38, %v1408
    %v1410 = vsel %vm1407, %v1409, %v1405
    %v1411 = vmul.f32 1.0, %v1410
    %v1412 = vtanh.pop %v1392
    %v1413 = vmul.f32 %v1411, %v1361
    %1415 = vrot.lane.b32.xlu0 %v1412, 96
    %v1416 = vpop.permute.xlu0 %1415
    %v1418 = vmul.f32 %v1411, %v1416
    %1420 = vrot.lane.b32.xlu0 %v1418, 16
    %v1421 = vpop.permute.xlu0 %1420
    %v1423 = vadd.f32 %v1413, %v1421
    %v1424 = vtanh.pop %v1423
    %1426 = vrot.lane.b32.xlu0 %v1424, 32
    %v1427 = vpop.permute.xlu0 %1426
    %v1429 = vmul.f32 %v1411, %v1427
    %vm1430 = vcmp.gt.s32.totalorder %v1139, 2
    %v1431 = vsel %vm1430, 1, 0
    %vm1432 = vcmp.eq.s32.totalorder %v1431, 1
    %v1433 = vsel %vm1432, %v1429, %v1360
    %v1434 = vsel %vm1432, %v1423, %v1361
    %v1435 = vrot.slane %v1212, 3
    %v1437 = vrot.slane %v1215, 2
    %v1439 = vsel %vm1222, %v1435, %v1437
    %1441 = vrot.lane.b32.xlu0 %v1433, 80
    %v1442 = vpop.permute.xlu0 %1441
    %v1443 = vsel %vm1187, %v1442, 0
    %1445 = vmatpush.msra.mxu0 0.0
    %1446 = vmatpush.msra.mxu0 0.0
    %1447 = vmatpush.msra.mxu0 0.0
    %1448 = vmatpush.msra.mxu0 0.0
    %1449 = vmatpush.msra.mxu0 0.0
    %1450 = vmatpush.msra.mxu0 0.0
    %1451 = vmatpush.msra.mxu0 0.0
    %1452 = vmatpush.msra.mxu0 0.0
    %1453 = vmatpush.msra.mxu0 0.0
    %1454 = vmatpush.msra.mxu0 0.0
    %1455 = vmatpush.msra.mxu0 0.0
    %1456 = vmatpush.msra.mxu0 0.0
    %1457 = vmatpush.msra.mxu0 0.0
    %1458 = vmatpush.msra.mxu0 0.0
    %1459 = vmatpush.msra.mxu0 %v1218
    %1460 = vmatpush.msra.mxu0 %v1217
    %1461 = vmatmul.f32.gmra.mxu0 %v1443
    %v1462 = vpop.f32.mrf.mxu0
    %v1463 = vadd.f32 0.0, %v1462
    %1464 = vdwg.mxu0
    %v1465 = vadd.f32 %v1439, %v1463
    %v1466 = vxor.u32 %v1465, 2147483648
    %v1467 = vmul.f32 %v1466, 1.442695
    %v1468 = vpow.pop %v1467
    %v1469 = vadd.f32 %v1468, 1.0
    %v1470 = vrcp.pop %v1469
    %v1471 = vmul.f32 %v1469, %v1470
    %v1472 = vsub.f32 1.0, %v1471
    %v1473 = vmul.f32 %v1470, %v1472
    %v1474 = vadd.f32 %v1470, %v1473
    %vm1475 = vweird.f32 %v1469
    %vm1476 = vweird.f32 %v1470
    %vm1477 = vmor %vm1475, %vm1476
    %v1478 = vsel %vm1477, %v1470, %v1474
    %v1479 = vand.u32 2147483647, %v1469
    %vm1480 = vcmp.eq.f32.partialorder %v1479, 8.507059e+37
    %v1481 = vand.u32 %v1469, 2147483648
    %v1482 = vor.u32 1.1754944e-38, %v1481
    %v1483 = vsel %vm1480, %v1482, %v1478
    %v1484 = vmul.f32 1.0, %v1483
    %v1485 = vtanh.pop %v1465
    %v1486 = vmul.f32 %v1484, %v1434
    %1488 = vrot.lane.b32.xlu0 %v1485, 96
    %v1489 = vpop.permute.xlu0 %1488
    %v1491 = vmul.f32 %v1484, %v1489
    %1493 = vrot.lane.b32.xlu0 %v1491, 16
    %v1494 = vpop.permute.xlu0 %1493
    %v1496 = vadd.f32 %v1486, %v1494
    %v1497 = vtanh.pop %v1496
    %1499 = vrot.lane.b32.xlu0 %v1497, 32
    %v1500 = vpop.permute.xlu0 %1499
    %v1502 = vmul.f32 %v1484, %v1500
    %vm1503 = vcmp.gt.s32.totalorder %v1139, 3
    %v1504 = vsel %vm1503, 1, 0
    %vm1505 = vcmp.eq.s32.totalorder %v1504, 1
    %v1506 = vsel %vm1505, %v1502, %v1433
    %v1507 = vsel %vm1505, %v1496, %v1434
    %v1508 = vrot.slane %v1212, 4
    %v1510 = vrot.slane %v1215, 3
    %v1512 = vsel %vm1222, %v1508, %v1510
    %1514 = vrot.lane.b32.xlu0 %v1506, 80
    %v1515 = vpop.permute.xlu0 %1514
    %v1516 = vsel %vm1187, %v1515, 0
    %1518 = vmatpush.msra.mxu0 0.0
    %1519 = vmatpush.msra.mxu0 0.0
    %1520 = vmatpush.msra.mxu0 0.0
    %1521 = vmatpush.msra.mxu0 0.0
    %1522 = vmatpush.msra.mxu0 0.0
    %1523 = vmatpush.msra.mxu0 0.0
    %1524 = vmatpush.msra.mxu0 0.0
    %1525 = vmatpush.msra.mxu0 0.0
    %1526 = vmatpush.msra.mxu0 0.0
    %1527 = vmatpush.msra.mxu0 0.0
    %1528 = vmatpush.msra.mxu0 0.0
    %1529 = vmatpush.msra.mxu0 0.0
    %1530 = vmatpush.msra.mxu0 0.0
    %1531 = vmatpush.msra.mxu0 0.0
    %1532 = vmatpush.msra.mxu0 %v1218
    %1533 = vmatpush.msra.mxu0 %v1217
    %1534 = vmatmul.f32.gmra.mxu0 %v1516
    %v1535 = vpop.f32.mrf.mxu0
    %v1536 = vadd.f32 0.0, %v1535
    %1537 = vdwg.mxu0
    %v1538 = vadd.f32 %v1512, %v1536
    %v1539 = vxor.u32 %v1538, 2147483648
    %v1540 = vmul.f32 %v1539, 1.442695
    %v1541 = vpow.pop %v1540
    %v1542 = vadd.f32 %v1541, 1.0
    %v1543 = vrcp.pop %v1542
    %v1544 = vmul.f32 %v1542, %v1543
    %v1545 = vsub.f32 1.0, %v1544
    %v1546 = vmul.f32 %v1543, %v1545
    %v1547 = vadd.f32 %v1543, %v1546
    %vm1548 = vweird.f32 %v1542
    %vm1549 = vweird.f32 %v1543
    %vm1550 = vmor %vm1548, %vm1549
    %v1551 = vsel %vm1550, %v1543, %v1547
    %v1552 = vand.u32 2147483647, %v1542
    %vm1553 = vcmp.eq.f32.partialorder %v1552, 8.507059e+37
    %v1554 = vand.u32 %v1542, 2147483648
    %v1555 = vor.u32 1.1754944e-38, %v1554
    %v1556 = vsel %vm1553, %v1555, %v1551
    %v1557 = vmul.f32 1.0, %v1556
    %v1558 = vtanh.pop %v1538
    %v1559 = vmul.f32 %v1557, %v1507
    %1561 = vrot.lane.b32.xlu0 %v1558, 96
    %v1562 = vpop.permute.xlu0 %1561
    %v1564 = vmul.f32 %v1557, %v1562
    %1566 = vrot.lane.b32.xlu0 %v1564, 16
    %v1567 = vpop.permute.xlu0 %1566
    %v1569 = vadd.f32 %v1559, %v1567
    %v1570 = vtanh.pop %v1569
    %1572 = vrot.lane.b32.xlu0 %v1570, 32
    %v1573 = vpop.permute.xlu0 %1572
    %v1575 = vmul.f32 %v1557, %v1573
    %vm1576 = vcmp.gt.s32.totalorder %v1139, 4
    %v1577 = vsel %vm1576, 1, 0
    %vm1578 = vcmp.eq.s32.totalorder %v1577, 1
    %v1579 = vsel %vm1578, %v1575, %v1506
    %v1580 = vsel %vm1578, %v1569, %v1507
    %v1581 = vrot.slane %v1212, 5
    %v1583 = vrot.slane %v1215, 4
    %v1585 = vsel %vm1222, %v1581, %v1583
    %1587 = vrot.lane.b32.xlu0 %v1579, 80
    %v1588 = vpop.permute.xlu0 %1587
    %v1589 = vsel %vm1187, %v1588, 0
    %1591 = vmatpush.msra.mxu0 0.0
    %1592 = vmatpush.msra.mxu0 0.0
    %1593 = vmatpush.msra.mxu0 0.0
    %1594 = vmatpush.msra.mxu0 0.0
    %1595 = vmatpush.msra.mxu0 0.0
    %1596 = vmatpush.msra.mxu0 0.0
    %1597 = vmatpush.msra.mxu0 0.0
    %1598 = vmatpush.msra.mxu0 0.0
    %1599 = vmatpush.msra.mxu0 0.0
    %1600 = vmatpush.msra.mxu0 0.0
    %1601 = vmatpush.msra.mxu0 0.0
    %1602 = vmatpush.msra.mxu0 0.0
    %1603 = vmatpush.msra.mxu0 0.0
    %1604 = vmatpush.msra.mxu0 0.0
    %1605 = vmatpush.msra.mxu0 %v1218
    %1606 = vmatpush.msra.mxu0 %v1217
    %1607 = vmatmul.f32.gmra.mxu0 %v1589
    %v1608 = vpop.f32.mrf.mxu0
    %v1609 = vadd.f32 0.0, %v1608
    %1610 = vdwg.mxu0
    %v1611 = vadd.f32 %v1585, %v1609
    %v1612 = vxor.u32 %v1611, 2147483648
    %v1613 = vmul.f32 %v1612, 1.442695
    %v1614 = vpow.pop %v1613
    %v1615 = vadd.f32 %v1614, 1.0
    %v1616 = vrcp.pop %v1615
    %v1617 = vmul.f32 %v1615, %v1616
    %v1618 = vsub.f32 1.0, %v1617
    %v1619 = vmul.f32 %v1616, %v1618
    %v1620 = vadd.f32 %v1616, %v1619
    %vm1621 = vweird.f32 %v1615
    %vm1622 = vweird.f32 %v1616
    %vm1623 = vmor %vm1621, %vm1622
    %v1624 = vsel %vm1623, %v1616, %v1620
    %v1625 = vand.u32 2147483647, %v1615
    %vm1626 = vcmp.eq.f32.partialorder %v1625, 8.507059e+37
    %v1627 = vand.u32 %v1615, 2147483648
    %v1628 = vor.u32 1.1754944e-38, %v1627
    %v1629 = vsel %vm1626, %v1628, %v1624
    %v1630 = vmul.f32 1.0, %v1629
    %v1631 = vtanh.pop %v1611
    %v1632 = vmul.f32 %v1630, %v1580
    %1634 = vrot.lane.b32.xlu0 %v1631, 96
    %v1635 = vpop.permute.xlu0 %1634
    %v1637 = vmul.f32 %v1630, %v1635
    %1639 = vrot.lane.b32.xlu0 %v1637, 16
    %v1640 = vpop.permute.xlu0 %1639
    %v1642 = vadd.f32 %v1632, %v1640
    %v1643 = vtanh.pop %v1642
    %1645 = vrot.lane.b32.xlu0 %v1643, 32
    %v1646 = vpop.permute.xlu0 %1645
    %v1648 = vmul.f32 %v1630, %v1646
    %vm1649 = vcmp.gt.s32.totalorder %v1139, 5
    %v1650 = vsel %vm1649, 1, 0
    %vm1651 = vcmp.eq.s32.totalorder %v1650, 1
    %v1652 = vsel %vm1651, %v1648, %v1579
    %v1653 = vsel %vm1651, %v1642, %v1580
    %v1654 = vrot.slane %v1212, 6
    %v1656 = vrot.slane %v1215, 5
    %v1658 = vsel %vm1222, %v1654, %v1656
    %1660 = vrot.lane.b32.xlu0 %v1652, 80
    %v1661 = vpop.permute.xlu0 %1660
    %v1662 = vsel %vm1187, %v1661, 0
    %1664 = vmatpush.msra.mxu0 0.0
    %1665 = vmatpush.msra.mxu0 0.0
    %1666 = vmatpush.msra.mxu0 0.0
    %1667 = vmatpush.msra.mxu0 0.0
    %1668 = vmatpush.msra.mxu0 0.0
    %1669 = vmatpush.msra.mxu0 0.0
    %1670 = vmatpush.msra.mxu0 0.0
    %1671 = vmatpush.msra.mxu0 0.0
    %1672 = vmatpush.msra.mxu0 0.0
    %1673 = vmatpush.msra.mxu0 0.0
    %1674 = vmatpush.msra.mxu0 0.0
    %1675 = vmatpush.msra.mxu0 0.0
    %1676 = vmatpush.msra.mxu0 0.0
    %1677 = vmatpush.msra.mxu0 0.0
    %1678 = vmatpush.msra.mxu0 %v1218
    %1679 = vmatpush.msra.mxu0 %v1217
    %1680 = vmatmul.f32.gmra.mxu0 %v1662
    %v1681 = vpop.f32.mrf.mxu0
    %v1682 = vadd.f32 0.0, %v1681
    %1683 = vdwg.mxu0
    %v1684 = vadd.f32 %v1658, %v1682
    %v1685 = vxor.u32 %v1684, 2147483648
    %v1686 = vmul.f32 %v1685, 1.442695
    %v1687 = vpow.pop %v1686
    %v1688 = vadd.f32 %v1687, 1.0
    %v1689 = vrcp.pop %v1688
    %v1690 = vmul.f32 %v1688, %v1689
    %v1691 = vsub.f32 1.0, %v1690
    %v1692 = vmul.f32 %v1689, %v1691
    %v1693 = vadd.f32 %v1689, %v1692
    %vm1694 = vweird.f32 %v1688
    %vm1695 = vweird.f32 %v1689
    %vm1696 = vmor %vm1694, %vm1695
    %v1697 = vsel %vm1696, %v1689, %v1693
    %v1698 = vand.u32 2147483647, %v1688
    %vm1699 = vcmp.eq.f32.partialorder %v1698, 8.507059e+37
    %v1700 = vand.u32 %v1688, 2147483648
    %v1701 = vor.u32 1.1754944e-38, %v1700
    %v1702 = vsel %vm1699, %v1701, %v1697
    %v1703 = vmul.f32 1.0, %v1702
    %v1704 = vtanh.pop %v1684
    %v1705 = vmul.f32 %v1703, %v1653
    %1707 = vrot.lane.b32.xlu0 %v1704, 96
    %v1708 = vpop.permute.xlu0 %1707
    %v1710 = vmul.f32 %v1703, %v1708
    %1712 = vrot.lane.b32.xlu0 %v1710, 16
    %v1713 = vpop.permute.xlu0 %1712
    %v1715 = vadd.f32 %v1705, %v1713
    %v1716 = vtanh.pop %v1715
    %1718 = vrot.lane.b32.xlu0 %v1716, 32
    %v1719 = vpop.permute.xlu0 %1718
    %v1721 = vmul.f32 %v1703, %v1719
    %vm1722 = vcmp.gt.s32.totalorder %v1139, 6
    %v1723 = vsel %vm1722, 1, 0
    %vm1724 = vcmp.eq.s32.totalorder %v1723, 1
    %v1725 = vsel %vm1724, %v1721, %v1652
    %v1726 = vsel %vm1724, %v1715, %v1653
    %v1727 = vrot.slane %v1212, 7
    %v1729 = vrot.slane %v1215, 6
    %v1731 = vsel %vm1222, %v1727, %v1729
    %1733 = vrot.lane.b32.xlu0 %v1725, 80
    %v1734 = vpop.permute.xlu0 %1733
    %v1735 = vsel %vm1187, %v1734, 0
    %1737 = vmatpush.msra.mxu0 0.0
    %1738 = vmatpush.msra.mxu0 0.0
    %1739 = vmatpush.msra.mxu0 0.0
    %1740 = vmatpush.msra.mxu0 0.0
    %1741 = vmatpush.msra.mxu0 0.0
    %1742 = vmatpush.msra.mxu0 0.0
    %1743 = vmatpush.msra.mxu0 0.0
    %1744 = vmatpush.msra.mxu0 0.0
    %1745 = vmatpush.msra.mxu0 0.0
    %1746 = vmatpush.msra.mxu0 0.0
    %1747 = vmatpush.msra.mxu0 0.0
    %1748 = vmatpush.msra.mxu0 0.0
    %1749 = vmatpush.msra.mxu0 0.0
    %1750 = vmatpush.msra.mxu0 0.0
    %1751 = vmatpush.msra.mxu0 %v1218
    %1752 = vmatpush.msra.mxu0 %v1217
    %1753 = vmatmul.f32.gmra.mxu0 %v1735
    %v1754 = vpop.f32.mrf.mxu0
    %v1755 = vadd.f32 0.0, %v1754
    %1756 = vdwg.mxu0
    %v1757 = vadd.f32 %v1731, %v1755
    %v1758 = vxor.u32 %v1757, 2147483648
    %v1759 = vmul.f32 %v1758, 1.442695
    %v1760 = vpow.pop %v1759
    %v1761 = vadd.f32 %v1760, 1.0
    %v1762 = vrcp.pop %v1761
    %v1763 = vmul.f32 %v1761, %v1762
    %v1764 = vsub.f32 1.0, %v1763
    %v1765 = vmul.f32 %v1762, %v1764
    %v1766 = vadd.f32 %v1762, %v1765
    %vm1767 = vweird.f32 %v1761
    %vm1768 = vweird.f32 %v1762
    %vm1769 = vmor %vm1767, %vm1768
    %v1770 = vsel %vm1769, %v1762, %v1766
    %v1771 = vand.u32 2147483647, %v1761
    %vm1772 = vcmp.eq.f32.partialorder %v1771, 8.507059e+37
    %v1773 = vand.u32 %v1761, 2147483648
    %v1774 = vor.u32 1.1754944e-38, %v1773
    %v1775 = vsel %vm1772, %v1774, %v1770
    %v1776 = vmul.f32 1.0, %v1775
    %v1777 = vtanh.pop %v1757
    %v1778 = vmul.f32 %v1776, %v1726
    %1780 = vrot.lane.b32.xlu0 %v1777, 96
    %v1781 = vpop.permute.xlu0 %1780
    %v1783 = vmul.f32 %v1776, %v1781
    %1785 = vrot.lane.b32.xlu0 %v1783, 16
    %v1786 = vpop.permute.xlu0 %1785
    %v1788 = vadd.f32 %v1778, %v1786
    %v1789 = vtanh.pop %v1788
    %1791 = vrot.lane.b32.xlu0 %v1789, 32
    %v1792 = vpop.permute.xlu0 %1791
    %v1794 = vmul.f32 %v1776, %v1792
    %vm1795 = vcmp.gt.s32.totalorder %v1139, 7
    %v1796 = vsel %vm1795, 1, 0
    %vm1797 = vcmp.eq.s32.totalorder %v1796, 1
    %v1798 = vsel %vm1797, %v1794, %v1725
    %v1799 = vld [vmem:[%s23] sm:$0xff]
    %v1800 = vld [vmem:[%s23 + $0x8] sm:$0xff]
    %v1801 = vld [vmem:[%s25] sm:$0x1]
    %v1803 = vperm.slane %v1801, 0
    %1806 = vrot.lane.b32.xlu0 %v1798, 80
    %v1807 = vpop.permute.xlu0 %1806
    %v1808 = vsel %vm1187, %v1807, 0
    %1810 = vmatpush.msra.mxu0 0.0
    %1811 = vmatpush.msra.mxu0 0.0
    %1812 = vmatpush.msra.mxu0 0.0
    %1813 = vmatpush.msra.mxu0 0.0
    %1814 = vmatpush.msra.mxu0 0.0
    %1815 = vmatpush.msra.mxu0 0.0
    %1816 = vmatpush.msra.mxu0 0.0
    %1817 = vmatpush.msra.mxu0 0.0
    %1818 = vmatpush.msra.mxu0 0.0
    %1819 = vmatpush.msra.mxu0 0.0
    %1820 = vmatpush.msra.mxu0 0.0
    %1821 = vmatpush.msra.mxu0 0.0
    %1822 = vmatpush.msra.mxu0 0.0
    %1823 = vmatpush.msra.mxu0 0.0
    %1824 = vmatpush.msra.mxu0 %v1800
    %1825 = vmatpush.msra.mxu0 %v1799
    %1826 = vmatmul.f32.gmra.mxu0 %v1808
    %v1827 = vpop.f32.mrf.mxu0
    %v1828 = vadd.f32 %v1803, %v1827
    %1829 = vdwg.mxu0
    %s1830 = smul.u32 8, 2
    %s1831 = smul.u32 %s1830, 16
    %s1832 = sshll.u32 %s1831, 4
    %1833 = dma.done [#allocation4], %s1832
    %s1834 = smul.u32 4, 256
    %s1835 = smul.u32 %s1834, 3
    %s1836 = sshll.u32 %s1835, 4
    %1837 = dma.done %s345, %s1836
    %v1838 = vld [vmem:[#allocation2] sm:$0xff]
    %v1839 = vld [vmem:[#allocation2 + $0x8] sm:$0xff]
    %v1840 = vld [vmem:[#allocation2 + $0x10] sm:$0xff]
    %v1841 = vld [vmem:[#allocation2 + $0x18] sm:$0xff]
    %v1842 = vld [vmem:[#allocation2 + $0x20] sm:$0xff]
    %v1843 = vld [vmem:[#allocation2 + $0x28] sm:$0xff]
    %v1844 = vld [vmem:[#allocation2 + $0x30] sm:$0xff]
    %v1845 = vld [vmem:[#allocation2 + $0x38] sm:$0xff]
    %v1846 = vld [vmem:[#allocation2 + $0x40] sm:$0xff]
    %v1847 = vld [vmem:[#allocation2 + $0x48] sm:$0xff]
    %v1848 = vld [vmem:[#allocation2 + $0x50] sm:$0xff]
    %v1849 = vld [vmem:[#allocation2 + $0x58] sm:$0xff]
    %v1850 = vld [vmem:[#allocation2 + $0x60] sm:$0xff]
    %v1851 = vld [vmem:[#allocation2 + $0x68] sm:$0xff]
    %v1852 = vld [vmem:[#allocation2 + $0x70] sm:$0xff]
    %v1853 = vld [vmem:[#allocation2 + $0x78] sm:$0xff]
    %v1854 = vld [vmem:[#allocation2 + $0x80] sm:$0xff]
    %v1855 = vld [vmem:[#allocation2 + $0x88] sm:$0xff]
    %v1856 = vld [vmem:[#allocation2 + $0x90] sm:$0xff]
    %v1857 = vld [vmem:[#allocation2 + $0x98] sm:$0xff]
    %v1858 = vld [vmem:[#allocation2 + $0xa0] sm:$0xff]
    %v1859 = vld [vmem:[#allocation2 + $0xa8] sm:$0xff]
    %v1860 = vld [vmem:[#allocation2 + $0xb0] sm:$0xff]
    %v1861 = vld [vmem:[#allocation2 + $0xb8] sm:$0xff]
    %v1862 = vld [vmem:[#allocation2 + $0xc0] sm:$0xff]
    %v1863 = vld [vmem:[#allocation2 + $0xc8] sm:$0xff]
    %v1864 = vld [vmem:[#allocation2 + $0xd0] sm:$0xff]
    %v1865 = vld [vmem:[#allocation2 + $0xd8] sm:$0xff]
    %v1866 = vld [vmem:[#allocation2 + $0xe0] sm:$0xff]
    %v1867 = vld [vmem:[#allocation2 + $0xe8] sm:$0xff]
    %v1868 = vld [vmem:[#allocation2 + $0xf0] sm:$0xff]
    %v1869 = vld [vmem:[#allocation2 + $0xf8] sm:$0xff]
    %v1870 = vpack.c.bf16 %v1854, %v1838
    %v1871 = vpack.c.bf16 %v1855, %v1839
    %v1872 = vpack.c.bf16 %v1856, %v1840
    %v1873 = vpack.c.bf16 %v1857, %v1841
    %v1874 = vpack.c.bf16 %v1858, %v1842
    %v1875 = vpack.c.bf16 %v1859, %v1843
    %v1876 = vpack.c.bf16 %v1860, %v1844
    %v1877 = vpack.c.bf16 %v1861, %v1845
    %v1878 = vpack.c.bf16 %v1862, %v1846
    %v1879 = vpack.c.bf16 %v1863, %v1847
    %v1880 = vpack.c.bf16 %v1864, %v1848
    %v1881 = vpack.c.bf16 %v1865, %v1849
    %v1882 = vpack.c.bf16 %v1866, %v1850
    %v1883 = vpack.c.bf16 %v1867, %v1851
    %v1884 = vpack.c.bf16 %v1868, %v1852
    %v1885 = vpack.c.bf16 %v1869, %v1853
    %v1886 = vld [vmem:[#allocation3] sm:$0xff]
    %v1887 = vld [vmem:[#allocation3 + $0x8] sm:$0xf]
    %v1888 = vld [vmem:[#allocation3 + $0xc] sm:$0xff]
    %v1889 = vld [vmem:[#allocation3 + $0x14] sm:$0xf]
    %v1890 = vld [vmem:[#allocation3 + $0x18] sm:$0xff]
    %v1891 = vld [vmem:[#allocation3 + $0x20] sm:$0xf]
    %v1892 = vld [vmem:[#allocation3 + $0x24] sm:$0xff]
    %v1893 = vld [vmem:[#allocation3 + $0x2c] sm:$0xf]
    %v1894 = vld [vmem:[#allocation3 + $0x30] sm:$0xff]
    %v1895 = vld [vmem:[#allocation3 + $0x38] sm:$0xf]
    %v1896 = vld [vmem:[#allocation3 + $0x3c] sm:$0xff]
    %v1897 = vld [vmem:[#allocation3 + $0x44] sm:$0xf]
    %v1898 = vld [vmem:[#allocation3 + $0x48] sm:$0xff]
    %v1899 = vld [vmem:[#allocation3 + $0x50] sm:$0xf]
    %v1900 = vld [vmem:[#allocation3 + $0x54] sm:$0xff]
    %v1901 = vld [vmem:[#allocation3 + $0x5c] sm:$0xf]
    %v1902 = vld [vmem:[#allocation3 + $0x60] sm:$0xff]
    %v1903 = vld [vmem:[#allocation3 + $0x68] sm:$0xf]
    %v1904 = vld [vmem:[#allocation3 + $0x6c] sm:$0xff]
    %v1905 = vld [vmem:[#allocation3 + $0x74] sm:$0xf]
    %v1906 = vld [vmem:[#allocation3 + $0x78] sm:$0xff]
    %v1907 = vld [vmem:[#allocation3 + $0x80] sm:$0xf]
    %v1908 = vld [vmem:[#allocation3 + $0x84] sm:$0xff]
    %v1909 = vld [vmem:[#allocation3 + $0x8c] sm:$0xf]
    %v1910 = vld [vmem:[#allocation3 + $0x90] sm:$0xff]
    %v1911 = vld [vmem:[#allocation3 + $0x98] sm:$0xf]
    %v1912 = vld [vmem:[#allocation3 + $0x9c] sm:$0xff]
    %v1913 = vld [vmem:[#allocation3 + $0xa4] sm:$0xf]
    %v1914 = vld [vmem:[#allocation3 + $0xa8] sm:$0xff]
    %v1915 = vld [vmem:[#allocation3 + $0xb0] sm:$0xf]
    %v1916 = vld [vmem:[#allocation3 + $0xb4] sm:$0xff]
    %v1917 = vld [vmem:[#allocation3 + $0xbc] sm:$0xf]
    %v1918 = vld [vmem:[#allocation3 + $0xc0] sm:$0xff]
    %v1919 = vld [vmem:[#allocation3 + $0xc8] sm:$0xf]
    %v1920 = vld [vmem:[#allocation3 + $0xcc] sm:$0xff]
    %v1921 = vld [vmem:[#allocation3 + $0xd4] sm:$0xf]
    %v1922 = vld [vmem:[#allocation3 + $0xd8] sm:$0xff]
    %v1923 = vld [vmem:[#allocation3 + $0xe0] sm:$0xf]
    %v1924 = vld [vmem:[#allocation3 + $0xe4] sm:$0xff]
    %v1925 = vld [vmem:[#allocation3 + $0xec] sm:$0xf]
    %v1926 = vld [vmem:[#allocation3 + $0xf0] sm:$0xff]
    %v1927 = vld [vmem:[#allocation3 + $0xf8] sm:$0xf]
    %v1928 = vld [vmem:[#allocation3 + $0xfc] sm:$0xff]
    %v1929 = vld [vmem:[#allocation3 + $0x104] sm:$0xf]
    %v1930 = vld [vmem:[#allocation3 + $0x108] sm:$0xff]
    %v1931 = vld [vmem:[#allocation3 + $0x110] sm:$0xf]
    %v1932 = vld [vmem:[#allocation3 + $0x114] sm:$0xff]
    %v1933 = vld [vmem:[#allocation3 + $0x11c] sm:$0xf]
    %v1934 = vld [vmem:[#allocation3 + $0x120] sm:$0xff]
    %v1935 = vld [vmem:[#allocation3 + $0x128] sm:$0xf]
    %v1936 = vld [vmem:[#allocation3 + $0x12c] sm:$0xff]
    %v1937 = vld [vmem:[#allocation3 + $0x134] sm:$0xf]
    %v1938 = vld [vmem:[#allocation3 + $0x138] sm:$0xff]
    %v1939 = vld [vmem:[#allocation3 + $0x140] sm:$0xf]
    %v1940 = vld [vmem:[#allocation3 + $0x144] sm:$0xff]
    %v1941 = vld [vmem:[#allocation3 + $0x14c] sm:$0xf]
    %v1942 = vld [vmem:[#allocation3 + $0x150] sm:$0xff]
    %v1943 = vld [vmem:[#allocation3 + $0x158] sm:$0xf]
    %v1944 = vld [vmem:[#allocation3 + $0x15c] sm:$0xff]
    %v1945 = vld [vmem:[#allocation3 + $0x164] sm:$0xf]
    %v1946 = vld [vmem:[#allocation3 + $0x168] sm:$0xff]
    %v1947 = vld [vmem:[#allocation3 + $0x170] sm:$0xf]
    %v1948 = vld [vmem:[#allocation3 + $0x174] sm:$0xff]
    %v1949 = vld [vmem:[#allocation3 + $0x17c] sm:$0xf]
    %v1950 = vld [vmem:[#allocation3 + $0x180] sm:$0xff]
    %v1951 = vld [vmem:[#allocation3 + $0x188] sm:$0xf]
    %v1952 = vld [vmem:[#allocation3 + $0x18c] sm:$0xff]
    %v1953 = vld [vmem:[#allocation3 + $0x194] sm:$0xf]
    %v1954 = vld [vmem:[#allocation3 + $0x198] sm:$0xff]
    %v1955 = vld [vmem:[#allocation3 + $0x1a0] sm:$0xf]
    %v1956 = vld [vmem:[#allocation3 + $0x1a4] sm:$0xff]
    %v1957 = vld [vmem:[#allocation3 + $0x1ac] sm:$0xf]
    %v1958 = vld [vmem:[#allocation3 + $0x1b0] sm:$0xff]
    %v1959 = vld [vmem:[#allocation3 + $0x1b8] sm:$0xf]
    %v1960 = vld [vmem:[#allocation3 + $0x1bc] sm:$0xff]
    %v1961 = vld [vmem:[#allocation3 + $0x1c4] sm:$0xf]
    %v1962 = vld [vmem:[#allocation3 + $0x1c8] sm:$0xff]
    %v1963 = vld [vmem:[#allocation3 + $0x1d0] sm:$0xf]
    %v1964 = vld [vmem:[#allocation3 + $0x1d4] sm:$0xff]
    %v1965 = vld [vmem:[#allocation3 + $0x1dc] sm:$0xf]
    %v1966 = vld [vmem:[#allocation3 + $0x1e0] sm:$0xff]
    %v1967 = vld [vmem:[#allocation3 + $0x1e8] sm:$0xf]
    %v1968 = vld [vmem:[#allocation3 + $0x1ec] sm:$0xff]
    %v1969 = vld [vmem:[#allocation3 + $0x1f4] sm:$0xf]
    %v1970 = vld [vmem:[#allocation3 + $0x1f8] sm:$0xff]
    %v1971 = vld [vmem:[#allocation3 + $0x200] sm:$0xf]
    %v1972 = vld [vmem:[#allocation3 + $0x204] sm:$0xff]
    %v1973 = vld [vmem:[#allocation3 + $0x20c] sm:$0xf]
    %v1974 = vld [vmem:[#allocation3 + $0x210] sm:$0xff]
    %v1975 = vld [vmem:[#allocation3 + $0x218] sm:$0xf]
    %v1976 = vld [vmem:[#allocation3 + $0x21c] sm:$0xff]
    %v1977 = vld [vmem:[#allocation3 + $0x224] sm:$0xf]
    %v1978 = vld [vmem:[#allocation3 + $0x228] sm:$0xff]
    %v1979 = vld [vmem:[#allocation3 + $0x230] sm:$0xf]
    %v1980 = vld [vmem:[#allocation3 + $0x234] sm:$0xff]
    %v1981 = vld [vmem:[#allocation3 + $0x23c] sm:$0xf]
    %v1982 = vld [vmem:[#allocation3 + $0x240] sm:$0xff]
    %v1983 = vld [vmem:[#allocation3 + $0x248] sm:$0xf]
    %v1984 = vld [vmem:[#allocation3 + $0x24c] sm:$0xff]
    %v1985 = vld [vmem:[#allocation3 + $0x254] sm:$0xf]
    %v1986 = vld [vmem:[#allocation3 + $0x258] sm:$0xff]
    %v1987 = vld [vmem:[#allocation3 + $0x260] sm:$0xf]
    %v1988 = vld [vmem:[#allocation3 + $0x264] sm:$0xff]
    %v1989 = vld [vmem:[#allocation3 + $0x26c] sm:$0xf]
    %v1990 = vld [vmem:[#allocation3 + $0x270] sm:$0xff]
    %v1991 = vld [vmem:[#allocation3 + $0x278] sm:$0xf]
    %v1992 = vld [vmem:[#allocation3 + $0x27c] sm:$0xff]
    %v1993 = vld [vmem:[#allocation3 + $0x284] sm:$0xf]
    %v1994 = vld [vmem:[#allocation3 + $0x288] sm:$0xff]
    %v1995 = vld [vmem:[#allocation3 + $0x290] sm:$0xf]
    %v1996 = vld [vmem:[#allocation3 + $0x294] sm:$0xff]
    %v1997 = vld [vmem:[#allocation3 + $0x29c] sm:$0xf]
    %v1998 = vld [vmem:[#allocation3 + $0x2a0] sm:$0xff]
    %v1999 = vld [vmem:[#allocation3 + $0x2a8] sm:$0xf]
    %v2000 = vld [vmem:[#allocation3 + $0x2ac] sm:$0xff]
    %v2001 = vld [vmem:[#allocation3 + $0x2b4] sm:$0xf]
    %v2002 = vld [vmem:[#allocation3 + $0x2b8] sm:$0xff]
    %v2003 = vld [vmem:[#allocation3 + $0x2c0] sm:$0xf]
    %v2004 = vld [vmem:[#allocation3 + $0x2c4] sm:$0xff]
    %v2005 = vld [vmem:[#allocation3 + $0x2cc] sm:$0xf]
    %v2006 = vld [vmem:[#allocation3 + $0x2d0] sm:$0xff]
    %v2007 = vld [vmem:[#allocation3 + $0x2d8] sm:$0xf]
    %v2008 = vld [vmem:[#allocation3 + $0x2dc] sm:$0xff]
    %v2009 = vld [vmem:[#allocation3 + $0x2e4] sm:$0xf]
    %v2010 = vld [vmem:[#allocation3 + $0x2e8] sm:$0xff]
    %v2011 = vld [vmem:[#allocation3 + $0x2f0] sm:$0xf]
    %v2012 = vld [vmem:[#allocation3 + $0x2f4] sm:$0xff]
    %v2013 = vld [vmem:[#allocation3 + $0x2fc] sm:$0xf]
    %v2014 = vld [vmem:[#allocation3 + $0x300] sm:$0xff]
    %v2015 = vld [vmem:[#allocation3 + $0x308] sm:$0xf]
    %v2016 = vld [vmem:[#allocation3 + $0x30c] sm:$0xff]
    %v2017 = vld [vmem:[#allocation3 + $0x314] sm:$0xf]
    %v2018 = vld [vmem:[#allocation3 + $0x318] sm:$0xff]
    %v2019 = vld [vmem:[#allocation3 + $0x320] sm:$0xf]
    %v2020 = vld [vmem:[#allocation3 + $0x324] sm:$0xff]
    %v2021 = vld [vmem:[#allocation3 + $0x32c] sm:$0xf]
    %v2022 = vld [vmem:[#allocation3 + $0x330] sm:$0xff]
    %v2023 = vld [vmem:[#allocation3 + $0x338] sm:$0xf]
    %v2024 = vld [vmem:[#allocation3 + $0x33c] sm:$0xff]
    %v2025 = vld [vmem:[#allocation3 + $0x344] sm:$0xf]
    %v2026 = vld [vmem:[#allocation3 + $0x348] sm:$0xff]
    %v2027 = vld [vmem:[#allocation3 + $0x350] sm:$0xf]
    %v2028 = vld [vmem:[#allocation3 + $0x354] sm:$0xff]
    %v2029 = vld [vmem:[#allocation3 + $0x35c] sm:$0xf]
    %v2030 = vld [vmem:[#allocation3 + $0x360] sm:$0xff]
    %v2031 = vld [vmem:[#allocation3 + $0x368] sm:$0xf]
    %v2032 = vld [vmem:[#allocation3 + $0x36c] sm:$0xff]
    %v2033 = vld [vmem:[#allocation3 + $0x374] sm:$0xf]
    %v2034 = vld [vmem:[#allocation3 + $0x378] sm:$0xff]
    %v2035 = vld [vmem:[#allocation3 + $0x380] sm:$0xf]
    %v2036 = vld [vmem:[#allocation3 + $0x384] sm:$0xff]
    %v2037 = vld [vmem:[#allocation3 + $0x38c] sm:$0xf]
    %v2038 = vld [vmem:[#allocation3 + $0x390] sm:$0xff]
    %v2039 = vld [vmem:[#allocation3 + $0x398] sm:$0xf]
    %v2040 = vld [vmem:[#allocation3 + $0x39c] sm:$0xff]
    %v2041 = vld [vmem:[#allocation3 + $0x3a4] sm:$0xf]
    %v2042 = vld [vmem:[#allocation3 + $0x3a8] sm:$0xff]
    %v2043 = vld [vmem:[#allocation3 + $0x3b0] sm:$0xf]
    %v2044 = vld [vmem:[#allocation3 + $0x3b4] sm:$0xff]
    %v2045 = vld [vmem:[#allocation3 + $0x3bc] sm:$0xf]
    %v2046 = vld [vmem:[#allocation3 + $0x3c0] sm:$0xff]
    %v2047 = vld [vmem:[#allocation3 + $0x3c8] sm:$0xf]
    %v2048 = vld [vmem:[#allocation3 + $0x3cc] sm:$0xff]
    %v2049 = vld [vmem:[#allocation3 + $0x3d4] sm:$0xf]
    %v2050 = vld [vmem:[#allocation3 + $0x3d8] sm:$0xff]
    %v2051 = vld [vmem:[#allocation3 + $0x3e0] sm:$0xf]
    %v2052 = vld [vmem:[#allocation3 + $0x3e4] sm:$0xff]
    %v2053 = vld [vmem:[#allocation3 + $0x3ec] sm:$0xf]
    %v2054 = vld [vmem:[#allocation3 + $0x3f0] sm:$0xff]
    %v2055 = vld [vmem:[#allocation3 + $0x3f8] sm:$0xf]
    %v2056 = vld [vmem:[#allocation3 + $0x3fc] sm:$0xff]
    %v2057 = vld [vmem:[#allocation3 + $0x404] sm:$0xf]
    %v2058 = vld [vmem:[#allocation3 + $0x408] sm:$0xff]
    %v2059 = vld [vmem:[#allocation3 + $0x410] sm:$0xf]
    %v2060 = vld [vmem:[#allocation3 + $0x414] sm:$0xff]
    %v2061 = vld [vmem:[#allocation3 + $0x41c] sm:$0xf]
    %v2062 = vld [vmem:[#allocation3 + $0x420] sm:$0xff]
    %v2063 = vld [vmem:[#allocation3 + $0x428] sm:$0xf]
    %v2064 = vld [vmem:[#allocation3 + $0x42c] sm:$0xff]
    %v2065 = vld [vmem:[#allocation3 + $0x434] sm:$0xf]
    %v2066 = vld [vmem:[#allocation3 + $0x438] sm:$0xff]
    %v2067 = vld [vmem:[#allocation3 + $0x440] sm:$0xf]
    %v2068 = vld [vmem:[#allocation3 + $0x444] sm:$0xff]
    %v2069 = vld [vmem:[#allocation3 + $0x44c] sm:$0xf]
    %v2070 = vld [vmem:[#allocation3 + $0x450] sm:$0xff]
    %v2071 = vld [vmem:[#allocation3 + $0x458] sm:$0xf]
    %v2072 = vld [vmem:[#allocation3 + $0x45c] sm:$0xff]
    %v2073 = vld [vmem:[#allocation3 + $0x464] sm:$0xf]
    %v2074 = vld [vmem:[#allocation3 + $0x468] sm:$0xff]
    %v2075 = vld [vmem:[#allocation3 + $0x470] sm:$0xf]
    %v2076 = vld [vmem:[#allocation3 + $0x474] sm:$0xff]
    %v2077 = vld [vmem:[#allocation3 + $0x47c] sm:$0xf]
    %v2078 = vld [vmem:[#allocation3 + $0x480] sm:$0xff]
    %v2079 = vld [vmem:[#allocation3 + $0x488] sm:$0xf]
    %v2080 = vld [vmem:[#allocation3 + $0x48c] sm:$0xff]
    %v2081 = vld [vmem:[#allocation3 + $0x494] sm:$0xf]
    %v2082 = vld [vmem:[#allocation3 + $0x498] sm:$0xff]
    %v2083 = vld [vmem:[#allocation3 + $0x4a0] sm:$0xf]
    %v2084 = vld [vmem:[#allocation3 + $0x4a4] sm:$0xff]
    %v2085 = vld [vmem:[#allocation3 + $0x4ac] sm:$0xf]
    %v2086 = vld [vmem:[#allocation3 + $0x4b0] sm:$0xff]
    %v2087 = vld [vmem:[#allocation3 + $0x4b8] sm:$0xf]
    %v2088 = vld [vmem:[#allocation3 + $0x4bc] sm:$0xff]
    %v2089 = vld [vmem:[#allocation3 + $0x4c4] sm:$0xf]
    %v2090 = vld [vmem:[#allocation3 + $0x4c8] sm:$0xff]
    %v2091 = vld [vmem:[#allocation3 + $0x4d0] sm:$0xf]
    %v2092 = vld [vmem:[#allocation3 + $0x4d4] sm:$0xff]
    %v2093 = vld [vmem:[#allocation3 + $0x4dc] sm:$0xf]
    %v2094 = vld [vmem:[#allocation3 + $0x4e0] sm:$0xff]
    %v2095 = vld [vmem:[#allocation3 + $0x4e8] sm:$0xf]
    %v2096 = vld [vmem:[#allocation3 + $0x4ec] sm:$0xff]
    %v2097 = vld [vmem:[#allocation3 + $0x4f4] sm:$0xf]
    %v2098 = vld [vmem:[#allocation3 + $0x4f8] sm:$0xff]
    %v2099 = vld [vmem:[#allocation3 + $0x500] sm:$0xf]
    %v2100 = vld [vmem:[#allocation3 + $0x504] sm:$0xff]
    %v2101 = vld [vmem:[#allocation3 + $0x50c] sm:$0xf]
    %v2102 = vld [vmem:[#allocation3 + $0x510] sm:$0xff]
    %v2103 = vld [vmem:[#allocation3 + $0x518] sm:$0xf]
    %v2104 = vld [vmem:[#allocation3 + $0x51c] sm:$0xff]
    %v2105 = vld [vmem:[#allocation3 + $0x524] sm:$0xf]
    %v2106 = vld [vmem:[#allocation3 + $0x528] sm:$0xff]
    %v2107 = vld [vmem:[#allocation3 + $0x530] sm:$0xf]
    %v2108 = vld [vmem:[#allocation3 + $0x534] sm:$0xff]
    %v2109 = vld [vmem:[#allocation3 + $0x53c] sm:$0xf]
    %v2110 = vld [vmem:[#allocation3 + $0x540] sm:$0xff]
    %v2111 = vld [vmem:[#allocation3 + $0x548] sm:$0xf]
    %v2112 = vld [vmem:[#allocation3 + $0x54c] sm:$0xff]
    %v2113 = vld [vmem:[#allocation3 + $0x554] sm:$0xf]
    %v2114 = vld [vmem:[#allocation3 + $0x558] sm:$0xff]
    %v2115 = vld [vmem:[#allocation3 + $0x560] sm:$0xf]
    %v2116 = vld [vmem:[#allocation3 + $0x564] sm:$0xff]
    %v2117 = vld [vmem:[#allocation3 + $0x56c] sm:$0xf]
    %v2118 = vld [vmem:[#allocation3 + $0x570] sm:$0xff]
    %v2119 = vld [vmem:[#allocation3 + $0x578] sm:$0xf]
    %v2120 = vld [vmem:[#allocation3 + $0x57c] sm:$0xff]
    %v2121 = vld [vmem:[#allocation3 + $0x584] sm:$0xf]
    %v2122 = vld [vmem:[#allocation3 + $0x588] sm:$0xff]
    %v2123 = vld [vmem:[#allocation3 + $0x590] sm:$0xf]
    %v2124 = vld [vmem:[#allocation3 + $0x594] sm:$0xff]
    %v2125 = vld [vmem:[#allocation3 + $0x59c] sm:$0xf]
    %v2126 = vld [vmem:[#allocation3 + $0x5a0] sm:$0xff]
    %v2127 = vld [vmem:[#allocation3 + $0x5a8] sm:$0xf]
    %v2128 = vld [vmem:[#allocation3 + $0x5ac] sm:$0xff]
    %v2129 = vld [vmem:[#allocation3 + $0x5b4] sm:$0xf]
    %v2130 = vld [vmem:[#allocation3 + $0x5b8] sm:$0xff]
    %v2131 = vld [vmem:[#allocation3 + $0x5c0] sm:$0xf]
    %v2132 = vld [vmem:[#allocation3 + $0x5c4] sm:$0xff]
    %v2133 = vld [vmem:[#allocation3 + $0x5cc] sm:$0xf]
    %v2134 = vld [vmem:[#allocation3 + $0x5d0] sm:$0xff]
    %v2135 = vld [vmem:[#allocation3 + $0x5d8] sm:$0xf]
    %v2136 = vld [vmem:[#allocation3 + $0x5dc] sm:$0xff]
    %v2137 = vld [vmem:[#allocation3 + $0x5e4] sm:$0xf]
    %v2138 = vld [vmem:[#allocation3 + $0x5e8] sm:$0xff]
    %v2139 = vld [vmem:[#allocation3 + $0x5f0] sm:$0xf]
    %v2140 = vld [vmem:[#allocation3 + $0x5f4] sm:$0xff]
    %v2141 = vld [vmem:[#allocation3 + $0x5fc] sm:$0xf]
    %v2142 = vld [vmem:[#allocation3 + $0x600] sm:$0xff]
    %v2143 = vld [vmem:[#allocation3 + $0x608] sm:$0xf]
    %v2144 = vld [vmem:[#allocation3 + $0x60c] sm:$0xff]
    %v2145 = vld [vmem:[#allocation3 + $0x614] sm:$0xf]
    %v2146 = vld [vmem:[#allocation3 + $0x618] sm:$0xff]
    %v2147 = vld [vmem:[#allocation3 + $0x620] sm:$0xf]
    %v2148 = vld [vmem:[#allocation3 + $0x624] sm:$0xff]
    %v2149 = vld [vmem:[#allocation3 + $0x62c] sm:$0xf]
    %v2150 = vld [vmem:[#allocation3 + $0x630] sm:$0xff]
    %v2151 = vld [vmem:[#allocation3 + $0x638] sm:$0xf]
    %v2152 = vld [vmem:[#allocation3 + $0x63c] sm:$0xff]
    %v2153 = vld [vmem:[#allocation3 + $0x644] sm:$0xf]
    %v2154 = vld [vmem:[#allocation3 + $0x648] sm:$0xff]
    %v2155 = vld [vmem:[#allocation3 + $0x650] sm:$0xf]
    %v2156 = vld [vmem:[#allocation3 + $0x654] sm:$0xff]
    %v2157 = vld [vmem:[#allocation3 + $0x65c] sm:$0xf]
    %v2158 = vld [vmem:[#allocation3 + $0x660] sm:$0xff]
    %v2159 = vld [vmem:[#allocation3 + $0x668] sm:$0xf]
    %v2160 = vld [vmem:[#allocation3 + $0x66c] sm:$0xff]
    %v2161 = vld [vmem:[#allocation3 + $0x674] sm:$0xf]
    %v2162 = vld [vmem:[#allocation3 + $0x678] sm:$0xff]
    %v2163 = vld [vmem:[#allocation3 + $0x680] sm:$0xf]
    %v2164 = vld [vmem:[#allocation3 + $0x684] sm:$0xff]
    %v2165 = vld [vmem:[#allocation3 + $0x68c] sm:$0xf]
    %v2166 = vld [vmem:[#allocation3 + $0x690] sm:$0xff]
    %v2167 = vld [vmem:[#allocation3 + $0x698] sm:$0xf]
    %v2168 = vld [vmem:[#allocation3 + $0x69c] sm:$0xff]
    %v2169 = vld [vmem:[#allocation3 + $0x6a4] sm:$0xf]
    %v2170 = vld [vmem:[#allocation3 + $0x6a8] sm:$0xff]
    %v2171 = vld [vmem:[#allocation3 + $0x6b0] sm:$0xf]
    %v2172 = vld [vmem:[#allocation3 + $0x6b4] sm:$0xff]
    %v2173 = vld [vmem:[#allocation3 + $0x6bc] sm:$0xf]
    %v2174 = vld [vmem:[#allocation3 + $0x6c0] sm:$0xff]
    %v2175 = vld [vmem:[#allocation3 + $0x6c8] sm:$0xf]
    %v2176 = vld [vmem:[#allocation3 + $0x6cc] sm:$0xff]
    %v2177 = vld [vmem:[#allocation3 + $0x6d4] sm:$0xf]
    %v2178 = vld [vmem:[#allocation3 + $0x6d8] sm:$0xff]
    %v2179 = vld [vmem:[#allocation3 + $0x6e0] sm:$0xf]
    %v2180 = vld [vmem:[#allocation3 + $0x6e4] sm:$0xff]
    %v2181 = vld [vmem:[#allocation3 + $0x6ec] sm:$0xf]
    %v2182 = vld [vmem:[#allocation3 + $0x6f0] sm:$0xff]
    %v2183 = vld [vmem:[#allocation3 + $0x6f8] sm:$0xf]
    %v2184 = vld [vmem:[#allocation3 + $0x6fc] sm:$0xff]
    %v2185 = vld [vmem:[#allocation3 + $0x704] sm:$0xf]
    %v2186 = vld [vmem:[#allocation3 + $0x708] sm:$0xff]
    %v2187 = vld [vmem:[#allocation3 + $0x710] sm:$0xf]
    %v2188 = vld [vmem:[#allocation3 + $0x714] sm:$0xff]
    %v2189 = vld [vmem:[#allocation3 + $0x71c] sm:$0xf]
    %v2190 = vld [vmem:[#allocation3 + $0x720] sm:$0xff]
    %v2191 = vld [vmem:[#allocation3 + $0x728] sm:$0xf]
    %v2192 = vld [vmem:[#allocation3 + $0x72c] sm:$0xff]
    %v2193 = vld [vmem:[#allocation3 + $0x734] sm:$0xf]
    %v2194 = vld [vmem:[#allocation3 + $0x738] sm:$0xff]
    %v2195 = vld [vmem:[#allocation3 + $0x740] sm:$0xf]
    %v2196 = vld [vmem:[#allocation3 + $0x744] sm:$0xff]
    %v2197 = vld [vmem:[#allocation3 + $0x74c] sm:$0xf]
    %v2198 = vld [vmem:[#allocation3 + $0x750] sm:$0xff]
    %v2199 = vld [vmem:[#allocation3 + $0x758] sm:$0xf]
    %v2200 = vld [vmem:[#allocation3 + $0x75c] sm:$0xff]
    %v2201 = vld [vmem:[#allocation3 + $0x764] sm:$0xf]
    %v2202 = vld [vmem:[#allocation3 + $0x768] sm:$0xff]
    %v2203 = vld [vmem:[#allocation3 + $0x770] sm:$0xf]
    %v2204 = vld [vmem:[#allocation3 + $0x774] sm:$0xff]
    %v2205 = vld [vmem:[#allocation3 + $0x77c] sm:$0xf]
    %v2206 = vld [vmem:[#allocation3 + $0x780] sm:$0xff]
    %v2207 = vld [vmem:[#allocation3 + $0x788] sm:$0xf]
    %v2208 = vld [vmem:[#allocation3 + $0x78c] sm:$0xff]
    %v2209 = vld [vmem:[#allocation3 + $0x794] sm:$0xf]
    %v2210 = vld [vmem:[#allocation3 + $0x798] sm:$0xff]
    %v2211 = vld [vmem:[#allocation3 + $0x7a0] sm:$0xf]
    %v2212 = vld [vmem:[#allocation3 + $0x7a4] sm:$0xff]
    %v2213 = vld [vmem:[#allocation3 + $0x7ac] sm:$0xf]
    %v2214 = vld [vmem:[#allocation3 + $0x7b0] sm:$0xff]
    %v2215 = vld [vmem:[#allocation3 + $0x7b8] sm:$0xf]
    %v2216 = vld [vmem:[#allocation3 + $0x7bc] sm:$0xff]
    %v2217 = vld [vmem:[#allocation3 + $0x7c4] sm:$0xf]
    %v2218 = vld [vmem:[#allocation3 + $0x7c8] sm:$0xff]
    %v2219 = vld [vmem:[#allocation3 + $0x7d0] sm:$0xf]
    %v2220 = vld [vmem:[#allocation3 + $0x7d4] sm:$0xff]
    %v2221 = vld [vmem:[#allocation3 + $0x7dc] sm:$0xf]
    %v2222 = vld [vmem:[#allocation3 + $0x7e0] sm:$0xff]
    %v2223 = vld [vmem:[#allocation3 + $0x7e8] sm:$0xf]
    %v2224 = vld [vmem:[#allocation3 + $0x7ec] sm:$0xff]
    %v2225 = vld [vmem:[#allocation3 + $0x7f4] sm:$0xf]
    %v2226 = vld [vmem:[#allocation3 + $0x7f8] sm:$0xff]
    %v2227 = vld [vmem:[#allocation3 + $0x800] sm:$0xf]
    %v2228 = vld [vmem:[#allocation3 + $0x804] sm:$0xff]
    %v2229 = vld [vmem:[#allocation3 + $0x80c] sm:$0xf]
    %v2230 = vld [vmem:[#allocation3 + $0x810] sm:$0xff]
    %v2231 = vld [vmem:[#allocation3 + $0x818] sm:$0xf]
    %v2232 = vld [vmem:[#allocation3 + $0x81c] sm:$0xff]
    %v2233 = vld [vmem:[#allocation3 + $0x824] sm:$0xf]
    %v2234 = vld [vmem:[#allocation3 + $0x828] sm:$0xff]
    %v2235 = vld [vmem:[#allocation3 + $0x830] sm:$0xf]
    %v2236 = vld [vmem:[#allocation3 + $0x834] sm:$0xff]
    %v2237 = vld [vmem:[#allocation3 + $0x83c] sm:$0xf]
    %v2238 = vld [vmem:[#allocation3 + $0x840] sm:$0xff]
    %v2239 = vld [vmem:[#allocation3 + $0x848] sm:$0xf]
    %v2240 = vld [vmem:[#allocation3 + $0x84c] sm:$0xff]
    %v2241 = vld [vmem:[#allocation3 + $0x854] sm:$0xf]
    %v2242 = vld [vmem:[#allocation3 + $0x858] sm:$0xff]
    %v2243 = vld [vmem:[#allocation3 + $0x860] sm:$0xf]
    %v2244 = vld [vmem:[#allocation3 + $0x864] sm:$0xff]
    %v2245 = vld [vmem:[#allocation3 + $0x86c] sm:$0xf]
    %v2246 = vld [vmem:[#allocation3 + $0x870] sm:$0xff]
    %v2247 = vld [vmem:[#allocation3 + $0x878] sm:$0xf]
    %v2248 = vld [vmem:[#allocation3 + $0x87c] sm:$0xff]
    %v2249 = vld [vmem:[#allocation3 + $0x884] sm:$0xf]
    %v2250 = vld [vmem:[#allocation3 + $0x888] sm:$0xff]
    %v2251 = vld [vmem:[#allocation3 + $0x890] sm:$0xf]
    %v2252 = vld [vmem:[#allocation3 + $0x894] sm:$0xff]
    %v2253 = vld [vmem:[#allocation3 + $0x89c] sm:$0xf]
    %v2254 = vld [vmem:[#allocation3 + $0x8a0] sm:$0xff]
    %v2255 = vld [vmem:[#allocation3 + $0x8a8] sm:$0xf]
    %v2256 = vld [vmem:[#allocation3 + $0x8ac] sm:$0xff]
    %v2257 = vld [vmem:[#allocation3 + $0x8b4] sm:$0xf]
    %v2258 = vld [vmem:[#allocation3 + $0x8b8] sm:$0xff]
    %v2259 = vld [vmem:[#allocation3 + $0x8c0] sm:$0xf]
    %v2260 = vld [vmem:[#allocation3 + $0x8c4] sm:$0xff]
    %v2261 = vld [vmem:[#allocation3 + $0x8cc] sm:$0xf]
    %v2262 = vld [vmem:[#allocation3 + $0x8d0] sm:$0xff]
    %v2263 = vld [vmem:[#allocation3 + $0x8d8] sm:$0xf]
    %v2264 = vld [vmem:[#allocation3 + $0x8dc] sm:$0xff]
    %v2265 = vld [vmem:[#allocation3 + $0x8e4] sm:$0xf]
    %v2266 = vld [vmem:[#allocation3 + $0x8e8] sm:$0xff]
    %v2267 = vld [vmem:[#allocation3 + $0x8f0] sm:$0xf]
    %v2268 = vld [vmem:[#allocation3 + $0x8f4] sm:$0xff]
    %v2269 = vld [vmem:[#allocation3 + $0x8fc] sm:$0xf]
    %v2270 = vld [vmem:[#allocation3 + $0x900] sm:$0xff]
    %v2271 = vld [vmem:[#allocation3 + $0x908] sm:$0xf]
    %v2272 = vld [vmem:[#allocation3 + $0x90c] sm:$0xff]
    %v2273 = vld [vmem:[#allocation3 + $0x914] sm:$0xf]
    %v2274 = vld [vmem:[#allocation3 + $0x918] sm:$0xff]
    %v2275 = vld [vmem:[#allocation3 + $0x920] sm:$0xf]
    %v2276 = vld [vmem:[#allocation3 + $0x924] sm:$0xff]
    %v2277 = vld [vmem:[#allocation3 + $0x92c] sm:$0xf]
    %v2278 = vld [vmem:[#allocation3 + $0x930] sm:$0xff]
    %v2279 = vld [vmem:[#allocation3 + $0x938] sm:$0xf]
    %v2280 = vld [vmem:[#allocation3 + $0x93c] sm:$0xff]
    %v2281 = vld [vmem:[#allocation3 + $0x944] sm:$0xf]
    %v2282 = vld [vmem:[#allocation3 + $0x948] sm:$0xff]
    %v2283 = vld [vmem:[#allocation3 + $0x950] sm:$0xf]
    %v2284 = vld [vmem:[#allocation3 + $0x954] sm:$0xff]
    %v2285 = vld [vmem:[#allocation3 + $0x95c] sm:$0xf]
    %v2286 = vld [vmem:[#allocation3 + $0x960] sm:$0xff]
    %v2287 = vld [vmem:[#allocation3 + $0x968] sm:$0xf]
    %v2288 = vld [vmem:[#allocation3 + $0x96c] sm:$0xff]
    %v2289 = vld [vmem:[#allocation3 + $0x974] sm:$0xf]
    %v2290 = vld [vmem:[#allocation3 + $0x978] sm:$0xff]
    %v2291 = vld [vmem:[#allocation3 + $0x980] sm:$0xf]
    %v2292 = vld [vmem:[#allocation3 + $0x984] sm:$0xff]
    %v2293 = vld [vmem:[#allocation3 + $0x98c] sm:$0xf]
    %v2294 = vld [vmem:[#allocation3 + $0x990] sm:$0xff]
    %v2295 = vld [vmem:[#allocation3 + $0x998] sm:$0xf]
    %v2296 = vld [vmem:[#allocation3 + $0x99c] sm:$0xff]
    %v2297 = vld [vmem:[#allocation3 + $0x9a4] sm:$0xf]
    %v2298 = vld [vmem:[#allocation3 + $0x9a8] sm:$0xff]
    %v2299 = vld [vmem:[#allocation3 + $0x9b0] sm:$0xf]
    %v2300 = vld [vmem:[#allocation3 + $0x9b4] sm:$0xff]
    %v2301 = vld [vmem:[#allocation3 + $0x9bc] sm:$0xf]
    %v2302 = vld [vmem:[#allocation3 + $0x9c0] sm:$0xff]
    %v2303 = vld [vmem:[#allocation3 + $0x9c8] sm:$0xf]
    %v2304 = vld [vmem:[#allocation3 + $0x9cc] sm:$0xff]
    %v2305 = vld [vmem:[#allocation3 + $0x9d4] sm:$0xf]
    %v2306 = vld [vmem:[#allocation3 + $0x9d8] sm:$0xff]
    %v2307 = vld [vmem:[#allocation3 + $0x9e0] sm:$0xf]
    %v2308 = vld [vmem:[#allocation3 + $0x9e4] sm:$0xff]
    %v2309 = vld [vmem:[#allocation3 + $0x9ec] sm:$0xf]
    %v2310 = vld [vmem:[#allocation3 + $0x9f0] sm:$0xff]
    %v2311 = vld [vmem:[#allocation3 + $0x9f8] sm:$0xf]
    %v2312 = vld [vmem:[#allocation3 + $0x9fc] sm:$0xff]
    %v2313 = vld [vmem:[#allocation3 + $0xa04] sm:$0xf]
    %v2314 = vld [vmem:[#allocation3 + $0xa08] sm:$0xff]
    %v2315 = vld [vmem:[#allocation3 + $0xa10] sm:$0xf]
    %v2316 = vld [vmem:[#allocation3 + $0xa14] sm:$0xff]
    %v2317 = vld [vmem:[#allocation3 + $0xa1c] sm:$0xf]
    %v2318 = vld [vmem:[#allocation3 + $0xa20] sm:$0xff]
    %v2319 = vld [vmem:[#allocation3 + $0xa28] sm:$0xf]
    %v2320 = vld [vmem:[#allocation3 + $0xa2c] sm:$0xff]
    %v2321 = vld [vmem:[#allocation3 + $0xa34] sm:$0xf]
    %v2322 = vld [vmem:[#allocation3 + $0xa38] sm:$0xff]
    %v2323 = vld [vmem:[#allocation3 + $0xa40] sm:$0xf]
    %v2324 = vld [vmem:[#allocation3 + $0xa44] sm:$0xff]
    %v2325 = vld [vmem:[#allocation3 + $0xa4c] sm:$0xf]
    %v2326 = vld [vmem:[#allocation3 + $0xa50] sm:$0xff]
    %v2327 = vld [vmem:[#allocation3 + $0xa58] sm:$0xf]
    %v2328 = vld [vmem:[#allocation3 + $0xa5c] sm:$0xff]
    %v2329 = vld [vmem:[#allocation3 + $0xa64] sm:$0xf]
    %v2330 = vld [vmem:[#allocation3 + $0xa68] sm:$0xff]
    %v2331 = vld [vmem:[#allocation3 + $0xa70] sm:$0xf]
    %v2332 = vld [vmem:[#allocation3 + $0xa74] sm:$0xff]
    %v2333 = vld [vmem:[#allocation3 + $0xa7c] sm:$0xf]
    %v2334 = vld [vmem:[#allocation3 + $0xa80] sm:$0xff]
    %v2335 = vld [vmem:[#allocation3 + $0xa88] sm:$0xf]
    %v2336 = vld [vmem:[#allocation3 + $0xa8c] sm:$0xff]
    %v2337 = vld [vmem:[#allocation3 + $0xa94] sm:$0xf]
    %v2338 = vld [vmem:[#allocation3 + $0xa98] sm:$0xff]
    %v2339 = vld [vmem:[#allocation3 + $0xaa0] sm:$0xf]
    %v2340 = vld [vmem:[#allocation3 + $0xaa4] sm:$0xff]
    %v2341 = vld [vmem:[#allocation3 + $0xaac] sm:$0xf]
    %v2342 = vld [vmem:[#allocation3 + $0xab0] sm:$0xff]
    %v2343 = vld [vmem:[#allocation3 + $0xab8] sm:$0xf]
    %v2344 = vld [vmem:[#allocation3 + $0xabc] sm:$0xff]
    %v2345 = vld [vmem:[#allocation3 + $0xac4] sm:$0xf]
    %v2346 = vld [vmem:[#allocation3 + $0xac8] sm:$0xff]
    %v2347 = vld [vmem:[#allocation3 + $0xad0] sm:$0xf]
    %v2348 = vld [vmem:[#allocation3 + $0xad4] sm:$0xff]
    %v2349 = vld [vmem:[#allocation3 + $0xadc] sm:$0xf]
    %v2350 = vld [vmem:[#allocation3 + $0xae0] sm:$0xff]
    %v2351 = vld [vmem:[#allocation3 + $0xae8] sm:$0xf]
    %v2352 = vld [vmem:[#allocation3 + $0xaec] sm:$0xff]
    %v2353 = vld [vmem:[#allocation3 + $0xaf4] sm:$0xf]
    %v2354 = vld [vmem:[#allocation3 + $0xaf8] sm:$0xff]
    %v2355 = vld [vmem:[#allocation3 + $0xb00] sm:$0xf]
    %v2356 = vld [vmem:[#allocation3 + $0xb04] sm:$0xff]
    %v2357 = vld [vmem:[#allocation3 + $0xb0c] sm:$0xf]
    %v2358 = vld [vmem:[#allocation3 + $0xb10] sm:$0xff]
    %v2359 = vld [vmem:[#allocation3 + $0xb18] sm:$0xf]
    %v2360 = vld [vmem:[#allocation3 + $0xb1c] sm:$0xff]
    %v2361 = vld [vmem:[#allocation3 + $0xb24] sm:$0xf]
    %v2362 = vld [vmem:[#allocation3 + $0xb28] sm:$0xff]
    %v2363 = vld [vmem:[#allocation3 + $0xb30] sm:$0xf]
    %v2364 = vld [vmem:[#allocation3 + $0xb34] sm:$0xff]
    %v2365 = vld [vmem:[#allocation3 + $0xb3c] sm:$0xf]
    %v2366 = vld [vmem:[#allocation3 + $0xb40] sm:$0xff]
    %v2367 = vld [vmem:[#allocation3 + $0xb48] sm:$0xf]
    %v2368 = vld [vmem:[#allocation3 + $0xb4c] sm:$0xff]
    %v2369 = vld [vmem:[#allocation3 + $0xb54] sm:$0xf]
    %v2370 = vld [vmem:[#allocation3 + $0xb58] sm:$0xff]
    %v2371 = vld [vmem:[#allocation3 + $0xb60] sm:$0xf]
    %v2372 = vld [vmem:[#allocation3 + $0xb64] sm:$0xff]
    %v2373 = vld [vmem:[#allocation3 + $0xb6c] sm:$0xf]
    %v2374 = vld [vmem:[#allocation3 + $0xb70] sm:$0xff]
    %v2375 = vld [vmem:[#allocation3 + $0xb78] sm:$0xf]
    %v2376 = vld [vmem:[#allocation3 + $0xb7c] sm:$0xff]
    %v2377 = vld [vmem:[#allocation3 + $0xb84] sm:$0xf]
    %v2378 = vld [vmem:[#allocation3 + $0xb88] sm:$0xff]
    %v2379 = vld [vmem:[#allocation3 + $0xb90] sm:$0xf]
    %v2380 = vld [vmem:[#allocation3 + $0xb94] sm:$0xff]
    %v2381 = vld [vmem:[#allocation3 + $0xb9c] sm:$0xf]
    %v2382 = vld [vmem:[#allocation3 + $0xba0] sm:$0xff]
    %v2383 = vld [vmem:[#allocation3 + $0xba8] sm:$0xf]
    %v2384 = vld [vmem:[#allocation3 + $0xbac] sm:$0xff]
    %v2385 = vld [vmem:[#allocation3 + $0xbb4] sm:$0xf]
    %v2386 = vld [vmem:[#allocation3 + $0xbb8] sm:$0xff]
    %v2387 = vld [vmem:[#allocation3 + $0xbc0] sm:$0xf]
    %v2388 = vld [vmem:[#allocation3 + $0xbc4] sm:$0xff]
    %v2389 = vld [vmem:[#allocation3 + $0xbcc] sm:$0xf]
    %v2390 = vld [vmem:[#allocation3 + $0xbd0] sm:$0xff]
    %v2391 = vld [vmem:[#allocation3 + $0xbd8] sm:$0xf]
    %v2392 = vld [vmem:[#allocation3 + $0xbdc] sm:$0xff]
    %v2393 = vld [vmem:[#allocation3 + $0xbe4] sm:$0xf]
    %v2394 = vld [vmem:[#allocation3 + $0xbe8] sm:$0xff]
    %v2395 = vld [vmem:[#allocation3 + $0xbf0] sm:$0xf]
    %v2396 = vld [vmem:[#allocation3 + $0xbf4] sm:$0xff]
    %v2397 = vld [vmem:[#allocation3 + $0xbfc] sm:$0xf]
    %v2398 = vld [vmem:[%s27] sm:$0x7]
    %v2400 = vperm.slane %v2398, 0
    %v2401 = vperm.slane %v2398, 1
    %v2402 = vperm.slane %v2398, 2
    %v2918 = vunpack.c.l.b16 %v1886
    %v2919 = vunpack.c.h.b16 %v1886
    %v2920 = vunpack.c.l.b16 %v1887
    %v2921 = vunpack.c.l.b16 %v1888
    %v2922 = vunpack.c.h.b16 %v1888
    %v2923 = vunpack.c.l.b16 %v1889
    %v2924 = vunpack.c.l.b16 %v1890
    %v2925 = vunpack.c.h.b16 %v1890
    %v2926 = vunpack.c.l.b16 %v1891
    %v2927 = vunpack.c.l.b16 %v1892
    %v2928 = vunpack.c.h.b16 %v1892
    %v2929 = vunpack.c.l.b16 %v1893
    %v2930 = vunpack.c.l.b16 %v1894
    %v2931 = vunpack.c.h.b16 %v1894
    %v2932 = vunpack.c.l.b16 %v1895
    %v2933 = vunpack.c.l.b16 %v1896
    %v2934 = vunpack.c.h.b16 %v1896
    %v2935 = vunpack.c.l.b16 %v1897
    %v2936 = vunpack.c.l.b16 %v1898
    %v2937 = vunpack.c.h.b16 %v1898
    %v2938 = vunpack.c.l.b16 %v1899
    %v2939 = vunpack.c.l.b16 %v1900
    %v2940 = vunpack.c.h.b16 %v1900
    %v2941 = vunpack.c.l.b16 %v1901
    %v2942 = vunpack.c.l.b16 %v1902
    %v2943 = vunpack.c.h.b16 %v1902
    %v2944 = vunpack.c.l.b16 %v1903
    %v2945 = vunpack.c.l.b16 %v1904
    %v2946 = vunpack.c.h.b16 %v1904
    %v2947 = vunpack.c.l.b16 %v1905
    %v2948 = vunpack.c.l.b16 %v1906
    %v2949 = vunpack.c.h.b16 %v1906
    %v2950 = vunpack.c.l.b16 %v1907
    %v2951 = vunpack.c.l.b16 %v1908
    %v2952 = vunpack.c.h.b16 %v1908
    %v2953 = vunpack.c.l.b16 %v1909
    %v2954 = vunpack.c.l.b16 %v1910
    %v2955 = vunpack.c.h.b16 %v1910
    %v2956 = vunpack.c.l.b16 %v1911
    %v2957 = vunpack.c.l.b16 %v1912
    %v2958 = vunpack.c.h.b16 %v1912
    %v2959 = vunpack.c.l.b16 %v1913
    %v2960 = vunpack.c.l.b16 %v1914
    %v2961 = vunpack.c.h.b16 %v1914
    %v2962 = vunpack.c.l.b16 %v1915
    %v2963 = vunpack.c.l.b16 %v1916
    %v2964 = vunpack.c.h.b16 %v1916
    %v2965 = vunpack.c.l.b16 %v1917
    %v2966 = vunpack.c.l.b16 %v1918
    %v2967 = vunpack.c.h.b16 %v1918
    %v2968 = vunpack.c.l.b16 %v1919
    %v2969 = vunpack.c.l.b16 %v1920
    %v2970 = vunpack.c.h.b16 %v1920
    %v2971 = vunpack.c.l.b16 %v1921
    %v2972 = vunpack.c.l.b16 %v1922
    %v2973 = vunpack.c.h.b16 %v1922
    %v2974 = vunpack.c.l.b16 %v1923
    %v2975 = vunpack.c.l.b16 %v1924
    %v2976 = vunpack.c.h.b16 %v1924
    %v2977 = vunpack.c.l.b16 %v1925
    %v2978 = vunpack.c.l.b16 %v1926
    %v2979 = vunpack.c.h.b16 %v1926
    %v2980 = vunpack.c.l.b16 %v1927
    %v2981 = vunpack.c.l.b16 %v1928
    %v2982 = vunpack.c.h.b16 %v1928
    %v2983 = vunpack.c.l.b16 %v1929
    %v2984 = vunpack.c.l.b16 %v1930
    %v2985 = vunpack.c.h.b16 %v1930
    %v2986 = vunpack.c.l.b16 %v1931
    %v2987 = vunpack.c.l.b16 %v1932
    %v2988 = vunpack.c.h.b16 %v1932
    %v2989 = vunpack.c.l.b16 %v1933
    %v2990 = vunpack.c.l.b16 %v1934
    %v2991 = vunpack.c.h.b16 %v1934
    %v2992 = vunpack.c.l.b16 %v1935
    %v2993 = vunpack.c.l.b16 %v1936
    %v2994 = vunpack.c.h.b16 %v1936
    %v2995 = vunpack.c.l.b16 %v1937
    %v2996 = vunpack.c.l.b16 %v1938
    %v2997 = vunpack.c.h.b16 %v1938
    %v2998 = vunpack.c.l.b16 %v1939
    %v2999 = vunpack.c.l.b16 %v1940
    %v3000 = vunpack.c.h.b16 %v1940
    %v3001 = vunpack.c.l.b16 %v1941
    %v3002 = vunpack.c.l.b16 %v1942
    %v3003 = vunpack.c.h.b16 %v1942
    %v3004 = vunpack.c.l.b16 %v1943
    %v3005 = vunpack.c.l.b16 %v1944
    %v3006 = vunpack.c.h.b16 %v1944
    %v3007 = vunpack.c.l.b16 %v1945
    %v3008 = vunpack.c.l.b16 %v1946
    %v3009 = vunpack.c.h.b16 %v1946
    %v3010 = vunpack.c.l.b16 %v1947
    %v3011 = vunpack.c.l.b16 %v1948
    %v3012 = vunpack.c.h.b16 %v1948
    %v3013 = vunpack.c.l.b16 %v1949
    %v3014 = vunpack.c.l.b16 %v1950
    %v3015 = vunpack.c.h.b16 %v1950
    %v3016 = vunpack.c.l.b16 %v1951
    %v3017 = vunpack.c.l.b16 %v1952
    %v3018 = vunpack.c.h.b16 %v1952
    %v3019 = vunpack.c.l.b16 %v1953
    %v3020 = vunpack.c.l.b16 %v1954
    %v3021 = vunpack.c.h.b16 %v1954
    %v3022 = vunpack.c.l.b16 %v1955
    %v3023 = vunpack.c.l.b16 %v1956
    %v3024 = vunpack.c.h.b16 %v1956
    %v3025 = vunpack.c.l.b16 %v1957
    %v3026 = vunpack.c.l.b16 %v1958
    %v3027 = vunpack.c.h.b16 %v1958
    %v3028 = vunpack.c.l.b16 %v1959
    %v3029 = vunpack.c.l.b16 %v1960
    %v3030 = vunpack.c.h.b16 %v1960
    %v3031 = vunpack.c.l.b16 %v1961
    %v3032 = vunpack.c.l.b16 %v1962
    %v3033 = vunpack.c.h.b16 %v1962
    %v3034 = vunpack.c.l.b16 %v1963
    %v3035 = vunpack.c.l.b16 %v1964
    %v3036 = vunpack.c.h.b16 %v1964
    %v3037 = vunpack.c.l.b16 %v1965
    %v3038 = vunpack.c.l.b16 %v1966
    %v3039 = vunpack.c.h.b16 %v1966
    %v3040 = vunpack.c.l.b16 %v1967
    %v3041 = vunpack.c.l.b16 %v1968
    %v3042 = vunpack.c.h.b16 %v1968
    %v3043 = vunpack.c.l.b16 %v1969
    %v3044 = vunpack.c.l.b16 %v1970
    %v3045 = vunpack.c.h.b16 %v1970
    %v3046 = vunpack.c.l.b16 %v1971
    %v3047 = vunpack.c.l.b16 %v1972
    %v3048 = vunpack.c.h.b16 %v1972
    %v3049 = vunpack.c.l.b16 %v1973
    %v3050 = vunpack.c.l.b16 %v1974
    %v3051 = vunpack.c.h.b16 %v1974
    %v3052 = vunpack.c.l.b16 %v1975
    %v3053 = vunpack.c.l.b16 %v1976
    %v3054 = vunpack.c.h.b16 %v1976
    %v3055 = vunpack.c.l.b16 %v1977
    %v3056 = vunpack.c.l.b16 %v1978
    %v3057 = vunpack.c.h.b16 %v1978
    %v3058 = vunpack.c.l.b16 %v1979
    %v3059 = vunpack.c.l.b16 %v1980
    %v3060 = vunpack.c.h.b16 %v1980
    %v3061 = vunpack.c.l.b16 %v1981
    %v3062 = vunpack.c.l.b16 %v1982
    %v3063 = vunpack.c.h.b16 %v1982
    %v3064 = vunpack.c.l.b16 %v1983
    %v3065 = vunpack.c.l.b16 %v1984
    %v3066 = vunpack.c.h.b16 %v1984
    %v3067 = vunpack.c.l.b16 %v1985
    %v3068 = vunpack.c.l.b16 %v1986
    %v3069 = vunpack.c.h.b16 %v1986
    %v3070 = vunpack.c.l.b16 %v1987
    %v3071 = vunpack.c.l.b16 %v1988
    %v3072 = vunpack.c.h.b16 %v1988
    %v3073 = vunpack.c.l.b16 %v1989
    %v3074 = vunpack.c.l.b16 %v1990
    %v3075 = vunpack.c.h.b16 %v1990
    %v3076 = vunpack.c.l.b16 %v1991
    %v3077 = vunpack.c.l.b16 %v1992
    %v3078 = vunpack.c.h.b16 %v1992
    %v3079 = vunpack.c.l.b16 %v1993
    %v3080 = vunpack.c.l.b16 %v1994
    %v3081 = vunpack.c.h.b16 %v1994
    %v3082 = vunpack.c.l.b16 %v1995
    %v3083 = vunpack.c.l.b16 %v1996
    %v3084 = vunpack.c.h.b16 %v1996
    %v3085 = vunpack.c.l.b16 %v1997
    %v3086 = vunpack.c.l.b16 %v1998
    %v3087 = vunpack.c.h.b16 %v1998
    %v3088 = vunpack.c.l.b16 %v1999
    %v3089 = vunpack.c.l.b16 %v2000
    %v3090 = vunpack.c.h.b16 %v2000
    %v3091 = vunpack.c.l.b16 %v2001
    %v3092 = vunpack.c.l.b16 %v2002
    %v3093 = vunpack.c.h.b16 %v2002
    %v3094 = vunpack.c.l.b16 %v2003
    %v3095 = vunpack.c.l.b16 %v2004
    %v3096 = vunpack.c.h.b16 %v2004
    %v3097 = vunpack.c.l.b16 %v2005
    %v3098 = vunpack.c.l.b16 %v2006
    %v3099 = vunpack.c.h.b16 %v2006
    %v3100 = vunpack.c.l.b16 %v2007
    %v3101 = vunpack.c.l.b16 %v2008
    %v3102 = vunpack.c.h.b16 %v2008
    %v3103 = vunpack.c.l.b16 %v2009
    %v3104 = vunpack.c.l.b16 %v2010
    %v3105 = vunpack.c.h.b16 %v2010
    %v3106 = vunpack.c.l.b16 %v2011
    %v3107 = vunpack.c.l.b16 %v2012
    %v3108 = vunpack.c.h.b16 %v2012
    %v3109 = vunpack.c.l.b16 %v2013
    %v3110 = vunpack.c.l.b16 %v2014
    %v3111 = vunpack.c.h.b16 %v2014
    %v3112 = vunpack.c.l.b16 %v2015
    %v3113 = vunpack.c.l.b16 %v2016
    %v3114 = vunpack.c.h.b16 %v2016
    %v3115 = vunpack.c.l.b16 %v2017
    %v3116 = vunpack.c.l.b16 %v2018
    %v3117 = vunpack.c.h.b16 %v2018
    %v3118 = vunpack.c.l.b16 %v2019
    %v3119 = vunpack.c.l.b16 %v2020
    %v3120 = vunpack.c.h.b16 %v2020
    %v3121 = vunpack.c.l.b16 %v2021
    %v3122 = vunpack.c.l.b16 %v2022
    %v3123 = vunpack.c.h.b16 %v2022
    %v3124 = vunpack.c.l.b16 %v2023
    %v3125 = vunpack.c.l.b16 %v2024
    %v3126 = vunpack.c.h.b16 %v2024
    %v3127 = vunpack.c.l.b16 %v2025
    %v3128 = vunpack.c.l.b16 %v2026
    %v3129 = vunpack.c.h.b16 %v2026
    %v3130 = vunpack.c.l.b16 %v2027
    %v3131 = vunpack.c.l.b16 %v2028
    %v3132 = vunpack.c.h.b16 %v2028
    %v3133 = vunpack.c.l.b16 %v2029
    %v3134 = vunpack.c.l.b16 %v2030
    %v3135 = vunpack.c.h.b16 %v2030
    %v3136 = vunpack.c.l.b16 %v2031
    %v3137 = vunpack.c.l.b16 %v2032
    %v3138 = vunpack.c.h.b16 %v2032
    %v3139 = vunpack.c.l.b16 %v2033
    %v3140 = vunpack.c.l.b16 %v2034
    %v3141 = vunpack.c.h.b16 %v2034
    %v3142 = vunpack.c.l.b16 %v2035
    %v3143 = vunpack.c.l.b16 %v2036
    %v3144 = vunpack.c.h.b16 %v2036
    %v3145 = vunpack.c.l.b16 %v2037
    %v3146 = vunpack.c.l.b16 %v2038
    %v3147 = vunpack.c.h.b16 %v2038
    %v3148 = vunpack.c.l.b16 %v2039
    %v3149 = vunpack.c.l.b16 %v2040
    %v3150 = vunpack.c.h.b16 %v2040
    %v3151 = vunpack.c.l.b16 %v2041
    %v3152 = vunpack.c.l.b16 %v2042
    %v3153 = vunpack.c.h.b16 %v2042
    %v3154 = vunpack.c.l.b16 %v2043
    %v3155 = vunpack.c.l.b16 %v2044
    %v3156 = vunpack.c.h.b16 %v2044
    %v3157 = vunpack.c.l.b16 %v2045
    %v3158 = vunpack.c.l.b16 %v2046
    %v3159 = vunpack.c.h.b16 %v2046
    %v3160 = vunpack.c.l.b16 %v2047
    %v3161 = vunpack.c.l.b16 %v2048
    %v3162 = vunpack.c.h.b16 %v2048
    %v3163 = vunpack.c.l.b16 %v2049
    %v3164 = vunpack.c.l.b16 %v2050
    %v3165 = vunpack.c.h.b16 %v2050
    %v3166 = vunpack.c.l.b16 %v2051
    %v3167 = vunpack.c.l.b16 %v2052
    %v3168 = vunpack.c.h.b16 %v2052
    %v3169 = vunpack.c.l.b16 %v2053
    %v3170 = vunpack.c.l.b16 %v2054
    %v3171 = vunpack.c.h.b16 %v2054
    %v3172 = vunpack.c.l.b16 %v2055
    %v3173 = vunpack.c.l.b16 %v2056
    %v3174 = vunpack.c.h.b16 %v2056
    %v3175 = vunpack.c.l.b16 %v2057
    %v3176 = vunpack.c.l.b16 %v2058
    %v3177 = vunpack.c.h.b16 %v2058
    %v3178 = vunpack.c.l.b16 %v2059
    %v3179 = vunpack.c.l.b16 %v2060
    %v3180 = vunpack.c.h.b16 %v2060
    %v3181 = vunpack.c.l.b16 %v2061
    %v3182 = vunpack.c.l.b16 %v2062
    %v3183 = vunpack.c.h.b16 %v2062
    %v3184 = vunpack.c.l.b16 %v2063
    %v3185 = vunpack.c.l.b16 %v2064
    %v3186 = vunpack.c.h.b16 %v2064
    %v3187 = vunpack.c.l.b16 %v2065
    %v3188 = vunpack.c.l.b16 %v2066
    %v3189 = vunpack.c.h.b16 %v2066
    %v3190 = vunpack.c.l.b16 %v2067
    %v3191 = vunpack.c.l.b16 %v2068
    %v3192 = vunpack.c.h.b16 %v2068
    %v3193 = vunpack.c.l.b16 %v2069
    %v3194 = vunpack.c.l.b16 %v2070
    %v3195 = vunpack.c.h.b16 %v2070
    %v3196 = vunpack.c.l.b16 %v2071
    %v3197 = vunpack.c.l.b16 %v2072
    %v3198 = vunpack.c.h.b16 %v2072
    %v3199 = vunpack.c.l.b16 %v2073
    %v3200 = vunpack.c.l.b16 %v2074
    %v3201 = vunpack.c.h.b16 %v2074
    %v3202 = vunpack.c.l.b16 %v2075
    %v3203 = vunpack.c.l.b16 %v2076
    %v3204 = vunpack.c.h.b16 %v2076
    %v3205 = vunpack.c.l.b16 %v2077
    %v3206 = vunpack.c.l.b16 %v2078
    %v3207 = vunpack.c.h.b16 %v2078
    %v3208 = vunpack.c.l.b16 %v2079
    %v3209 = vunpack.c.l.b16 %v2080
    %v3210 = vunpack.c.h.b16 %v2080
    %v3211 = vunpack.c.l.b16 %v2081
    %v3212 = vunpack.c.l.b16 %v2082
    %v3213 = vunpack.c.h.b16 %v2082
    %v3214 = vunpack.c.l.b16 %v2083
    %v3215 = vunpack.c.l.b16 %v2084
    %v3216 = vunpack.c.h.b16 %v2084
    %v3217 = vunpack.c.l.b16 %v2085
    %v3218 = vunpack.c.l.b16 %v2086
    %v3219 = vunpack.c.h.b16 %v2086
    %v3220 = vunpack.c.l.b16 %v2087
    %v3221 = vunpack.c.l.b16 %v2088
    %v3222 = vunpack.c.h.b16 %v2088
    %v3223 = vunpack.c.l.b16 %v2089
    %v3224 = vunpack.c.l.b16 %v2090
    %v3225 = vunpack.c.h.b16 %v2090
    %v3226 = vunpack.c.l.b16 %v2091
    %v3227 = vunpack.c.l.b16 %v2092
    %v3228 = vunpack.c.h.b16 %v2092
    %v3229 = vunpack.c.l.b16 %v2093
    %v3230 = vunpack.c.l.b16 %v2094
    %v3231 = vunpack.c.h.b16 %v2094
    %v3232 = vunpack.c.l.b16 %v2095
    %v3233 = vunpack.c.l.b16 %v2096
    %v3234 = vunpack.c.h.b16 %v2096
    %v3235 = vunpack.c.l.b16 %v2097
    %v3236 = vunpack.c.l.b16 %v2098
    %v3237 = vunpack.c.h.b16 %v2098
    %v3238 = vunpack.c.l.b16 %v2099
    %v3239 = vunpack.c.l.b16 %v2100
    %v3240 = vunpack.c.h.b16 %v2100
    %v3241 = vunpack.c.l.b16 %v2101
    %v3242 = vunpack.c.l.b16 %v2102
    %v3243 = vunpack.c.h.b16 %v2102
    %v3244 = vunpack.c.l.b16 %v2103
    %v3245 = vunpack.c.l.b16 %v2104
    %v3246 = vunpack.c.h.b16 %v2104
    %v3247 = vunpack.c.l.b16 %v2105
    %v3248 = vunpack.c.l.b16 %v2106
    %v3249 = vunpack.c.h.b16 %v2106
    %v3250 = vunpack.c.l.b16 %v2107
    %v3251 = vunpack.c.l.b16 %v2108
    %v3252 = vunpack.c.h.b16 %v2108
    %v3253 = vunpack.c.l.b16 %v2109
    %v3254 = vunpack.c.l.b16 %v2110
    %v3255 = vunpack.c.h.b16 %v2110
    %v3256 = vunpack.c.l.b16 %v2111
    %v3257 = vunpack.c.l.b16 %v2112
    %v3258 = vunpack.c.h.b16 %v2112
    %v3259 = vunpack.c.l.b16 %v2113
    %v3260 = vunpack.c.l.b16 %v2114
    %v3261 = vunpack.c.h.b16 %v2114
    %v3262 = vunpack.c.l.b16 %v2115
    %v3263 = vunpack.c.l.b16 %v2116
    %v3264 = vunpack.c.h.b16 %v2116
    %v3265 = vunpack.c.l.b16 %v2117
    %v3266 = vunpack.c.l.b16 %v2118
    %v3267 = vunpack.c.h.b16 %v2118
    %v3268 = vunpack.c.l.b16 %v2119
    %v3269 = vunpack.c.l.b16 %v2120
    %v3270 = vunpack.c.h.b16 %v2120
    %v3271 = vunpack.c.l.b16 %v2121
    %v3272 = vunpack.c.l.b16 %v2122
    %v3273 = vunpack.c.h.b16 %v2122
    %v3274 = vunpack.c.l.b16 %v2123
    %v3275 = vunpack.c.l.b16 %v2124
    %v3276 = vunpack.c.h.b16 %v2124
    %v3277 = vunpack.c.l.b16 %v2125
    %v3278 = vunpack.c.l.b16 %v2126
    %v3279 = vunpack.c.h.b16 %v2126
    %v3280 = vunpack.c.l.b16 %v2127
    %v3281 = vunpack.c.l.b16 %v2128
    %v3282 = vunpack.c.h.b16 %v2128
    %v3283 = vunpack.c.l.b16 %v2129
    %v3284 = vunpack.c.l.b16 %v2130
    %v3285 = vunpack.c.h.b16 %v2130
    %v3286 = vunpack.c.l.b16 %v2131
    %v3287 = vunpack.c.l.b16 %v2132
    %v3288 = vunpack.c.h.b16 %v2132
    %v3289 = vunpack.c.l.b16 %v2133
    %v3290 = vunpack.c.l.b16 %v2134
    %v3291 = vunpack.c.h.b16 %v2134
    %v3292 = vunpack.c.l.b16 %v2135
    %v3293 = vunpack.c.l.b16 %v2136
    %v3294 = vunpack.c.h.b16 %v2136
    %v3295 = vunpack.c.l.b16 %v2137
    %v3296 = vunpack.c.l.b16 %v2138
    %v3297 = vunpack.c.h.b16 %v2138
    %v3298 = vunpack.c.l.b16 %v2139
    %v3299 = vunpack.c.l.b16 %v2140
    %v3300 = vunpack.c.h.b16 %v2140
    %v3301 = vunpack.c.l.b16 %v2141
    %v3302 = vunpack.c.l.b16 %v2142
    %v3303 = vunpack.c.h.b16 %v2142
    %v3304 = vunpack.c.l.b16 %v2143
    %v3305 = vunpack.c.l.b16 %v2144
    %v3306 = vunpack.c.h.b16 %v2144
    %v3307 = vunpack.c.l.b16 %v2145
    %v3308 = vunpack.c.l.b16 %v2146
    %v3309 = vunpack.c.h.b16 %v2146
    %v3310 = vunpack.c.l.b16 %v2147
    %v3311 = vunpack.c.l.b16 %v2148
    %v3312 = vunpack.c.h.b16 %v2148
    %v3313 = vunpack.c.l.b16 %v2149
    %v3314 = vunpack.c.l.b16 %v2150
    %v3315 = vunpack.c.h.b16 %v2150
    %v3316 = vunpack.c.l.b16 %v2151
    %v3317 = vunpack.c.l.b16 %v2152
    %v3318 = vunpack.c.h.b16 %v2152
    %v3319 = vunpack.c.l.b16 %v2153
    %v3320 = vunpack.c.l.b16 %v2154
    %v3321 = vunpack.c.h.b16 %v2154
    %v3322 = vunpack.c.l.b16 %v2155
    %v3323 = vunpack.c.l.b16 %v2156
    %v3324 = vunpack.c.h.b16 %v2156
    %v3325 = vunpack.c.l.b16 %v2157
    %v3326 = vunpack.c.l.b16 %v2158
    %v3327 = vunpack.c.h.b16 %v2158
    %v3328 = vunpack.c.l.b16 %v2159
    %v3329 = vunpack.c.l.b16 %v2160
    %v3330 = vunpack.c.h.b16 %v2160
    %v3331 = vunpack.c.l.b16 %v2161
    %v3332 = vunpack.c.l.b16 %v2162
    %v3333 = vunpack.c.h.b16 %v2162
    %v3334 = vunpack.c.l.b16 %v2163
    %v3335 = vunpack.c.l.b16 %v2164
    %v3336 = vunpack.c.h.b16 %v2164
    %v3337 = vunpack.c.l.b16 %v2165
    %v3338 = vunpack.c.l.b16 %v2166
    %v3339 = vunpack.c.h.b16 %v2166
    %v3340 = vunpack.c.l.b16 %v2167
    %v3341 = vunpack.c.l.b16 %v2168
    %v3342 = vunpack.c.h.b16 %v2168
    %v3343 = vunpack.c.l.b16 %v2169
    %v3344 = vunpack.c.l.b16 %v2170
    %v3345 = vunpack.c.h.b16 %v2170
    %v3346 = vunpack.c.l.b16 %v2171
    %v3347 = vunpack.c.l.b16 %v2172
    %v3348 = vunpack.c.h.b16 %v2172
    %v3349 = vunpack.c.l.b16 %v2173
    %v3350 = vunpack.c.l.b16 %v2174
    %v3351 = vunpack.c.h.b16 %v2174
    %v3352 = vunpack.c.l.b16 %v2175
    %v3353 = vunpack.c.l.b16 %v2176
    %v3354 = vunpack.c.h.b16 %v2176
    %v3355 = vunpack.c.l.b16 %v2177
    %v3356 = vunpack.c.l.b16 %v2178
    %v3357 = vunpack.c.h.b16 %v2178
    %v3358 = vunpack.c.l.b16 %v2179
    %v3359 = vunpack.c.l.b16 %v2180
    %v3360 = vunpack.c.h.b16 %v2180
    %v3361 = vunpack.c.l.b16 %v2181
    %v3362 = vunpack.c.l.b16 %v2182
    %v3363 = vunpack.c.h.b16 %v2182
    %v3364 = vunpack.c.l.b16 %v2183
    %v3365 = vunpack.c.l.b16 %v2184
    %v3366 = vunpack.c.h.b16 %v2184
    %v3367 = vunpack.c.l.b16 %v2185
    %v3368 = vunpack.c.l.b16 %v2186
    %v3369 = vunpack.c.h.b16 %v2186
    %v3370 = vunpack.c.l.b16 %v2187
    %v3371 = vunpack.c.l.b16 %v2188
    %v3372 = vunpack.c.h.b16 %v2188
    %v3373 = vunpack.c.l.b16 %v2189
    %v3374 = vunpack.c.l.b16 %v2190
    %v3375 = vunpack.c.h.b16 %v2190
    %v3376 = vunpack.c.l.b16 %v2191
    %v3377 = vunpack.c.l.b16 %v2192
    %v3378 = vunpack.c.h.b16 %v2192
    %v3379 = vunpack.c.l.b16 %v2193
    %v3380 = vunpack.c.l.b16 %v2194
    %v3381 = vunpack.c.h.b16 %v2194
    %v3382 = vunpack.c.l.b16 %v2195
    %v3383 = vunpack.c.l.b16 %v2196
    %v3384 = vunpack.c.h.b16 %v2196
    %v3385 = vunpack.c.l.b16 %v2197
    %v3386 = vunpack.c.l.b16 %v2198
    %v3387 = vunpack.c.h.b16 %v2198
    %v3388 = vunpack.c.l.b16 %v2199
    %v3389 = vunpack.c.l.b16 %v2200
    %v3390 = vunpack.c.h.b16 %v2200
    %v3391 = vunpack.c.l.b16 %v2201
    %v3392 = vunpack.c.l.b16 %v2202
    %v3393 = vunpack.c.h.b16 %v2202
    %v3394 = vunpack.c.l.b16 %v2203
    %v3395 = vunpack.c.l.b16 %v2204
    %v3396 = vunpack.c.h.b16 %v2204
    %v3397 = vunpack.c.l.b16 %v2205
    %v3398 = vunpack.c.l.b16 %v2206
    %v3399 = vunpack.c.h.b16 %v2206
    %v3400 = vunpack.c.l.b16 %v2207
    %v3401 = vunpack.c.l.b16 %v2208
    %v3402 = vunpack.c.h.b16 %v2208
    %v3403 = vunpack.c.l.b16 %v2209
    %v3404 = vunpack.c.l.b16 %v2210
    %v3405 = vunpack.c.h.b16 %v2210
    %v3406 = vunpack.c.l.b16 %v2211
    %v3407 = vunpack.c.l.b16 %v2212
    %v3408 = vunpack.c.h.b16 %v2212
    %v3409 = vunpack.c.l.b16 %v2213
    %v3410 = vunpack.c.l.b16 %v2214
    %v3411 = vunpack.c.h.b16 %v2214
    %v3412 = vunpack.c.l.b16 %v2215
    %v3413 = vunpack.c.l.b16 %v2216
    %v3414 = vunpack.c.h.b16 %v2216
    %v3415 = vunpack.c.l.b16 %v2217
    %v3416 = vunpack.c.l.b16 %v2218
    %v3417 = vunpack.c.h.b16 %v2218
    %v3418 = vunpack.c.l.b16 %v2219
    %v3419 = vunpack.c.l.b16 %v2220
    %v3420 = vunpack.c.h.b16 %v2220
    %v3421 = vunpack.c.l.b16 %v2221
    %v3422 = vunpack.c.l.b16 %v2222
    %v3423 = vunpack.c.h.b16 %v2222
    %v3424 = vunpack.c.l.b16 %v2223
    %v3425 = vunpack.c.l.b16 %v2224
    %v3426 = vunpack.c.h.b16 %v2224
    %v3427 = vunpack.c.l.b16 %v2225
    %v3428 = vunpack.c.l.b16 %v2226
    %v3429 = vunpack.c.h.b16 %v2226
    %v3430 = vunpack.c.l.b16 %v2227
    %v3431 = vunpack.c.l.b16 %v2228
    %v3432 = vunpack.c.h.b16 %v2228
    %v3433 = vunpack.c.l.b16 %v2229
    %v3434 = vunpack.c.l.b16 %v2230
    %v3435 = vunpack.c.h.b16 %v2230
    %v3436 = vunpack.c.l.b16 %v2231
    %v3437 = vunpack.c.l.b16 %v2232
    %v3438 = vunpack.c.h.b16 %v2232
    %v3439 = vunpack.c.l.b16 %v2233
    %v3440 = vunpack.c.l.b16 %v2234
    %v3441 = vunpack.c.h.b16 %v2234
    %v3442 = vunpack.c.l.b16 %v2235
    %v3443 = vunpack.c.l.b16 %v2236
    %v3444 = vunpack.c.h.b16 %v2236
    %v3445 = vunpack.c.l.b16 %v2237
    %v3446 = vunpack.c.l.b16 %v2238
    %v3447 = vunpack.c.h.b16 %v2238
    %v3448 = vunpack.c.l.b16 %v2239
    %v3449 = vunpack.c.l.b16 %v2240
    %v3450 = vunpack.c.h.b16 %v2240
    %v3451 = vunpack.c.l.b16 %v2241
    %v3452 = vunpack.c.l.b16 %v2242
    %v3453 = vunpack.c.h.b16 %v2242
    %v3454 = vunpack.c.l.b16 %v2243
    %v3455 = vunpack.c.l.b16 %v2244
    %v3456 = vunpack.c.h.b16 %v2244
    %v3457 = vunpack.c.l.b16 %v2245
    %v3458 = vunpack.c.l.b16 %v2246
    %v3459 = vunpack.c.h.b16 %v2246
    %v3460 = vunpack.c.l.b16 %v2247
    %v3461 = vunpack.c.l.b16 %v2248
    %v3462 = vunpack.c.h.b16 %v2248
    %v3463 = vunpack.c.l.b16 %v2249
    %v3464 = vunpack.c.l.b16 %v2250
    %v3465 = vunpack.c.h.b16 %v2250
    %v3466 = vunpack.c.l.b16 %v2251
    %v3467 = vunpack.c.l.b16 %v2252
    %v3468 = vunpack.c.h.b16 %v2252
    %v3469 = vunpack.c.l.b16 %v2253
    %v3470 = vunpack.c.l.b16 %v2254
    %v3471 = vunpack.c.h.b16 %v2254
    %v3472 = vunpack.c.l.b16 %v2255
    %v3473 = vunpack.c.l.b16 %v2256
    %v3474 = vunpack.c.h.b16 %v2256
    %v3475 = vunpack.c.l.b16 %v2257
    %v3476 = vunpack.c.l.b16 %v2258
    %v3477 = vunpack.c.h.b16 %v2258
    %v3478 = vunpack.c.l.b16 %v2259
    %v3479 = vunpack.c.l.b16 %v2260
    %v3480 = vunpack.c.h.b16 %v2260
    %v3481 = vunpack.c.l.b16 %v2261
    %v3482 = vunpack.c.l.b16 %v2262
    %v3483 = vunpack.c.h.b16 %v2262
    %v3484 = vunpack.c.l.b16 %v2263
    %v3485 = vunpack.c.l.b16 %v2264
    %v3486 = vunpack.c.h.b16 %v2264
    %v3487 = vunpack.c.l.b16 %v2265
    %v3488 = vunpack.c.l.b16 %v2266
    %v3489 = vunpack.c.h.b16 %v2266
    %v3490 = vunpack.c.l.b16 %v2267
    %v3491 = vunpack.c.l.b16 %v2268
    %v3492 = vunpack.c.h.b16 %v2268
    %v3493 = vunpack.c.l.b16 %v2269
    %v3494 = vunpack.c.l.b16 %v2270
    %v3495 = vunpack.c.h.b16 %v2270
    %v3496 = vunpack.c.l.b16 %v2271
    %v3497 = vunpack.c.l.b16 %v2272
    %v3498 = vunpack.c.h.b16 %v2272
    %v3499 = vunpack.c.l.b16 %v2273
    %v3500 = vunpack.c.l.b16 %v2274
    %v3501 = vunpack.c.h.b16 %v2274
    %v3502 = vunpack.c.l.b16 %v2275
    %v3503 = vunpack.c.l.b16 %v2276
    %v3504 = vunpack.c.h.b16 %v2276
    %v3505 = vunpack.c.l.b16 %v2277
    %v3506 = vunpack.c.l.b16 %v2278
    %v3507 = vunpack.c.h.b16 %v2278
    %v3508 = vunpack.c.l.b16 %v2279
    %v3509 = vunpack.c.l.b16 %v2280
    %v3510 = vunpack.c.h.b16 %v2280
    %v3511 = vunpack.c.l.b16 %v2281
    %v3512 = vunpack.c.l.b16 %v2282
    %v3513 = vunpack.c.h.b16 %v2282
    %v3514 = vunpack.c.l.b16 %v2283
    %v3515 = vunpack.c.l.b16 %v2284
    %v3516 = vunpack.c.h.b16 %v2284
    %v3517 = vunpack.c.l.b16 %v2285
    %v3518 = vunpack.c.l.b16 %v2286
    %v3519 = vunpack.c.h.b16 %v2286
    %v3520 = vunpack.c.l.b16 %v2287
    %v3521 = vunpack.c.l.b16 %v2288
    %v3522 = vunpack.c.h.b16 %v2288
    %v3523 = vunpack.c.l.b16 %v2289
    %v3524 = vunpack.c.l.b16 %v2290
    %v3525 = vunpack.c.h.b16 %v2290
    %v3526 = vunpack.c.l.b16 %v2291
    %v3527 = vunpack.c.l.b16 %v2292
    %v3528 = vunpack.c.h.b16 %v2292
    %v3529 = vunpack.c.l.b16 %v2293
    %v3530 = vunpack.c.l.b16 %v2294
    %v3531 = vunpack.c.h.b16 %v2294
    %v3532 = vunpack.c.l.b16 %v2295
    %v3533 = vunpack.c.l.b16 %v2296
    %v3534 = vunpack.c.h.b16 %v2296
    %v3535 = vunpack.c.l.b16 %v2297
    %v3536 = vunpack.c.l.b16 %v2298
    %v3537 = vunpack.c.h.b16 %v2298
    %v3538 = vunpack.c.l.b16 %v2299
    %v3539 = vunpack.c.l.b16 %v2300
    %v3540 = vunpack.c.h.b16 %v2300
    %v3541 = vunpack.c.l.b16 %v2301
    %v3542 = vunpack.c.l.b16 %v2302
    %v3543 = vunpack.c.h.b16 %v2302
    %v3544 = vunpack.c.l.b16 %v2303
    %v3545 = vunpack.c.l.b16 %v2304
    %v3546 = vunpack.c.h.b16 %v2304
    %v3547 = vunpack.c.l.b16 %v2305
    %v3548 = vunpack.c.l.b16 %v2306
    %v3549 = vunpack.c.h.b16 %v2306
    %v3550 = vunpack.c.l.b16 %v2307
    %v3551 = vunpack.c.l.b16 %v2308
    %v3552 = vunpack.c.h.b16 %v2308
    %v3553 = vunpack.c.l.b16 %v2309
    %v3554 = vunpack.c.l.b16 %v2310
    %v3555 = vunpack.c.h.b16 %v2310
    %v3556 = vunpack.c.l.b16 %v2311
    %v3557 = vunpack.c.l.b16 %v2312
    %v3558 = vunpack.c.h.b16 %v2312
    %v3559 = vunpack.c.l.b16 %v2313
    %v3560 = vunpack.c.l.b16 %v2314
    %v3561 = vunpack.c.h.b16 %v2314
    %v3562 = vunpack.c.l.b16 %v2315
    %v3563 = vunpack.c.l.b16 %v2316
    %v3564 = vunpack.c.h.b16 %v2316
    %v3565 = vunpack.c.l.b16 %v2317
    %v3566 = vunpack.c.l.b16 %v2318
    %v3567 = vunpack.c.h.b16 %v2318
    %v3568 = vunpack.c.l.b16 %v2319
    %v3569 = vunpack.c.l.b16 %v2320
    %v3570 = vunpack.c.h.b16 %v2320
    %v3571 = vunpack.c.l.b16 %v2321
    %v3572 = vunpack.c.l.b16 %v2322
    %v3573 = vunpack.c.h.b16 %v2322
    %v3574 = vunpack.c.l.b16 %v2323
    %v3575 = vunpack.c.l.b16 %v2324
    %v3576 = vunpack.c.h.b16 %v2324
    %v3577 = vunpack.c.l.b16 %v2325
    %v3578 = vunpack.c.l.b16 %v2326
    %v3579 = vunpack.c.h.b16 %v2326
    %v3580 = vunpack.c.l.b16 %v2327
    %v3581 = vunpack.c.l.b16 %v2328
    %v3582 = vunpack.c.h.b16 %v2328
    %v3583 = vunpack.c.l.b16 %v2329
    %v3584 = vunpack.c.l.b16 %v2330
    %v3585 = vunpack.c.h.b16 %v2330
    %v3586 = vunpack.c.l.b16 %v2331
    %v3587 = vunpack.c.l.b16 %v2332
    %v3588 = vunpack.c.h.b16 %v2332
    %v3589 = vunpack.c.l.b16 %v2333
    %v3590 = vunpack.c.l.b16 %v2334
    %v3591 = vunpack.c.h.b16 %v2334
    %v3592 = vunpack.c.l.b16 %v2335
    %v3593 = vunpack.c.l.b16 %v2336
    %v3594 = vunpack.c.h.b16 %v2336
    %v3595 = vunpack.c.l.b16 %v2337
    %v3596 = vunpack.c.l.b16 %v2338
    %v3597 = vunpack.c.h.b16 %v2338
    %v3598 = vunpack.c.l.b16 %v2339
    %v3599 = vunpack.c.l.b16 %v2340
    %v3600 = vunpack.c.h.b16 %v2340
    %v3601 = vunpack.c.l.b16 %v2341
    %v3602 = vunpack.c.l.b16 %v2342
    %v3603 = vunpack.c.h.b16 %v2342
    %v3604 = vunpack.c.l.b16 %v2343
    %v3605 = vunpack.c.l.b16 %v2344
    %v3606 = vunpack.c.h.b16 %v2344
    %v3607 = vunpack.c.l.b16 %v2345
    %v3608 = vunpack.c.l.b16 %v2346
    %v3609 = vunpack.c.h.b16 %v2346
    %v3610 = vunpack.c.l.b16 %v2347
    %v3611 = vunpack.c.l.b16 %v2348
    %v3612 = vunpack.c.h.b16 %v2348
    %v3613 = vunpack.c.l.b16 %v2349
    %v3614 = vunpack.c.l.b16 %v2350
    %v3615 = vunpack.c.h.b16 %v2350
    %v3616 = vunpack.c.l.b16 %v2351
    %v3617 = vunpack.c.l.b16 %v2352
    %v3618 = vunpack.c.h.b16 %v2352
    %v3619 = vunpack.c.l.b16 %v2353
    %v3620 = vunpack.c.l.b16 %v2354
    %v3621 = vunpack.c.h.b16 %v2354
    %v3622 = vunpack.c.l.b16 %v2355
    %v3623 = vunpack.c.l.b16 %v2356
    %v3624 = vunpack.c.h.b16 %v2356
    %v3625 = vunpack.c.l.b16 %v2357
    %v3626 = vunpack.c.l.b16 %v2358
    %v3627 = vunpack.c.h.b16 %v2358
    %v3628 = vunpack.c.l.b16 %v2359
    %v3629 = vunpack.c.l.b16 %v2360
    %v3630 = vunpack.c.h.b16 %v2360
    %v3631 = vunpack.c.l.b16 %v2361
    %v3632 = vunpack.c.l.b16 %v2362
    %v3633 = vunpack.c.h.b16 %v2362
    %v3634 = vunpack.c.l.b16 %v2363
    %v3635 = vunpack.c.l.b16 %v2364
    %v3636 = vunpack.c.h.b16 %v2364
    %v3637 = vunpack.c.l.b16 %v2365
    %v3638 = vunpack.c.l.b16 %v2366
    %v3639 = vunpack.c.h.b16 %v2366
    %v3640 = vunpack.c.l.b16 %v2367
    %v3641 = vunpack.c.l.b16 %v2368
    %v3642 = vunpack.c.h.b16 %v2368
    %v3643 = vunpack.c.l.b16 %v2369
    %v3644 = vunpack.c.l.b16 %v2370
    %v3645 = vunpack.c.h.b16 %v2370
    %v3646 = vunpack.c.l.b16 %v2371
    %v3647 = vunpack.c.l.b16 %v2372
    %v3648 = vunpack.c.h.b16 %v2372
    %v3649 = vunpack.c.l.b16 %v2373
    %v3650 = vunpack.c.l.b16 %v2374
    %v3651 = vunpack.c.h.b16 %v2374
    %v3652 = vunpack.c.l.b16 %v2375
    %v3653 = vunpack.c.l.b16 %v2376
    %v3654 = vunpack.c.h.b16 %v2376
    %v3655 = vunpack.c.l.b16 %v2377
    %v3656 = vunpack.c.l.b16 %v2378
    %v3657 = vunpack.c.h.b16 %v2378
    %v3658 = vunpack.c.l.b16 %v2379
    %v3659 = vunpack.c.l.b16 %v2380
    %v3660 = vunpack.c.h.b16 %v2380
    %v3661 = vunpack.c.l.b16 %v2381
    %v3662 = vunpack.c.l.b16 %v2382
    %v3663 = vunpack.c.h.b16 %v2382
    %v3664 = vunpack.c.l.b16 %v2383
    %v3665 = vunpack.c.l.b16 %v2384
    %v3666 = vunpack.c.h.b16 %v2384
    %v3667 = vunpack.c.l.b16 %v2385
    %v3668 = vunpack.c.l.b16 %v2386
    %v3669 = vunpack.c.h.b16 %v2386
    %v3670 = vunpack.c.l.b16 %v2387
    %v3671 = vunpack.c.l.b16 %v2388
    %v3672 = vunpack.c.h.b16 %v2388
    %v3673 = vunpack.c.l.b16 %v2389
    %v3674 = vunpack.c.l.b16 %v2390
    %v3675 = vunpack.c.h.b16 %v2390
    %v3676 = vunpack.c.l.b16 %v2391
    %v3677 = vunpack.c.l.b16 %v2392
    %v3678 = vunpack.c.h.b16 %v2392
    %v3679 = vunpack.c.l.b16 %v2393
    %v3680 = vunpack.c.l.b16 %v2394
    %v3681 = vunpack.c.h.b16 %v2394
    %v3682 = vunpack.c.l.b16 %v2395
    %v3683 = vunpack.c.l.b16 %v2396
    %v3684 = vunpack.c.h.b16 %v2396
    %v3685 = vunpack.c.l.b16 %v2397
    %v3686 = vpack.c.b16 %v2921, %v2918
    %v3687 = vpack.c.b16 %v2922, %v2919
    %v3688 = vpack.c.b16 %v2923, %v2920
    %v3689 = vpack.c.b16 %v2927, %v2924
    %v3690 = vpack.c.b16 %v2928, %v2925
    %v3691 = vpack.c.b16 %v2929, %v2926
    %v3692 = vpack.c.b16 %v2933, %v2930
    %v3693 = vpack.c.b16 %v2934, %v2931
    %v3694 = vpack.c.b16 %v2935, %v2932
    %v3695 = vpack.c.b16 %v2939, %v2936
    %v3696 = vpack.c.b16 %v2940, %v2937
    %v3697 = vpack.c.b16 %v2941, %v2938
    %v3698 = vpack.c.b16 %v2945, %v2942
    %v3699 = vpack.c.b16 %v2946, %v2943
    %v3700 = vpack.c.b16 %v2947, %v2944
    %v3701 = vpack.c.b16 %v2951, %v2948
    %v3702 = vpack.c.b16 %v2952, %v2949
    %v3703 = vpack.c.b16 %v2953, %v2950
    %v3704 = vpack.c.b16 %v2957, %v2954
    %v3705 = vpack.c.b16 %v2958, %v2955
    %v3706 = vpack.c.b16 %v2959, %v2956
    %v3707 = vpack.c.b16 %v2963, %v2960
    %v3708 = vpack.c.b16 %v2964, %v2961
    %v3709 = vpack.c.b16 %v2965, %v2962
    %v3710 = vpack.c.b16 %v2969, %v2966
    %v3711 = vpack.c.b16 %v2970, %v2967
    %v3712 = vpack.c.b16 %v2971, %v2968
    %v3713 = vpack.c.b16 %v2975, %v2972
    %v3714 = vpack.c.b16 %v2976, %v2973
    %v3715 = vpack.c.b16 %v2977, %v2974
    %v3716 = vpack.c.b16 %v2981, %v2978
    %v3717 = vpack.c.b16 %v2982, %v2979
    %v3718 = vpack.c.b16 %v2983, %v2980
    %v3719 = vpack.c.b16 %v2987, %v2984
    %v3720 = vpack.c.b16 %v2988, %v2985
    %v3721 = vpack.c.b16 %v2989, %v2986
    %v3722 = vpack.c.b16 %v2993, %v2990
    %v3723 = vpack.c.b16 %v2994, %v2991
    %v3724 = vpack.c.b16 %v2995, %v2992
    %v3725 = vpack.c.b16 %v2999, %v2996
    %v3726 = vpack.c.b16 %v3000, %v2997
    %v3727 = vpack.c.b16 %v3001, %v2998
    %v3728 = vpack.c.b16 %v3005, %v3002
    %v3729 = vpack.c.b16 %v3006, %v3003
    %v3730 = vpack.c.b16 %v3007, %v3004
    %v3731 = vpack.c.b16 %v3011, %v3008
    %v3732 = vpack.c.b16 %v3012, %v3009
    %v3733 = vpack.c.b16 %v3013, %v3010
    %v3734 = vpack.c.b16 %v3017, %v3014
    %v3735 = vpack.c.b16 %v3018, %v3015
    %v3736 = vpack.c.b16 %v3019, %v3016
    %v3737 = vpack.c.b16 %v3023, %v3020
    %v3738 = vpack.c.b16 %v3024, %v3021
    %v3739 = vpack.c.b16 %v3025, %v3022
    %v3740 = vpack.c.b16 %v3029, %v3026
    %v3741 = vpack.c.b16 %v3030, %v3027
    %v3742 = vpack.c.b16 %v3031, %v3028
    %v3743 = vpack.c.b16 %v3035, %v3032
    %v3744 = vpack.c.b16 %v3036, %v3033
    %v3745 = vpack.c.b16 %v3037, %v3034
    %v3746 = vpack.c.b16 %v3041, %v3038
    %v3747 = vpack.c.b16 %v3042, %v3039
    %v3748 = vpack.c.b16 %v3043, %v3040
    %v3749 = vpack.c.b16 %v3047, %v3044
    %v3750 = vpack.c.b16 %v3048, %v3045
    %v3751 = vpack.c.b16 %v3049, %v3046
    %v3752 = vpack.c.b16 %v3053, %v3050
    %v3753 = vpack.c.b16 %v3054, %v3051
    %v3754 = vpack.c.b16 %v3055, %v3052
    %v3755 = vpack.c.b16 %v3059, %v3056
    %v3756 = vpack.c.b16 %v3060, %v3057
    %v3757 = vpack.c.b16 %v3061, %v3058
    %v3758 = vpack.c.b16 %v3065, %v3062
    %v3759 = vpack.c.b16 %v3066, %v3063
    %v3760 = vpack.c.b16 %v3067, %v3064
    %v3761 = vpack.c.b16 %v3071, %v3068
    %v3762 = vpack.c.b16 %v3072, %v3069
    %v3763 = vpack.c.b16 %v3073, %v3070
    %v3764 = vpack.c.b16 %v3077, %v3074
    %v3765 = vpack.c.b16 %v3078, %v3075
    %v3766 = vpack.c.b16 %v3079, %v3076
    %v3767 = vpack.c.b16 %v3083, %v3080
    %v3768 = vpack.c.b16 %v3084, %v3081
    %v3769 = vpack.c.b16 %v3085, %v3082
    %v3770 = vpack.c.b16 %v3089, %v3086
    %v3771 = vpack.c.b16 %v3090, %v3087
    %v3772 = vpack.c.b16 %v3091, %v3088
    %v3773 = vpack.c.b16 %v3095, %v3092
    %v3774 = vpack.c.b16 %v3096, %v3093
    %v3775 = vpack.c.b16 %v3097, %v3094
    %v3776 = vpack.c.b16 %v3101, %v3098
    %v3777 = vpack.c.b16 %v3102, %v3099
    %v3778 = vpack.c.b16 %v3103, %v3100
    %v3779 = vpack.c.b16 %v3107, %v3104
    %v3780 = vpack.c.b16 %v3108, %v3105
    %v3781 = vpack.c.b16 %v3109, %v3106
    %v3782 = vpack.c.b16 %v3113, %v3110
    %v3783 = vpack.c.b16 %v3114, %v3111
    %v3784 = vpack.c.b16 %v3115, %v3112
    %v3785 = vpack.c.b16 %v3119, %v3116
    %v3786 = vpack.c.b16 %v3120, %v3117
    %v3787 = vpack.c.b16 %v3121, %v3118
    %v3788 = vpack.c.b16 %v3125, %v3122
    %v3789 = vpack.c.b16 %v3126, %v3123
    %v3790 = vpack.c.b16 %v3127, %v3124
    %v3791 = vpack.c.b16 %v3131, %v3128
    %v3792 = vpack.c.b16 %v3132, %v3129
    %v3793 = vpack.c.b16 %v3133, %v3130
    %v3794 = vpack.c.b16 %v3137, %v3134
    %v3795 = vpack.c.b16 %v3138, %v3135
    %v3796 = vpack.c.b16 %v3139, %v3136
    %v3797 = vpack.c.b16 %v3143, %v3140
    %v3798 = vpack.c.b16 %v3144, %v3141
    %v3799 = vpack.c.b16 %v3145, %v3142
    %v3800 = vpack.c.b16 %v3149, %v3146
    %v3801 = vpack.c.b16 %v3150, %v3147
    %v3802 = vpack.c.b16 %v3151, %v3148
    %v3803 = vpack.c.b16 %v3155, %v3152
    %v3804 = vpack.c.b16 %v3156, %v3153
    %v3805 = vpack.c.b16 %v3157, %v3154
    %v3806 = vpack.c.b16 %v3161, %v3158
    %v3807 = vpack.c.b16 %v3162, %v3159
    %v3808 = vpack.c.b16 %v3163, %v3160
    %v3809 = vpack.c.b16 %v3167, %v3164
    %v3810 = vpack.c.b16 %v3168, %v3165
    %v3811 = vpack.c.b16 %v3169, %v3166
    %v3812 = vpack.c.b16 %v3173, %v3170
    %v3813 = vpack.c.b16 %v3174, %v3171
    %v3814 = vpack.c.b16 %v3175, %v3172
    %v3815 = vpack.c.b16 %v3179, %v3176
    %v3816 = vpack.c.b16 %v3180, %v3177
    %v3817 = vpack.c.b16 %v3181, %v3178
    %v3818 = vpack.c.b16 %v3185, %v3182
    %v3819 = vpack.c.b16 %v3186, %v3183
    %v3820 = vpack.c.b16 %v3187, %v3184
    %v3821 = vpack.c.b16 %v3191, %v3188
    %v3822 = vpack.c.b16 %v3192, %v3189
    %v3823 = vpack.c.b16 %v3193, %v3190
    %v3824 = vpack.c.b16 %v3197, %v3194
    %v3825 = vpack.c.b16 %v3198, %v3195
    %v3826 = vpack.c.b16 %v3199, %v3196
    %v3827 = vpack.c.b16 %v3203, %v3200
    %v3828 = vpack.c.b16 %v3204, %v3201
    %v3829 = vpack.c.b16 %v3205, %v3202
    %v3830 = vpack.c.b16 %v3209, %v3206
    %v3831 = vpack.c.b16 %v3210, %v3207
    %v3832 = vpack.c.b16 %v3211, %v3208
    %v3833 = vpack.c.b16 %v3215, %v3212
    %v3834 = vpack.c.b16 %v3216, %v3213
    %v3835 = vpack.c.b16 %v3217, %v3214
    %v3836 = vpack.c.b16 %v3221, %v3218
    %v3837 = vpack.c.b16 %v3222, %v3219
    %v3838 = vpack.c.b16 %v3223, %v3220
    %v3839 = vpack.c.b16 %v3227, %v3224
    %v3840 = vpack.c.b16 %v3228, %v3225
    %v3841 = vpack.c.b16 %v3229, %v3226
    %v3842 = vpack.c.b16 %v3233, %v3230
    %v3843 = vpack.c.b16 %v3234, %v3231
    %v3844 = vpack.c.b16 %v3235, %v3232
    %v3845 = vpack.c.b16 %v3239, %v3236
    %v3846 = vpack.c.b16 %v3240, %v3237
    %v3847 = vpack.c.b16 %v3241, %v3238
    %v3848 = vpack.c.b16 %v3245, %v3242
    %v3849 = vpack.c.b16 %v3246, %v3243
    %v3850 = vpack.c.b16 %v3247, %v3244
    %v3851 = vpack.c.b16 %v3251, %v3248
    %v3852 = vpack.c.b16 %v3252, %v3249
    %v3853 = vpack.c.b16 %v3253, %v3250
    %v3854 = vpack.c.b16 %v3257, %v3254
    %v3855 = vpack.c.b16 %v3258, %v3255
    %v3856 = vpack.c.b16 %v3259, %v3256
    %v3857 = vpack.c.b16 %v3263, %v3260
    %v3858 = vpack.c.b16 %v3264, %v3261
    %v3859 = vpack.c.b16 %v3265, %v3262
    %v3860 = vpack.c.b16 %v3269, %v3266
    %v3861 = vpack.c.b16 %v3270, %v3267
    %v3862 = vpack.c.b16 %v3271, %v3268
    %v3863 = vpack.c.b16 %v3275, %v3272
    %v3864 = vpack.c.b16 %v3276, %v3273
    %v3865 = vpack.c.b16 %v3277, %v3274
    %v3866 = vpack.c.b16 %v3281, %v3278
    %v3867 = vpack.c.b16 %v3282, %v3279
    %v3868 = vpack.c.b16 %v3283, %v3280
    %v3869 = vpack.c.b16 %v3287, %v3284
    %v3870 = vpack.c.b16 %v3288, %v3285
    %v3871 = vpack.c.b16 %v3289, %v3286
    %v3872 = vpack.c.b16 %v3293, %v3290
    %v3873 = vpack.c.b16 %v3294, %v3291
    %v3874 = vpack.c.b16 %v3295, %v3292
    %v3875 = vpack.c.b16 %v3299, %v3296
    %v3876 = vpack.c.b16 %v3300, %v3297
    %v3877 = vpack.c.b16 %v3301, %v3298
    %v3878 = vpack.c.b16 %v3305, %v3302
    %v3879 = vpack.c.b16 %v3306, %v3303
    %v3880 = vpack.c.b16 %v3307, %v3304
    %v3881 = vpack.c.b16 %v3311, %v3308
    %v3882 = vpack.c.b16 %v3312, %v3309
    %v3883 = vpack.c.b16 %v3313, %v3310
    %v3884 = vpack.c.b16 %v3317, %v3314
    %v3885 = vpack.c.b16 %v3318, %v3315
    %v3886 = vpack.c.b16 %v3319, %v3316
    %v3887 = vpack.c.b16 %v3323, %v3320
    %v3888 = vpack.c.b16 %v3324, %v3321
    %v3889 = vpack.c.b16 %v3325, %v3322
    %v3890 = vpack.c.b16 %v3329, %v3326
    %v3891 = vpack.c.b16 %v3330, %v3327
    %v3892 = vpack.c.b16 %v3331, %v3328
    %v3893 = vpack.c.b16 %v3335, %v3332
    %v3894 = vpack.c.b16 %v3336, %v3333
    %v3895 = vpack.c.b16 %v3337, %v3334
    %v3896 = vpack.c.b16 %v3341, %v3338
    %v3897 = vpack.c.b16 %v3342, %v3339
    %v3898 = vpack.c.b16 %v3343, %v3340
    %v3899 = vpack.c.b16 %v3347, %v3344
    %v3900 = vpack.c.b16 %v3348, %v3345
    %v3901 = vpack.c.b16 %v3349, %v3346
    %v3902 = vpack.c.b16 %v3353, %v3350
    %v3903 = vpack.c.b16 %v3354, %v3351
    %v3904 = vpack.c.b16 %v3355, %v3352
    %v3905 = vpack.c.b16 %v3359, %v3356
    %v3906 = vpack.c.b16 %v3360, %v3357
    %v3907 = vpack.c.b16 %v3361, %v3358
    %v3908 = vpack.c.b16 %v3365, %v3362
    %v3909 = vpack.c.b16 %v3366, %v3363
    %v3910 = vpack.c.b16 %v3367, %v3364
    %v3911 = vpack.c.b16 %v3371, %v3368
    %v3912 = vpack.c.b16 %v3372, %v3369
    %v3913 = vpack.c.b16 %v3373, %v3370
    %v3914 = vpack.c.b16 %v3377, %v3374
    %v3915 = vpack.c.b16 %v3378, %v3375
    %v3916 = vpack.c.b16 %v3379, %v3376
    %v3917 = vpack.c.b16 %v3383, %v3380
    %v3918 = vpack.c.b16 %v3384, %v3381
    %v3919 = vpack.c.b16 %v3385, %v3382
    %v3920 = vpack.c.b16 %v3389, %v3386
    %v3921 = vpack.c.b16 %v3390, %v3387
    %v3922 = vpack.c.b16 %v3391, %v3388
    %v3923 = vpack.c.b16 %v3395, %v3392
    %v3924 = vpack.c.b16 %v3396, %v3393
    %v3925 = vpack.c.b16 %v3397, %v3394
    %v3926 = vpack.c.b16 %v3401, %v3398
    %v3927 = vpack.c.b16 %v3402, %v3399
    %v3928 = vpack.c.b16 %v3403, %v3400
    %v3929 = vpack.c.b16 %v3407, %v3404
    %v3930 = vpack.c.b16 %v3408, %v3405
    %v3931 = vpack.c.b16 %v3409, %v3406
    %v3932 = vpack.c.b16 %v3413, %v3410
    %v3933 = vpack.c.b16 %v3414, %v3411
    %v3934 = vpack.c.b16 %v3415, %v3412
    %v3935 = vpack.c.b16 %v3419, %v3416
    %v3936 = vpack.c.b16 %v3420, %v3417
    %v3937 = vpack.c.b16 %v3421, %v3418
    %v3938 = vpack.c.b16 %v3425, %v3422
    %v3939 = vpack.c.b16 %v3426, %v3423
    %v3940 = vpack.c.b16 %v3427, %v3424
    %v3941 = vpack.c.b16 %v3431, %v3428
    %v3942 = vpack.c.b16 %v3432, %v3429
    %v3943 = vpack.c.b16 %v3433, %v3430
    %v3944 = vpack.c.b16 %v3437, %v3434
    %v3945 = vpack.c.b16 %v3438, %v3435
    %v3946 = vpack.c.b16 %v3439, %v3436
    %v3947 = vpack.c.b16 %v3443, %v3440
    %v3948 = vpack.c.b16 %v3444, %v3441
    %v3949 = vpack.c.b16 %v3445, %v3442
    %v3950 = vpack.c.b16 %v3449, %v3446
    %v3951 = vpack.c.b16 %v3450, %v3447
    %v3952 = vpack.c.b16 %v3451, %v3448
    %v3953 = vpack.c.b16 %v3455, %v3452
    %v3954 = vpack.c.b16 %v3456, %v3453
    %v3955 = vpack.c.b16 %v3457, %v3454
    %v3956 = vpack.c.b16 %v3461, %v3458
    %v3957 = vpack.c.b16 %v3462, %v3459
    %v3958 = vpack.c.b16 %v3463, %v3460
    %v3959 = vpack.c.b16 %v3467, %v3464
    %v3960 = vpack.c.b16 %v3468, %v3465
    %v3961 = vpack.c.b16 %v3469, %v3466
    %v3962 = vpack.c.b16 %v3473, %v3470
    %v3963 = vpack.c.b16 %v3474, %v3471
    %v3964 = vpack.c.b16 %v3475, %v3472
    %v3965 = vpack.c.b16 %v3479, %v3476
    %v3966 = vpack.c.b16 %v3480, %v3477
    %v3967 = vpack.c.b16 %v3481, %v3478
    %v3968 = vpack.c.b16 %v3485, %v3482
    %v3969 = vpack.c.b16 %v3486, %v3483
    %v3970 = vpack.c.b16 %v3487, %v3484
    %v3971 = vpack.c.b16 %v3491, %v3488
    %v3972 = vpack.c.b16 %v3492, %v3489
    %v3973 = vpack.c.b16 %v3493, %v3490
    %v3974 = vpack.c.b16 %v3497, %v3494
    %v3975 = vpack.c.b16 %v3498, %v3495
    %v3976 = vpack.c.b16 %v3499, %v3496
    %v3977 = vpack.c.b16 %v3503, %v3500
    %v3978 = vpack.c.b16 %v3504, %v3501
    %v3979 = vpack.c.b16 %v3505, %v3502
    %v3980 = vpack.c.b16 %v3509, %v3506
    %v3981 = vpack.c.b16 %v3510, %v3507
    %v3982 = vpack.c.b16 %v3511, %v3508
    %v3983 = vpack.c.b16 %v3515, %v3512
    %v3984 = vpack.c.b16 %v3516, %v3513
    %v3985 = vpack.c.b16 %v3517, %v3514
    %v3986 = vpack.c.b16 %v3521, %v3518
    %v3987 = vpack.c.b16 %v3522, %v3519
    %v3988 = vpack.c.b16 %v3523, %v3520
    %v3989 = vpack.c.b16 %v3527, %v3524
    %v3990 = vpack.c.b16 %v3528, %v3525
    %v3991 = vpack.c.b16 %v3529, %v3526
    %v3992 = vpack.c.b16 %v3533, %v3530
    %v3993 = vpack.c.b16 %v3534, %v3531
    %v3994 = vpack.c.b16 %v3535, %v3532
    %v3995 = vpack.c.b16 %v3539, %v3536
    %v3996 = vpack.c.b16 %v3540, %v3537
    %v3997 = vpack.c.b16 %v3541, %v3538
    %v3998 = vpack.c.b16 %v3545, %v3542
    %v3999 = vpack.c.b16 %v3546, %v3543
    %v4000 = vpack.c.b16 %v3547, %v3544
    %v4001 = vpack.c.b16 %v3551, %v3548
    %v4002 = vpack.c.b16 %v3552, %v3549
    %v4003 = vpack.c.b16 %v3553, %v3550
    %v4004 = vpack.c.b16 %v3557, %v3554
    %v4005 = vpack.c.b16 %v3558, %v3555
    %v4006 = vpack.c.b16 %v3559, %v3556
    %v4007 = vpack.c.b16 %v3563, %v3560
    %v4008 = vpack.c.b16 %v3564, %v3561
    %v4009 = vpack.c.b16 %v3565, %v3562
    %v4010 = vpack.c.b16 %v3569, %v3566
    %v4011 = vpack.c.b16 %v3570, %v3567
    %v4012 = vpack.c.b16 %v3571, %v3568
    %v4013 = vpack.c.b16 %v3575, %v3572
    %v4014 = vpack.c.b16 %v3576, %v3573
    %v4015 = vpack.c.b16 %v3577, %v3574
    %v4016 = vpack.c.b16 %v3581, %v3578
    %v4017 = vpack.c.b16 %v3582, %v3579
    %v4018 = vpack.c.b16 %v3583, %v3580
    %v4019 = vpack.c.b16 %v3587, %v3584
    %v4020 = vpack.c.b16 %v3588, %v3585
    %v4021 = vpack.c.b16 %v3589, %v3586
    %v4022 = vpack.c.b16 %v3593, %v3590
    %v4023 = vpack.c.b16 %v3594, %v3591
    %v4024 = vpack.c.b16 %v3595, %v3592
    %v4025 = vpack.c.b16 %v3599, %v3596
    %v4026 = vpack.c.b16 %v3600, %v3597
    %v4027 = vpack.c.b16 %v3601, %v3598
    %v4028 = vpack.c.b16 %v3605, %v3602
    %v4029 = vpack.c.b16 %v3606, %v3603
    %v4030 = vpack.c.b16 %v3607, %v3604
    %v4031 = vpack.c.b16 %v3611, %v3608
    %v4032 = vpack.c.b16 %v3612, %v3609
    %v4033 = vpack.c.b16 %v3613, %v3610
    %v4034 = vpack.c.b16 %v3617, %v3614
    %v4035 = vpack.c.b16 %v3618, %v3615
    %v4036 = vpack.c.b16 %v3619, %v3616
    %v4037 = vpack.c.b16 %v3623, %v3620
    %v4038 = vpack.c.b16 %v3624, %v3621
    %v4039 = vpack.c.b16 %v3625, %v3622
    %v4040 = vpack.c.b16 %v3629, %v3626
    %v4041 = vpack.c.b16 %v3630, %v3627
    %v4042 = vpack.c.b16 %v3631, %v3628
    %v4043 = vpack.c.b16 %v3635, %v3632
    %v4044 = vpack.c.b16 %v3636, %v3633
    %v4045 = vpack.c.b16 %v3637, %v3634
    %v4046 = vpack.c.b16 %v3641, %v3638
    %v4047 = vpack.c.b16 %v3642, %v3639
    %v4048 = vpack.c.b16 %v3643, %v3640
    %v4049 = vpack.c.b16 %v3647, %v3644
    %v4050 = vpack.c.b16 %v3648, %v3645
    %v4051 = vpack.c.b16 %v3649, %v3646
    %v4052 = vpack.c.b16 %v3653, %v3650
    %v4053 = vpack.c.b16 %v3654, %v3651
    %v4054 = vpack.c.b16 %v3655, %v3652
    %v4055 = vpack.c.b16 %v3659, %v3656
    %v4056 = vpack.c.b16 %v3660, %v3657
    %v4057 = vpack.c.b16 %v3661, %v3658
    %v4058 = vpack.c.b16 %v3665, %v3662
    %v4059 = vpack.c.b16 %v3666, %v3663
    %v4060 = vpack.c.b16 %v3667, %v3664
    %v4061 = vpack.c.b16 %v3671, %v3668
    %v4062 = vpack.c.b16 %v3672, %v3669
    %v4063 = vpack.c.b16 %v3673, %v3670
    %v4064 = vpack.c.b16 %v3677, %v3674
    %v4065 = vpack.c.b16 %v3678, %v3675
    %v4066 = vpack.c.b16 %v3679, %v3676
    %v4067 = vpack.c.b16 %v3683, %v3680
    %v4068 = vpack.c.b16 %v3684, %v3681
    %v4069 = vpack.c.b16 %v3685, %v3682
    %4454 = vmatpush.bf16.msra.mxu0 %v3707
    %4455 = vmatpush.bf16.msra.mxu0 %v3704
    %4456 = vmatpush.bf16.msra.mxu0 %v3701
    %4457 = vmatpush.bf16.msra.mxu0 %v3698
    %4458 = vmatpush.bf16.msra.mxu0 %v3695
    %4459 = vmatpush.bf16.msra.mxu0 %v3692
    %4460 = vmatpush.bf16.msra.mxu0 %v3689
    %4461 = vmatpush.bf16.msra.mxu0 %v3686
    %4462 = vmatmul.bf16.gmra.mxu0 %v1870
    %v4463 = vpop.f32.mrf.mxu0
    %v4464 = vadd.f32 %v2400, %v4463
    %v4465 = vpop.f32.mrf.mxu0
    %v4466 = vadd.f32 %v2400, %v4465
    %4467 = vdwg.mxu0
    %4468 = vmatpush.bf16.msra.mxu0 %v3731
    %4469 = vmatpush.bf16.msra.mxu0 %v3728
    %4470 = vmatpush.bf16.msra.mxu0 %v3725
    %4471 = vmatpush.bf16.msra.mxu0 %v3722
    %4472 = vmatpush.bf16.msra.mxu0 %v3719
    %4473 = vmatpush.bf16.msra.mxu0 %v3716
    %4474 = vmatpush.bf16.msra.mxu0 %v3713
    %4475 = vmatpush.bf16.msra.mxu0 %v3710
    %4476 = vmatmul.bf16.gmra.mxu0 %v1871
    %v4477 = vpop.f32.mrf.mxu0
    %v4478 = vadd.f32 %v4464, %v4477
    %v4479 = vpop.f32.mrf.mxu0
    %v4480 = vadd.f32 %v4466, %v4479
    %4481 = vdwg.mxu0
    %4482 = vmatpush.bf16.msra.mxu0 %v3755
    %4483 = vmatpush.bf16.msra.mxu0 %v3752
    %4484 = vmatpush.bf16.msra.mxu0 %v3749
    %4485 = vmatpush.bf16.msra.mxu0 %v3746
    %4486 = vmatpush.bf16.msra.mxu0 %v3743
    %4487 = vmatpush.bf16.msra.mxu0 %v3740
    %4488 = vmatpush.bf16.msra.mxu0 %v3737
    %4489 = vmatpush.bf16.msra.mxu0 %v3734
    %4490 = vmatmul.bf16.gmra.mxu0 %v1872
    %v4491 = vpop.f32.mrf.mxu0
    %v4492 = vadd.f32 %v4478, %v4491
    %v4493 = vpop.f32.mrf.mxu0
    %v4494 = vadd.f32 %v4480, %v4493
    %4495 = vdwg.mxu0
    %4496 = vmatpush.bf16.msra.mxu0 %v3779
    %4497 = vmatpush.bf16.msra.mxu0 %v3776
    %4498 = vmatpush.bf16.msra.mxu0 %v3773
    %4499 = vmatpush.bf16.msra.mxu0 %v3770
    %4500 = vmatpush.bf16.msra.mxu0 %v3767
    %4501 = vmatpush.bf16.msra.mxu0 %v3764
    %4502 = vmatpush.bf16.msra.mxu0 %v3761
    %4503 = vmatpush.bf16.msra.mxu0 %v3758
    %4504 = vmatmul.bf16.gmra.mxu0 %v1873
    %v4505 = vpop.f32.mrf.mxu0
    %v4506 = vadd.f32 %v4492, %v4505
    %v4507 = vpop.f32.mrf.mxu0
    %v4508 = vadd.f32 %v4494, %v4507
    %4509 = vdwg.mxu0
    %4510 = vmatpush.bf16.msra.mxu0 %v3803
    %4511 = vmatpush.bf16.msra.mxu0 %v3800
    %4512 = vmatpush.bf16.msra.mxu0 %v3797
    %4513 = vmatpush.bf16.msra.mxu0 %v3794
    %4514 = vmatpush.bf16.msra.mxu0 %v3791
    %4515 = vmatpush.bf16.msra.mxu0 %v3788
    %4516 = vmatpush.bf16.msra.mxu0 %v3785
    %4517 = vmatpush.bf16.msra.mxu0 %v3782
    %4518 = vmatmul.bf16.gmra.mxu0 %v1874
    %v4519 = vpop.f32.mrf.mxu0
    %v4520 = vadd.f32 %v4506, %v4519
    %v4521 = vpop.f32.mrf.mxu0
    %v4522 = vadd.f32 %v4508, %v4521
    %4523 = vdwg.mxu0
    %4524 = vmatpush.bf16.msra.mxu0 %v3827
    %4525 = vmatpush.bf16.msra.mxu0 %v3824
    %4526 = vmatpush.bf16.msra.mxu0 %v3821
    %4527 = vmatpush.bf16.msra.mxu0 %v3818
    %4528 = vmatpush.bf16.msra.mxu0 %v3815
    %4529 = vmatpush.bf16.msra.mxu0 %v3812
    %4530 = vmatpush.bf16.msra.mxu0 %v3809
    %4531 = vmatpush.bf16.msra.mxu0 %v3806
    %4532 = vmatmul.bf16.gmra.mxu0 %v1875
    %v4533 = vpop.f32.mrf.mxu0
    %v4534 = vadd.f32 %v4520, %v4533
    %v4535 = vpop.f32.mrf.mxu0
    %v4536 = vadd.f32 %v4522, %v4535
    %4537 = vdwg.mxu0
    %4538 = vmatpush.bf16.msra.mxu0 %v3851
    %4539 = vmatpush.bf16.msra.mxu0 %v3848
    %4540 = vmatpush.bf16.msra.mxu0 %v3845
    %4541 = vmatpush.bf16.msra.mxu0 %v3842
    %4542 = vmatpush.bf16.msra.mxu0 %v3839
    %4543 = vmatpush.bf16.msra.mxu0 %v3836
    %4544 = vmatpush.bf16.msra.mxu0 %v3833
    %4545 = vmatpush.bf16.msra.mxu0 %v3830
    %4546 = vmatmul.bf16.gmra.mxu0 %v1876
    %v4547 = vpop.f32.mrf.mxu0
    %v4548 = vadd.f32 %v4534, %v4547
    %v4549 = vpop.f32.mrf.mxu0
    %v4550 = vadd.f32 %v4536, %v4549
    %4551 = vdwg.mxu0
    %4552 = vmatpush.bf16.msra.mxu0 %v3875
    %4553 = vmatpush.bf16.msra.mxu0 %v3872
    %4554 = vmatpush.bf16.msra.mxu0 %v3869
    %4555 = vmatpush.bf16.msra.mxu0 %v3866
    %4556 = vmatpush.bf16.msra.mxu0 %v3863
    %4557 = vmatpush.bf16.msra.mxu0 %v3860
    %4558 = vmatpush.bf16.msra.mxu0 %v3857
    %4559 = vmatpush.bf16.msra.mxu0 %v3854
    %4560 = vmatmul.bf16.gmra.mxu0 %v1877
    %v4561 = vpop.f32.mrf.mxu0
    %v4562 = vadd.f32 %v4548, %v4561
    %v4563 = vpop.f32.mrf.mxu0
    %v4564 = vadd.f32 %v4550, %v4563
    %4565 = vdwg.mxu0
    %4566 = vmatpush.bf16.msra.mxu0 %v3899
    %4567 = vmatpush.bf16.msra.mxu0 %v3896
    %4568 = vmatpush.bf16.msra.mxu0 %v3893
    %4569 = vmatpush.bf16.msra.mxu0 %v3890
    %4570 = vmatpush.bf16.msra.mxu0 %v3887
    %4571 = vmatpush.bf16.msra.mxu0 %v3884
    %4572 = vmatpush.bf16.msra.mxu0 %v3881
    %4573 = vmatpush.bf16.msra.mxu0 %v3878
    %4574 = vmatmul.bf16.gmra.mxu0 %v1878
    %v4575 = vpop.f32.mrf.mxu0
    %v4576 = vadd.f32 %v4562, %v4575
    %v4577 = vpop.f32.mrf.mxu0
    %v4578 = vadd.f32 %v4564, %v4577
    %4579 = vdwg.mxu0
    %4580 = vmatpush.bf16.msra.mxu0 %v3923
    %4581 = vmatpush.bf16.msra.mxu0 %v3920
    %4582 = vmatpush.bf16.msra.mxu0 %v3917
    %4583 = vmatpush.bf16.msra.mxu0 %v3914
    %4584 = vmatpush.bf16.msra.mxu0 %v3911
    %4585 = vmatpush.bf16.msra.mxu0 %v3908
    %4586 = vmatpush.bf16.msra.mxu0 %v3905
    %4587 = vmatpush.bf16.msra.mxu0 %v3902
    %4588 = vmatmul.bf16.gmra.mxu0 %v1879
    %v4589 = vpop.f32.mrf.mxu0
    %v4590 = vadd.f32 %v4576, %v4589
    %v4591 = vpop.f32.mrf.mxu0
    %v4592 = vadd.f32 %v4578, %v4591
    %4593 = vdwg.mxu0
    %4594 = vmatpush.bf16.msra.mxu0 %v3947
    %4595 = vmatpush.bf16.msra.mxu0 %v3944
    %4596 = vmatpush.bf16.msra.mxu0 %v3941
    %4597 = vmatpush.bf16.msra.mxu0 %v3938
    %4598 = vmatpush.bf16.msra.mxu0 %v3935
    %4599 = vmatpush.bf16.msra.mxu0 %v3932
    %4600 = vmatpush.bf16.msra.mxu0 %v3929
    %4601 = vmatpush.bf16.msra.mxu0 %v3926
    %4602 = vmatmul.bf16.gmra.mxu0 %v1880
    %v4603 = vpop.f32.mrf.mxu0
    %v4604 = vadd.f32 %v4590, %v4603
    %v4605 = vpop.f32.mrf.mxu0
    %v4606 = vadd.f32 %v4592, %v4605
    %4607 = vdwg.mxu0
    %4608 = vmatpush.bf16.msra.mxu0 %v3971
    %4609 = vmatpush.bf16.msra.mxu0 %v3968
    %4610 = vmatpush.bf16.msra.mxu0 %v3965
    %4611 = vmatpush.bf16.msra.mxu0 %v3962
    %4612 = vmatpush.bf16.msra.mxu0 %v3959
    %4613 = vmatpush.bf16.msra.mxu0 %v3956
    %4614 = vmatpush.bf16.msra.mxu0 %v3953
    %4615 = vmatpush.bf16.msra.mxu0 %v3950
    %4616 = vmatmul.bf16.gmra.mxu0 %v1881
    %v4617 = vpop.f32.mrf.mxu0
    %v4618 = vadd.f32 %v4604, %v4617
    %v4619 = vpop.f32.mrf.mxu0
    %v4620 = vadd.f32 %v4606, %v4619
    %4621 = vdwg.mxu0
    %4622 = vmatpush.bf16.msra.mxu0 %v3995
    %4623 = vmatpush.bf16.msra.mxu0 %v3992
    %4624 = vmatpush.bf16.msra.mxu0 %v3989
    %4625 = vmatpush.bf16.msra.mxu0 %v3986
    %4626 = vmatpush.bf16.msra.mxu0 %v3983
    %4627 = vmatpush.bf16.msra.mxu0 %v3980
    %4628 = vmatpush.bf16.msra.mxu0 %v3977
    %4629 = vmatpush.bf16.msra.mxu0 %v3974
    %4630 = vmatmul.bf16.gmra.mxu0 %v1882
    %v4631 = vpop.f32.mrf.mxu0
    %v4632 = vadd.f32 %v4618, %v4631
    %v4633 = vpop.f32.mrf.mxu0
    %v4634 = vadd.f32 %v4620, %v4633
    %4635 = vdwg.mxu0
    %4636 = vmatpush.bf16.msra.mxu0 %v4019
    %4637 = vmatpush.bf16.msra.mxu0 %v4016
    %4638 = vmatpush.bf16.msra.mxu0 %v4013
    %4639 = vmatpush.bf16.msra.mxu0 %v4010
    %4640 = vmatpush.bf16.msra.mxu0 %v4007
    %4641 = vmatpush.bf16.msra.mxu0 %v4004
    %4642 = vmatpush.bf16.msra.mxu0 %v4001
    %4643 = vmatpush.bf16.msra.mxu0 %v3998
    %4644 = vmatmul.bf16.gmra.mxu0 %v1883
    %v4645 = vpop.f32.mrf.mxu0
    %v4646 = vadd.f32 %v4632, %v4645
    %v4647 = vpop.f32.mrf.mxu0
    %v4648 = vadd.f32 %v4634, %v4647
    %4649 = vdwg.mxu0
    %4650 = vmatpush.bf16.msra.mxu0 %v4043
    %4651 = vmatpush.bf16.msra.mxu0 %v4040
    %4652 = vmatpush.bf16.msra.mxu0 %v4037
    %4653 = vmatpush.bf16.msra.mxu0 %v4034
    %4654 = vmatpush.bf16.msra.mxu0 %v4031
    %4655 = vmatpush.bf16.msra.mxu0 %v4028
    %4656 = vmatpush.bf16.msra.mxu0 %v4025
    %4657 = vmatpush.bf16.msra.mxu0 %v4022
    %4658 = vmatmul.bf16.gmra.mxu0 %v1884
    %v4659 = vpop.f32.mrf.mxu0
    %v4660 = vadd.f32 %v4646, %v4659
    %v4661 = vpop.f32.mrf.mxu0
    %v4662 = vadd.f32 %v4648, %v4661
    %4663 = vdwg.mxu0
    %4664 = vmatpush.bf16.msra.mxu0 %v4067
    %4665 = vmatpush.bf16.msra.mxu0 %v4064
    %4666 = vmatpush.bf16.msra.mxu0 %v4061
    %4667 = vmatpush.bf16.msra.mxu0 %v4058
    %4668 = vmatpush.bf16.msra.mxu0 %v4055
    %4669 = vmatpush.bf16.msra.mxu0 %v4052
    %4670 = vmatpush.bf16.msra.mxu0 %v4049
    %4671 = vmatpush.bf16.msra.mxu0 %v4046
    %4672 = vmatmul.bf16.gmra.mxu0 %v1885
    %v4673 = vpop.f32.mrf.mxu0
    %v4674 = vadd.f32 %v4660, %v4673
    %v4675 = vpop.f32.mrf.mxu0
    %v4676 = vadd.f32 %v4662, %v4675
    %4677 = vdwg.mxu0
    %4678 = vmatpush.bf16.msra.mxu0 %v3708
    %4679 = vmatpush.bf16.msra.mxu0 %v3705
    %4680 = vmatpush.bf16.msra.mxu0 %v3702
    %4681 = vmatpush.bf16.msra.mxu0 %v3699
    %4682 = vmatpush.bf16.msra.mxu0 %v3696
    %4683 = vmatpush.bf16.msra.mxu0 %v3693
    %4684 = vmatpush.bf16.msra.mxu0 %v3690
    %4685 = vmatpush.bf16.msra.mxu0 %v3687
    %4686 = vmatmul.bf16.gmra.mxu0 %v1870
    %v4687 = vpop.f32.mrf.mxu0
    %v4688 = vadd.f32 %v2401, %v4687
    %v4689 = vpop.f32.mrf.mxu0
    %v4690 = vadd.f32 %v2401, %v4689
    %4691 = vdwg.mxu0
    %4692 = vmatpush.bf16.msra.mxu0 %v3732
    %4693 = vmatpush.bf16.msra.mxu0 %v3729
    %4694 = vmatpush.bf16.msra.mxu0 %v3726
    %4695 = vmatpush.bf16.msra.mxu0 %v3723
    %4696 = vmatpush.bf16.msra.mxu0 %v3720
    %4697 = vmatpush.bf16.msra.mxu0 %v3717
    %4698 = vmatpush.bf16.msra.mxu0 %v3714
    %4699 = vmatpush.bf16.msra.mxu0 %v3711
    %4700 = vmatmul.bf16.gmra.mxu0 %v1871
    %v4701 = vpop.f32.mrf.mxu0
    %v4702 = vadd.f32 %v4688, %v4701
    %v4703 = vpop.f32.mrf.mxu0
    %v4704 = vadd.f32 %v4690, %v4703
    %4705 = vdwg.mxu0
    %4706 = vmatpush.bf16.msra.mxu0 %v3756
    %4707 = vmatpush.bf16.msra.mxu0 %v3753
    %4708 = vmatpush.bf16.msra.mxu0 %v3750
    %4709 = vmatpush.bf16.msra.mxu0 %v3747
    %4710 = vmatpush.bf16.msra.mxu0 %v3744
    %4711 = vmatpush.bf16.msra.mxu0 %v3741
    %4712 = vmatpush.bf16.msra.mxu0 %v3738
    %4713 = vmatpush.bf16.msra.mxu0 %v3735
    %4714 = vmatmul.bf16.gmra.mxu0 %v1872
    %v4715 = vpop.f32.mrf.mxu0
    %v4716 = vadd.f32 %v4702, %v4715
    %v4717 = vpop.f32.mrf.mxu0
    %v4718 = vadd.f32 %v4704, %v4717
    %4719 = vdwg.mxu0
    %4720 = vmatpush.bf16.msra.mxu0 %v3780
    %4721 = vmatpush.bf16.msra.mxu0 %v3777
    %4722 = vmatpush.bf16.msra.mxu0 %v3774
    %4723 = vmatpush.bf16.msra.mxu0 %v3771
    %4724 = vmatpush.bf16.msra.mxu0 %v3768
    %4725 = vmatpush.bf16.msra.mxu0 %v3765
    %4726 = vmatpush.bf16.msra.mxu0 %v3762
    %4727 = vmatpush.bf16.msra.mxu0 %v3759
    %4728 = vmatmul.bf16.gmra.mxu0 %v1873
    %v4729 = vpop.f32.mrf.mxu0
    %v4730 = vadd.f32 %v4716, %v4729
    %v4731 = vpop.f32.mrf.mxu0
    %v4732 = vadd.f32 %v4718, %v4731
    %4733 = vdwg.mxu0
    %4734 = vmatpush.bf16.msra.mxu0 %v3804
    %4735 = vmatpush.bf16.msra.mxu0 %v3801
    %4736 = vmatpush.bf16.msra.mxu0 %v3798
    %4737 = vmatpush.bf16.msra.mxu0 %v3795
    %4738 = vmatpush.bf16.msra.mxu0 %v3792
    %4739 = vmatpush.bf16.msra.mxu0 %v3789
    %4740 = vmatpush.bf16.msra.mxu0 %v3786
    %4741 = vmatpush.bf16.msra.mxu0 %v3783
    %4742 = vmatmul.bf16.gmra.mxu0 %v1874
    %v4743 = vpop.f32.mrf.mxu0
    %v4744 = vadd.f32 %v4730, %v4743
    %v4745 = vpop.f32.mrf.mxu0
    %v4746 = vadd.f32 %v4732, %v4745
    %4747 = vdwg.mxu0
    %4748 = vmatpush.bf16.msra.mxu0 %v3828
    %4749 = vmatpush.bf16.msra.mxu0 %v3825
    %4750 = vmatpush.bf16.msra.mxu0 %v3822
    %4751 = vmatpush.bf16.msra.mxu0 %v3819
    %4752 = vmatpush.bf16.msra.mxu0 %v3816
    %4753 = vmatpush.bf16.msra.mxu0 %v3813
    %4754 = vmatpush.bf16.msra.mxu0 %v3810
    %4755 = vmatpush.bf16.msra.mxu0 %v3807
    %4756 = vmatmul.bf16.gmra.mxu0 %v1875
    %v4757 = vpop.f32.mrf.mxu0
    %v4758 = vadd.f32 %v4744, %v4757
    %v4759 = vpop.f32.mrf.mxu0
    %v4760 = vadd.f32 %v4746, %v4759
    %4761 = vdwg.mxu0
    %4762 = vmatpush.bf16.msra.mxu0 %v3852
    %4763 = vmatpush.bf16.msra.mxu0 %v3849
    %4764 = vmatpush.bf16.msra.mxu0 %v3846
    %4765 = vmatpush.bf16.msra.mxu0 %v3843
    %4766 = vmatpush.bf16.msra.mxu0 %v3840
    %4767 = vmatpush.bf16.msra.mxu0 %v3837
    %4768 = vmatpush.bf16.msra.mxu0 %v3834
    %4769 = vmatpush.bf16.msra.mxu0 %v3831
    %4770 = vmatmul.bf16.gmra.mxu0 %v1876
    %v4771 = vpop.f32.mrf.mxu0
    %v4772 = vadd.f32 %v4758, %v4771
    %v4773 = vpop.f32.mrf.mxu0
    %v4774 = vadd.f32 %v4760, %v4773
    %4775 = vdwg.mxu0
    %4776 = vmatpush.bf16.msra.mxu0 %v3876
    %4777 = vmatpush.bf16.msra.mxu0 %v3873
    %4778 = vmatpush.bf16.msra.mxu0 %v3870
    %4779 = vmatpush.bf16.msra.mxu0 %v3867
    %4780 = vmatpush.bf16.msra.mxu0 %v3864
    %4781 = vmatpush.bf16.msra.mxu0 %v3861
    %4782 = vmatpush.bf16.msra.mxu0 %v3858
    %4783 = vmatpush.bf16.msra.mxu0 %v3855
    %4784 = vmatmul.bf16.gmra.mxu0 %v1877
    %v4785 = vpop.f32.mrf.mxu0
    %v4786 = vadd.f32 %v4772, %v4785
    %v4787 = vpop.f32.mrf.mxu0
    %v4788 = vadd.f32 %v4774, %v4787
    %4789 = vdwg.mxu0
    %4790 = vmatpush.bf16.msra.mxu0 %v3900
    %4791 = vmatpush.bf16.msra.mxu0 %v3897
    %4792 = vmatpush.bf16.msra.mxu0 %v3894
    %4793 = vmatpush.bf16.msra.mxu0 %v3891
    %4794 = vmatpush.bf16.msra.mxu0 %v3888
    %4795 = vmatpush.bf16.msra.mxu0 %v3885
    %4796 = vmatpush.bf16.msra.mxu0 %v3882
    %4797 = vmatpush.bf16.msra.mxu0 %v3879
    %4798 = vmatmul.bf16.gmra.mxu0 %v1878
    %v4799 = vpop.f32.mrf.mxu0
    %v4800 = vadd.f32 %v4786, %v4799
    %v4801 = vpop.f32.mrf.mxu0
    %v4802 = vadd.f32 %v4788, %v4801
    %4803 = vdwg.mxu0
    %4804 = vmatpush.bf16.msra.mxu0 %v3924
    %4805 = vmatpush.bf16.msra.mxu0 %v3921
    %4806 = vmatpush.bf16.msra.mxu0 %v3918
    %4807 = vmatpush.bf16.msra.mxu0 %v3915
    %4808 = vmatpush.bf16.msra.mxu0 %v3912
    %4809 = vmatpush.bf16.msra.mxu0 %v3909
    %4810 = vmatpush.bf16.msra.mxu0 %v3906
    %4811 = vmatpush.bf16.msra.mxu0 %v3903
    %4812 = vmatmul.bf16.gmra.mxu0 %v1879
    %v4813 = vpop.f32.mrf.mxu0
    %v4814 = vadd.f32 %v4800, %v4813
    %v4815 = vpop.f32.mrf.mxu0
    %v4816 = vadd.f32 %v4802, %v4815
    %4817 = vdwg.mxu0
    %4818 = vmatpush.bf16.msra.mxu0 %v3948
    %4819 = vmatpush.bf16.msra.mxu0 %v3945
    %4820 = vmatpush.bf16.msra.mxu0 %v3942
    %4821 = vmatpush.bf16.msra.mxu0 %v3939
    %4822 = vmatpush.bf16.msra.mxu0 %v3936
    %4823 = vmatpush.bf16.msra.mxu0 %v3933
    %4824 = vmatpush.bf16.msra.mxu0 %v3930
    %4825 = vmatpush.bf16.msra.mxu0 %v3927
    %4826 = vmatmul.bf16.gmra.mxu0 %v1880
    %v4827 = vpop.f32.mrf.mxu0
    %v4828 = vadd.f32 %v4814, %v4827
    %v4829 = vpop.f32.mrf.mxu0
    %v4830 = vadd.f32 %v4816, %v4829
    %4831 = vdwg.mxu0
    %4832 = vmatpush.bf16.msra.mxu0 %v3972
    %4833 = vmatpush.bf16.msra.mxu0 %v3969
    %4834 = vmatpush.bf16.msra.mxu0 %v3966
    %4835 = vmatpush.bf16.msra.mxu0 %v3963
    %4836 = vmatpush.bf16.msra.mxu0 %v3960
    %4837 = vmatpush.bf16.msra.mxu0 %v3957
    %4838 = vmatpush.bf16.msra.mxu0 %v3954
    %4839 = vmatpush.bf16.msra.mxu0 %v3951
    %4840 = vmatmul.bf16.gmra.mxu0 %v1881
    %v4841 = vpop.f32.mrf.mxu0
    %v4842 = vadd.f32 %v4828, %v4841
    %v4843 = vpop.f32.mrf.mxu0
    %v4844 = vadd.f32 %v4830, %v4843
    %4845 = vdwg.mxu0
    %4846 = vmatpush.bf16.msra.mxu0 %v3996
    %4847 = vmatpush.bf16.msra.mxu0 %v3993
    %4848 = vmatpush.bf16.msra.mxu0 %v3990
    %4849 = vmatpush.bf16.msra.mxu0 %v3987
    %4850 = vmatpush.bf16.msra.mxu0 %v3984
    %4851 = vmatpush.bf16.msra.mxu0 %v3981
    %4852 = vmatpush.bf16.msra.mxu0 %v3978
    %4853 = vmatpush.bf16.msra.mxu0 %v3975
    %4854 = vmatmul.bf16.gmra.mxu0 %v1882
    %v4855 = vpop.f32.mrf.mxu0
    %v4856 = vadd.f32 %v4842, %v4855
    %v4857 = vpop.f32.mrf.mxu0
    %v4858 = vadd.f32 %v4844, %v4857
    %4859 = vdwg.mxu0
    %4860 = vmatpush.bf16.msra.mxu0 %v4020
    %4861 = vmatpush.bf16.msra.mxu0 %v4017
    %4862 = vmatpush.bf16.msra.mxu0 %v4014
    %4863 = vmatpush.bf16.msra.mxu0 %v4011
    %4864 = vmatpush.bf16.msra.mxu0 %v4008
    %4865 = vmatpush.bf16.msra.mxu0 %v4005
    %4866 = vmatpush.bf16.msra.mxu0 %v4002
    %4867 = vmatpush.bf16.msra.mxu0 %v3999
    %4868 = vmatmul.bf16.gmra.mxu0 %v1883
    %v4869 = vpop.f32.mrf.mxu0
    %v4870 = vadd.f32 %v4856, %v4869
    %v4871 = vpop.f32.mrf.mxu0
    %v4872 = vadd.f32 %v4858, %v4871
    %4873 = vdwg.mxu0
    %4874 = vmatpush.bf16.msra.mxu0 %v4044
    %4875 = vmatpush.bf16.msra.mxu0 %v4041
    %4876 = vmatpush.bf16.msra.mxu0 %v4038
    %4877 = vmatpush.bf16.msra.mxu0 %v4035
    %4878 = vmatpush.bf16.msra.mxu0 %v4032
    %4879 = vmatpush.bf16.msra.mxu0 %v4029
    %4880 = vmatpush.bf16.msra.mxu0 %v4026
    %4881 = vmatpush.bf16.msra.mxu0 %v4023
    %4882 = vmatmul.bf16.gmra.mxu0 %v1884
    %v4883 = vpop.f32.mrf.mxu0
    %v4884 = vadd.f32 %v4870, %v4883
    %v4885 = vpop.f32.mrf.mxu0
    %v4886 = vadd.f32 %v4872, %v4885
    %4887 = vdwg.mxu0
    %4888 = vmatpush.bf16.msra.mxu0 %v4068
    %4889 = vmatpush.bf16.msra.mxu0 %v4065
    %4890 = vmatpush.bf16.msra.mxu0 %v4062
    %4891 = vmatpush.bf16.msra.mxu0 %v4059
    %4892 = vmatpush.bf16.msra.mxu0 %v4056
    %4893 = vmatpush.bf16.msra.mxu0 %v4053
    %4894 = vmatpush.bf16.msra.mxu0 %v4050
    %4895 = vmatpush.bf16.msra.mxu0 %v4047
    %4896 = vmatmul.bf16.gmra.mxu0 %v1885
    %v4897 = vpop.f32.mrf.mxu0
    %v4898 = vadd.f32 %v4884, %v4897
    %v4899 = vpop.f32.mrf.mxu0
    %v4900 = vadd.f32 %v4886, %v4899
    %4901 = vdwg.mxu0
    %4902 = vmatpush.bf16.msra.mxu0 %v3709
    %4903 = vmatpush.bf16.msra.mxu0 %v3706
    %4904 = vmatpush.bf16.msra.mxu0 %v3703
    %4905 = vmatpush.bf16.msra.mxu0 %v3700
    %4906 = vmatpush.bf16.msra.mxu0 %v3697
    %4907 = vmatpush.bf16.msra.mxu0 %v3694
    %4908 = vmatpush.bf16.msra.mxu0 %v3691
    %4909 = vmatpush.bf16.msra.mxu0 %v3688
    %4910 = vmatmul.bf16.gmra.mxu0 %v1870
    %v4911 = vpop.f32.mrf.mxu0
    %v4912 = vadd.f32 %v2402, %v4911
    %v4913 = vpop.f32.mrf.mxu0
    %v4914 = vadd.f32 %v2402, %v4913
    %4915 = vdwg.mxu0
    %4916 = vmatpush.bf16.msra.mxu0 %v3733
    %4917 = vmatpush.bf16.msra.mxu0 %v3730
    %4918 = vmatpush.bf16.msra.mxu0 %v3727
    %4919 = vmatpush.bf16.msra.mxu0 %v3724
    %4920 = vmatpush.bf16.msra.mxu0 %v3721
    %4921 = vmatpush.bf16.msra.mxu0 %v3718
    %4922 = vmatpush.bf16.msra.mxu0 %v3715
    %4923 = vmatpush.bf16.msra.mxu0 %v3712
    %4924 = vmatmul.bf16.gmra.mxu0 %v1871
    %v4925 = vpop.f32.mrf.mxu0
    %v4926 = vadd.f32 %v4912, %v4925
    %v4927 = vpop.f32.mrf.mxu0
    %v4928 = vadd.f32 %v4914, %v4927
    %4929 = vdwg.mxu0
    %4930 = vmatpush.bf16.msra.mxu0 %v3757
    %4931 = vmatpush.bf16.msra.mxu0 %v3754
    %4932 = vmatpush.bf16.msra.mxu0 %v3751
    %4933 = vmatpush.bf16.msra.mxu0 %v3748
    %4934 = vmatpush.bf16.msra.mxu0 %v3745
    %4935 = vmatpush.bf16.msra.mxu0 %v3742
    %4936 = vmatpush.bf16.msra.mxu0 %v3739
    %4937 = vmatpush.bf16.msra.mxu0 %v3736
    %4938 = vmatmul.bf16.gmra.mxu0 %v1872
    %v4939 = vpop.f32.mrf.mxu0
    %v4940 = vadd.f32 %v4926, %v4939
    %v4941 = vpop.f32.mrf.mxu0
    %v4942 = vadd.f32 %v4928, %v4941
    %4943 = vdwg.mxu0
    %4944 = vmatpush.bf16.msra.mxu0 %v3781
    %4945 = vmatpush.bf16.msra.mxu0 %v3778
    %4946 = vmatpush.bf16.msra.mxu0 %v3775
    %4947 = vmatpush.bf16.msra.mxu0 %v3772
    %4948 = vmatpush.bf16.msra.mxu0 %v3769
    %4949 = vmatpush.bf16.msra.mxu0 %v3766
    %4950 = vmatpush.bf16.msra.mxu0 %v3763
    %4951 = vmatpush.bf16.msra.mxu0 %v3760
    %4952 = vmatmul.bf16.gmra.mxu0 %v1873
    %v4953 = vpop.f32.mrf.mxu0
    %v4954 = vadd.f32 %v4940, %v4953
    %v4955 = vpop.f32.mrf.mxu0
    %v4956 = vadd.f32 %v4942, %v4955
    %4957 = vdwg.mxu0
    %4958 = vmatpush.bf16.msra.mxu0 %v3805
    %4959 = vmatpush.bf16.msra.mxu0 %v3802
    %4960 = vmatpush.bf16.msra.mxu0 %v3799
    %4961 = vmatpush.bf16.msra.mxu0 %v3796
    %4962 = vmatpush.bf16.msra.mxu0 %v3793
    %4963 = vmatpush.bf16.msra.mxu0 %v3790
    %4964 = vmatpush.bf16.msra.mxu0 %v3787
    %4965 = vmatpush.bf16.msra.mxu0 %v3784
    %4966 = vmatmul.bf16.gmra.mxu0 %v1874
    %v4967 = vpop.f32.mrf.mxu0
    %v4968 = vadd.f32 %v4954, %v4967
    %v4969 = vpop.f32.mrf.mxu0
    %v4970 = vadd.f32 %v4956, %v4969
    %4971 = vdwg.mxu0
    %4972 = vmatpush.bf16.msra.mxu0 %v3829
    %4973 = vmatpush.bf16.msra.mxu0 %v3826
    %4974 = vmatpush.bf16.msra.mxu0 %v3823
    %4975 = vmatpush.bf16.msra.mxu0 %v3820
    %4976 = vmatpush.bf16.msra.mxu0 %v3817
    %4977 = vmatpush.bf16.msra.mxu0 %v3814
    %4978 = vmatpush.bf16.msra.mxu0 %v3811
    %4979 = vmatpush.bf16.msra.mxu0 %v3808
    %4980 = vmatmul.bf16.gmra.mxu0 %v1875
    %v4981 = vpop.f32.mrf.mxu0
    %v4982 = vadd.f32 %v4968, %v4981
    %v4983 = vpop.f32.mrf.mxu0
    %v4984 = vadd.f32 %v4970, %v4983
    %4985 = vdwg.mxu0
    %4986 = vmatpush.bf16.msra.mxu0 %v3853
    %4987 = vmatpush.bf16.msra.mxu0 %v3850
    %4988 = vmatpush.bf16.msra.mxu0 %v3847
    %4989 = vmatpush.bf16.msra.mxu0 %v3844
    %4990 = vmatpush.bf16.msra.mxu0 %v3841
    %4991 = vmatpush.bf16.msra.mxu0 %v3838
    %4992 = vmatpush.bf16.msra.mxu0 %v3835
    %4993 = vmatpush.bf16.msra.mxu0 %v3832
    %4994 = vmatmul.bf16.gmra.mxu0 %v1876
    %v4995 = vpop.f32.mrf.mxu0
    %v4996 = vadd.f32 %v4982, %v4995
    %v4997 = vpop.f32.mrf.mxu0
    %v4998 = vadd.f32 %v4984, %v4997
    %4999 = vdwg.mxu0
    %5000 = vmatpush.bf16.msra.mxu0 %v3877
    %5001 = vmatpush.bf16.msra.mxu0 %v3874
    %5002 = vmatpush.bf16.msra.mxu0 %v3871
    %5003 = vmatpush.bf16.msra.mxu0 %v3868
    %5004 = vmatpush.bf16.msra.mxu0 %v3865
    %5005 = vmatpush.bf16.msra.mxu0 %v3862
    %5006 = vmatpush.bf16.msra.mxu0 %v3859
    %5007 = vmatpush.bf16.msra.mxu0 %v3856
    %5008 = vmatmul.bf16.gmra.mxu0 %v1877
    %v5009 = vpop.f32.mrf.mxu0
    %v5010 = vadd.f32 %v4996, %v5009
    %v5011 = vpop.f32.mrf.mxu0
    %v5012 = vadd.f32 %v4998, %v5011
    %5013 = vdwg.mxu0
    %5014 = vmatpush.bf16.msra.mxu0 %v3901
    %5015 = vmatpush.bf16.msra.mxu0 %v3898
    %5016 = vmatpush.bf16.msra.mxu0 %v3895
    %5017 = vmatpush.bf16.msra.mxu0 %v3892
    %5018 = vmatpush.bf16.msra.mxu0 %v3889
    %5019 = vmatpush.bf16.msra.mxu0 %v3886
    %5020 = vmatpush.bf16.msra.mxu0 %v3883
    %5021 = vmatpush.bf16.msra.mxu0 %v3880
    %5022 = vmatmul.bf16.gmra.mxu0 %v1878
    %v5023 = vpop.f32.mrf.mxu0
    %v5024 = vadd.f32 %v5010, %v5023
    %v5025 = vpop.f32.mrf.mxu0
    %v5026 = vadd.f32 %v5012, %v5025
    %5027 = vdwg.mxu0
    %5028 = vmatpush.bf16.msra.mxu0 %v3925
    %5029 = vmatpush.bf16.msra.mxu0 %v3922
    %5030 = vmatpush.bf16.msra.mxu0 %v3919
    %5031 = vmatpush.bf16.msra.mxu0 %v3916
    %5032 = vmatpush.bf16.msra.mxu0 %v3913
    %5033 = vmatpush.bf16.msra.mxu0 %v3910
    %5034 = vmatpush.bf16.msra.mxu0 %v3907
    %5035 = vmatpush.bf16.msra.mxu0 %v3904
    %5036 = vmatmul.bf16.gmra.mxu0 %v1879
    %v5037 = vpop.f32.mrf.mxu0
    %v5038 = vadd.f32 %v5024, %v5037
    %v5039 = vpop.f32.mrf.mxu0
    %v5040 = vadd.f32 %v5026, %v5039
    %5041 = vdwg.mxu0
    %5042 = vmatpush.bf16.msra.mxu0 %v3949
    %5043 = vmatpush.bf16.msra.mxu0 %v3946
    %5044 = vmatpush.bf16.msra.mxu0 %v3943
    %5045 = vmatpush.bf16.msra.mxu0 %v3940
    %5046 = vmatpush.bf16.msra.mxu0 %v3937
    %5047 = vmatpush.bf16.msra.mxu0 %v3934
    %5048 = vmatpush.bf16.msra.mxu0 %v3931
    %5049 = vmatpush.bf16.msra.mxu0 %v3928
    %5050 = vmatmul.bf16.gmra.mxu0 %v1880
    %v5051 = vpop.f32.mrf.mxu0
    %v5052 = vadd.f32 %v5038, %v5051
    %v5053 = vpop.f32.mrf.mxu0
    %v5054 = vadd.f32 %v5040, %v5053
    %5055 = vdwg.mxu0
    %5056 = vmatpush.bf16.msra.mxu0 %v3973
    %5057 = vmatpush.bf16.msra.mxu0 %v3970
    %5058 = vmatpush.bf16.msra.mxu0 %v3967
    %5059 = vmatpush.bf16.msra.mxu0 %v3964
    %5060 = vmatpush.bf16.msra.mxu0 %v3961
    %5061 = vmatpush.bf16.msra.mxu0 %v3958
    %5062 = vmatpush.bf16.msra.mxu0 %v3955
    %5063 = vmatpush.bf16.msra.mxu0 %v3952
    %5064 = vmatmul.bf16.gmra.mxu0 %v1881
    %v5065 = vpop.f32.mrf.mxu0
    %v5066 = vadd.f32 %v5052, %v5065
    %v5067 = vpop.f32.mrf.mxu0
    %v5068 = vadd.f32 %v5054, %v5067
    %5069 = vdwg.mxu0
    %5070 = vmatpush.bf16.msra.mxu0 %v3997
    %5071 = vmatpush.bf16.msra.mxu0 %v3994
    %5072 = vmatpush.bf16.msra.mxu0 %v3991
    %5073 = vmatpush.bf16.msra.mxu0 %v3988
    %5074 = vmatpush.bf16.msra.mxu0 %v3985
    %5075 = vmatpush.bf16.msra.mxu0 %v3982
    %5076 = vmatpush.bf16.msra.mxu0 %v3979
    %5077 = vmatpush.bf16.msra.mxu0 %v3976
    %5078 = vmatmul.bf16.gmra.mxu0 %v1882
    %v5079 = vpop.f32.mrf.mxu0
    %v5080 = vadd.f32 %v5066, %v5079
    %v5081 = vpop.f32.mrf.mxu0
    %v5082 = vadd.f32 %v5068, %v5081
    %5083 = vdwg.mxu0
    %5084 = vmatpush.bf16.msra.mxu0 %v4021
    %5085 = vmatpush.bf16.msra.mxu0 %v4018
    %5086 = vmatpush.bf16.msra.mxu0 %v4015
    %5087 = vmatpush.bf16.msra.mxu0 %v4012
    %5088 = vmatpush.bf16.msra.mxu0 %v4009
    %5089 = vmatpush.bf16.msra.mxu0 %v4006
    %5090 = vmatpush.bf16.msra.mxu0 %v4003
    %5091 = vmatpush.bf16.msra.mxu0 %v4000
    %5092 = vmatmul.bf16.gmra.mxu0 %v1883
    %v5093 = vpop.f32.mrf.mxu0
    %v5094 = vadd.f32 %v5080, %v5093
    %v5095 = vpop.f32.mrf.mxu0
    %v5096 = vadd.f32 %v5082, %v5095
    %5097 = vdwg.mxu0
    %5098 = vmatpush.bf16.msra.mxu0 %v4045
    %5099 = vmatpush.bf16.msra.mxu0 %v4042
    %5100 = vmatpush.bf16.msra.mxu0 %v4039
    %5101 = vmatpush.bf16.msra.mxu0 %v4036
    %5102 = vmatpush.bf16.msra.mxu0 %v4033
    %5103 = vmatpush.bf16.msra.mxu0 %v4030
    %5104 = vmatpush.bf16.msra.mxu0 %v4027
    %5105 = vmatpush.bf16.msra.mxu0 %v4024
    %5106 = vmatmul.bf16.gmra.mxu0 %v1884
    %v5107 = vpop.f32.mrf.mxu0
    %v5108 = vadd.f32 %v5094, %v5107
    %v5109 = vpop.f32.mrf.mxu0
    %v5110 = vadd.f32 %v5096, %v5109
    %5111 = vdwg.mxu0
    %5112 = vmatpush.bf16.msra.mxu0 %v4069
    %5113 = vmatpush.bf16.msra.mxu0 %v4066
    %5114 = vmatpush.bf16.msra.mxu0 %v4063
    %5115 = vmatpush.bf16.msra.mxu0 %v4060
    %5116 = vmatpush.bf16.msra.mxu0 %v4057
    %5117 = vmatpush.bf16.msra.mxu0 %v4054
    %5118 = vmatpush.bf16.msra.mxu0 %v4051
    %5119 = vmatpush.bf16.msra.mxu0 %v4048
    %5120 = vmatmul.bf16.gmra.mxu0 %v1885
    %v5121 = vpop.f32.mrf.mxu0
    %v5122 = vadd.f32 %v5108, %v5121
    %v5123 = vpop.f32.mrf.mxu0
    %v5124 = vadd.f32 %v5110, %v5123
    %5125 = vdwg.mxu0
    %v5126 = vld [vmem:[%s29] sm:$0xff]
    %v5127 = vld [vmem:[%s29 + $0x8] sm:$0xff]
    %v5128 = vld [vmem:[%s29 + $0x10] sm:$0xff]
    %v5129 = vld [vmem:[%s29 + $0x18] sm:$0xff]
    %v5130 = vld [vmem:[%s29 + $0x20] sm:$0xff]
    %v5131 = vld [vmem:[%s29 + $0x28] sm:$0xff]
    %v5132 = vld [vmem:[%s29 + $0x30] sm:$0xff]
    %v5133 = vld [vmem:[%s29 + $0x38] sm:$0xff]
    %v5134 = vld [vmem:[%s29 + $0x40] sm:$0xff]
    %v5135 = vld [vmem:[%s29 + $0x48] sm:$0xff]
    %v5136 = vld [vmem:[%s29 + $0x50] sm:$0xff]
    %v5137 = vld [vmem:[%s29 + $0x58] sm:$0xff]
    %v5138 = vld [vmem:[%s29 + $0x60] sm:$0xff]
    %v5139 = vld [vmem:[%s29 + $0x68] sm:$0xff]
    %v5140 = vld [vmem:[%s29 + $0x70] sm:$0xff]
    %v5141 = vld [vmem:[%s29 + $0x78] sm:$0xff]
    %v5144 = vrot.slane %v4676, 7
    %v5145 = vrot.slane %v4900, 7
    %v5148 = vsel %vm1222, %v4674, %v5144
    %v5149 = vsel %vm1222, %v4898, %v5145
    %vm5150 = vcmask 523264
    %v5151 = vsel %vm5150, 0.0, 0
    %5153 = vmatpush.msra.mxu0 0.0
    %5154 = vmatpush.msra.mxu0 0.0
    %5155 = vmatpush.msra.mxu0 0.0
    %5156 = vmatpush.msra.mxu0 0.0
    %5157 = vmatpush.msra.mxu0 0.0
    %5158 = vmatpush.msra.mxu0 0.0
    %5159 = vmatpush.msra.mxu0 0.0
    %5160 = vmatpush.msra.mxu0 0.0
    %5161 = vmatpush.msra.mxu0 %v5140
    %5162 = vmatpush.msra.mxu0 %v5138
    %5163 = vmatpush.msra.mxu0 %v5136
    %5164 = vmatpush.msra.mxu0 %v5134
    %5165 = vmatpush.msra.mxu0 %v5132
    %5166 = vmatpush.msra.mxu0 %v5130
    %5167 = vmatpush.msra.mxu0 %v5128
    %5168 = vmatpush.msra.mxu0 %v5126
    %5169 = vmatmul.f32.gmra.mxu0 %v5151
    %v5170 = vpop.f32.mrf.mxu0
    %v5171 = vadd.f32 0.0, %v5170
    %5172 = vdwg.mxu0
    %5173 = vmatpush.msra.mxu0 0.0
    %5174 = vmatpush.msra.mxu0 0.0
    %5175 = vmatpush.msra.mxu0 0.0
    %5176 = vmatpush.msra.mxu0 0.0
    %5177 = vmatpush.msra.mxu0 0.0
    %5178 = vmatpush.msra.mxu0 0.0
    %5179 = vmatpush.msra.mxu0 0.0
    %5180 = vmatpush.msra.mxu0 0.0
    %5181 = vmatpush.msra.mxu0 %v5141
    %5182 = vmatpush.msra.mxu0 %v5139
    %5183 = vmatpush.msra.mxu0 %v5137
    %5184 = vmatpush.msra.mxu0 %v5135
    %5185 = vmatpush.msra.mxu0 %v5133
    %5186 = vmatpush.msra.mxu0 %v5131
    %5187 = vmatpush.msra.mxu0 %v5129
    %5188 = vmatpush.msra.mxu0 %v5127
    %5189 = vmatmul.f32.gmra.mxu0 %v5151
    %v5190 = vpop.f32.mrf.mxu0
    %v5191 = vadd.f32 0.0, %v5190
    %5192 = vdwg.mxu0
    %v5193 = vadd.f32 %v5148, %v5171
    %v5194 = vadd.f32 %v5149, %v5191
    %v5195 = vxor.u32 %v5193, 2147483648
    %v5196 = vmul.f32 %v5195, 1.442695
    %v5197 = vpow.pop %v5196
    %v5198 = vadd.f32 %v5197, 1.0
    %v5199 = vrcp.pop %v5198
    %v5200 = vmul.f32 %v5198, %v5199
    %v5201 = vsub.f32 1.0, %v5200
    %v5202 = vmul.f32 %v5199, %v5201
    %v5203 = vadd.f32 %v5199, %v5202
    %vm5204 = vweird.f32 %v5198
    %vm5205 = vweird.f32 %v5199
    %vm5206 = vmor %vm5204, %vm5205
    %v5207 = vsel %vm5206, %v5199, %v5203
    %v5208 = vand.u32 2147483647, %v5198
    %vm5209 = vcmp.eq.f32.partialorder %v5208, 8.507059e+37
    %v5210 = vand.u32 %v5198, 2147483648
    %v5211 = vor.u32 1.1754944e-38, %v5210
    %v5212 = vsel %vm5209, %v5211, %v5207
    %v5213 = vmul.f32 1.0, %v5212
    %v5214 = vtanh.pop %v5194
    %v5215 = vxor.u32 %v5194, 2147483648
    %v5216 = vmul.f32 %v5215, 1.442695
    %v5217 = vpow.pop %v5216
    %v5218 = vadd.f32 %v5217, 1.0
    %v5219 = vrcp.pop %v5218
    %v5220 = vmul.f32 %v5218, %v5219
    %v5221 = vsub.f32 1.0, %v5220
    %v5222 = vmul.f32 %v5219, %v5221
    %v5223 = vadd.f32 %v5219, %v5222
    %vm5224 = vweird.f32 %v5218
    %vm5225 = vweird.f32 %v5219
    %vm5226 = vmor %vm5224, %vm5225
    %v5227 = vsel %vm5226, %v5219, %v5223
    %v5228 = vand.u32 2147483647, %v5218
    %vm5229 = vcmp.eq.f32.partialorder %v5228, 8.507059e+37
    %v5230 = vand.u32 %v5218, 2147483648
    %v5231 = vor.u32 1.1754944e-38, %v5230
    %v5232 = vsel %vm5229, %v5231, %v5227
    %v5233 = vmul.f32 1.0, %v5232
    %v5234 = vmul.f32 %v5213, 0.0
    %v5235 = vmul.f32 %v5213, %v5214
    %5237 = vrot.lane.b32.xlu0 %v5235, 64
    %v5238 = vpop.permute.xlu0 %5237
    %v5240 = vadd.f32 %v5234, %v5238
    %v5241 = vtanh.pop %v5240
    %v5242 = vmul.f32 %v5233, %v5241
    %vm5243 = vcmp.gt.s32.totalorder %v1145, 0
    %v5244 = vsel %vm5243, 1, 0
    %vm5245 = vcmp.eq.s32.totalorder %v5244, 1
    %v5246 = vsel %vm5245, %v5242, 0.0
    %v5247 = vsel %vm5245, %v5240, 0.0
    %v5250 = vrot.slane %v4674, 1
    %v5251 = vrot.slane %v4898, 1
    %v5254 = vsel %vm1222, %v5250, %v4676
    %v5255 = vsel %vm1222, %v5251, %v4900
    %5257 = vrot.lane.b32.xlu0 %v5246, 64
    %v5258 = vpop.permute.xlu0 %5257
    %v5259 = vsel %vm5150, %v5258, 0
    %5261 = vmatpush.msra.mxu0 0.0
    %5262 = vmatpush.msra.mxu0 0.0
    %5263 = vmatpush.msra.mxu0 0.0
    %5264 = vmatpush.msra.mxu0 0.0
    %5265 = vmatpush.msra.mxu0 0.0
    %5266 = vmatpush.msra.mxu0 0.0
    %5267 = vmatpush.msra.mxu0 0.0
    %5268 = vmatpush.msra.mxu0 0.0
    %5269 = vmatpush.msra.mxu0 %v5140
    %5270 = vmatpush.msra.mxu0 %v5138
    %5271 = vmatpush.msra.mxu0 %v5136
    %5272 = vmatpush.msra.mxu0 %v5134
    %5273 = vmatpush.msra.mxu0 %v5132
    %5274 = vmatpush.msra.mxu0 %v5130
    %5275 = vmatpush.msra.mxu0 %v5128
    %5276 = vmatpush.msra.mxu0 %v5126
    %5277 = vmatmul.f32.gmra.mxu0 %v5259
    %v5278 = vpop.f32.mrf.mxu0
    %v5279 = vadd.f32 0.0, %v5278
    %5280 = vdwg.mxu0
    %5281 = vmatpush.msra.mxu0 0.0
    %5282 = vmatpush.msra.mxu0 0.0
    %5283 = vmatpush.msra.mxu0 0.0
    %5284 = vmatpush.msra.mxu0 0.0
    %5285 = vmatpush.msra.mxu0 0.0
    %5286 = vmatpush.msra.mxu0 0.0
    %5287 = vmatpush.msra.mxu0 0.0
    %5288 = vmatpush.msra.mxu0 0.0
    %5289 = vmatpush.msra.mxu0 %v5141
    %5290 = vmatpush.msra.mxu0 %v5139
    %5291 = vmatpush.msra.mxu0 %v5137
    %5292 = vmatpush.msra.mxu0 %v5135
    %5293 = vmatpush.msra.mxu0 %v5133
    %5294 = vmatpush.msra.mxu0 %v5131
    %5295 = vmatpush.msra.mxu0 %v5129
    %5296 = vmatpush.msra.mxu0 %v5127
    %5297 = vmatmul.f32.gmra.mxu0 %v5259
    %v5298 = vpop.f32.mrf.mxu0
    %v5299 = vadd.f32 0.0, %v5298
    %5300 = vdwg.mxu0
    %v5301 = vadd.f32 %v5254, %v5279
    %v5302 = vadd.f32 %v5255, %v5299
    %v5303 = vxor.u32 %v5301, 2147483648
    %v5304 = vmul.f32 %v5303, 1.442695
    %v5305 = vpow.pop %v5304
    %v5306 = vadd.f32 %v5305, 1.0
    %v5307 = vrcp.pop %v5306
    %v5308 = vmul.f32 %v5306, %v5307
    %v5309 = vsub.f32 1.0, %v5308
    %v5310 = vmul.f32 %v5307, %v5309
    %v5311 = vadd.f32 %v5307, %v5310
    %vm5312 = vweird.f32 %v5306
    %vm5313 = vweird.f32 %v5307
    %vm5314 = vmor %vm5312, %vm5313
    %v5315 = vsel %vm5314, %v5307, %v5311
    %v5316 = vand.u32 2147483647, %v5306
    %vm5317 = vcmp.eq.f32.partialorder %v5316, 8.507059e+37
    %v5318 = vand.u32 %v5306, 2147483648
    %v5319 = vor.u32 1.1754944e-38, %v5318
    %v5320 = vsel %vm5317, %v5319, %v5315
    %v5321 = vmul.f32 1.0, %v5320
    %v5322 = vtanh.pop %v5302
    %v5323 = vxor.u32 %v5302, 2147483648
    %v5324 = vmul.f32 %v5323, 1.442695
    %v5325 = vpow.pop %v5324
    %v5326 = vadd.f32 %v5325, 1.0
    %v5327 = vrcp.pop %v5326
    %v5328 = vmul.f32 %v5326, %v5327
    %v5329 = vsub.f32 1.0, %v5328
    %v5330 = vmul.f32 %v5327, %v5329
    %v5331 = vadd.f32 %v5327, %v5330
    %vm5332 = vweird.f32 %v5326
    %vm5333 = vweird.f32 %v5327
    %vm5334 = vmor %vm5332, %vm5333
    %v5335 = vsel %vm5334, %v5327, %v5331
    %v5336 = vand.u32 2147483647, %v5326
    %vm5337 = vcmp.eq.f32.partialorder %v5336, 8.507059e+37
    %v5338 = vand.u32 %v5326, 2147483648
    %v5339 = vor.u32 1.1754944e-38, %v5338
    %v5340 = vsel %vm5337, %v5339, %v5335
    %v5341 = vmul.f32 1.0, %v5340
    %v5342 = vmul.f32 %v5321, %v5247
    %v5343 = vmul.f32 %v5321, %v5322
    %5345 = vrot.lane.b32.xlu0 %v5343, 64
    %v5346 = vpop.permute.xlu0 %5345
    %v5348 = vadd.f32 %v5342, %v5346
    %v5349 = vtanh.pop %v5348
    %v5350 = vmul.f32 %v5341, %v5349
    %vm5351 = vcmp.gt.s32.totalorder %v1145, 1
    %v5352 = vsel %vm5351, 1, 0
    %vm5353 = vcmp.eq.s32.totalorder %v5352, 1
    %v5354 = vsel %vm5353, %v5350, %v5246
    %v5355 = vsel %vm5353, %v5348, %v5247
    %v5356 = vrot.slane %v4674, 2
    %v5357 = vrot.slane %v4898, 2
    %v5360 = vrot.slane %v4676, 1
    %v5361 = vrot.slane %v4900, 1
    %v5364 = vsel %vm1222, %v5356, %v5360
    %v5365 = vsel %vm1222, %v5357, %v5361
    %5367 = vrot.lane.b32.xlu0 %v5354, 64
    %v5368 = vpop.permute.xlu0 %5367
    %v5369 = vsel %vm5150, %v5368, 0
    %5371 = vmatpush.msra.mxu0 0.0
    %5372 = vmatpush.msra.mxu0 0.0
    %5373 = vmatpush.msra.mxu0 0.0
    %5374 = vmatpush.msra.mxu0 0.0
    %5375 = vmatpush.msra.mxu0 0.0
    %5376 = vmatpush.msra.mxu0 0.0
    %5377 = vmatpush.msra.mxu0 0.0
    %5378 = vmatpush.msra.mxu0 0.0
    %5379 = vmatpush.msra.mxu0 %v5140
    %5380 = vmatpush.msra.mxu0 %v5138
    %5381 = vmatpush.msra.mxu0 %v5136
    %5382 = vmatpush.msra.mxu0 %v5134
    %5383 = vmatpush.msra.mxu0 %v5132
    %5384 = vmatpush.msra.mxu0 %v5130
    %5385 = vmatpush.msra.mxu0 %v5128
    %5386 = vmatpush.msra.mxu0 %v5126
    %5387 = vmatmul.f32.gmra.mxu0 %v5369
    %v5388 = vpop.f32.mrf.mxu0
    %v5389 = vadd.f32 0.0, %v5388
    %5390 = vdwg.mxu0
    %5391 = vmatpush.msra.mxu0 0.0
    %5392 = vmatpush.msra.mxu0 0.0
    %5393 = vmatpush.msra.mxu0 0.0
    %5394 = vmatpush.msra.mxu0 0.0
    %5395 = vmatpush.msra.mxu0 0.0
    %5396 = vmatpush.msra.mxu0 0.0
    %5397 = vmatpush.msra.mxu0 0.0
    %5398 = vmatpush.msra.mxu0 0.0
    %5399 = vmatpush.msra.mxu0 %v5141
    %5400 = vmatpush.msra.mxu0 %v5139
    %5401 = vmatpush.msra.mxu0 %v5137
    %5402 = vmatpush.msra.mxu0 %v5135
    %5403 = vmatpush.msra.mxu0 %v5133
    %5404 = vmatpush.msra.mxu0 %v5131
    %5405 = vmatpush.msra.mxu0 %v5129
    %5406 = vmatpush.msra.mxu0 %v5127
    %5407 = vmatmul.f32.gmra.mxu0 %v5369
    %v5408 = vpop.f32.mrf.mxu0
    %v5409 = vadd.f32 0.0, %v5408
    %5410 = vdwg.mxu0
    %v5411 = vadd.f32 %v5364, %v5389
    %v5412 = vadd.f32 %v5365, %v5409
    %v5413 = vxor.u32 %v5411, 2147483648
    %v5414 = vmul.f32 %v5413, 1.442695
    %v5415 = vpow.pop %v5414
    %v5416 = vadd.f32 %v5415, 1.0
    %v5417 = vrcp.pop %v5416
    %v5418 = vmul.f32 %v5416, %v5417
    %v5419 = vsub.f32 1.0, %v5418
    %v5420 = vmul.f32 %v5417, %v5419
    %v5421 = vadd.f32 %v5417, %v5420
    %vm5422 = vweird.f32 %v5416
    %vm5423 = vweird.f32 %v5417
    %vm5424 = vmor %vm5422, %vm5423
    %v5425 = vsel %vm5424, %v5417, %v5421
    %v5426 = vand.u32 2147483647, %v5416
    %vm5427 = vcmp.eq.f32.partialorder %v5426, 8.507059e+37
    %v5428 = vand.u32 %v5416, 2147483648
    %v5429 = vor.u32 1.1754944e-38, %v5428
    %v5430 = vsel %vm5427, %v5429, %v5425
    %v5431 = vmul.f32 1.0, %v5430
    %v5432 = vtanh.pop %v5412
    %v5433 = vxor.u32 %v5412, 2147483648
    %v5434 = vmul.f32 %v5433, 1.442695
    %v5435 = vpow.pop %v5434
    %v5436 = vadd.f32 %v5435, 1.0
    %v5437 = vrcp.pop %v5436
    %v5438 = vmul.f32 %v5436, %v5437
    %v5439 = vsub.f32 1.0, %v5438
    %v5440 = vmul.f32 %v5437, %v5439
    %v5441 = vadd.f32 %v5437, %v5440
    %vm5442 = vweird.f32 %v5436
    %vm5443 = vweird.f32 %v5437
    %vm5444 = vmor %vm5442, %vm5443
    %v5445 = vsel %vm5444, %v5437, %v5441
    %v5446 = vand.u32 2147483647, %v5436
    %vm5447 = vcmp.eq.f32.partialorder %v5446, 8.507059e+37
    %v5448 = vand.u32 %v5436, 2147483648
    %v5449 = vor.u32 1.1754944e-38, %v5448
    %v5450 = vsel %vm5447, %v5449, %v5445
    %v5451 = vmul.f32 1.0, %v5450
    %v5452 = vmul.f32 %v5431, %v5355
    %v5453 = vmul.f32 %v5431, %v5432
    %5455 = vrot.lane.b32.xlu0 %v5453, 64
    %v5456 = vpop.permute.xlu0 %5455
    %v5458 = vadd.f32 %v5452, %v5456
    %v5459 = vtanh.pop %v5458
    %v5460 = vmul.f32 %v5451, %v5459
    %vm5461 = vcmp.gt.s32.totalorder %v1145, 2
    %v5462 = vsel %vm5461, 1, 0
    %vm5463 = vcmp.eq.s32.totalorder %v5462, 1
    %v5464 = vsel %vm5463, %v5460, %v5354
    %v5465 = vsel %vm5463, %v5458, %v5355
    %v5466 = vrot.slane %v4674, 3
    %v5467 = vrot.slane %v4898, 3
    %v5470 = vrot.slane %v4676, 2
    %v5471 = vrot.slane %v4900, 2
    %v5474 = vsel %vm1222, %v5466, %v5470
    %v5475 = vsel %vm1222, %v5467, %v5471
    %5477 = vrot.lane.b32.xlu0 %v5464, 64
    %v5478 = vpop.permute.xlu0 %5477
    %v5479 = vsel %vm5150, %v5478, 0
    %5481 = vmatpush.msra.mxu0 0.0
    %5482 = vmatpush.msra.mxu0 0.0
    %5483 = vmatpush.msra.mxu0 0.0
    %5484 = vmatpush.msra.mxu0 0.0
    %5485 = vmatpush.msra.mxu0 0.0
    %5486 = vmatpush.msra.mxu0 0.0
    %5487 = vmatpush.msra.mxu0 0.0
    %5488 = vmatpush.msra.mxu0 0.0
    %5489 = vmatpush.msra.mxu0 %v5140
    %5490 = vmatpush.msra.mxu0 %v5138
    %5491 = vmatpush.msra.mxu0 %v5136
    %5492 = vmatpush.msra.mxu0 %v5134
    %5493 = vmatpush.msra.mxu0 %v5132
    %5494 = vmatpush.msra.mxu0 %v5130
    %5495 = vmatpush.msra.mxu0 %v5128
    %5496 = vmatpush.msra.mxu0 %v5126
    %5497 = vmatmul.f32.gmra.mxu0 %v5479
    %v5498 = vpop.f32.mrf.mxu0
    %v5499 = vadd.f32 0.0, %v5498
    %5500 = vdwg.mxu0
    %5501 = vmatpush.msra.mxu0 0.0
    %5502 = vmatpush.msra.mxu0 0.0
    %5503 = vmatpush.msra.mxu0 0.0
    %5504 = vmatpush.msra.mxu0 0.0
    %5505 = vmatpush.msra.mxu0 0.0
    %5506 = vmatpush.msra.mxu0 0.0
    %5507 = vmatpush.msra.mxu0 0.0
    %5508 = vmatpush.msra.mxu0 0.0
    %5509 = vmatpush.msra.mxu0 %v5141
    %5510 = vmatpush.msra.mxu0 %v5139
    %5511 = vmatpush.msra.mxu0 %v5137
    %5512 = vmatpush.msra.mxu0 %v5135
    %5513 = vmatpush.msra.mxu0 %v5133
    %5514 = vmatpush.msra.mxu0 %v5131
    %5515 = vmatpush.msra.mxu0 %v5129
    %5516 = vmatpush.msra.mxu0 %v5127
    %5517 = vmatmul.f32.gmra.mxu0 %v5479
    %v5518 = vpop.f32.mrf.mxu0
    %v5519 = vadd.f32 0.0, %v5518
    %5520 = vdwg.mxu0
    %v5521 = vadd.f32 %v5474, %v5499
    %v5522 = vadd.f32 %v5475, %v5519
    %v5523 = vxor.u32 %v5521, 2147483648
    %v5524 = vmul.f32 %v5523, 1.442695
    %v5525 = vpow.pop %v5524
    %v5526 = vadd.f32 %v5525, 1.0
    %v5527 = vrcp.pop %v5526
    %v5528 = vmul.f32 %v5526, %v5527
    %v5529 = vsub.f32 1.0, %v5528
    %v5530 = vmul.f32 %v5527, %v5529
    %v5531 = vadd.f32 %v5527, %v5530
    %vm5532 = vweird.f32 %v5526
    %vm5533 = vweird.f32 %v5527
    %vm5534 = vmor %vm5532, %vm5533
    %v5535 = vsel %vm5534, %v5527, %v5531
    %v5536 = vand.u32 2147483647, %v5526
    %vm5537 = vcmp.eq.f32.partialorder %v5536, 8.507059e+37
    %v5538 = vand.u32 %v5526, 2147483648
    %v5539 = vor.u32 1.1754944e-38, %v5538
    %v5540 = vsel %vm5537, %v5539, %v5535
    %v5541 = vmul.f32 1.0, %v5540
    %v5542 = vtanh.pop %v5522
    %v5543 = vxor.u32 %v5522, 2147483648
    %v5544 = vmul.f32 %v5543, 1.442695
    %v5545 = vpow.pop %v5544
    %v5546 = vadd.f32 %v5545, 1.0
    %v5547 = vrcp.pop %v5546
    %v5548 = vmul.f32 %v5546, %v5547
    %v5549 = vsub.f32 1.0, %v5548
    %v5550 = vmul.f32 %v5547, %v5549
    %v5551 = vadd.f32 %v5547, %v5550
    %vm5552 = vweird.f32 %v5546
    %vm5553 = vweird.f32 %v5547
    %vm5554 = vmor %vm5552, %vm5553
    %v5555 = vsel %vm5554, %v5547, %v5551
    %v5556 = vand.u32 2147483647, %v5546
    %vm5557 = vcmp.eq.f32.partialorder %v5556, 8.507059e+37
    %v5558 = vand.u32 %v5546, 2147483648
    %v5559 = vor.u32 1.1754944e-38, %v5558
    %v5560 = vsel %vm5557, %v5559, %v5555
    %v5561 = vmul.f32 1.0, %v5560
    %v5562 = vmul.f32 %v5541, %v5465
    %v5563 = vmul.f32 %v5541, %v5542
    %5565 = vrot.lane.b32.xlu0 %v5563, 64
    %v5566 = vpop.permute.xlu0 %5565
    %v5568 = vadd.f32 %v5562, %v5566
    %v5569 = vtanh.pop %v5568
    %v5570 = vmul.f32 %v5561, %v5569
    %vm5571 = vcmp.gt.s32.totalorder %v1145, 3
    %v5572 = vsel %vm5571, 1, 0
    %vm5573 = vcmp.eq.s32.totalorder %v5572, 1
    %v5574 = vsel %vm5573, %v5570, %v5464
    %v5575 = vsel %vm5573, %v5568, %v5465
    %v5576 = vrot.slane %v4674, 4
    %v5577 = vrot.slane %v4898, 4
    %v5580 = vrot.slane %v4676, 3
    %v5581 = vrot.slane %v4900, 3
    %v5584 = vsel %vm1222, %v5576, %v5580
    %v5585 = vsel %vm1222, %v5577, %v5581
    %5587 = vrot.lane.b32.xlu0 %v5574, 64
    %v5588 = vpop.permute.xlu0 %5587
    %v5589 = vsel %vm5150, %v5588, 0
    %5591 = vmatpush.msra.mxu0 0.0
    %5592 = vmatpush.msra.mxu0 0.0
    %5593 = vmatpush.msra.mxu0 0.0
    %5594 = vmatpush.msra.mxu0 0.0
    %5595 = vmatpush.msra.mxu0 0.0
    %5596 = vmatpush.msra.mxu0 0.0
    %5597 = vmatpush.msra.mxu0 0.0
    %5598 = vmatpush.msra.mxu0 0.0
    %5599 = vmatpush.msra.mxu0 %v5140
    %5600 = vmatpush.msra.mxu0 %v5138
    %5601 = vmatpush.msra.mxu0 %v5136
    %5602 = vmatpush.msra.mxu0 %v5134
    %5603 = vmatpush.msra.mxu0 %v5132
    %5604 = vmatpush.msra.mxu0 %v5130
    %5605 = vmatpush.msra.mxu0 %v5128
    %5606 = vmatpush.msra.mxu0 %v5126
    %5607 = vmatmul.f32.gmra.mxu0 %v5589
    %v5608 = vpop.f32.mrf.mxu0
    %v5609 = vadd.f32 0.0, %v5608
    %5610 = vdwg.mxu0
    %5611 = vmatpush.msra.mxu0 0.0
    %5612 = vmatpush.msra.mxu0 0.0
    %5613 = vmatpush.msra.mxu0 0.0
    %5614 = vmatpush.msra.mxu0 0.0
    %5615 = vmatpush.msra.mxu0 0.0
    %5616 = vmatpush.msra.mxu0 0.0
    %5617 = vmatpush.msra.mxu0 0.0
    %5618 = vmatpush.msra.mxu0 0.0
    %5619 = vmatpush.msra.mxu0 %v5141
    %5620 = vmatpush.msra.mxu0 %v5139
    %5621 = vmatpush.msra.mxu0 %v5137
    %5622 = vmatpush.msra.mxu0 %v5135
    %5623 = vmatpush.msra.mxu0 %v5133
    %5624 = vmatpush.msra.mxu0 %v5131
    %5625 = vmatpush.msra.mxu0 %v5129
    %5626 = vmatpush.msra.mxu0 %v5127
    %5627 = vmatmul.f32.gmra.mxu0 %v5589
    %v5628 = vpop.f32.mrf.mxu0
    %v5629 = vadd.f32 0.0, %v5628
    %5630 = vdwg.mxu0
    %v5631 = vadd.f32 %v5584, %v5609
    %v5632 = vadd.f32 %v5585, %v5629
    %v5633 = vxor.u32 %v5631, 2147483648
    %v5634 = vmul.f32 %v5633, 1.442695
    %v5635 = vpow.pop %v5634
    %v5636 = vadd.f32 %v5635, 1.0
    %v5637 = vrcp.pop %v5636
    %v5638 = vmul.f32 %v5636, %v5637
    %v5639 = vsub.f32 1.0, %v5638
    %v5640 = vmul.f32 %v5637, %v5639
    %v5641 = vadd.f32 %v5637, %v5640
    %vm5642 = vweird.f32 %v5636
    %vm5643 = vweird.f32 %v5637
    %vm5644 = vmor %vm5642, %vm5643
    %v5645 = vsel %vm5644, %v5637, %v5641
    %v5646 = vand.u32 2147483647, %v5636
    %vm5647 = vcmp.eq.f32.partialorder %v5646, 8.507059e+37
    %v5648 = vand.u32 %v5636, 2147483648
    %v5649 = vor.u32 1.1754944e-38, %v5648
    %v5650 = vsel %vm5647, %v5649, %v5645
    %v5651 = vmul.f32 1.0, %v5650
    %v5652 = vtanh.pop %v5632
    %v5653 = vxor.u32 %v5632, 2147483648
    %v5654 = vmul.f32 %v5653, 1.442695
    %v5655 = vpow.pop %v5654
    %v5656 = vadd.f32 %v5655, 1.0
    %v5657 = vrcp.pop %v5656
    %v5658 = vmul.f32 %v5656, %v5657
    %v5659 = vsub.f32 1.0, %v5658
    %v5660 = vmul.f32 %v5657, %v5659
    %v5661 = vadd.f32 %v5657, %v5660
    %vm5662 = vweird.f32 %v5656
    %vm5663 = vweird.f32 %v5657
    %vm5664 = vmor %vm5662, %vm5663
    %v5665 = vsel %vm5664, %v5657, %v5661
    %v5666 = vand.u32 2147483647, %v5656
    %vm5667 = vcmp.eq.f32.partialorder %v5666, 8.507059e+37
    %v5668 = vand.u32 %v5656, 2147483648
    %v5669 = vor.u32 1.1754944e-38, %v5668
    %v5670 = vsel %vm5667, %v5669, %v5665
    %v5671 = vmul.f32 1.0, %v5670
    %v5672 = vmul.f32 %v5651, %v5575
    %v5673 = vmul.f32 %v5651, %v5652
    %5675 = vrot.lane.b32.xlu0 %v5673, 64
    %v5676 = vpop.permute.xlu0 %5675
    %v5678 = vadd.f32 %v5672, %v5676
    %v5679 = vtanh.pop %v5678
    %v5680 = vmul.f32 %v5671, %v5679
    %vm5681 = vcmp.gt.s32.totalorder %v1145, 4
    %v5682 = vsel %vm5681, 1, 0
    %vm5683 = vcmp.eq.s32.totalorder %v5682, 1
    %v5684 = vsel %vm5683, %v5680, %v5574
    %v5685 = vsel %vm5683, %v5678, %v5575
    %v5686 = vrot.slane %v4674, 5
    %v5687 = vrot.slane %v4898, 5
    %v5690 = vrot.slane %v4676, 4
    %v5691 = vrot.slane %v4900, 4
    %v5694 = vsel %vm1222, %v5686, %v5690
    %v5695 = vsel %vm1222, %v5687, %v5691
    %5697 = vrot.lane.b32.xlu0 %v5684, 64
    %v5698 = vpop.permute.xlu0 %5697
    %v5699 = vsel %vm5150, %v5698, 0
    %5701 = vmatpush.msra.mxu0 0.0
    %5702 = vmatpush.msra.mxu0 0.0
    %5703 = vmatpush.msra.mxu0 0.0
    %5704 = vmatpush.msra.mxu0 0.0
    %5705 = vmatpush.msra.mxu0 0.0
    %5706 = vmatpush.msra.mxu0 0.0
    %5707 = vmatpush.msra.mxu0 0.0
    %5708 = vmatpush.msra.mxu0 0.0
    %5709 = vmatpush.msra.mxu0 %v5140
    %5710 = vmatpush.msra.mxu0 %v5138
    %5711 = vmatpush.msra.mxu0 %v5136
    %5712 = vmatpush.msra.mxu0 %v5134
    %5713 = vmatpush.msra.mxu0 %v5132
    %5714 = vmatpush.msra.mxu0 %v5130
    %5715 = vmatpush.msra.mxu0 %v5128
    %5716 = vmatpush.msra.mxu0 %v5126
    %5717 = vmatmul.f32.gmra.mxu0 %v5699
    %v5718 = vpop.f32.mrf.mxu0
    %v5719 = vadd.f32 0.0, %v5718
    %5720 = vdwg.mxu0
    %5721 = vmatpush.msra.mxu0 0.0
    %5722 = vmatpush.msra.mxu0 0.0
    %5723 = vmatpush.msra.mxu0 0.0
    %5724 = vmatpush.msra.mxu0 0.0
    %5725 = vmatpush.msra.mxu0 0.0
    %5726 = vmatpush.msra.mxu0 0.0
    %5727 = vmatpush.msra.mxu0 0.0
    %5728 = vmatpush.msra.mxu0 0.0
    %5729 = vmatpush.msra.mxu0 %v5141
    %5730 = vmatpush.msra.mxu0 %v5139
    %5731 = vmatpush.msra.mxu0 %v5137
    %5732 = vmatpush.msra.mxu0 %v5135
    %5733 = vmatpush.msra.mxu0 %v5133
    %5734 = vmatpush.msra.mxu0 %v5131
    %5735 = vmatpush.msra.mxu0 %v5129
    %5736 = vmatpush.msra.mxu0 %v5127
    %5737 = vmatmul.f32.gmra.mxu0 %v5699
    %v5738 = vpop.f32.mrf.mxu0
    %v5739 = vadd.f32 0.0, %v5738
    %5740 = vdwg.mxu0
    %v5741 = vadd.f32 %v5694, %v5719
    %v5742 = vadd.f32 %v5695, %v5739
    %v5743 = vxor.u32 %v5741, 2147483648
    %v5744 = vmul.f32 %v5743, 1.442695
    %v5745 = vpow.pop %v5744
    %v5746 = vadd.f32 %v5745, 1.0
    %v5747 = vrcp.pop %v5746
    %v5748 = vmul.f32 %v5746, %v5747
    %v5749 = vsub.f32 1.0, %v5748
    %v5750 = vmul.f32 %v5747, %v5749
    %v5751 = vadd.f32 %v5747, %v5750
    %vm5752 = vweird.f32 %v5746
    %vm5753 = vweird.f32 %v5747
    %vm5754 = vmor %vm5752, %vm5753
    %v5755 = vsel %vm5754, %v5747, %v5751
    %v5756 = vand.u32 2147483647, %v5746
    %vm5757 = vcmp.eq.f32.partialorder %v5756, 8.507059e+37
    %v5758 = vand.u32 %v5746, 2147483648
    %v5759 = vor.u32 1.1754944e-38, %v5758
    %v5760 = vsel %vm5757, %v5759, %v5755
    %v5761 = vmul.f32 1.0, %v5760
    %v5762 = vtanh.pop %v5742
    %v5763 = vxor.u32 %v5742, 2147483648
    %v5764 = vmul.f32 %v5763, 1.442695
    %v5765 = vpow.pop %v5764
    %v5766 = vadd.f32 %v5765, 1.0
    %v5767 = vrcp.pop %v5766
    %v5768 = vmul.f32 %v5766, %v5767
    %v5769 = vsub.f32 1.0, %v5768
    %v5770 = vmul.f32 %v5767, %v5769
    %v5771 = vadd.f32 %v5767, %v5770
    %vm5772 = vweird.f32 %v5766
    %vm5773 = vweird.f32 %v5767
    %vm5774 = vmor %vm5772, %vm5773
    %v5775 = vsel %vm5774, %v5767, %v5771
    %v5776 = vand.u32 2147483647, %v5766
    %vm5777 = vcmp.eq.f32.partialorder %v5776, 8.507059e+37
    %v5778 = vand.u32 %v5766, 2147483648
    %v5779 = vor.u32 1.1754944e-38, %v5778
    %v5780 = vsel %vm5777, %v5779, %v5775
    %v5781 = vmul.f32 1.0, %v5780
    %v5782 = vmul.f32 %v5761, %v5685
    %v5783 = vmul.f32 %v5761, %v5762
    %5785 = vrot.lane.b32.xlu0 %v5783, 64
    %v5786 = vpop.permute.xlu0 %5785
    %v5788 = vadd.f32 %v5782, %v5786
    %v5789 = vtanh.pop %v5788
    %v5790 = vmul.f32 %v5781, %v5789
    %vm5791 = vcmp.gt.s32.totalorder %v1145, 5
    %v5792 = vsel %vm5791, 1, 0
    %vm5793 = vcmp.eq.s32.totalorder %v5792, 1
    %v5794 = vsel %vm5793, %v5790, %v5684
    %v5795 = vsel %vm5793, %v5788, %v5685
    %v5796 = vrot.slane %v4674, 6
    %v5797 = vrot.slane %v4898, 6
    %v5800 = vrot.slane %v4676, 5
    %v5801 = vrot.slane %v4900, 5
    %v5804 = vsel %vm1222, %v5796, %v5800
    %v5805 = vsel %vm1222, %v5797, %v5801
    %5807 = vrot.lane.b32.xlu0 %v5794, 64
    %v5808 = vpop.permute.xlu0 %5807
    %v5809 = vsel %vm5150, %v5808, 0
    %5811 = vmatpush.msra.mxu0 0.0
    %5812 = vmatpush.msra.mxu0 0.0
    %5813 = vmatpush.msra.mxu0 0.0
    %5814 = vmatpush.msra.mxu0 0.0
    %5815 = vmatpush.msra.mxu0 0.0
    %5816 = vmatpush.msra.mxu0 0.0
    %5817 = vmatpush.msra.mxu0 0.0
    %5818 = vmatpush.msra.mxu0 0.0
    %5819 = vmatpush.msra.mxu0 %v5140
    %5820 = vmatpush.msra.mxu0 %v5138
    %5821 = vmatpush.msra.mxu0 %v5136
    %5822 = vmatpush.msra.mxu0 %v5134
    %5823 = vmatpush.msra.mxu0 %v5132
    %5824 = vmatpush.msra.mxu0 %v5130
    %5825 = vmatpush.msra.mxu0 %v5128
    %5826 = vmatpush.msra.mxu0 %v5126
    %5827 = vmatmul.f32.gmra.mxu0 %v5809
    %v5828 = vpop.f32.mrf.mxu0
    %v5829 = vadd.f32 0.0, %v5828
    %5830 = vdwg.mxu0
    %5831 = vmatpush.msra.mxu0 0.0
    %5832 = vmatpush.msra.mxu0 0.0
    %5833 = vmatpush.msra.mxu0 0.0
    %5834 = vmatpush.msra.mxu0 0.0
    %5835 = vmatpush.msra.mxu0 0.0
    %5836 = vmatpush.msra.mxu0 0.0
    %5837 = vmatpush.msra.mxu0 0.0
    %5838 = vmatpush.msra.mxu0 0.0
    %5839 = vmatpush.msra.mxu0 %v5141
    %5840 = vmatpush.msra.mxu0 %v5139
    %5841 = vmatpush.msra.mxu0 %v5137
    %5842 = vmatpush.msra.mxu0 %v5135
    %5843 = vmatpush.msra.mxu0 %v5133
    %5844 = vmatpush.msra.mxu0 %v5131
    %5845 = vmatpush.msra.mxu0 %v5129
    %5846 = vmatpush.msra.mxu0 %v5127
    %5847 = vmatmul.f32.gmra.mxu0 %v5809
    %v5848 = vpop.f32.mrf.mxu0
    %v5849 = vadd.f32 0.0, %v5848
    %5850 = vdwg.mxu0
    %v5851 = vadd.f32 %v5804, %v5829
    %v5852 = vadd.f32 %v5805, %v5849
    %v5853 = vxor.u32 %v5851, 2147483648
    %v5854 = vmul.f32 %v5853, 1.442695
    %v5855 = vpow.pop %v5854
    %v5856 = vadd.f32 %v5855, 1.0
    %v5857 = vrcp.pop %v5856
    %v5858 = vmul.f32 %v5856, %v5857
    %v5859 = vsub.f32 1.0, %v5858
    %v5860 = vmul.f32 %v5857, %v5859
    %v5861 = vadd.f32 %v5857, %v5860
    %vm5862 = vweird.f32 %v5856
    %vm5863 = vweird.f32 %v5857
    %vm5864 = vmor %vm5862, %vm5863
    %v5865 = vsel %vm5864, %v5857, %v5861
    %v5866 = vand.u32 2147483647, %v5856
    %vm5867 = vcmp.eq.f32.partialorder %v5866, 8.507059e+37
    %v5868 = vand.u32 %v5856, 2147483648
    %v5869 = vor.u32 1.1754944e-38, %v5868
    %v5870 = vsel %vm5867, %v5869, %v5865
    %v5871 = vmul.f32 1.0, %v5870
    %v5872 = vtanh.pop %v5852
    %v5873 = vxor.u32 %v5852, 2147483648
    %v5874 = vmul.f32 %v5873, 1.442695
    %v5875 = vpow.pop %v5874
    %v5876 = vadd.f32 %v5875, 1.0
    %v5877 = vrcp.pop %v5876
    %v5878 = vmul.f32 %v5876, %v5877
    %v5879 = vsub.f32 1.0, %v5878
    %v5880 = vmul.f32 %v5877, %v5879
    %v5881 = vadd.f32 %v5877, %v5880
    %vm5882 = vweird.f32 %v5876
    %vm5883 = vweird.f32 %v5877
    %vm5884 = vmor %vm5882, %vm5883
    %v5885 = vsel %vm5884, %v5877, %v5881
    %v5886 = vand.u32 2147483647, %v5876
    %vm5887 = vcmp.eq.f32.partialorder %v5886, 8.507059e+37
    %v5888 = vand.u32 %v5876, 2147483648
    %v5889 = vor.u32 1.1754944e-38, %v5888
    %v5890 = vsel %vm5887, %v5889, %v5885
    %v5891 = vmul.f32 1.0, %v5890
    %v5892 = vmul.f32 %v5871, %v5795
    %v5893 = vmul.f32 %v5871, %v5872
    %5895 = vrot.lane.b32.xlu0 %v5893, 64
    %v5896 = vpop.permute.xlu0 %5895
    %v5898 = vadd.f32 %v5892, %v5896
    %v5899 = vtanh.pop %v5898
    %v5900 = vmul.f32 %v5891, %v5899
    %vm5901 = vcmp.gt.s32.totalorder %v1145, 6
    %v5902 = vsel %vm5901, 1, 0
    %vm5903 = vcmp.eq.s32.totalorder %v5902, 1
    %v5904 = vsel %vm5903, %v5900, %v5794
    %v5905 = vsel %vm5903, %v5898, %v5795
    %v5906 = vrot.slane %v4674, 7
    %v5907 = vrot.slane %v4898, 7
    %v5910 = vrot.slane %v4676, 6
    %v5911 = vrot.slane %v4900, 6
    %v5914 = vsel %vm1222, %v5906, %v5910
    %v5915 = vsel %vm1222, %v5907, %v5911
    %5917 = vrot.lane.b32.xlu0 %v5904, 64
    %v5918 = vpop.permute.xlu0 %5917
    %v5919 = vsel %vm5150, %v5918, 0
    %5921 = vmatpush.msra.mxu0 0.0
    %5922 = vmatpush.msra.mxu0 0.0
    %5923 = vmatpush.msra.mxu0 0.0
    %5924 = vmatpush.msra.mxu0 0.0
    %5925 = vmatpush.msra.mxu0 0.0
    %5926 = vmatpush.msra.mxu0 0.0
    %5927 = vmatpush.msra.mxu0 0.0
    %5928 = vmatpush.msra.mxu0 0.0
    %5929 = vmatpush.msra.mxu0 %v5140
    %5930 = vmatpush.msra.mxu0 %v5138
    %5931 = vmatpush.msra.mxu0 %v5136
    %5932 = vmatpush.msra.mxu0 %v5134
    %5933 = vmatpush.msra.mxu0 %v5132
    %5934 = vmatpush.msra.mxu0 %v5130
    %5935 = vmatpush.msra.mxu0 %v5128
    %5936 = vmatpush.msra.mxu0 %v5126
    %5937 = vmatmul.f32.gmra.mxu0 %v5919
    %v5938 = vpop.f32.mrf.mxu0
    %v5939 = vadd.f32 0.0, %v5938
    %5940 = vdwg.mxu0
    %5941 = vmatpush.msra.mxu0 0.0
    %5942 = vmatpush.msra.mxu0 0.0
    %5943 = vmatpush.msra.mxu0 0.0
    %5944 = vmatpush.msra.mxu0 0.0
    %5945 = vmatpush.msra.mxu0 0.0
    %5946 = vmatpush.msra.mxu0 0.0
    %5947 = vmatpush.msra.mxu0 0.0
    %5948 = vmatpush.msra.mxu0 0.0
    %5949 = vmatpush.msra.mxu0 %v5141
    %5950 = vmatpush.msra.mxu0 %v5139
    %5951 = vmatpush.msra.mxu0 %v5137
    %5952 = vmatpush.msra.mxu0 %v5135
    %5953 = vmatpush.msra.mxu0 %v5133
    %5954 = vmatpush.msra.mxu0 %v5131
    %5955 = vmatpush.msra.mxu0 %v5129
    %5956 = vmatpush.msra.mxu0 %v5127
    %5957 = vmatmul.f32.gmra.mxu0 %v5919
    %v5958 = vpop.f32.mrf.mxu0
    %v5959 = vadd.f32 0.0, %v5958
    %5960 = vdwg.mxu0
    %v5961 = vadd.f32 %v5914, %v5939
    %v5962 = vadd.f32 %v5915, %v5959
    %v5963 = vxor.u32 %v5961, 2147483648
    %v5964 = vmul.f32 %v5963, 1.442695
    %v5965 = vpow.pop %v5964
    %v5966 = vadd.f32 %v5965, 1.0
    %v5967 = vrcp.pop %v5966
    %v5968 = vmul.f32 %v5966, %v5967
    %v5969 = vsub.f32 1.0, %v5968
    %v5970 = vmul.f32 %v5967, %v5969
    %v5971 = vadd.f32 %v5967, %v5970
    %vm5972 = vweird.f32 %v5966
    %vm5973 = vweird.f32 %v5967
    %vm5974 = vmor %vm5972, %vm5973
    %v5975 = vsel %vm5974, %v5967, %v5971
    %v5976 = vand.u32 2147483647, %v5966
    %vm5977 = vcmp.eq.f32.partialorder %v5976, 8.507059e+37
    %v5978 = vand.u32 %v5966, 2147483648
    %v5979 = vor.u32 1.1754944e-38, %v5978
    %v5980 = vsel %vm5977, %v5979, %v5975
    %v5981 = vmul.f32 1.0, %v5980
    %v5982 = vtanh.pop %v5962
    %v5983 = vxor.u32 %v5962, 2147483648
    %v5984 = vmul.f32 %v5983, 1.442695
    %v5985 = vpow.pop %v5984
    %v5986 = vadd.f32 %v5985, 1.0
    %v5987 = vrcp.pop %v5986
    %v5988 = vmul.f32 %v5986, %v5987
    %v5989 = vsub.f32 1.0, %v5988
    %v5990 = vmul.f32 %v5987, %v5989
    %v5991 = vadd.f32 %v5987, %v5990
    %vm5992 = vweird.f32 %v5986
    %vm5993 = vweird.f32 %v5987
    %vm5994 = vmor %vm5992, %vm5993
    %v5995 = vsel %vm5994, %v5987, %v5991
    %v5996 = vand.u32 2147483647, %v5986
    %vm5997 = vcmp.eq.f32.partialorder %v5996, 8.507059e+37
    %v5998 = vand.u32 %v5986, 2147483648
    %v5999 = vor.u32 1.1754944e-38, %v5998
    %v6000 = vsel %vm5997, %v5999, %v5995
    %v6001 = vmul.f32 1.0, %v6000
    %v6002 = vmul.f32 %v5981, %v5905
    %v6003 = vmul.f32 %v5981, %v5982
    %6005 = vrot.lane.b32.xlu0 %v6003, 64
    %v6006 = vpop.permute.xlu0 %6005
    %v6008 = vadd.f32 %v6002, %v6006
    %v6009 = vtanh.pop %v6008
    %v6010 = vmul.f32 %v6001, %v6009
    %vm6011 = vcmp.gt.s32.totalorder %v1145, 7
    %v6012 = vsel %vm6011, 1, 0
    %vm6013 = vcmp.eq.s32.totalorder %v6012, 1
    %v6014 = vsel %vm6013, %v6010, %v5904
    %v6015 = vmax.f32 %v5122, 0.0
    %v6016 = vmax.f32 %v5124, 0.0
    %v6017 = vld [vmem:[%s37] sm:$0xff]
    %v6018 = vld [vmem:[%s37 + $0x8] sm:$0xff]
    %v6019 = vld [vmem:[%s37 + $0x10] sm:$0xff]
    %v6020 = vld [vmem:[%s37 + $0x18] sm:$0xff]
    %v6021 = vld [vmem:[%s37 + $0x20] sm:$0xff]
    %v6022 = vld [vmem:[%s37 + $0x28] sm:$0xff]
    %v6023 = vld [vmem:[%s37 + $0x30] sm:$0xff]
    %v6024 = vld [vmem:[%s37 + $0x38] sm:$0xff]
    %v6025 = vld [vmem:[%s39] sm:$0x1]
    %v6027 = vperm.slane %v6025, 0
    %v6030 = vsel %vm5150, %v6015, 0
    %v6033 = vsel %vm5150, %v6016, 0
    %6035 = vmatpush.msra.mxu0 0.0
    %6036 = vmatpush.msra.mxu0 0.0
    %6037 = vmatpush.msra.mxu0 0.0
    %6038 = vmatpush.msra.mxu0 0.0
    %6039 = vmatpush.msra.mxu0 0.0
    %6040 = vmatpush.msra.mxu0 0.0
    %6041 = vmatpush.msra.mxu0 0.0
    %6042 = vmatpush.msra.mxu0 0.0
    %6043 = vmatpush.msra.mxu0 %v6024
    %6044 = vmatpush.msra.mxu0 %v6023
    %6045 = vmatpush.msra.mxu0 %v6022
    %6046 = vmatpush.msra.mxu0 %v6021
    %6047 = vmatpush.msra.mxu0 %v6020
    %6048 = vmatpush.msra.mxu0 %v6019
    %6049 = vmatpush.msra.mxu0 %v6018
    %6050 = vmatpush.msra.mxu0 %v6017
    %6051 = vmatmul.f32.gmra.mxu0 %v6030
    %v6052 = vpop.f32.mrf.mxu0
    %v6053 = vadd.f32 %v6027, %v6052
    %6054 = vmatmul.f32.gmra.mxu0 %v6033
    %v6055 = vpop.f32.mrf.mxu0
    %v6056 = vadd.f32 %v6027, %v6055
    %6057 = vdwg.mxu0
    %v6058 = vsel %vm5150, %v6053, -inf
    %6059 = vmax.xlane.f32.xlu0 %v6058
    %v6060 = vpop.xlane.xlu0 %6059
    %v6061 = vsel %vm5150, %v6056, -inf
    %6062 = vmax.xlane.f32.xlu0 %v6061
    %v6063 = vpop.xlane.xlu0 %6062
    %v6064 = vsub.f32 %v6053, %v6060
    %v6065 = vsub.f32 %v6056, %v6063
    %v6066 = vmul.f32 %v6064, 1.442695
    %v6067 = vpow.pop %v6066
    %v6068 = vmul.f32 %v6065, 1.442695
    %v6069 = vpow.pop %v6068
    %v6070 = vsel %vm5150, %v6067, 0.0
    %6071 = vadd.xlane.f32.xlu0 %v6070
    %v6072 = vpop.xlane.xlu0 %6071
    %v6073 = vsel %vm5150, %v6069, 0.0
    %6074 = vadd.xlane.f32.xlu0 %v6073
    %v6075 = vpop.xlane.xlu0 %6074
    %v6076 = vrcp.pop %v6072
    %v6077 = vrcp.pop %v6075
    %v6078 = vmul.f32 %v6067, %v6076
    %v6079 = vmul.f32 %v6069, %v6077
    %v6080 = vmul.f32 %v6078, %v5122
    %v6081 = vmul.f32 %v6079, %v5124
    %v6082 = vld [vmem:[%s31] sm:$0xff]
    %v6083 = vld [vmem:[%s31 + $0x8] sm:$0xff]
    %v6084 = vld [vmem:[%s31 + $0x10] sm:$0xff]
    %v6085 = vld [vmem:[%s31 + $0x18] sm:$0xff]
    %v6086 = vld [vmem:[%s31 + $0x20] sm:$0xff]
    %v6087 = vld [vmem:[%s31 + $0x28] sm:$0xff]
    %v6088 = vld [vmem:[%s31 + $0x30] sm:$0xff]
    %v6089 = vld [vmem:[%s31 + $0x38] sm:$0xff]
    %v6090 = vld [vmem:[%s31 + $0x40] sm:$0xff]
    %v6091 = vld [vmem:[%s31 + $0x48] sm:$0xff]
    %v6092 = vld [vmem:[%s31 + $0x50] sm:$0xff]
    %v6093 = vld [vmem:[%s31 + $0x58] sm:$0xff]
    %v6094 = vld [vmem:[%s31 + $0x60] sm:$0xff]
    %v6095 = vld [vmem:[%s31 + $0x68] sm:$0xff]
    %v6096 = vld [vmem:[%s31 + $0x70] sm:$0xff]
    %v6097 = vld [vmem:[%s31 + $0x78] sm:$0xff]
    %v6098 = vld [vmem:[%s35] sm:$0x3]
    %v6100 = vperm.slane %v6098, 0
    %v6101 = vperm.slane %v6098, 1
    %6105 = vrot.lane.b32.xlu0 %v6014, 64
    %v6106 = vpop.permute.xlu0 %6105
    %v6107 = vsel %vm5150, %v6106, 0
    %6109 = vmatpush.msra.mxu0 0.0
    %6110 = vmatpush.msra.mxu0 0.0
    %6111 = vmatpush.msra.mxu0 0.0
    %6112 = vmatpush.msra.mxu0 0.0
    %6113 = vmatpush.msra.mxu0 0.0
    %6114 = vmatpush.msra.mxu0 0.0
    %6115 = vmatpush.msra.mxu0 0.0
    %6116 = vmatpush.msra.mxu0 0.0
    %6117 = vmatpush.msra.mxu0 %v6096
    %6118 = vmatpush.msra.mxu0 %v6094
    %6119 = vmatpush.msra.mxu0 %v6092
    %6120 = vmatpush.msra.mxu0 %v6090
    %6121 = vmatpush.msra.mxu0 %v6088
    %6122 = vmatpush.msra.mxu0 %v6086
    %6123 = vmatpush.msra.mxu0 %v6084
    %6124 = vmatpush.msra.mxu0 %v6082
    %6125 = vmatmul.f32.gmra.mxu0 %v6107
    %v6126 = vpop.f32.mrf.mxu0
    %v6127 = vadd.f32 %v6100, %v6126
    %6128 = vdwg.mxu0
    %6129 = vmatpush.msra.mxu0 0.0
    %6130 = vmatpush.msra.mxu0 0.0
    %6131 = vmatpush.msra.mxu0 0.0
    %6132 = vmatpush.msra.mxu0 0.0
    %6133 = vmatpush.msra.mxu0 0.0
    %6134 = vmatpush.msra.mxu0 0.0
    %6135 = vmatpush.msra.mxu0 0.0
    %6136 = vmatpush.msra.mxu0 0.0
    %6137 = vmatpush.msra.mxu0 %v6097
    %6138 = vmatpush.msra.mxu0 %v6095
    %6139 = vmatpush.msra.mxu0 %v6093
    %6140 = vmatpush.msra.mxu0 %v6091
    %6141 = vmatpush.msra.mxu0 %v6089
    %6142 = vmatpush.msra.mxu0 %v6087
    %6143 = vmatpush.msra.mxu0 %v6085
    %6144 = vmatpush.msra.mxu0 %v6083
    %6145 = vmatmul.f32.gmra.mxu0 %v6107
    %v6146 = vpop.f32.mrf.mxu0
    %v6147 = vadd.f32 %v6101, %v6146
    %6148 = vdwg.mxu0
    %v6150 = vsel %vm5150, %v6080, 0
    %v6153 = vsel %vm5150, %v6081, 0
    %6155 = vmatpush.msra.mxu0 0.0
    %6156 = vmatpush.msra.mxu0 0.0
    %6157 = vmatpush.msra.mxu0 0.0
    %6158 = vmatpush.msra.mxu0 0.0
    %6159 = vmatpush.msra.mxu0 0.0
    %6160 = vmatpush.msra.mxu0 0.0
    %6161 = vmatpush.msra.mxu0 0.0
    %6162 = vmatpush.msra.mxu0 0.0
    %6163 = vmatpush.msra.mxu0 %v6096
    %6164 = vmatpush.msra.mxu0 %v6094
    %6165 = vmatpush.msra.mxu0 %v6092
    %6166 = vmatpush.msra.mxu0 %v6090
    %6167 = vmatpush.msra.mxu0 %v6088
    %6168 = vmatpush.msra.mxu0 %v6086
    %6169 = vmatpush.msra.mxu0 %v6084
    %6170 = vmatpush.msra.mxu0 %v6082
    %6171 = vmatmul.f32.gmra.mxu0 %v6150
    %v6172 = vpop.f32.mrf.mxu0
    %v6173 = vadd.f32 %v6100, %v6172
    %6174 = vmatmul.f32.gmra.mxu0 %v6153
    %v6175 = vpop.f32.mrf.mxu0
    %v6176 = vadd.f32 %v6100, %v6175
    %6177 = vdwg.mxu0
    %6178 = vmatpush.msra.mxu0 0.0
    %6179 = vmatpush.msra.mxu0 0.0
    %6180 = vmatpush.msra.mxu0 0.0
    %6181 = vmatpush.msra.mxu0 0.0
    %6182 = vmatpush.msra.mxu0 0.0
    %6183 = vmatpush.msra.mxu0 0.0
    %6184 = vmatpush.msra.mxu0 0.0
    %6185 = vmatpush.msra.mxu0 0.0
    %6186 = vmatpush.msra.mxu0 %v6097
    %6187 = vmatpush.msra.mxu0 %v6095
    %6188 = vmatpush.msra.mxu0 %v6093
    %6189 = vmatpush.msra.mxu0 %v6091
    %6190 = vmatpush.msra.mxu0 %v6089
    %6191 = vmatpush.msra.mxu0 %v6087
    %6192 = vmatpush.msra.mxu0 %v6085
    %6193 = vmatpush.msra.mxu0 %v6083
    %6194 = vmatmul.f32.gmra.mxu0 %v6150
    %v6195 = vpop.f32.mrf.mxu0
    %v6196 = vadd.f32 %v6101, %v6195
    %6197 = vmatmul.f32.gmra.mxu0 %v6153
    %v6198 = vpop.f32.mrf.mxu0
    %v6199 = vadd.f32 %v6101, %v6198
    %6200 = vdwg.mxu0
    %v6201 = vld [vmem:[%s33] sm:$0xff]
    %v6202 = vld [vmem:[%s33 + $0x8] sm:$0xff]
    %v6203 = vld [vmem:[%s33 + $0x10] sm:$0xff]
    %v6204 = vld [vmem:[%s33 + $0x18] sm:$0xff]
    %v6205 = vld [vmem:[%s33 + $0x20] sm:$0xff]
    %v6206 = vld [vmem:[%s33 + $0x28] sm:$0xff]
    %v6207 = vld [vmem:[%s33 + $0x30] sm:$0xff]
    %v6208 = vld [vmem:[%s33 + $0x38] sm:$0xff]
    %v6209 = vld [vmem:[%s33 + $0x40] sm:$0xff]
    %v6210 = vld [vmem:[%s33 + $0x48] sm:$0xff]
    %v6211 = vld [vmem:[%s33 + $0x50] sm:$0xff]
    %v6212 = vld [vmem:[%s33 + $0x58] sm:$0xff]
    %v6213 = vld [vmem:[%s33 + $0x60] sm:$0xff]
    %v6214 = vld [vmem:[%s33 + $0x68] sm:$0xff]
    %v6215 = vld [vmem:[%s33 + $0x70] sm:$0xff]
    %v6216 = vld [vmem:[%s33 + $0x78] sm:$0xff]
    %v6217 = vadd.s32 %v1145, 1
    %6218 = vmatpush.msra.mxu0 0.0
    %6219 = vmatpush.msra.mxu0 0.0
    %6220 = vmatpush.msra.mxu0 0.0
    %6221 = vmatpush.msra.mxu0 0.0
    %6222 = vmatpush.msra.mxu0 0.0
    %6223 = vmatpush.msra.mxu0 0.0
    %6224 = vmatpush.msra.mxu0 0.0
    %6225 = vmatpush.msra.mxu0 0.0
    %6226 = vmatpush.msra.mxu0 %v6215
    %6227 = vmatpush.msra.mxu0 %v6213
    %6228 = vmatpush.msra.mxu0 %v6211
    %6229 = vmatpush.msra.mxu0 %v6209
    %6230 = vmatpush.msra.mxu0 %v6207
    %6231 = vmatpush.msra.mxu0 %v6205
    %6232 = vmatpush.msra.mxu0 %v6203
    %6233 = vmatpush.msra.mxu0 %v6201
    %6234 = vmatmul.f32.gmra.mxu0 %v5151
    %v6235 = vpop.f32.mrf.mxu0
    %v6236 = vadd.f32 0.0, %v6235
    %6237 = vdwg.mxu0
    %6238 = vmatpush.msra.mxu0 0.0
    %6239 = vmatpush.msra.mxu0 0.0
    %6240 = vmatpush.msra.mxu0 0.0
    %6241 = vmatpush.msra.mxu0 0.0
    %6242 = vmatpush.msra.mxu0 0.0
    %6243 = vmatpush.msra.mxu0 0.0
    %6244 = vmatpush.msra.mxu0 0.0
    %6245 = vmatpush.msra.mxu0 0.0
    %6246 = vmatpush.msra.mxu0 %v6216
    %6247 = vmatpush.msra.mxu0 %v6214
    %6248 = vmatpush.msra.mxu0 %v6212
    %6249 = vmatpush.msra.mxu0 %v6210
    %6250 = vmatpush.msra.mxu0 %v6208
    %6251 = vmatpush.msra.mxu0 %v6206
    %6252 = vmatpush.msra.mxu0 %v6204
    %6253 = vmatpush.msra.mxu0 %v6202
    %6254 = vmatmul.f32.gmra.mxu0 %v5151
    %v6255 = vpop.f32.mrf.mxu0
    %v6256 = vadd.f32 0.0, %v6255
    %6257 = vdwg.mxu0
    %v6258 = vadd.f32 %v6127, %v6236
    %v6259 = vadd.f32 %v6147, %v6256
    %v6260 = vxor.u32 %v6258, 2147483648
    %v6261 = vmul.f32 %v6260, 1.442695
    %v6262 = vpow.pop %v6261
    %v6263 = vadd.f32 %v6262, 1.0
    %v6264 = vrcp.pop %v6263
    %v6265 = vmul.f32 %v6263, %v6264
    %v6266 = vsub.f32 1.0, %v6265
    %v6267 = vmul.f32 %v6264, %v6266
    %v6268 = vadd.f32 %v6264, %v6267
    %vm6269 = vweird.f32 %v6263
    %vm6270 = vweird.f32 %v6264
    %vm6271 = vmor %vm6269, %vm6270
    %v6272 = vsel %vm6271, %v6264, %v6268
    %v6273 = vand.u32 2147483647, %v6263
    %vm6274 = vcmp.eq.f32.partialorder %v6273, 8.507059e+37
    %v6275 = vand.u32 %v6263, 2147483648
    %v6276 = vor.u32 1.1754944e-38, %v6275
    %v6277 = vsel %vm6274, %v6276, %v6272
    %v6278 = vmul.f32 1.0, %v6277
    %v6279 = vtanh.pop %v6259
    %v6280 = vxor.u32 %v6259, 2147483648
    %v6281 = vmul.f32 %v6280, 1.442695
    %v6282 = vpow.pop %v6281
    %v6283 = vadd.f32 %v6282, 1.0
    %v6284 = vrcp.pop %v6283
    %v6285 = vmul.f32 %v6283, %v6284
    %v6286 = vsub.f32 1.0, %v6285
    %v6287 = vmul.f32 %v6284, %v6286
    %v6288 = vadd.f32 %v6284, %v6287
    %vm6289 = vweird.f32 %v6283
    %vm6290 = vweird.f32 %v6284
    %vm6291 = vmor %vm6289, %vm6290
    %v6292 = vsel %vm6291, %v6284, %v6288
    %v6293 = vand.u32 2147483647, %v6283
    %vm6294 = vcmp.eq.f32.partialorder %v6293, 8.507059e+37
    %v6295 = vand.u32 %v6283, 2147483648
    %v6296 = vor.u32 1.1754944e-38, %v6295
    %v6297 = vsel %vm6294, %v6296, %v6292
    %v6298 = vmul.f32 1.0, %v6297
    %v6299 = vmul.f32 %v6278, 0.0
    %v6300 = vmul.f32 %v6278, %v6279
    %6302 = vrot.lane.b32.xlu0 %v6300, 64
    %v6303 = vpop.permute.xlu0 %6302
    %v6305 = vadd.f32 %v6299, %v6303
    %v6306 = vtanh.pop %v6305
    %v6307 = vmul.f32 %v6298, %v6306
    %vm6308 = vcmp.gt.s32.totalorder %v6217, 0
    %v6309 = vsel %vm6308, 1, 0
    %vm6310 = vcmp.eq.s32.totalorder %v6309, 1
    %v6311 = vsel %vm6310, %v6307, 0.0
    %v6312 = vsel %vm6310, %v6305, 0.0
    %v6315 = vrot.slane %v6176, 7
    %v6316 = vrot.slane %v6199, 7
    %v6319 = vsel %vm1222, %v6173, %v6315
    %v6320 = vsel %vm1222, %v6196, %v6316
    %6322 = vrot.lane.b32.xlu0 %v6311, 64
    %v6323 = vpop.permute.xlu0 %6322
    %v6324 = vsel %vm5150, %v6323, 0
    %6326 = vmatpush.msra.mxu0 0.0
    %6327 = vmatpush.msra.mxu0 0.0
    %6328 = vmatpush.msra.mxu0 0.0
    %6329 = vmatpush.msra.mxu0 0.0
    %6330 = vmatpush.msra.mxu0 0.0
    %6331 = vmatpush.msra.mxu0 0.0
    %6332 = vmatpush.msra.mxu0 0.0
    %6333 = vmatpush.msra.mxu0 0.0
    %6334 = vmatpush.msra.mxu0 %v6215
    %6335 = vmatpush.msra.mxu0 %v6213
    %6336 = vmatpush.msra.mxu0 %v6211
    %6337 = vmatpush.msra.mxu0 %v6209
    %6338 = vmatpush.msra.mxu0 %v6207
    %6339 = vmatpush.msra.mxu0 %v6205
    %6340 = vmatpush.msra.mxu0 %v6203
    %6341 = vmatpush.msra.mxu0 %v6201
    %6342 = vmatmul.f32.gmra.mxu0 %v6324
    %v6343 = vpop.f32.mrf.mxu0
    %v6344 = vadd.f32 0.0, %v6343
    %6345 = vdwg.mxu0
    %6346 = vmatpush.msra.mxu0 0.0
    %6347 = vmatpush.msra.mxu0 0.0
    %6348 = vmatpush.msra.mxu0 0.0
    %6349 = vmatpush.msra.mxu0 0.0
    %6350 = vmatpush.msra.mxu0 0.0
    %6351 = vmatpush.msra.mxu0 0.0
    %6352 = vmatpush.msra.mxu0 0.0
    %6353 = vmatpush.msra.mxu0 0.0
    %6354 = vmatpush.msra.mxu0 %v6216
    %6355 = vmatpush.msra.mxu0 %v6214
    %6356 = vmatpush.msra.mxu0 %v6212
    %6357 = vmatpush.msra.mxu0 %v6210
    %6358 = vmatpush.msra.mxu0 %v6208
    %6359 = vmatpush.msra.mxu0 %v6206
    %6360 = vmatpush.msra.mxu0 %v6204
    %6361 = vmatpush.msra.mxu0 %v6202
    %6362 = vmatmul.f32.gmra.mxu0 %v6324
    %v6363 = vpop.f32.mrf.mxu0
    %v6364 = vadd.f32 0.0, %v6363
    %6365 = vdwg.mxu0
    %v6366 = vadd.f32 %v6319, %v6344
    %v6367 = vadd.f32 %v6320, %v6364
    %v6368 = vxor.u32 %v6366, 2147483648
    %v6369 = vmul.f32 %v6368, 1.442695
    %v6370 = vpow.pop %v6369
    %v6371 = vadd.f32 %v6370, 1.0
    %v6372 = vrcp.pop %v6371
    %v6373 = vmul.f32 %v6371, %v6372
    %v6374 = vsub.f32 1.0, %v6373
    %v6375 = vmul.f32 %v6372, %v6374
    %v6376 = vadd.f32 %v6372, %v6375
    %vm6377 = vweird.f32 %v6371
    %vm6378 = vweird.f32 %v6372
    %vm6379 = vmor %vm6377, %vm6378
    %v6380 = vsel %vm6379, %v6372, %v6376
    %v6381 = vand.u32 2147483647, %v6371
    %vm6382 = vcmp.eq.f32.partialorder %v6381, 8.507059e+37
    %v6383 = vand.u32 %v6371, 2147483648
    %v6384 = vor.u32 1.1754944e-38, %v6383
    %v6385 = vsel %vm6382, %v6384, %v6380
    %v6386 = vmul.f32 1.0, %v6385
    %v6387 = vtanh.pop %v6367
    %v6388 = vxor.u32 %v6367, 2147483648
    %v6389 = vmul.f32 %v6388, 1.442695
    %v6390 = vpow.pop %v6389
    %v6391 = vadd.f32 %v6390, 1.0
    %v6392 = vrcp.pop %v6391
    %v6393 = vmul.f32 %v6391, %v6392
    %v6394 = vsub.f32 1.0, %v6393
    %v6395 = vmul.f32 %v6392, %v6394
    %v6396 = vadd.f32 %v6392, %v6395
    %vm6397 = vweird.f32 %v6391
    %vm6398 = vweird.f32 %v6392
    %vm6399 = vmor %vm6397, %vm6398
    %v6400 = vsel %vm6399, %v6392, %v6396
    %v6401 = vand.u32 2147483647, %v6391
    %vm6402 = vcmp.eq.f32.partialorder %v6401, 8.507059e+37
    %v6403 = vand.u32 %v6391, 2147483648
    %v6404 = vor.u32 1.1754944e-38, %v6403
    %v6405 = vsel %vm6402, %v6404, %v6400
    %v6406 = vmul.f32 1.0, %v6405
    %v6407 = vmul.f32 %v6386, %v6312
    %v6408 = vmul.f32 %v6386, %v6387
    %6410 = vrot.lane.b32.xlu0 %v6408, 64
    %v6411 = vpop.permute.xlu0 %6410
    %v6413 = vadd.f32 %v6407, %v6411
    %v6414 = vtanh.pop %v6413
    %v6415 = vmul.f32 %v6406, %v6414
    %vm6416 = vcmp.gt.s32.totalorder %v6217, 1
    %v6417 = vsel %vm6416, 1, 0
    %vm6418 = vcmp.eq.s32.totalorder %v6417, 1
    %v6419 = vsel %vm6418, %v6415, %v6311
    %v6420 = vsel %vm6418, %v6413, %v6312
    %v6423 = vrot.slane %v6173, 1
    %v6424 = vrot.slane %v6196, 1
    %v6427 = vsel %vm1222, %v6423, %v6176
    %v6428 = vsel %vm1222, %v6424, %v6199
    %6430 = vrot.lane.b32.xlu0 %v6419, 64
    %v6431 = vpop.permute.xlu0 %6430
    %v6432 = vsel %vm5150, %v6431, 0
    %6434 = vmatpush.msra.mxu0 0.0
    %6435 = vmatpush.msra.mxu0 0.0
    %6436 = vmatpush.msra.mxu0 0.0
    %6437 = vmatpush.msra.mxu0 0.0
    %6438 = vmatpush.msra.mxu0 0.0
    %6439 = vmatpush.msra.mxu0 0.0
    %6440 = vmatpush.msra.mxu0 0.0
    %6441 = vmatpush.msra.mxu0 0.0
    %6442 = vmatpush.msra.mxu0 %v6215
    %6443 = vmatpush.msra.mxu0 %v6213
    %6444 = vmatpush.msra.mxu0 %v6211
    %6445 = vmatpush.msra.mxu0 %v6209
    %6446 = vmatpush.msra.mxu0 %v6207
    %6447 = vmatpush.msra.mxu0 %v6205
    %6448 = vmatpush.msra.mxu0 %v6203
    %6449 = vmatpush.msra.mxu0 %v6201
    %6450 = vmatmul.f32.gmra.mxu0 %v6432
    %v6451 = vpop.f32.mrf.mxu0
    %v6452 = vadd.f32 0.0, %v6451
    %6453 = vdwg.mxu0
    %6454 = vmatpush.msra.mxu0 0.0
    %6455 = vmatpush.msra.mxu0 0.0
    %6456 = vmatpush.msra.mxu0 0.0
    %6457 = vmatpush.msra.mxu0 0.0
    %6458 = vmatpush.msra.mxu0 0.0
    %6459 = vmatpush.msra.mxu0 0.0
    %6460 = vmatpush.msra.mxu0 0.0
    %6461 = vmatpush.msra.mxu0 0.0
    %6462 = vmatpush.msra.mxu0 %v6216
    %6463 = vmatpush.msra.mxu0 %v6214
    %6464 = vmatpush.msra.mxu0 %v6212
    %6465 = vmatpush.msra.mxu0 %v6210
    %6466 = vmatpush.msra.mxu0 %v6208
    %6467 = vmatpush.msra.mxu0 %v6206
    %6468 = vmatpush.msra.mxu0 %v6204
    %6469 = vmatpush.msra.mxu0 %v6202
    %6470 = vmatmul.f32.gmra.mxu0 %v6432
    %v6471 = vpop.f32.mrf.mxu0
    %v6472 = vadd.f32 0.0, %v6471
    %6473 = vdwg.mxu0
    %v6474 = vadd.f32 %v6427, %v6452
    %v6475 = vadd.f32 %v6428, %v6472
    %v6476 = vxor.u32 %v6474, 2147483648
    %v6477 = vmul.f32 %v6476, 1.442695
    %v6478 = vpow.pop %v6477
    %v6479 = vadd.f32 %v6478, 1.0
    %v6480 = vrcp.pop %v6479
    %v6481 = vmul.f32 %v6479, %v6480
    %v6482 = vsub.f32 1.0, %v6481
    %v6483 = vmul.f32 %v6480, %v6482
    %v6484 = vadd.f32 %v6480, %v6483
    %vm6485 = vweird.f32 %v6479
    %vm6486 = vweird.f32 %v6480
    %vm6487 = vmor %vm6485, %vm6486
    %v6488 = vsel %vm6487, %v6480, %v6484
    %v6489 = vand.u32 2147483647, %v6479
    %vm6490 = vcmp.eq.f32.partialorder %v6489, 8.507059e+37
    %v6491 = vand.u32 %v6479, 2147483648
    %v6492 = vor.u32 1.1754944e-38, %v6491
    %v6493 = vsel %vm6490, %v6492, %v6488
    %v6494 = vmul.f32 1.0, %v6493
    %v6495 = vtanh.pop %v6475
    %v6496 = vxor.u32 %v6475, 2147483648
    %v6497 = vmul.f32 %v6496, 1.442695
    %v6498 = vpow.pop %v6497
    %v6499 = vadd.f32 %v6498, 1.0
    %v6500 = vrcp.pop %v6499
    %v6501 = vmul.f32 %v6499, %v6500
    %v6502 = vsub.f32 1.0, %v6501
    %v6503 = vmul.f32 %v6500, %v6502
    %v6504 = vadd.f32 %v6500, %v6503
    %vm6505 = vweird.f32 %v6499
    %vm6506 = vweird.f32 %v6500
    %vm6507 = vmor %vm6505, %vm6506
    %v6508 = vsel %vm6507, %v6500, %v6504
    %v6509 = vand.u32 2147483647, %v6499
    %vm6510 = vcmp.eq.f32.partialorder %v6509, 8.507059e+37
    %v6511 = vand.u32 %v6499, 2147483648
    %v6512 = vor.u32 1.1754944e-38, %v6511
    %v6513 = vsel %vm6510, %v6512, %v6508
    %v6514 = vmul.f32 1.0, %v6513
    %v6515 = vmul.f32 %v6494, %v6420
    %v6516 = vmul.f32 %v6494, %v6495
    %6518 = vrot.lane.b32.xlu0 %v6516, 64
    %v6519 = vpop.permute.xlu0 %6518
    %v6521 = vadd.f32 %v6515, %v6519
    %v6522 = vtanh.pop %v6521
    %v6523 = vmul.f32 %v6514, %v6522
    %vm6524 = vcmp.gt.s32.totalorder %v6217, 2
    %v6525 = vsel %vm6524, 1, 0
    %vm6526 = vcmp.eq.s32.totalorder %v6525, 1
    %v6527 = vsel %vm6526, %v6523, %v6419
    %v6528 = vsel %vm6526, %v6521, %v6420
    %v6529 = vrot.slane %v6173, 2
    %v6530 = vrot.slane %v6196, 2
    %v6533 = vrot.slane %v6176, 1
    %v6534 = vrot.slane %v6199, 1
    %v6537 = vsel %vm1222, %v6529, %v6533
    %v6538 = vsel %vm1222, %v6530, %v6534
    %6540 = vrot.lane.b32.xlu0 %v6527, 64
    %v6541 = vpop.permute.xlu0 %6540
    %v6542 = vsel %vm5150, %v6541, 0
    %6544 = vmatpush.msra.mxu0 0.0
    %6545 = vmatpush.msra.mxu0 0.0
    %6546 = vmatpush.msra.mxu0 0.0
    %6547 = vmatpush.msra.mxu0 0.0
    %6548 = vmatpush.msra.mxu0 0.0
    %6549 = vmatpush.msra.mxu0 0.0
    %6550 = vmatpush.msra.mxu0 0.0
    %6551 = vmatpush.msra.mxu0 0.0
    %6552 = vmatpush.msra.mxu0 %v6215
    %6553 = vmatpush.msra.mxu0 %v6213
    %6554 = vmatpush.msra.mxu0 %v6211
    %6555 = vmatpush.msra.mxu0 %v6209
    %6556 = vmatpush.msra.mxu0 %v6207
    %6557 = vmatpush.msra.mxu0 %v6205
    %6558 = vmatpush.msra.mxu0 %v6203
    %6559 = vmatpush.msra.mxu0 %v6201
    %6560 = vmatmul.f32.gmra.mxu0 %v6542
    %v6561 = vpop.f32.mrf.mxu0
    %v6562 = vadd.f32 0.0, %v6561
    %6563 = vdwg.mxu0
    %6564 = vmatpush.msra.mxu0 0.0
    %6565 = vmatpush.msra.mxu0 0.0
    %6566 = vmatpush.msra.mxu0 0.0
    %6567 = vmatpush.msra.mxu0 0.0
    %6568 = vmatpush.msra.mxu0 0.0
    %6569 = vmatpush.msra.mxu0 0.0
    %6570 = vmatpush.msra.mxu0 0.0
    %6571 = vmatpush.msra.mxu0 0.0
    %6572 = vmatpush.msra.mxu0 %v6216
    %6573 = vmatpush.msra.mxu0 %v6214
    %6574 = vmatpush.msra.mxu0 %v6212
    %6575 = vmatpush.msra.mxu0 %v6210
    %6576 = vmatpush.msra.mxu0 %v6208
    %6577 = vmatpush.msra.mxu0 %v6206
    %6578 = vmatpush.msra.mxu0 %v6204
    %6579 = vmatpush.msra.mxu0 %v6202
    %6580 = vmatmul.f32.gmra.mxu0 %v6542
    %v6581 = vpop.f32.mrf.mxu0
    %v6582 = vadd.f32 0.0, %v6581
    %6583 = vdwg.mxu0
    %v6584 = vadd.f32 %v6537, %v6562
    %v6585 = vadd.f32 %v6538, %v6582
    %v6586 = vxor.u32 %v6584, 2147483648
    %v6587 = vmul.f32 %v6586, 1.442695
    %v6588 = vpow.pop %v6587
    %v6589 = vadd.f32 %v6588, 1.0
    %v6590 = vrcp.pop %v6589
    %v6591 = vmul.f32 %v6589, %v6590
    %v6592 = vsub.f32 1.0, %v6591
    %v6593 = vmul.f32 %v6590, %v6592
    %v6594 = vadd.f32 %v6590, %v6593
    %vm6595 = vweird.f32 %v6589
    %vm6596 = vweird.f32 %v6590
    %vm6597 = vmor %vm6595, %vm6596
    %v6598 = vsel %vm6597, %v6590, %v6594
    %v6599 = vand.u32 2147483647, %v6589
    %vm6600 = vcmp.eq.f32.partialorder %v6599, 8.507059e+37
    %v6601 = vand.u32 %v6589, 2147483648
    %v6602 = vor.u32 1.1754944e-38, %v6601
    %v6603 = vsel %vm6600, %v6602, %v6598
    %v6604 = vmul.f32 1.0, %v6603
    %v6605 = vtanh.pop %v6585
    %v6606 = vxor.u32 %v6585, 2147483648
    %v6607 = vmul.f32 %v6606, 1.442695
    %v6608 = vpow.pop %v6607
    %v6609 = vadd.f32 %v6608, 1.0
    %v6610 = vrcp.pop %v6609
    %v6611 = vmul.f32 %v6609, %v6610
    %v6612 = vsub.f32 1.0, %v6611
    %v6613 = vmul.f32 %v6610, %v6612
    %v6614 = vadd.f32 %v6610, %v6613
    %vm6615 = vweird.f32 %v6609
    %vm6616 = vweird.f32 %v6610
    %vm6617 = vmor %vm6615, %vm6616
    %v6618 = vsel %vm6617, %v6610, %v6614
    %v6619 = vand.u32 2147483647, %v6609
    %vm6620 = vcmp.eq.f32.partialorder %v6619, 8.507059e+37
    %v6621 = vand.u32 %v6609, 2147483648
    %v6622 = vor.u32 1.1754944e-38, %v6621
    %v6623 = vsel %vm6620, %v6622, %v6618
    %v6624 = vmul.f32 1.0, %v6623
    %v6625 = vmul.f32 %v6604, %v6528
    %v6626 = vmul.f32 %v6604, %v6605
    %6628 = vrot.lane.b32.xlu0 %v6626, 64
    %v6629 = vpop.permute.xlu0 %6628
    %v6631 = vadd.f32 %v6625, %v6629
    %v6632 = vtanh.pop %v6631
    %v6633 = vmul.f32 %v6624, %v6632
    %vm6634 = vcmp.gt.s32.totalorder %v6217, 3
    %v6635 = vsel %vm6634, 1, 0
    %vm6636 = vcmp.eq.s32.totalorder %v6635, 1
    %v6637 = vsel %vm6636, %v6633, %v6527
    %v6638 = vsel %vm6636, %v6631, %v6528
    %v6639 = vrot.slane %v6173, 3
    %v6640 = vrot.slane %v6196, 3
    %v6643 = vrot.slane %v6176, 2
    %v6644 = vrot.slane %v6199, 2
    %v6647 = vsel %vm1222, %v6639, %v6643
    %v6648 = vsel %vm1222, %v6640, %v6644
    %6650 = vrot.lane.b32.xlu0 %v6637, 64
    %v6651 = vpop.permute.xlu0 %6650
    %v6652 = vsel %vm5150, %v6651, 0
    %6654 = vmatpush.msra.mxu0 0.0
    %6655 = vmatpush.msra.mxu0 0.0
    %6656 = vmatpush.msra.mxu0 0.0
    %6657 = vmatpush.msra.mxu0 0.0
    %6658 = vmatpush.msra.mxu0 0.0
    %6659 = vmatpush.msra.mxu0 0.0
    %6660 = vmatpush.msra.mxu0 0.0
    %6661 = vmatpush.msra.mxu0 0.0
    %6662 = vmatpush.msra.mxu0 %v6215
    %6663 = vmatpush.msra.mxu0 %v6213
    %6664 = vmatpush.msra.mxu0 %v6211
    %6665 = vmatpush.msra.mxu0 %v6209
    %6666 = vmatpush.msra.mxu0 %v6207
    %6667 = vmatpush.msra.mxu0 %v6205
    %6668 = vmatpush.msra.mxu0 %v6203
    %6669 = vmatpush.msra.mxu0 %v6201
    %6670 = vmatmul.f32.gmra.mxu0 %v6652
    %v6671 = vpop.f32.mrf.mxu0
    %v6672 = vadd.f32 0.0, %v6671
    %6673 = vdwg.mxu0
    %6674 = vmatpush.msra.mxu0 0.0
    %6675 = vmatpush.msra.mxu0 0.0
    %6676 = vmatpush.msra.mxu0 0.0
    %6677 = vmatpush.msra.mxu0 0.0
    %6678 = vmatpush.msra.mxu0 0.0
    %6679 = vmatpush.msra.mxu0 0.0
    %6680 = vmatpush.msra.mxu0 0.0
    %6681 = vmatpush.msra.mxu0 0.0
    %6682 = vmatpush.msra.mxu0 %v6216
    %6683 = vmatpush.msra.mxu0 %v6214
    %6684 = vmatpush.msra.mxu0 %v6212
    %6685 = vmatpush.msra.mxu0 %v6210
    %6686 = vmatpush.msra.mxu0 %v6208
    %6687 = vmatpush.msra.mxu0 %v6206
    %6688 = vmatpush.msra.mxu0 %v6204
    %6689 = vmatpush.msra.mxu0 %v6202
    %6690 = vmatmul.f32.gmra.mxu0 %v6652
    %v6691 = vpop.f32.mrf.mxu0
    %v6692 = vadd.f32 0.0, %v6691
    %6693 = vdwg.mxu0
    %v6694 = vadd.f32 %v6647, %v6672
    %v6695 = vadd.f32 %v6648, %v6692
    %v6696 = vxor.u32 %v6694, 2147483648
    %v6697 = vmul.f32 %v6696, 1.442695
    %v6698 = vpow.pop %v6697
    %v6699 = vadd.f32 %v6698, 1.0
    %v6700 = vrcp.pop %v6699
    %v6701 = vmul.f32 %v6699, %v6700
    %v6702 = vsub.f32 1.0, %v6701
    %v6703 = vmul.f32 %v6700, %v6702
    %v6704 = vadd.f32 %v6700, %v6703
    %vm6705 = vweird.f32 %v6699
    %vm6706 = vweird.f32 %v6700
    %vm6707 = vmor %vm6705, %vm6706
    %v6708 = vsel %vm6707, %v6700, %v6704
    %v6709 = vand.u32 2147483647, %v6699
    %vm6710 = vcmp.eq.f32.partialorder %v6709, 8.507059e+37
    %v6711 = vand.u32 %v6699, 2147483648
    %v6712 = vor.u32 1.1754944e-38, %v6711
    %v6713 = vsel %vm6710, %v6712, %v6708
    %v6714 = vmul.f32 1.0, %v6713
    %v6715 = vtanh.pop %v6695
    %v6716 = vxor.u32 %v6695, 2147483648
    %v6717 = vmul.f32 %v6716, 1.442695
    %v6718 = vpow.pop %v6717
    %v6719 = vadd.f32 %v6718, 1.0
    %v6720 = vrcp.pop %v6719
    %v6721 = vmul.f32 %v6719, %v6720
    %v6722 = vsub.f32 1.0, %v6721
    %v6723 = vmul.f32 %v6720, %v6722
    %v6724 = vadd.f32 %v6720, %v6723
    %vm6725 = vweird.f32 %v6719
    %vm6726 = vweird.f32 %v6720
    %vm6727 = vmor %vm6725, %vm6726
    %v6728 = vsel %vm6727, %v6720, %v6724
    %v6729 = vand.u32 2147483647, %v6719
    %vm6730 = vcmp.eq.f32.partialorder %v6729, 8.507059e+37
    %v6731 = vand.u32 %v6719, 2147483648
    %v6732 = vor.u32 1.1754944e-38, %v6731
    %v6733 = vsel %vm6730, %v6732, %v6728
    %v6734 = vmul.f32 1.0, %v6733
    %v6735 = vmul.f32 %v6714, %v6638
    %v6736 = vmul.f32 %v6714, %v6715
    %6738 = vrot.lane.b32.xlu0 %v6736, 64
    %v6739 = vpop.permute.xlu0 %6738
    %v6741 = vadd.f32 %v6735, %v6739
    %v6742 = vtanh.pop %v6741
    %v6743 = vmul.f32 %v6734, %v6742
    %vm6744 = vcmp.gt.s32.totalorder %v6217, 4
    %v6745 = vsel %vm6744, 1, 0
    %vm6746 = vcmp.eq.s32.totalorder %v6745, 1
    %v6747 = vsel %vm6746, %v6743, %v6637
    %v6748 = vsel %vm6746, %v6741, %v6638
    %v6749 = vrot.slane %v6173, 4
    %v6750 = vrot.slane %v6196, 4
    %v6753 = vrot.slane %v6176, 3
    %v6754 = vrot.slane %v6199, 3
    %v6757 = vsel %vm1222, %v6749, %v6753
    %v6758 = vsel %vm1222, %v6750, %v6754
    %6760 = vrot.lane.b32.xlu0 %v6747, 64
    %v6761 = vpop.permute.xlu0 %6760
    %v6762 = vsel %vm5150, %v6761, 0
    %6764 = vmatpush.msra.mxu0 0.0
    %6765 = vmatpush.msra.mxu0 0.0
    %6766 = vmatpush.msra.mxu0 0.0
    %6767 = vmatpush.msra.mxu0 0.0
    %6768 = vmatpush.msra.mxu0 0.0
    %6769 = vmatpush.msra.mxu0 0.0
    %6770 = vmatpush.msra.mxu0 0.0
    %6771 = vmatpush.msra.mxu0 0.0
    %6772 = vmatpush.msra.mxu0 %v6215
    %6773 = vmatpush.msra.mxu0 %v6213
    %6774 = vmatpush.msra.mxu0 %v6211
    %6775 = vmatpush.msra.mxu0 %v6209
    %6776 = vmatpush.msra.mxu0 %v6207
    %6777 = vmatpush.msra.mxu0 %v6205
    %6778 = vmatpush.msra.mxu0 %v6203
    %6779 = vmatpush.msra.mxu0 %v6201
    %6780 = vmatmul.f32.gmra.mxu0 %v6762
    %v6781 = vpop.f32.mrf.mxu0
    %v6782 = vadd.f32 0.0, %v6781
    %6783 = vdwg.mxu0
    %6784 = vmatpush.msra.mxu0 0.0
    %6785 = vmatpush.msra.mxu0 0.0
    %6786 = vmatpush.msra.mxu0 0.0
    %6787 = vmatpush.msra.mxu0 0.0
    %6788 = vmatpush.msra.mxu0 0.0
    %6789 = vmatpush.msra.mxu0 0.0
    %6790 = vmatpush.msra.mxu0 0.0
    %6791 = vmatpush.msra.mxu0 0.0
    %6792 = vmatpush.msra.mxu0 %v6216
    %6793 = vmatpush.msra.mxu0 %v6214
    %6794 = vmatpush.msra.mxu0 %v6212
    %6795 = vmatpush.msra.mxu0 %v6210
    %6796 = vmatpush.msra.mxu0 %v6208
    %6797 = vmatpush.msra.mxu0 %v6206
    %6798 = vmatpush.msra.mxu0 %v6204
    %6799 = vmatpush.msra.mxu0 %v6202
    %6800 = vmatmul.f32.gmra.mxu0 %v6762
    %v6801 = vpop.f32.mrf.mxu0
    %v6802 = vadd.f32 0.0, %v6801
    %6803 = vdwg.mxu0
    %v6804 = vadd.f32 %v6757, %v6782
    %v6805 = vadd.f32 %v6758, %v6802
    %v6806 = vxor.u32 %v6804, 2147483648
    %v6807 = vmul.f32 %v6806, 1.442695
    %v6808 = vpow.pop %v6807
    %v6809 = vadd.f32 %v6808, 1.0
    %v6810 = vrcp.pop %v6809
    %v6811 = vmul.f32 %v6809, %v6810
    %v6812 = vsub.f32 1.0, %v6811
    %v6813 = vmul.f32 %v6810, %v6812
    %v6814 = vadd.f32 %v6810, %v6813
    %vm6815 = vweird.f32 %v6809
    %vm6816 = vweird.f32 %v6810
    %vm6817 = vmor %vm6815, %vm6816
    %v6818 = vsel %vm6817, %v6810, %v6814
    %v6819 = vand.u32 2147483647, %v6809
    %vm6820 = vcmp.eq.f32.partialorder %v6819, 8.507059e+37
    %v6821 = vand.u32 %v6809, 2147483648
    %v6822 = vor.u32 1.1754944e-38, %v6821
    %v6823 = vsel %vm6820, %v6822, %v6818
    %v6824 = vmul.f32 1.0, %v6823
    %v6825 = vtanh.pop %v6805
    %v6826 = vxor.u32 %v6805, 2147483648
    %v6827 = vmul.f32 %v6826, 1.442695
    %v6828 = vpow.pop %v6827
    %v6829 = vadd.f32 %v6828, 1.0
    %v6830 = vrcp.pop %v6829
    %v6831 = vmul.f32 %v6829, %v6830
    %v6832 = vsub.f32 1.0, %v6831
    %v6833 = vmul.f32 %v6830, %v6832
    %v6834 = vadd.f32 %v6830, %v6833
    %vm6835 = vweird.f32 %v6829
    %vm6836 = vweird.f32 %v6830
    %vm6837 = vmor %vm6835, %vm6836
    %v6838 = vsel %vm6837, %v6830, %v6834
    %v6839 = vand.u32 2147483647, %v6829
    %vm6840 = vcmp.eq.f32.partialorder %v6839, 8.507059e+37
    %v6841 = vand.u32 %v6829, 2147483648
    %v6842 = vor.u32 1.1754944e-38, %v6841
    %v6843 = vsel %vm6840, %v6842, %v6838
    %v6844 = vmul.f32 1.0, %v6843
    %v6845 = vmul.f32 %v6824, %v6748
    %v6846 = vmul.f32 %v6824, %v6825
    %6848 = vrot.lane.b32.xlu0 %v6846, 64
    %v6849 = vpop.permute.xlu0 %6848
    %v6851 = vadd.f32 %v6845, %v6849
    %v6852 = vtanh.pop %v6851
    %v6853 = vmul.f32 %v6844, %v6852
    %vm6854 = vcmp.gt.s32.totalorder %v6217, 5
    %v6855 = vsel %vm6854, 1, 0
    %vm6856 = vcmp.eq.s32.totalorder %v6855, 1
    %v6857 = vsel %vm6856, %v6853, %v6747
    %v6858 = vsel %vm6856, %v6851, %v6748
    %v6859 = vrot.slane %v6173, 5
    %v6860 = vrot.slane %v6196, 5
    %v6863 = vrot.slane %v6176, 4
    %v6864 = vrot.slane %v6199, 4
    %v6867 = vsel %vm1222, %v6859, %v6863
    %v6868 = vsel %vm1222, %v6860, %v6864
    %6870 = vrot.lane.b32.xlu0 %v6857, 64
    %v6871 = vpop.permute.xlu0 %6870
    %v6872 = vsel %vm5150, %v6871, 0
    %6874 = vmatpush.msra.mxu0 0.0
    %6875 = vmatpush.msra.mxu0 0.0
    %6876 = vmatpush.msra.mxu0 0.0
    %6877 = vmatpush.msra.mxu0 0.0
    %6878 = vmatpush.msra.mxu0 0.0
    %6879 = vmatpush.msra.mxu0 0.0
    %6880 = vmatpush.msra.mxu0 0.0
    %6881 = vmatpush.msra.mxu0 0.0
    %6882 = vmatpush.msra.mxu0 %v6215
    %6883 = vmatpush.msra.mxu0 %v6213
    %6884 = vmatpush.msra.mxu0 %v6211
    %6885 = vmatpush.msra.mxu0 %v6209
    %6886 = vmatpush.msra.mxu0 %v6207
    %6887 = vmatpush.msra.mxu0 %v6205
    %6888 = vmatpush.msra.mxu0 %v6203
    %6889 = vmatpush.msra.mxu0 %v6201
    %6890 = vmatmul.f32.gmra.mxu0 %v6872
    %v6891 = vpop.f32.mrf.mxu0
    %v6892 = vadd.f32 0.0, %v6891
    %6893 = vdwg.mxu0
    %6894 = vmatpush.msra.mxu0 0.0
    %6895 = vmatpush.msra.mxu0 0.0
    %6896 = vmatpush.msra.mxu0 0.0
    %6897 = vmatpush.msra.mxu0 0.0
    %6898 = vmatpush.msra.mxu0 0.0
    %6899 = vmatpush.msra.mxu0 0.0
    %6900 = vmatpush.msra.mxu0 0.0
    %6901 = vmatpush.msra.mxu0 0.0
    %6902 = vmatpush.msra.mxu0 %v6216
    %6903 = vmatpush.msra.mxu0 %v6214
    %6904 = vmatpush.msra.mxu0 %v6212
    %6905 = vmatpush.msra.mxu0 %v6210
    %6906 = vmatpush.msra.mxu0 %v6208
    %6907 = vmatpush.msra.mxu0 %v6206
    %6908 = vmatpush.msra.mxu0 %v6204
    %6909 = vmatpush.msra.mxu0 %v6202
    %6910 = vmatmul.f32.gmra.mxu0 %v6872
    %v6911 = vpop.f32.mrf.mxu0
    %v6912 = vadd.f32 0.0, %v6911
    %6913 = vdwg.mxu0
    %v6914 = vadd.f32 %v6867, %v6892
    %v6915 = vadd.f32 %v6868, %v6912
    %v6916 = vxor.u32 %v6914, 2147483648
    %v6917 = vmul.f32 %v6916, 1.442695
    %v6918 = vpow.pop %v6917
    %v6919 = vadd.f32 %v6918, 1.0
    %v6920 = vrcp.pop %v6919
    %v6921 = vmul.f32 %v6919, %v6920
    %v6922 = vsub.f32 1.0, %v6921
    %v6923 = vmul.f32 %v6920, %v6922
    %v6924 = vadd.f32 %v6920, %v6923
    %vm6925 = vweird.f32 %v6919
    %vm6926 = vweird.f32 %v6920
    %vm6927 = vmor %vm6925, %vm6926
    %v6928 = vsel %vm6927, %v6920, %v6924
    %v6929 = vand.u32 2147483647, %v6919
    %vm6930 = vcmp.eq.f32.partialorder %v6929, 8.507059e+37
    %v6931 = vand.u32 %v6919, 2147483648
    %v6932 = vor.u32 1.1754944e-38, %v6931
    %v6933 = vsel %vm6930, %v6932, %v6928
    %v6934 = vmul.f32 1.0, %v6933
    %v6935 = vtanh.pop %v6915
    %v6936 = vxor.u32 %v6915, 2147483648
    %v6937 = vmul.f32 %v6936, 1.442695
    %v6938 = vpow.pop %v6937
    %v6939 = vadd.f32 %v6938, 1.0
    %v6940 = vrcp.pop %v6939
    %v6941 = vmul.f32 %v6939, %v6940
    %v6942 = vsub.f32 1.0, %v6941
    %v6943 = vmul.f32 %v6940, %v6942
    %v6944 = vadd.f32 %v6940, %v6943
    %vm6945 = vweird.f32 %v6939
    %vm6946 = vweird.f32 %v6940
    %vm6947 = vmor %vm6945, %vm6946
    %v6948 = vsel %vm6947, %v6940, %v6944
    %v6949 = vand.u32 2147483647, %v6939
    %vm6950 = vcmp.eq.f32.partialorder %v6949, 8.507059e+37
    %v6951 = vand.u32 %v6939, 2147483648
    %v6952 = vor.u32 1.1754944e-38, %v6951
    %v6953 = vsel %vm6950, %v6952, %v6948
    %v6954 = vmul.f32 1.0, %v6953
    %v6955 = vmul.f32 %v6934, %v6858
    %v6956 = vmul.f32 %v6934, %v6935
    %6958 = vrot.lane.b32.xlu0 %v6956, 64
    %v6959 = vpop.permute.xlu0 %6958
    %v6961 = vadd.f32 %v6955, %v6959
    %v6962 = vtanh.pop %v6961
    %v6963 = vmul.f32 %v6954, %v6962
    %vm6964 = vcmp.gt.s32.totalorder %v6217, 6
    %v6965 = vsel %vm6964, 1, 0
    %vm6966 = vcmp.eq.s32.totalorder %v6965, 1
    %v6967 = vsel %vm6966, %v6963, %v6857
    %v6968 = vsel %vm6966, %v6961, %v6858
    %v6969 = vrot.slane %v6173, 6
    %v6970 = vrot.slane %v6196, 6
    %v6973 = vrot.slane %v6176, 5
    %v6974 = vrot.slane %v6199, 5
    %v6977 = vsel %vm1222, %v6969, %v6973
    %v6978 = vsel %vm1222, %v6970, %v6974
    %6980 = vrot.lane.b32.xlu0 %v6967, 64
    %v6981 = vpop.permute.xlu0 %6980
    %v6982 = vsel %vm5150, %v6981, 0
    %6984 = vmatpush.msra.mxu0 0.0
    %6985 = vmatpush.msra.mxu0 0.0
    %6986 = vmatpush.msra.mxu0 0.0
    %6987 = vmatpush.msra.mxu0 0.0
    %6988 = vmatpush.msra.mxu0 0.0
    %6989 = vmatpush.msra.mxu0 0.0
    %6990 = vmatpush.msra.mxu0 0.0
    %6991 = vmatpush.msra.mxu0 0.0
    %6992 = vmatpush.msra.mxu0 %v6215
    %6993 = vmatpush.msra.mxu0 %v6213
    %6994 = vmatpush.msra.mxu0 %v6211
    %6995 = vmatpush.msra.mxu0 %v6209
    %6996 = vmatpush.msra.mxu0 %v6207
    %6997 = vmatpush.msra.mxu0 %v6205
    %6998 = vmatpush.msra.mxu0 %v6203
    %6999 = vmatpush.msra.mxu0 %v6201
    %7000 = vmatmul.f32.gmra.mxu0 %v6982
    %v7001 = vpop.f32.mrf.mxu0
    %v7002 = vadd.f32 0.0, %v7001
    %7003 = vdwg.mxu0
    %7004 = vmatpush.msra.mxu0 0.0
    %7005 = vmatpush.msra.mxu0 0.0
    %7006 = vmatpush.msra.mxu0 0.0
    %7007 = vmatpush.msra.mxu0 0.0
    %7008 = vmatpush.msra.mxu0 0.0
    %7009 = vmatpush.msra.mxu0 0.0
    %7010 = vmatpush.msra.mxu0 0.0
    %7011 = vmatpush.msra.mxu0 0.0
    %7012 = vmatpush.msra.mxu0 %v6216
    %7013 = vmatpush.msra.mxu0 %v6214
    %7014 = vmatpush.msra.mxu0 %v6212
    %7015 = vmatpush.msra.mxu0 %v6210
    %7016 = vmatpush.msra.mxu0 %v6208
    %7017 = vmatpush.msra.mxu0 %v6206
    %7018 = vmatpush.msra.mxu0 %v6204
    %7019 = vmatpush.msra.mxu0 %v6202
    %7020 = vmatmul.f32.gmra.mxu0 %v6982
    %v7021 = vpop.f32.mrf.mxu0
    %v7022 = vadd.f32 0.0, %v7021
    %7023 = vdwg.mxu0
    %v7024 = vadd.f32 %v6977, %v7002
    %v7025 = vadd.f32 %v6978, %v7022
    %v7026 = vxor.u32 %v7024, 2147483648
    %v7027 = vmul.f32 %v7026, 1.442695
    %v7028 = vpow.pop %v7027
    %v7029 = vadd.f32 %v7028, 1.0
    %v7030 = vrcp.pop %v7029
    %v7031 = vmul.f32 %v7029, %v7030
    %v7032 = vsub.f32 1.0, %v7031
    %v7033 = vmul.f32 %v7030, %v7032
    %v7034 = vadd.f32 %v7030, %v7033
    %vm7035 = vweird.f32 %v7029
    %vm7036 = vweird.f32 %v7030
    %vm7037 = vmor %vm7035, %vm7036
    %v7038 = vsel %vm7037, %v7030, %v7034
    %v7039 = vand.u32 2147483647, %v7029
    %vm7040 = vcmp.eq.f32.partialorder %v7039, 8.507059e+37
    %v7041 = vand.u32 %v7029, 2147483648
    %v7042 = vor.u32 1.1754944e-38, %v7041
    %v7043 = vsel %vm7040, %v7042, %v7038
    %v7044 = vmul.f32 1.0, %v7043
    %v7045 = vtanh.pop %v7025
    %v7046 = vxor.u32 %v7025, 2147483648
    %v7047 = vmul.f32 %v7046, 1.442695
    %v7048 = vpow.pop %v7047
    %v7049 = vadd.f32 %v7048, 1.0
    %v7050 = vrcp.pop %v7049
    %v7051 = vmul.f32 %v7049, %v7050
    %v7052 = vsub.f32 1.0, %v7051
    %v7053 = vmul.f32 %v7050, %v7052
    %v7054 = vadd.f32 %v7050, %v7053
    %vm7055 = vweird.f32 %v7049
    %vm7056 = vweird.f32 %v7050
    %vm7057 = vmor %vm7055, %vm7056
    %v7058 = vsel %vm7057, %v7050, %v7054
    %v7059 = vand.u32 2147483647, %v7049
    %vm7060 = vcmp.eq.f32.partialorder %v7059, 8.507059e+37
    %v7061 = vand.u32 %v7049, 2147483648
    %v7062 = vor.u32 1.1754944e-38, %v7061
    %v7063 = vsel %vm7060, %v7062, %v7058
    %v7064 = vmul.f32 1.0, %v7063
    %v7065 = vmul.f32 %v7044, %v6968
    %v7066 = vmul.f32 %v7044, %v7045
    %7068 = vrot.lane.b32.xlu0 %v7066, 64
    %v7069 = vpop.permute.xlu0 %7068
    %v7071 = vadd.f32 %v7065, %v7069
    %v7072 = vtanh.pop %v7071
    %v7073 = vmul.f32 %v7064, %v7072
    %vm7074 = vcmp.gt.s32.totalorder %v6217, 7
    %v7075 = vsel %vm7074, 1, 0
    %vm7076 = vcmp.eq.s32.totalorder %v7075, 1
    %v7077 = vsel %vm7076, %v7073, %v6967
    %v7078 = vsel %vm7076, %v7071, %v6968
    %v7079 = vrot.slane %v6173, 7
    %v7080 = vrot.slane %v6196, 7
    %v7083 = vrot.slane %v6176, 6
    %v7084 = vrot.slane %v6199, 6
    %v7087 = vsel %vm1222, %v7079, %v7083
    %v7088 = vsel %vm1222, %v7080, %v7084
    %7090 = vrot.lane.b32.xlu0 %v7077, 64
    %v7091 = vpop.permute.xlu0 %7090
    %v7092 = vsel %vm5150, %v7091, 0
    %7094 = vmatpush.msra.mxu0 0.0
    %7095 = vmatpush.msra.mxu0 0.0
    %7096 = vmatpush.msra.mxu0 0.0
    %7097 = vmatpush.msra.mxu0 0.0
    %7098 = vmatpush.msra.mxu0 0.0
    %7099 = vmatpush.msra.mxu0 0.0
    %7100 = vmatpush.msra.mxu0 0.0
    %7101 = vmatpush.msra.mxu0 0.0
    %7102 = vmatpush.msra.mxu0 %v6215
    %7103 = vmatpush.msra.mxu0 %v6213
    %7104 = vmatpush.msra.mxu0 %v6211
    %7105 = vmatpush.msra.mxu0 %v6209
    %7106 = vmatpush.msra.mxu0 %v6207
    %7107 = vmatpush.msra.mxu0 %v6205
    %7108 = vmatpush.msra.mxu0 %v6203
    %7109 = vmatpush.msra.mxu0 %v6201
    %7110 = vmatmul.f32.gmra.mxu0 %v7092
    %v7111 = vpop.f32.mrf.mxu0
    %v7112 = vadd.f32 0.0, %v7111
    %7113 = vdwg.mxu0
    %7114 = vmatpush.msra.mxu0 0.0
    %7115 = vmatpush.msra.mxu0 0.0
    %7116 = vmatpush.msra.mxu0 0.0
    %7117 = vmatpush.msra.mxu0 0.0
    %7118 = vmatpush.msra.mxu0 0.0
    %7119 = vmatpush.msra.mxu0 0.0
    %7120 = vmatpush.msra.mxu0 0.0
    %7121 = vmatpush.msra.mxu0 0.0
    %7122 = vmatpush.msra.mxu0 %v6216
    %7123 = vmatpush.msra.mxu0 %v6214
    %7124 = vmatpush.msra.mxu0 %v6212
    %7125 = vmatpush.msra.mxu0 %v6210
    %7126 = vmatpush.msra.mxu0 %v6208
    %7127 = vmatpush.msra.mxu0 %v6206
    %7128 = vmatpush.msra.mxu0 %v6204
    %7129 = vmatpush.msra.mxu0 %v6202
    %7130 = vmatmul.f32.gmra.mxu0 %v7092
    %v7131 = vpop.f32.mrf.mxu0
    %v7132 = vadd.f32 0.0, %v7131
    %7133 = vdwg.mxu0
    %v7134 = vadd.f32 %v7087, %v7112
    %v7135 = vadd.f32 %v7088, %v7132
    %v7136 = vxor.u32 %v7134, 2147483648
    %v7137 = vmul.f32 %v7136, 1.442695
    %v7138 = vpow.pop %v7137
    %v7139 = vadd.f32 %v7138, 1.0
    %v7140 = vrcp.pop %v7139
    %v7141 = vmul.f32 %v7139, %v7140
    %v7142 = vsub.f32 1.0, %v7141
    %v7143 = vmul.f32 %v7140, %v7142
    %v7144 = vadd.f32 %v7140, %v7143
    %vm7145 = vweird.f32 %v7139
    %vm7146 = vweird.f32 %v7140
    %vm7147 = vmor %vm7145, %vm7146
    %v7148 = vsel %vm7147, %v7140, %v7144
    %v7149 = vand.u32 2147483647, %v7139
    %vm7150 = vcmp.eq.f32.partialorder %v7149, 8.507059e+37
    %v7151 = vand.u32 %v7139, 2147483648
    %v7152 = vor.u32 1.1754944e-38, %v7151
    %v7153 = vsel %vm7150, %v7152, %v7148
    %v7154 = vmul.f32 1.0, %v7153
    %v7155 = vtanh.pop %v7135
    %v7156 = vxor.u32 %v7135, 2147483648
    %v7157 = vmul.f32 %v7156, 1.442695
    %v7158 = vpow.pop %v7157
    %v7159 = vadd.f32 %v7158, 1.0
    %v7160 = vrcp.pop %v7159
    %v7161 = vmul.f32 %v7159, %v7160
    %v7162 = vsub.f32 1.0, %v7161
    %v7163 = vmul.f32 %v7160, %v7162
    %v7164 = vadd.f32 %v7160, %v7163
    %vm7165 = vweird.f32 %v7159
    %vm7166 = vweird.f32 %v7160
    %vm7167 = vmor %vm7165, %vm7166
    %v7168 = vsel %vm7167, %v7160, %v7164
    %v7169 = vand.u32 2147483647, %v7159
    %vm7170 = vcmp.eq.f32.partialorder %v7169, 8.507059e+37
    %v7171 = vand.u32 %v7159, 2147483648
    %v7172 = vor.u32 1.1754944e-38, %v7171
    %v7173 = vsel %vm7170, %v7172, %v7168
    %v7174 = vmul.f32 1.0, %v7173
    %v7175 = vmul.f32 %v7154, %v7078
    %v7176 = vmul.f32 %v7154, %v7155
    %7178 = vrot.lane.b32.xlu0 %v7176, 64
    %v7179 = vpop.permute.xlu0 %7178
    %v7181 = vadd.f32 %v7175, %v7179
    %v7182 = vtanh.pop %v7181
    %v7183 = vmul.f32 %v7174, %v7182
    %vm7184 = vcmp.gt.s32.totalorder %v6217, 8
    %v7185 = vsel %vm7184, 1, 0
    %vm7186 = vcmp.eq.s32.totalorder %v7185, 1
    %v7187 = vsel %vm7186, %v7183, %v7077
    %v7188 = vadd.f32 %v7187, %v6014
    %v7189 = vld [vmem:[%s41] sm:$0xff]
    %v7190 = vld [vmem:[%s41 + $0x8] sm:$0xff]
    %v7191 = vld [vmem:[%s41 + $0x10] sm:$0xff]
    %v7192 = vld [vmem:[%s41 + $0x18] sm:$0xff]
    %v7193 = vld [vmem:[%s41 + $0x20] sm:$0xff]
    %v7194 = vld [vmem:[%s41 + $0x28] sm:$0xff]
    %v7195 = vld [vmem:[%s41 + $0x30] sm:$0xff]
    %v7196 = vld [vmem:[%s41 + $0x38] sm:$0xff]
    %v7197 = vld [vmem:[%s43] sm:$0x1]
    %v7199 = vperm.slane %v7197, 0
    %7202 = vrot.lane.b32.xlu0 %v7188, 64
    %v7203 = vpop.permute.xlu0 %7202
    %v7204 = vsel %vm5150, %v7203, 0
    %7206 = vmatpush.msra.mxu0 0.0
    %7207 = vmatpush.msra.mxu0 0.0
    %7208 = vmatpush.msra.mxu0 0.0
    %7209 = vmatpush.msra.mxu0 0.0
    %7210 = vmatpush.msra.mxu0 0.0
    %7211 = vmatpush.msra.mxu0 0.0
    %7212 = vmatpush.msra.mxu0 0.0
    %7213 = vmatpush.msra.mxu0 0.0
    %7214 = vmatpush.msra.mxu0 %v7196
    %7215 = vmatpush.msra.mxu0 %v7195
    %7216 = vmatpush.msra.mxu0 %v7194
    %7217 = vmatpush.msra.mxu0 %v7193
    %7218 = vmatpush.msra.mxu0 %v7192
    %7219 = vmatpush.msra.mxu0 %v7191
    %7220 = vmatpush.msra.mxu0 %v7190
    %7221 = vmatpush.msra.mxu0 %v7189
    %7222 = vmatmul.f32.gmra.mxu0 %v7204
    %v7223 = vpop.f32.mrf.mxu0
    %v7224 = vadd.f32 %v7199, %v7223
    %7225 = vdwg.mxu0
    %v7226 = vld [vmem:[%s45] sm:$0xff]
    %v7227 = vld [vmem:[%s45 + $0x8] sm:$0xff]
    %v7228 = vld [vmem:[%s45 + $0x10] sm:$0xff]
    %v7229 = vld [vmem:[%s45 + $0x18] sm:$0xff]
    %v7230 = vld [vmem:[%s45 + $0x20] sm:$0xff]
    %v7231 = vld [vmem:[%s45 + $0x28] sm:$0xff]
    %v7232 = vld [vmem:[%s45 + $0x30] sm:$0xff]
    %v7233 = vld [vmem:[%s45 + $0x38] sm:$0xff]
    %v7234 = vld [vmem:[%s47] sm:$0x1]
    %v7236 = vperm.slane %v7234, 0
    %v7239 = vsel %vm5150, %v7224, 0
    %7241 = vmatpush.msra.mxu0 0.0
    %7242 = vmatpush.msra.mxu0 0.0
    %7243 = vmatpush.msra.mxu0 0.0
    %7244 = vmatpush.msra.mxu0 0.0
    %7245 = vmatpush.msra.mxu0 0.0
    %7246 = vmatpush.msra.mxu0 0.0
    %7247 = vmatpush.msra.mxu0 0.0
    %7248 = vmatpush.msra.mxu0 0.0
    %7249 = vmatpush.msra.mxu0 %v7233
    %7250 = vmatpush.msra.mxu0 %v7232
    %7251 = vmatpush.msra.mxu0 %v7231
    %7252 = vmatpush.msra.mxu0 %v7230
    %7253 = vmatpush.msra.mxu0 %v7229
    %7254 = vmatpush.msra.mxu0 %v7228
    %7255 = vmatpush.msra.mxu0 %v7227
    %7256 = vmatpush.msra.mxu0 %v7226
    %7257 = vmatmul.f32.gmra.mxu0 %v7239
    %v7258 = vpop.f32.mrf.mxu0
    %v7259 = vadd.f32 %v7236, %v7258
    %7260 = vdwg.mxu0
    %v7261 = vmax.f32 %v7259, 0.0
    %v7262 = vld [vmem:[%s49] sm:$0xff]
    %v7263 = vld [vmem:[%s49 + $0x8] sm:$0xff]
    %v7264 = vld [vmem:[%s49 + $0x10] sm:$0xff]
    %v7265 = vld [vmem:[%s49 + $0x18] sm:$0xff]
    %v7266 = vld [vmem:[%s49 + $0x20] sm:$0xff]
    %v7267 = vld [vmem:[%s49 + $0x28] sm:$0xff]
    %v7268 = vld [vmem:[%s49 + $0x30] sm:$0xff]
    %v7269 = vld [vmem:[%s49 + $0x38] sm:$0xff]
    %v7270 = vld [vmem:[%s51] sm:$0x1]
    %v7272 = vperm.slane %v7270, 0
    %v7275 = vsel %vm5150, %v7261, 0
    %7277 = vmatpush.msra.mxu0 0.0
    %7278 = vmatpush.msra.mxu0 0.0
    %7279 = vmatpush.msra.mxu0 0.0
    %7280 = vmatpush.msra.mxu0 0.0
    %7281 = vmatpush.msra.mxu0 0.0
    %7282 = vmatpush.msra.mxu0 0.0
    %7283 = vmatpush.msra.mxu0 0.0
    %7284 = vmatpush.msra.mxu0 0.0
    %7285 = vmatpush.msra.mxu0 %v7269
    %7286 = vmatpush.msra.mxu0 %v7268
    %7287 = vmatpush.msra.mxu0 %v7267
    %7288 = vmatpush.msra.mxu0 %v7266
    %7289 = vmatpush.msra.mxu0 %v7265
    %7290 = vmatpush.msra.mxu0 %v7264
    %7291 = vmatpush.msra.mxu0 %v7263
    %7292 = vmatpush.msra.mxu0 %v7262
    %7293 = vmatmul.f32.gmra.mxu0 %v7275
    %v7294 = vpop.f32.mrf.mxu0
    %v7295 = vadd.f32 %v7272, %v7294
    %7296 = vdwg.mxu0
    %vm7297 = vcmask 517120
    %v7298 = vsel %vm7297, %v7295, -inf
    %7299 = vmax.xlane.f32.xlu0 %v7298
    %v7300 = vpop.xlane.xlu0 %7299
    %v7301 = vsub.f32 %v7295, %v7300
    %v7302 = vmul.f32 %v7301, 1.442695
    %v7303 = vpow.pop %v7302
    %v7304 = vsel %vm7297, %v7303, 0.0
    %7305 = vadd.xlane.f32.xlu0 %v7304
    %v7306 = vpop.xlane.xlu0 %7305
    %v7307 = vrcp.pop %v7306
    %v7308 = vmul.f32 %v7303, %v7307
    %v7309 = vmul.f32 %v7308, %v7224
    %v7310 = vadd.f32 %v7309, %v7224
    %7312 = vrot.lane.b32.xlu0 %v1828, 32
    %v7313 = vpop.permute.xlu0 %7312
    %7316 = vrot.lane.b32.xlu0 %v7310, 48
    %v7317 = vpop.permute.xlu0 %7316
    %v7319 = vsel %vm1155, %v1177, %v7313
    %vm7320 = vcmask 392192
    %v7321 = vsel %vm7320, %v7319, %v7317
    %v7322 = vld [vmem:[%s53] sm:$0xff]
    %v7323 = vld [vmem:[%s53 + $0x8] sm:$0xff]
    %v7324 = vld [vmem:[%s53 + $0x10] sm:$0xff]
    %v7325 = vld [vmem:[%s53 + $0x18] sm:$0xff]
    %v7326 = vld [vmem:[%s53 + $0x20] sm:$0xff]
    %v7327 = vld [vmem:[%s53 + $0x28] sm:$0xff]
    %v7328 = vld [vmem:[%s53 + $0x30] sm:$0xff]
    %v7329 = vld [vmem:[%s53 + $0x38] sm:$0xff]
    %v7330 = vld [vmem:[%s53 + $0x40] sm:$0xff]
    %v7331 = vld [vmem:[%s53 + $0x48] sm:$0xff]
    %v7332 = vld [vmem:[%s53 + $0x50] sm:$0xff]
    %v7333 = vld [vmem:[%s53 + $0x58] sm:$0xff]
    %v7334 = vld [vmem:[%s53 + $0x60] sm:$0xff]
    %v7335 = vld [vmem:[%s53 + $0x68] sm:$0xff]
    %v7336 = vld [vmem:[%s55] sm:$0x1]
    %v7338 = vperm.slane %v7336, 0
    %vm7340 = vcmask 916480
    %v7342 = vsel %vm7340, %v7321, 0
    %7344 = vmatpush.msra.mxu0 0.0
    %7345 = vmatpush.msra.mxu0 0.0
    %7346 = vmatpush.msra.mxu0 %v7335
    %7347 = vmatpush.msra.mxu0 %v7334
    %7348 = vmatpush.msra.mxu0 %v7333
    %7349 = vmatpush.msra.mxu0 %v7332
    %7350 = vmatpush.msra.mxu0 %v7331
    %7351 = vmatpush.msra.mxu0 %v7330
    %7352 = vmatpush.msra.mxu0 %v7329
    %7353 = vmatpush.msra.mxu0 %v7328
    %7354 = vmatpush.msra.mxu0 %v7327
    %7355 = vmatpush.msra.mxu0 %v7326
    %7356 = vmatpush.msra.mxu0 %v7325
    %7357 = vmatpush.msra.mxu0 %v7324
    %7358 = vmatpush.msra.mxu0 %v7323
    %7359 = vmatpush.msra.mxu0 %v7322
    %7360 = vmatmul.f32.gmra.mxu0 %v7342
    %v7361 = vpop.f32.mrf.mxu0
    %v7362 = vadd.f32 %v7338, %v7361
    %7363 = vdwg.mxu0
    %v7364 = vmax.f32 %v7362, 0.0
    %v7365 = vld [vmem:[%s73] sm:$0xff]
    %v7366 = vld [vmem:[%s73 + $0x8] sm:$0xff]
    %v7367 = vld [vmem:[%s73 + $0x10] sm:$0xff]
    %v7368 = vld [vmem:[%s73 + $0x18] sm:$0xff]
    %v7369 = vld [vmem:[%s75] sm:$0x1]
    %v7371 = vperm.slane %v7369, 0
    %v7374 = vsel %vm1155, %v1177, 0
    %7376 = vmatpush.msra.mxu0 0.0
    %7377 = vmatpush.msra.mxu0 0.0
    %7378 = vmatpush.msra.mxu0 0.0
    %7379 = vmatpush.msra.mxu0 0.0
    %7380 = vmatpush.msra.mxu0 0.0
    %7381 = vmatpush.msra.mxu0 0.0
    %7382 = vmatpush.msra.mxu0 0.0
    %7383 = vmatpush.msra.mxu0 0.0
    %7384 = vmatpush.msra.mxu0 0.0
    %7385 = vmatpush.msra.mxu0 0.0
    %7386 = vmatpush.msra.mxu0 0.0
    %7387 = vmatpush.msra.mxu0 0.0
    %7388 = vmatpush.msra.mxu0 %v7368
    %7389 = vmatpush.msra.mxu0 %v7367
    %7390 = vmatpush.msra.mxu0 %v7366
    %7391 = vmatpush.msra.mxu0 %v7365
    %7392 = vmatmul.f32.gmra.mxu0 %v7374
    %v7393 = vpop.f32.mrf.mxu0
    %v7394 = vadd.f32 %v7371, %v7393
    %7395 = vdwg.mxu0
    %v7396 = vmax.f32 %v7394, 0.0
    %v7397 = vld [vmem:[%s85] sm:$0xff]
    %v7398 = vld [vmem:[%s85 + $0x8] sm:$0xff]
    %v7399 = vld [vmem:[%s87] sm:$0x1]
    %v7401 = vperm.slane %v7399, 0
    %v7403 = vsel %vm1187, %v1828, 0
    %7405 = vmatpush.msra.mxu0 0.0
    %7406 = vmatpush.msra.mxu0 0.0
    %7407 = vmatpush.msra.mxu0 0.0
    %7408 = vmatpush.msra.mxu0 0.0
    %7409 = vmatpush.msra.mxu0 0.0
    %7410 = vmatpush.msra.mxu0 0.0
    %7411 = vmatpush.msra.mxu0 0.0
    %7412 = vmatpush.msra.mxu0 0.0
    %7413 = vmatpush.msra.mxu0 0.0
    %7414 = vmatpush.msra.mxu0 0.0
    %7415 = vmatpush.msra.mxu0 0.0
    %7416 = vmatpush.msra.mxu0 0.0
    %7417 = vmatpush.msra.mxu0 0.0
    %7418 = vmatpush.msra.mxu0 0.0
    %7419 = vmatpush.msra.mxu0 %v7398
    %7420 = vmatpush.msra.mxu0 %v7397
    %7421 = vmatmul.f32.gmra.mxu0 %v7403
    %v7422 = vpop.f32.mrf.mxu0
    %v7423 = vadd.f32 %v7401, %v7422
    %7424 = vdwg.mxu0
    %v7425 = vmax.f32 %v7423, 0.0
    %v7426 = vld [vmem:[%s97] sm:$0xff]
    %v7427 = vld [vmem:[%s97 + $0x8] sm:$0xff]
    %v7428 = vld [vmem:[%s97 + $0x10] sm:$0xff]
    %v7429 = vld [vmem:[%s97 + $0x18] sm:$0xff]
    %v7430 = vld [vmem:[%s97 + $0x20] sm:$0xff]
    %v7431 = vld [vmem:[%s97 + $0x28] sm:$0xff]
    %v7432 = vld [vmem:[%s97 + $0x30] sm:$0xff]
    %v7433 = vld [vmem:[%s97 + $0x38] sm:$0xff]
    %v7434 = vld [vmem:[%s99] sm:$0x1]
    %v7436 = vperm.slane %v7434, 0
    %v7438 = vsel %vm5150, %v7310, 0
    %7440 = vmatpush.msra.mxu0 0.0
    %7441 = vmatpush.msra.mxu0 0.0
    %7442 = vmatpush.msra.mxu0 0.0
    %7443 = vmatpush.msra.mxu0 0.0
    %7444 = vmatpush.msra.mxu0 0.0
    %7445 = vmatpush.msra.mxu0 0.0
    %7446 = vmatpush.msra.mxu0 0.0
    %7447 = vmatpush.msra.mxu0 0.0
    %7448 = vmatpush.msra.mxu0 %v7433
    %7449 = vmatpush.msra.mxu0 %v7432
    %7450 = vmatpush.msra.mxu0 %v7431
    %7451 = vmatpush.msra.mxu0 %v7430
    %7452 = vmatpush.msra.mxu0 %v7429
    %7453 = vmatpush.msra.mxu0 %v7428
    %7454 = vmatpush.msra.mxu0 %v7427
    %7455 = vmatpush.msra.mxu0 %v7426
    %7456 = vmatmul.f32.gmra.mxu0 %v7438
    %v7457 = vpop.f32.mrf.mxu0
    %v7458 = vadd.f32 %v7436, %v7457
    %7459 = vdwg.mxu0
    %v7460 = vmax.f32 %v7458, 0.0
    %v7461 = vld [vmem:[%s57] sm:$0xff]
    %v7462 = vld [vmem:[%s57 + $0x8] sm:$0xff]
    %v7463 = vld [vmem:[%s57 + $0x10] sm:$0xff]
    %v7464 = vld [vmem:[%s57 + $0x18] sm:$0xff]
    %v7465 = vld [vmem:[%s57 + $0x20] sm:$0xff]
    %v7466 = vld [vmem:[%s57 + $0x28] sm:$0xff]
    %v7467 = vld [vmem:[%s57 + $0x30] sm:$0xff]
    %v7468 = vld [vmem:[%s57 + $0x38] sm:$0xff]
    %v7469 = vld [vmem:[%s59] sm:$0x1]
    %v7471 = vperm.slane %v7469, 0
    %v7474 = vsel %vm5150, %v7364, 0
    %7476 = vmatpush.msra.mxu0 0.0
    %7477 = vmatpush.msra.mxu0 0.0
    %7478 = vmatpush.msra.mxu0 0.0
    %7479 = vmatpush.msra.mxu0 0.0
    %7480 = vmatpush.msra.mxu0 0.0
    %7481 = vmatpush.msra.mxu0 0.0
    %7482 = vmatpush.msra.mxu0 0.0
    %7483 = vmatpush.msra.mxu0 0.0
    %7484 = vmatpush.msra.mxu0 %v7468
    %7485 = vmatpush.msra.mxu0 %v7467
    %7486 = vmatpush.msra.mxu0 %v7466
    %7487 = vmatpush.msra.mxu0 %v7465
    %7488 = vmatpush.msra.mxu0 %v7464
    %7489 = vmatpush.msra.mxu0 %v7463
    %7490 = vmatpush.msra.mxu0 %v7462
    %7491 = vmatpush.msra.mxu0 %v7461
    %7492 = vmatmul.f32.gmra.mxu0 %v7474
    %v7493 = vpop.f32.mrf.mxu0
    %v7494 = vadd.f32 %v7471, %v7493
    %7495 = vdwg.mxu0
    %v7496 = vmax.f32 %v7494, 0.0
    %7497 = vrot.lane.b32.xlu0 %v1177, 64
    %v7498 = vpop.permute.xlu0 %7497
    %7500 = vrot.lane.b32.xlu0 %v1828, 96
    %v7501 = vpop.permute.xlu0 %7500
    %7503 = vrot.lane.b32.xlu0 %v7310, 112
    %v7504 = vpop.permute.xlu0 %7503
    %v7506 = vsel %vm5150, %v7496, %v7498
    %vm7507 = vcmask 785408
    %v7508 = vsel %vm7507, %v7506, %v7501
    %v7509 = vsel %vm7340, %v7508, %v7504
    %v7510 = vld [vmem:[%s61] sm:$0xff]
    %v7511 = vld [vmem:[%s61 + $0x8] sm:$0xff]
    %v7512 = vld [vmem:[%s61 + $0x10] sm:$0xff]
    %v7513 = vld [vmem:[%s61 + $0x18] sm:$0xff]
    %v7514 = vld [vmem:[%s61 + $0x20] sm:$0xff]
    %v7515 = vld [vmem:[%s61 + $0x28] sm:$0xff]
    %v7516 = vld [vmem:[%s61 + $0x30] sm:$0xff]
    %v7517 = vld [vmem:[%s61 + $0x38] sm:$0xff]
    %v7518 = vld [vmem:[%s61 + $0x40] sm:$0xff]
    %v7519 = vld [vmem:[%s61 + $0x48] sm:$0xff]
    %v7520 = vld [vmem:[%s61 + $0x50] sm:$0xff]
    %v7521 = vld [vmem:[%s61 + $0x58] sm:$0xff]
    %v7522 = vld [vmem:[%s61 + $0x60] sm:$0xff]
    %v7523 = vld [vmem:[%s61 + $0x68] sm:$0xff]
    %v7524 = vld [vmem:[%s61 + $0x70] sm:$0xff]
    %v7525 = vld [vmem:[%s61 + $0x78] sm:$0xff]
    %v7526 = vld [vmem:[%s61 + $0x80] sm:$0xff]
    %v7527 = vld [vmem:[%s61 + $0x88] sm:$0xff]
    %v7528 = vld [vmem:[%s61 + $0x90] sm:$0xff]
    %v7529 = vld [vmem:[%s61 + $0x98] sm:$0xff]
    %v7530 = vld [vmem:[%s61 + $0xa0] sm:$0xff]
    %v7531 = vld [vmem:[%s61 + $0xa8] sm:$0xff]
    %v7532 = vld [vmem:[%s63] sm:$0x1]
    %v7534 = vperm.slane %v7532, 0
    %v7536 = vsel %vm7320, %v7504, 0
    %7538 = vmatpush.msra.mxu0 %v7525
    %7539 = vmatpush.msra.mxu0 %v7524
    %7540 = vmatpush.msra.mxu0 %v7523
    %7541 = vmatpush.msra.mxu0 %v7522
    %7542 = vmatpush.msra.mxu0 %v7521
    %7543 = vmatpush.msra.mxu0 %v7520
    %7544 = vmatpush.msra.mxu0 %v7519
    %7545 = vmatpush.msra.mxu0 %v7518
    %7546 = vmatpush.msra.mxu0 %v7517
    %7547 = vmatpush.msra.mxu0 %v7516
    %7548 = vmatpush.msra.mxu0 %v7515
    %7549 = vmatpush.msra.mxu0 %v7514
    %7550 = vmatpush.msra.mxu0 %v7513
    %7551 = vmatpush.msra.mxu0 %v7512
    %7552 = vmatpush.msra.mxu0 %v7511
    %7553 = vmatpush.msra.mxu0 %v7510
    %7554 = vmatmul.f32.gmra.mxu0 %v7509
    %v7555 = vpop.f32.mrf.mxu0
    %v7556 = vadd.f32 %v7534, %v7555
    %7557 = vdwg.mxu0
    %7558 = vmatpush.msra.mxu0 0.0
    %7559 = vmatpush.msra.mxu0 0.0
    %7560 = vmatpush.msra.mxu0 0.0
    %7561 = vmatpush.msra.mxu0 0.0
    %7562 = vmatpush.msra.mxu0 0.0
    %7563 = vmatpush.msra.mxu0 0.0
    %7564 = vmatpush.msra.mxu0 0.0
    %7565 = vmatpush.msra.mxu0 0.0
    %7566 = vmatpush.msra.mxu0 0.0
    %7567 = vmatpush.msra.mxu0 0.0
    %7568 = vmatpush.msra.mxu0 %v7531
    %7569 = vmatpush.msra.mxu0 %v7530
    %7570 = vmatpush.msra.mxu0 %v7529
    %7571 = vmatpush.msra.mxu0 %v7528
    %7572 = vmatpush.msra.mxu0 %v7527
    %7573 = vmatpush.msra.mxu0 %v7526
    %7574 = vmatmul.f32.gmra.mxu0 %v7536
    %v7575 = vpop.f32.mrf.mxu0
    %v7576 = vadd.f32 %v7556, %v7575
    %7577 = vdwg.mxu0
    %v7578 = vmax.f32 %v7576, 0.0
    %v7579 = vld [vmem:[%s65] sm:$0xff]
    %v7580 = vld [vmem:[%s65 + $0x8] sm:$0xff]
    %v7581 = vld [vmem:[%s65 + $0x10] sm:$0xff]
    %v7582 = vld [vmem:[%s65 + $0x18] sm:$0xff]
    %v7583 = vld [vmem:[%s65 + $0x20] sm:$0xff]
    %v7584 = vld [vmem:[%s65 + $0x28] sm:$0xff]
    %v7585 = vld [vmem:[%s65 + $0x30] sm:$0xff]
    %v7586 = vld [vmem:[%s65 + $0x38] sm:$0xff]
    %v7587 = vld [vmem:[%s67] sm:$0x1]
    %v7589 = vperm.slane %v7587, 0
    %v7592 = vsel %vm5150, %v7578, 0
    %7594 = vmatpush.msra.mxu0 0.0
    %7595 = vmatpush.msra.mxu0 0.0
    %7596 = vmatpush.msra.mxu0 0.0
    %7597 = vmatpush.msra.mxu0 0.0
    %7598 = vmatpush.msra.mxu0 0.0
    %7599 = vmatpush.msra.mxu0 0.0
    %7600 = vmatpush.msra.mxu0 0.0
    %7601 = vmatpush.msra.mxu0 0.0
    %7602 = vmatpush.msra.mxu0 %v7586
    %7603 = vmatpush.msra.mxu0 %v7585
    %7604 = vmatpush.msra.mxu0 %v7584
    %7605 = vmatpush.msra.mxu0 %v7583
    %7606 = vmatpush.msra.mxu0 %v7582
    %7607 = vmatpush.msra.mxu0 %v7581
    %7608 = vmatpush.msra.mxu0 %v7580
    %7609 = vmatpush.msra.mxu0 %v7579
    %7610 = vmatmul.f32.gmra.mxu0 %v7592
    %v7611 = vpop.f32.mrf.mxu0
    %v7612 = vadd.f32 %v7589, %v7611
    %7613 = vdwg.mxu0
    %v7614 = vmax.f32 %v7612, 0.0
    %v7615 = vld [vmem:[%s69] sm:$0xff]
    %v7616 = vld [vmem:[%s69 + $0x8] sm:$0xff]
    %v7617 = vld [vmem:[%s69 + $0x10] sm:$0xff]
    %v7618 = vld [vmem:[%s69 + $0x18] sm:$0xff]
    %v7619 = vld [vmem:[%s69 + $0x20] sm:$0xff]
    %v7620 = vld [vmem:[%s69 + $0x28] sm:$0xff]
    %v7621 = vld [vmem:[%s69 + $0x30] sm:$0xff]
    %v7622 = vld [vmem:[%s69 + $0x38] sm:$0xff]
    %v7623 = vld [vmem:[#allocation5] sm:$0x1]
    %v7625 = vperm.slane %v7623, 0
    %v7628 = vsel %vm5150, %v7614, 0
    %7630 = vmatpush.msra.mxu0 0.0
    %7631 = vmatpush.msra.mxu0 0.0
    %7632 = vmatpush.msra.mxu0 0.0
    %7633 = vmatpush.msra.mxu0 0.0
    %7634 = vmatpush.msra.mxu0 0.0
    %7635 = vmatpush.msra.mxu0 0.0
    %7636 = vmatpush.msra.mxu0 0.0
    %7637 = vmatpush.msra.mxu0 0.0
    %7638 = vmatpush.msra.mxu0 %v7622
    %7639 = vmatpush.msra.mxu0 %v7621
    %7640 = vmatpush.msra.mxu0 %v7620
    %7641 = vmatpush.msra.mxu0 %v7619
    %7642 = vmatpush.msra.mxu0 %v7618
    %7643 = vmatpush.msra.mxu0 %v7617
    %7644 = vmatpush.msra.mxu0 %v7616
    %7645 = vmatpush.msra.mxu0 %v7615
    %7646 = vmatmul.f32.gmra.mxu0 %v7628
    %v7647 = vpop.f32.mrf.mxu0
    %v7648 = vadd.f32 %v7625, %v7647
    %7649 = vdwg.mxu0
    %v7650 = vld [vmem:[%s77] sm:$0xff]
    %v7651 = vld [vmem:[%s77 + $0x8] sm:$0xff]
    %v7652 = vld [vmem:[%s77 + $0x10] sm:$0xff]
    %v7653 = vld [vmem:[%s77 + $0x18] sm:$0xff]
    %v7654 = vld [vmem:[%s79] sm:$0x1]
    %v7656 = vperm.slane %v7654, 0
    %v7659 = vsel %vm1155, %v7396, 0
    %7661 = vmatpush.msra.mxu0 0.0
    %7662 = vmatpush.msra.mxu0 0.0
    %7663 = vmatpush.msra.mxu0 0.0
    %7664 = vmatpush.msra.mxu0 0.0
    %7665 = vmatpush.msra.mxu0 0.0
    %7666 = vmatpush.msra.mxu0 0.0
    %7667 = vmatpush.msra.mxu0 0.0
    %7668 = vmatpush.msra.mxu0 0.0
    %7669 = vmatpush.msra.mxu0 0.0
    %7670 = vmatpush.msra.mxu0 0.0
    %7671 = vmatpush.msra.mxu0 0.0
    %7672 = vmatpush.msra.mxu0 0.0
    %7673 = vmatpush.msra.mxu0 %v7653
    %7674 = vmatpush.msra.mxu0 %v7652
    %7675 = vmatpush.msra.mxu0 %v7651
    %7676 = vmatpush.msra.mxu0 %v7650
    %7677 = vmatmul.f32.gmra.mxu0 %v7659
    %v7678 = vpop.f32.mrf.mxu0
    %v7679 = vadd.f32 %v7656, %v7678
    %7680 = vdwg.mxu0
    %v7681 = vmax.f32 %v7679, 0.0
    %v7682 = vld [vmem:[%s81] sm:$0xff]
    %v7683 = vld [vmem:[%s81 + $0x8] sm:$0xff]
    %v7684 = vld [vmem:[%s81 + $0x10] sm:$0xff]
    %v7685 = vld [vmem:[%s81 + $0x18] sm:$0xff]
    %v7686 = vld [vmem:[#allocation6] sm:$0x1]
    %v7688 = vperm.slane %v7686, 0
    %v7691 = vsel %vm1155, %v7681, 0
    %7693 = vmatpush.msra.mxu0 0.0
    %7694 = vmatpush.msra.mxu0 0.0
    %7695 = vmatpush.msra.mxu0 0.0
    %7696 = vmatpush.msra.mxu0 0.0
    %7697 = vmatpush.msra.mxu0 0.0
    %7698 = vmatpush.msra.mxu0 0.0
    %7699 = vmatpush.msra.mxu0 0.0
    %7700 = vmatpush.msra.mxu0 0.0
    %7701 = vmatpush.msra.mxu0 0.0
    %7702 = vmatpush.msra.mxu0 0.0
    %7703 = vmatpush.msra.mxu0 0.0
    %7704 = vmatpush.msra.mxu0 0.0
    %7705 = vmatpush.msra.mxu0 %v7685
    %7706 = vmatpush.msra.mxu0 %v7684
    %7707 = vmatpush.msra.mxu0 %v7683
    %7708 = vmatpush.msra.mxu0 %v7682
    %7709 = vmatmul.f32.gmra.mxu0 %v7691
    %v7710 = vpop.f32.mrf.mxu0
    %v7711 = vadd.f32 %v7688, %v7710
    %7712 = vdwg.mxu0
    %v7713 = vld [vmem:[%s89] sm:$0xff]
    %v7714 = vld [vmem:[%s89 + $0x8] sm:$0xff]
    %v7715 = vld [vmem:[%s91] sm:$0x1]
    %v7717 = vperm.slane %v7715, 0
    %v7720 = vsel %vm1187, %v7425, 0
    %7722 = vmatpush.msra.mxu0 0.0
    %7723 = vmatpush.msra.mxu0 0.0
    %7724 = vmatpush.msra.mxu0 0.0
    %7725 = vmatpush.msra.mxu0 0.0
    %7726 = vmatpush.msra.mxu0 0.0
    %7727 = vmatpush.msra.mxu0 0.0
    %7728 = vmatpush.msra.mxu0 0.0
    %7729 = vmatpush.msra.mxu0 0.0
    %7730 = vmatpush.msra.mxu0 0.0
    %7731 = vmatpush.msra.mxu0 0.0
    %7732 = vmatpush.msra.mxu0 0.0
    %7733 = vmatpush.msra.mxu0 0.0
    %7734 = vmatpush.msra.mxu0 0.0
    %7735 = vmatpush.msra.mxu0 0.0
    %7736 = vmatpush.msra.mxu0 %v7714
    %7737 = vmatpush.msra.mxu0 %v7713
    %7738 = vmatmul.f32.gmra.mxu0 %v7720
    %v7739 = vpop.f32.mrf.mxu0
    %v7740 = vadd.f32 %v7717, %v7739
    %7741 = vdwg.mxu0
    %v7742 = vmax.f32 %v7740, 0.0
    %v7743 = vld [vmem:[%s93] sm:$0xff]
    %v7744 = vld [vmem:[%s93 + $0x8] sm:$0xff]
    %v7745 = vld [vmem:[#allocation7] sm:$0x1]
    %v7747 = vperm.slane %v7745, 0
    %v7750 = vsel %vm1187, %v7742, 0
    %7752 = vmatpush.msra.mxu0 0.0
    %7753 = vmatpush.msra.mxu0 0.0
    %7754 = vmatpush.msra.mxu0 0.0
    %7755 = vmatpush.msra.mxu0 0.0
    %7756 = vmatpush.msra.mxu0 0.0
    %7757 = vmatpush.msra.mxu0 0.0
    %7758 = vmatpush.msra.mxu0 0.0
    %7759 = vmatpush.msra.mxu0 0.0
    %7760 = vmatpush.msra.mxu0 0.0
    %7761 = vmatpush.msra.mxu0 0.0
    %7762 = vmatpush.msra.mxu0 0.0
    %7763 = vmatpush.msra.mxu0 0.0
    %7764 = vmatpush.msra.mxu0 0.0
    %7765 = vmatpush.msra.mxu0 0.0
    %7766 = vmatpush.msra.mxu0 %v7744
    %7767 = vmatpush.msra.mxu0 %v7743
    %7768 = vmatmul.f32.gmra.mxu0 %v7750
    %v7769 = vpop.f32.mrf.mxu0
    %v7770 = vadd.f32 %v7747, %v7769
    %7771 = vdwg.mxu0
    %v7772 = vld [vmem:[%s101] sm:$0xff]
    %v7773 = vld [vmem:[%s101 + $0x8] sm:$0xff]
    %v7774 = vld [vmem:[%s101 + $0x10] sm:$0xff]
    %v7775 = vld [vmem:[%s101 + $0x18] sm:$0xff]
    %v7776 = vld [vmem:[#allocation14] sm:$0x1]
    %v7778 = vperm.slane %v7776, 0
    %v7781 = vsel %vm1155, %v7460, 0
    %7783 = vmatpush.msra.mxu0 0.0
    %7784 = vmatpush.msra.mxu0 0.0
    %7785 = vmatpush.msra.mxu0 0.0
    %7786 = vmatpush.msra.mxu0 0.0
    %7787 = vmatpush.msra.mxu0 0.0
    %7788 = vmatpush.msra.mxu0 0.0
    %7789 = vmatpush.msra.mxu0 0.0
    %7790 = vmatpush.msra.mxu0 0.0
    %7791 = vmatpush.msra.mxu0 0.0
    %7792 = vmatpush.msra.mxu0 0.0
    %7793 = vmatpush.msra.mxu0 0.0
    %7794 = vmatpush.msra.mxu0 0.0
    %7795 = vmatpush.msra.mxu0 %v7775
    %7796 = vmatpush.msra.mxu0 %v7774
    %7797 = vmatpush.msra.mxu0 %v7773
    %7798 = vmatpush.msra.mxu0 %v7772
    %7799 = vmatmul.f32.gmra.mxu0 %v7781
    %v7800 = vpop.f32.mrf.mxu0
    %v7801 = vadd.f32 %v7778, %v7800
    %7802 = vdwg.mxu0
    %v7803 = vmax.f32 %v7801, 0.0
    %v7804 = vld [vmem:[%s105] sm:$0xff]
    %v7805 = vld [vmem:[%s105 + $0x8] sm:$0xff]
    %v7806 = vld [vmem:[%s105 + $0x10] sm:$0xff]
    %v7807 = vld [vmem:[%s105 + $0x18] sm:$0xff]
    %v7808 = vld [vmem:[#allocation8] sm:$0x1]
    %v7810 = vperm.slane %v7808, 0
    %v7813 = vsel %vm1155, %v7803, 0
    %7815 = vmatpush.msra.mxu0 0.0
    %7816 = vmatpush.msra.mxu0 0.0
    %7817 = vmatpush.msra.mxu0 0.0
    %7818 = vmatpush.msra.mxu0 0.0
    %7819 = vmatpush.msra.mxu0 0.0
    %7820 = vmatpush.msra.mxu0 0.0
    %7821 = vmatpush.msra.mxu0 0.0
    %7822 = vmatpush.msra.mxu0 0.0
    %7823 = vmatpush.msra.mxu0 0.0
    %7824 = vmatpush.msra.mxu0 0.0
    %7825 = vmatpush.msra.mxu0 0.0
    %7826 = vmatpush.msra.mxu0 0.0
    %7827 = vmatpush.msra.mxu0 %v7807
    %7828 = vmatpush.msra.mxu0 %v7806
    %7829 = vmatpush.msra.mxu0 %v7805
    %7830 = vmatpush.msra.mxu0 %v7804
    %7831 = vmatmul.f32.gmra.mxu0 %v7813
    %v7832 = vpop.f32.mrf.mxu0
    %v7833 = vadd.f32 %v7810, %v7832
    %7834 = vdwg.mxu0
    %7836 = vrot.lane.b32.xlu0 %v7711, 1
    %v7837 = vpop.permute.xlu0 %7836
    %7840 = vrot.lane.b32.xlu0 %v7770, 2
    %v7841 = vpop.permute.xlu0 %7840
    %7844 = vrot.lane.b32.xlu0 %v7833, 3
    %v7845 = vpop.permute.xlu0 %7844
    %7847 = vrot.lane.b32.xlu0 %v7396, 4
    %v7848 = vpop.permute.xlu0 %7847
    %7850 = vrot.lane.b32.xlu0 %v7425, 36
    %v7851 = vpop.permute.xlu0 %7850
    %7853 = vrot.lane.b32.xlu0 %v7460, 52
    %v7854 = vpop.permute.xlu0 %7853
    %7856 = vrot.lane.b32.xlu0 %v7578, 84
    %v7857 = vpop.permute.xlu0 %7856
    %vm7859 = vcmask 7168
    %v7860 = vsel %vm7859, %v7648, %v7837
    %vm7861 = vcmask 15360
    %v7862 = vsel %vm7861, %v7860, %v7841
    %vm7863 = vcmask 23552
    %v7864 = vsel %vm7863, %v7862, %v7845
    %vm7865 = vcmask 31744
    %v7866 = vsel %vm7865, %v7864, %v7848
    %vm7867 = vcmask 293888
    %v7868 = vsel %vm7867, %v7866, %v7851
    %vm7869 = vcmask 424960
    %v7870 = vsel %vm7869, %v7868, %v7854
    %vm7871 = vcmask 687104
    %v7872 = vsel %vm7871, %v7870, %v7857
    %vm7873 = vcmask 162816
    %v7874 = vsel %vm7873, %v7857, 0.0
    %v7877 = vrot.slane %v7874, 6
    %vm7878 = vcmask 1041408
    %v7879 = vsel %vm7878, %v7872, %v7877
    %7881 = vst [vmem:[%s109] sm:$0xf] %v7879
    // Predicated region
    $region260: #{self_mm_forward.1} parent=1 // pred_check
      _
    $region261: #{self_mm_forward.1} parent=1 // pred_check_branch
      %7883 = sbr.rel (0) target = $region263
    $region262: #{self_mm_forward.1} parent=1 // pred_region
      _
    $region263: #{self_mm_forward.1} parent=1 // pred_fallthru
      _
    // Predicated region
    $region264: #{self_mm_forward.1} parent=1 // pred_check
      _
    $region265: #{self_mm_forward.1} parent=1 // pred_check_branch
      %7885 = sbr.rel (0) target = $region267
    $region266: #{self_mm_forward.1} parent=1 // pred_region
      _
    $region267: #{self_mm_forward.1} parent=1 // pred_fallthru
      _
    %7886 = vsyncpa [#allocation10], 1
    %7887 = vsyncpa [#allocation11], 1
    %7888 = vsyncpa [#allocation13], 1
  %7889 = vsyncmov [#allocation4]
  %s7890 = vpop.sfrf %7889
  %p7891 = scmp.eq.s32.totalorder %s7890, 0
  %p7892 = pneg %p7891
  %7894 = shalt.err (%p7892)
  %s7895 = scalar_lea.sflag [#allocation4], 1
  %7896 = vsyncmov %s7895
  %s7897 = vpop.sfrf %7896
  %p7898 = scmp.eq.s32.totalorder %s7897, 0
  %p7899 = pneg %p7898
  %7901 = shalt.err (%p7899)

</llo_original>
